<compile_context>
chip_gen: v5e
topology: v5e:2x2
jax: 0.10.0
libtpu: 0.0.40
codegen_flags: <defaults>
</compile_context>

<pallas_src>
import functools
import math

import jax
import jax.numpy as jnp
from jax import lax
from jax.experimental import pallas as pl
from jax.experimental.pallas import tpu as pltpu


MM_DTYPE = jnp.bfloat16   # MXU operand dtype (accumulation stays f32)


def _mm(w, x):
    """Channel-major matmul  yT = W @ xT  with bf16 operands, f32 accumulation."""
    return jnp.dot(w.astype(MM_DTYPE), x.astype(MM_DTYPE),
                   preferred_element_type=jnp.float32)


def _layernorm_cm(xT, g, b, eps):
    """LayerNorm over channels for channel-major (C, S) data; g, b are (C, 1)."""
    mu = jnp.mean(xT, axis=0, keepdims=True)
    var = jnp.mean((xT - mu) ** 2, axis=0, keepdims=True)
    return (xT - mu) * lax.rsqrt(var + eps) * g + b


def _heads_attention(qT, kT, vT, n_heads, head_dim):
    """Per-token attention over the heads axis (literal xformers layout).

    qT/kT/vT: (D, S) channel-major.  Every op works on full-lane (hd, S) or
    (1, S) strips.  Returns hT: (D, S).
    """
    scale = 1.0 / math.sqrt(head_dim)
    head_outs = []
    for i in range(n_heads):
        qi = qT[i * head_dim:(i + 1) * head_dim, :]                    # (hd, S)
        scores = [jnp.sum(qi * kT[j * head_dim:(j + 1) * head_dim, :],
                          axis=0, keepdims=True) * scale               # (1, S)
                  for j in range(n_heads)]
        m = scores[0]
        for s in scores[1:]:
            m = jnp.maximum(m, s)
        exps = [jnp.exp(s - m) for s in scores]
        den = exps[0]
        for e in exps[1:]:
            den = den + e
        acc = exps[0] * vT[:head_dim, :]
        for j in range(1, n_heads):
            acc = acc + exps[j] * vT[j * head_dim:(j + 1) * head_dim, :]
        head_outs.append(acc / den)
    return jnp.concatenate(head_outs, axis=0)                          # (D, S)


def _spatial_transformer_kernel(
        x_ref, line_ref,
        line_w_ref, line_b_ref, gn_g_ref, gn_b_ref, pin_w_ref, pin_b_ref,
        ln1_g_ref, ln1_b_ref, qkv1_w_ref, o1_w_ref, o1_b_ref,
        ln2_g_ref, ln2_b_ref, q2_w_ref, kv2_w_ref, o2_w_ref, o2_b_ref,
        ln3_g_ref, ln3_b_ref, gp_w_ref, gp_b_ref, fo_w_ref, fo_b_ref,
        po_w_ref, po_b_ref,
        out_ref,
        *, n_heads, head_dim, seq, gn_eps, ln_eps):
    d = n_heads * head_dim
    half = seq // 2

    xT = x_ref[0].astype(jnp.float32)          # (C, S)   channel-major
    lineT = line_ref[0].astype(jnp.float32)    # (Clp, S)

    # constants for the literal torch `.chunk(2, dim=1)` kv re-grouping
    # spread[t, s] = 1 iff t == s // 2  ->  (spread-matmul) column s pulls
    # column s//2; lane parity then selects the first / second D-row block.
    rr = lax.broadcasted_iota(jnp.int32, (half, seq), 0)
    cc = lax.broadcasted_iota(jnp.int32, (half, seq), 1)
    spread = jnp.logical_or(cc == 2 * rr, cc == 2 * rr + 1).astype(jnp.float32)
    even = (lax.broadcasted_iota(jnp.int32, (d, seq), 1) & 1) == 0

    def chunk_interleave(kvpT):                # kvpT: (2D, S)
        sk = jnp.dot(kvpT[:, :half], spread, preferred_element_type=jnp.float32)
        sv = jnp.dot(kvpT[:, half:], spread, preferred_element_type=jnp.float32)
        kT = jnp.where(even, sk[:d, :], sk[d:, :])
        vT = jnp.where(even, sv[:d, :], sv[d:, :])
        return kT, vT

    # ---- Norm(x): per-channel GroupNorm over the S tokens -------------------
    mu = jnp.mean(xT, axis=1, keepdims=True)
    var = jnp.mean((xT - mu) ** 2, axis=1, keepdims=True)
    xg = (xT - mu) * lax.rsqrt(var + gn_eps) * gn_g_ref[...] + gn_b_ref[...]

    # ---- proj_in / line 1x1 convs --------------------------------------------
    h = _mm(pin_w_ref[...], xg) + pin_b_ref[...]         # (C, S)
    lT = _mm(line_w_ref[...], lineT) + line_b_ref[...]   # (C, S)

    # ---- cross_1: self attention (fused q+kv projection) ---------------------
    xn = _layernorm_cm(h, ln1_g_ref[...], ln1_b_ref[...], ln_eps)
    qkv = _mm(qkv1_w_ref[...], xn)                       # (3D, S)
    kT, vT = chunk_interleave(qkv[d:, :])
    attn = _heads_attention(qkv[:d, :], kT, vT, n_heads, head_dim)
    h = _mm(o1_w_ref[...], attn) + o1_b_ref[...] + h

    # ---- cross_2: cross attention over the (raw) line tokens -----------------
    xn = _layernorm_cm(h, ln2_g_ref[...], ln2_b_ref[...], ln_eps)
    qT = _mm(q2_w_ref[...], xn)
    kT, vT = chunk_interleave(_mm(kv2_w_ref[...], lT))
    attn = _heads_attention(qT, kT, vT, n_heads, head_dim)
    h = _mm(o2_w_ref[...], attn) + o2_b_ref[...] + h

    # ---- GeGLU FFN ------------------------------------------------------------
    xn = _layernorm_cm(h, ln3_g_ref[...], ln3_b_ref[...], ln_eps)
    pT = _mm(gp_w_ref[...], xn) + gp_b_ref[...]          # (8C, S)
    dmid = gp_w_ref.shape[0] // 2
    a, gate = pT[:dmid, :], pT[dmid:, :]
    gelu_gate = 0.5 * gate * (1.0 + lax.erf(gate * (1.0 / math.sqrt(2.0))))
    h = _mm(fo_w_ref[...], a * gelu_gate) + fo_b_ref[...] + h

    # ---- proj_out + input residual --------------------------------------------
    y = _mm(po_w_ref[...], h) + po_b_ref[...] + xT
    out_ref[0] = y.astype(out_ref.dtype)


def spatial_transformer(params, x, line, n_heads, head_dim):
    B, C, H, W = x.shape
    S = H * W
    Cl = line.shape[1]

    # F.avg_pool2d(line, (Hl//H, Wl//W))  -- exact division, no padding.
    kh, kw = line.shape[2] // H, line.shape[3] // W
    line_p = line.reshape(B, Cl, H, kh, W, kw).mean(axis=(3, 5))     # (B,Cl,H,W)

    # channel-major (C, S) views: free reshapes of NCHW, no transposes.
    x_cm = x.reshape(B, C, S)
    line_cm = line_p.reshape(B, Cl, S)

    # pad the tiny line-channel axis up to a sublane multiple (zeros are inert).
    clp = ((Cl + 7) // 8) * 8
    line_w = params['line_w']
    if clp != Cl:
        line_cm = jnp.concatenate(
            [line_cm, jnp.zeros((B, clp - Cl, S), line_cm.dtype)], axis=1)
        line_w = jnp.concatenate(
            [line_w, jnp.zeros((C, clp - Cl), line_w.dtype)], axis=1)

    c1, c2 = params['cross1'], params['cross2']
    w16 = lambda a: a.astype(MM_DTYPE)                 # MXU operands in bf16
    col = lambda a: a.reshape(-1, 1).astype(jnp.float32)

    weight_args = [
        w16(line_w), col(params['line_b']),
        col(params['gn_g']), col(params['gn_b']),
        w16(params['pin_w']), col(params['pin_b']),
        col(c1['ln_g']), col(c1['ln_b']),
        w16(jnp.concatenate([c1['q_w'], c1['kv_w']], axis=0)),   # fused q+kv
        w16(c1['out_w']), col(c1['out_b']),
        col(c2['ln_g']), col(c2['ln_b']),
        w16(c2['q_w']), w16(c2['kv_w']), w16(c2['out_w']), col(c2['out_b']),
        col(params['geglu_ln_g']), col(params['geglu_ln_b']),
        w16(params['geglu_w']), col(params['geglu_b']),
        w16(params['ffn_out_w']), col(params['ffn_out_b']),
        w16(params['pout_w']), col(params['pout_b']),
    ]

    kernel = functools.partial(
        _spatial_transformer_kernel, n_heads=n_heads, head_dim=head_dim,
        seq=S, gn_eps=1e-6, ln_eps=1e-5)

    in_specs = [pl.BlockSpec((1, C, S), lambda b: (b, 0, 0)),
                pl.BlockSpec((1, clp, S), lambda b: (b, 0, 0))]
    in_specs += [pl.BlockSpec(a.shape, lambda b: (0, 0)) for a in weight_args]

    y = pl.pallas_call(
        kernel,
        out_shape=jax.ShapeDtypeStruct((B, C, S), jnp.float32),
        grid=(B,),
        in_specs=in_specs,
        out_specs=pl.BlockSpec((1, C, S), lambda b: (b, 0, 0)),
        compiler_params=pltpu.CompilerParams(
            dimension_semantics=("parallel",)),
    )(x_cm, line_cm, *weight_args)

    return y.reshape(B, C, H, W)


# ----------------------------------------------------------------------------
# Deterministic parameter init.  All matmul weights are stored in PyTorch
# (out_features, in_features) layout, which is exactly the W of yT = W @ xT.
# ----------------------------------------------------------------------------
def init_params(key, channels, n_heads, head_dim):
    D = n_heads * head_dim
    ks = jax.random.split(key, 12)

    def w(k, shape, scale=0.05):
        return jax.random.normal(k, shape, jnp.float32) * scale

    def cross(k):
        kk = jax.random.split(k, 4)
        return dict(ln_g=jnp.ones((channels,), jnp.float32),
                    ln_b=jnp.zeros((channels,), jnp.float32),
                    q_w=w(kk[0], (D, channels)),
                    kv_w=w(kk[1], (2 * D, channels)),
                    out_w=w(kk[2], (channels, D)),
                    out_b=w(kk[3], (channels,)))

    return dict(
        line_w=w(ks[0], (channels, 4)), line_b=w(ks[1], (channels,)),
        gn_g=jnp.ones((channels,), jnp.float32),
        gn_b=jnp.zeros((channels,), jnp.float32),
        pin_w=w(ks[2], (channels, channels)), pin_b=w(ks[3], (channels,)),
        cross1=cross(ks[4]), cross2=cross(ks[5]),
        geglu_ln_g=jnp.ones((channels,), jnp.float32),
        geglu_ln_b=jnp.zeros((channels,), jnp.float32),
        geglu_w=w(ks[6], (8 * channels, channels)),
        geglu_b=w(ks[7], (8 * channels,)),
        ffn_out_w=w(ks[8], (channels, 4 * channels)),
        ffn_out_b=w(ks[9], (channels,)),
        pout_w=w(ks[10], (channels, channels)), pout_b=w(ks[11], (channels,)),
    )


if __name__ == "__main__":
    channels, n_heads, head_dim = 32, 4, 8
    B, H, W = 2, 16, 16

    key = jax.random.PRNGKey(0)
    kp, kx, kl = jax.random.split(key, 3)
    params = init_params(kp, channels, n_heads, head_dim)
    x = jax.random.normal(kx, (B, channels, H, W), jnp.float32)
    line = jax.random.normal(kl, (B, 4, 2 * H, 2 * W), jnp.float32)

    fwd = jax.jit(functools.partial(spatial_transformer,
                                    n_heads=n_heads, head_dim=head_dim))
    y = fwd(params, x, line)
    jax.block_until_ready(y)
    assert y.shape == x.shape and y.dtype == jnp.float32
    print("KERNEL_OK")
</pallas_src>

<mosaic_0001>
module attributes {stable_mosaic.version = 11 : i64} {
  func.func @_spatial_transformer_kernel(%arg0: i32, %arg1: memref<1x32x256xf32, #tpu.memory_space<vmem>>, %arg2: memref<1x8x256xf32, #tpu.memory_space<vmem>>, %arg3: memref<32x8xbf16, #tpu.memory_space<vmem>>, %arg4: memref<32x1xf32, #tpu.memory_space<vmem>>, %arg5: memref<32x1xf32, #tpu.memory_space<vmem>>, %arg6: memref<32x1xf32, #tpu.memory_space<vmem>>, %arg7: memref<32x32xbf16, #tpu.memory_space<vmem>>, %arg8: memref<32x1xf32, #tpu.memory_space<vmem>>, %arg9: memref<32x1xf32, #tpu.memory_space<vmem>>, %arg10: memref<32x1xf32, #tpu.memory_space<vmem>>, %arg11: memref<96x32xbf16, #tpu.memory_space<vmem>>, %arg12: memref<32x32xbf16, #tpu.memory_space<vmem>>, %arg13: memref<32x1xf32, #tpu.memory_space<vmem>>, %arg14: memref<32x1xf32, #tpu.memory_space<vmem>>, %arg15: memref<32x1xf32, #tpu.memory_space<vmem>>, %arg16: memref<32x32xbf16, #tpu.memory_space<vmem>>, %arg17: memref<64x32xbf16, #tpu.memory_space<vmem>>, %arg18: memref<32x32xbf16, #tpu.memory_space<vmem>>, %arg19: memref<32x1xf32, #tpu.memory_space<vmem>>, %arg20: memref<32x1xf32, #tpu.memory_space<vmem>>, %arg21: memref<32x1xf32, #tpu.memory_space<vmem>>, %arg22: memref<256x32xbf16, #tpu.memory_space<vmem>>, %arg23: memref<256x1xf32, #tpu.memory_space<vmem>>, %arg24: memref<32x128xbf16, #tpu.memory_space<vmem>>, %arg25: memref<32x1xf32, #tpu.memory_space<vmem>>, %arg26: memref<32x32xbf16, #tpu.memory_space<vmem>>, %arg27: memref<32x1xf32, #tpu.memory_space<vmem>>, %arg28: memref<1x32x256xf32, #tpu.memory_space<vmem>>) attributes {dimension_semantics = [#tpu.dimension_semantics<parallel>], iteration_bounds = array<i64: 2>, scalar_prefetch = 0 : i64, scratch_operands = 0 : i64, tpu.core_type = #tpu.core_type<tc>, window_params = [{transform_indices = @transform_0, window_bounds = array<i64: 1, 32, 256>}, {transform_indices = @transform_1, window_bounds = array<i64: 1, 8, 256>}, {pipeline_mode = #tpu.pipeline_mode<synchronous>, transform_indices = @transform_2, window_bounds = array<i64: 32, 8>}, {pipeline_mode = #tpu.pipeline_mode<synchronous>, transform_indices = @transform_3, window_bounds = array<i64: 32, 1>}, {pipeline_mode = #tpu.pipeline_mode<synchronous>, transform_indices = @transform_4, window_bounds = array<i64: 32, 1>}, {pipeline_mode = #tpu.pipeline_mode<synchronous>, transform_indices = @transform_5, window_bounds = array<i64: 32, 1>}, {pipeline_mode = #tpu.pipeline_mode<synchronous>, transform_indices = @transform_6, window_bounds = array<i64: 32, 32>}, {pipeline_mode = #tpu.pipeline_mode<synchronous>, transform_indices = @transform_7, window_bounds = array<i64: 32, 1>}, {pipeline_mode = #tpu.pipeline_mode<synchronous>, transform_indices = @transform_8, window_bounds = array<i64: 32, 1>}, {pipeline_mode = #tpu.pipeline_mode<synchronous>, transform_indices = @transform_9, window_bounds = array<i64: 32, 1>}, {pipeline_mode = #tpu.pipeline_mode<synchronous>, transform_indices = @transform_10, window_bounds = array<i64: 96, 32>}, {pipeline_mode = #tpu.pipeline_mode<synchronous>, transform_indices = @transform_11, window_bounds = array<i64: 32, 32>}, {pipeline_mode = #tpu.pipeline_mode<synchronous>, transform_indices = @transform_12, window_bounds = array<i64: 32, 1>}, {pipeline_mode = #tpu.pipeline_mode<synchronous>, transform_indices = @transform_13, window_bounds = array<i64: 32, 1>}, {pipeline_mode = #tpu.pipeline_mode<synchronous>, transform_indices = @transform_14, window_bounds = array<i64: 32, 1>}, {pipeline_mode = #tpu.pipeline_mode<synchronous>, transform_indices = @transform_15, window_bounds = array<i64: 32, 32>}, {pipeline_mode = #tpu.pipeline_mode<synchronous>, transform_indices = @transform_16, window_bounds = array<i64: 64, 32>}, {pipeline_mode = #tpu.pipeline_mode<synchronous>, transform_indices = @transform_17, window_bounds = array<i64: 32, 32>}, {pipeline_mode = #tpu.pipeline_mode<synchronous>, transform_indices = @transform_18, window_bounds = array<i64: 32, 1>}, {pipeline_mode = #tpu.pipeline_mode<synchronous>, transform_indices = @transform_19, window_bounds = array<i64: 32, 1>}, {pipeline_mode = #tpu.pipeline_mode<synchronous>, transform_indices = @transform_20, window_bounds = array<i64: 32, 1>}, {pipeline_mode = #tpu.pipeline_mode<synchronous>, transform_indices = @transform_21, window_bounds = array<i64: 256, 32>}, {pipeline_mode = #tpu.pipeline_mode<synchronous>, transform_indices = @transform_22, window_bounds = array<i64: 256, 1>}, {pipeline_mode = #tpu.pipeline_mode<synchronous>, transform_indices = @transform_23, window_bounds = array<i64: 32, 128>}, {pipeline_mode = #tpu.pipeline_mode<synchronous>, transform_indices = @transform_24, window_bounds = array<i64: 32, 1>}, {pipeline_mode = #tpu.pipeline_mode<synchronous>, transform_indices = @transform_25, window_bounds = array<i64: 32, 32>}, {pipeline_mode = #tpu.pipeline_mode<synchronous>, transform_indices = @transform_26, window_bounds = array<i64: 32, 1>}, {transform_indices = @transform_27, window_bounds = array<i64: 1, 32, 256>}]} {
    %c0 = arith.constant 0 : index
    %c0_0 = arith.constant 0 : index
    %c0_1 = arith.constant 0 : index
    %0 = vector.load %arg1[%c0, %c0_0, %c0_1] : memref<1x32x256xf32, #tpu.memory_space<vmem>>, vector<1x32x256xf32>
    %1 = vector.shape_cast %0 : vector<1x32x256xf32> to vector<32x256xf32>
    %c0_2 = arith.constant 0 : index
    %c0_3 = arith.constant 0 : index
    %c0_4 = arith.constant 0 : index
    %2 = vector.load %arg2[%c0_2, %c0_3, %c0_4] : memref<1x8x256xf32, #tpu.memory_space<vmem>>, vector<1x8x256xf32>
    %3 = vector.shape_cast %2 : vector<1x8x256xf32> to vector<8x256xf32>
    %4 = tpu.iota {dimensions = array<i32: 0>} : vector<128x256xi32>
    %5 = tpu.iota {dimensions = array<i32: 1>} : vector<128x256xi32>
    %c2_i32 = arith.constant 2 : i32
    %6 = vector.broadcast %c2_i32 : i32 to vector<128x256xi32>
    %7 = arith.muli %6, %4 : vector<128x256xi32>
    %8 = arith.cmpi eq, %5, %7 : vector<128x256xi32>
    %c2_i32_5 = arith.constant 2 : i32
    %9 = vector.broadcast %c2_i32_5 : i32 to vector<128x256xi32>
    %10 = arith.muli %9, %4 : vector<128x256xi32>
    %c1_i32 = arith.constant 1 : i32
    %11 = vector.broadcast %c1_i32 : i32 to vector<128x256xi32>
    %12 = arith.addi %10, %11 : vector<128x256xi32>
    %13 = arith.cmpi eq, %5, %12 : vector<128x256xi32>
    %14 = arith.ori %8, %13 : vector<128x256xi1>
    %15 = arith.extui %14 : vector<128x256xi1> to vector<128x256xi32>
    %16 = arith.sitofp %15 : vector<128x256xi32> to vector<128x256xf32>
    %17 = tpu.iota {dimensions = array<i32: 1>} : vector<32x256xi32>
    %c1_i32_6 = arith.constant 1 : i32
    %18 = vector.broadcast %c1_i32_6 : i32 to vector<32x256xi32>
    %19 = arith.andi %17, %18 : vector<32x256xi32>
    %c0_i32 = arith.constant 0 : i32
    %20 = vector.broadcast %c0_i32 : i32 to vector<32x256xi32>
    %21 = arith.cmpi eq, %19, %20 : vector<32x256xi32>
    %cst = arith.constant dense<0.000000e+00> : vector<32xf32>
    %22 = vector.multi_reduction <add>, %1, %cst [1] : vector<32x256xf32> to vector<32xf32>
    %23 = vector.shape_cast %22 : vector<32xf32> to vector<32x1xf32>
    %cst_7 = arith.constant 2.560000e+02 : f32
    %24 = vector.broadcast %cst_7 : f32 to vector<32x1xf32>
    %25 = arith.divf %23, %24 : vector<32x1xf32>
    %26 = vector.broadcast %25 : vector<32x1xf32> to vector<32x256xf32>
    %27 = arith.subf %1, %26 : vector<32x256xf32>
    %28 = arith.mulf %27, %27 : vector<32x256xf32>
    %cst_8 = arith.constant dense<0.000000e+00> : vector<32xf32>
    %29 = vector.multi_reduction <add>, %28, %cst_8 [1] : vector<32x256xf32> to vector<32xf32>
    %30 = vector.shape_cast %29 : vector<32xf32> to vector<32x1xf32>
    %cst_9 = arith.constant 2.560000e+02 : f32
    %31 = vector.broadcast %cst_9 : f32 to vector<32x1xf32>
    %32 = arith.divf %30, %31 : vector<32x1xf32>
    %33 = vector.broadcast %25 : vector<32x1xf32> to vector<32x256xf32>
    %34 = arith.subf %1, %33 : vector<32x256xf32>
    %cst_10 = arith.constant 9.99999997E-7 : f32
    %35 = vector.broadcast %cst_10 : f32 to vector<32x1xf32>
    %36 = arith.addf %32, %35 : vector<32x1xf32>
    %37 = math.rsqrt %36 : vector<32x1xf32>
    %38 = vector.broadcast %37 : vector<32x1xf32> to vector<32x256xf32>
    %39 = arith.mulf %34, %38 : vector<32x256xf32>
    %c0_11 = arith.constant 0 : index
    %c0_12 = arith.constant 0 : index
    %40 = vector.load %arg5[%c0_11, %c0_12] : memref<32x1xf32, #tpu.memory_space<vmem>>, vector<32x1xf32>
    %41 = vector.broadcast %40 : vector<32x1xf32> to vector<32x256xf32>
    %42 = arith.mulf %39, %41 : vector<32x256xf32>
    %c0_13 = arith.constant 0 : index
    %c0_14 = arith.constant 0 : index
    %43 = vector.load %arg6[%c0_13, %c0_14] : memref<32x1xf32, #tpu.memory_space<vmem>>, vector<32x1xf32>
    %44 = vector.broadcast %43 : vector<32x1xf32> to vector<32x256xf32>
    %45 = arith.addf %42, %44 : vector<32x256xf32>
    %c0_15 = arith.constant 0 : index
    %c0_16 = arith.constant 0 : index
    %46 = vector.load %arg7[%c0_15, %c0_16] : memref<32x32xbf16, #tpu.memory_space<vmem>>, vector<32x32xbf16>
    %47 = arith.truncf %45 : vector<32x256xf32> to vector<32x256xbf16>
    %cst_17 = arith.constant dense<0.000000e+00> : vector<32x256xf32>
    %48 = tpu.matmul %46, %47, %cst_17 {dimension_numbers = #tpu.dot_dimension_numbers<[1], [0], [0], [1], [0, 0, 1, 1], [], []>} : vector<32x32xbf16>, vector<32x256xbf16>, vector<32x256xf32> -> vector<32x256xf32>
    %c0_18 = arith.constant 0 : index
    %c0_19 = arith.constant 0 : index
    %49 = vector.load %arg8[%c0_18, %c0_19] : memref<32x1xf32, #tpu.memory_space<vmem>>, vector<32x1xf32>
    %50 = vector.broadcast %49 : vector<32x1xf32> to vector<32x256xf32>
    %51 = arith.addf %48, %50 : vector<32x256xf32>
    %c0_20 = arith.constant 0 : index
    %c0_21 = arith.constant 0 : index
    %52 = vector.load %arg3[%c0_20, %c0_21] : memref<32x8xbf16, #tpu.memory_space<vmem>>, vector<32x8xbf16>
    %53 = arith.truncf %3 : vector<8x256xf32> to vector<8x256xbf16>
    %cst_22 = arith.constant dense<0.000000e+00> : vector<32x256xf32>
    %54 = tpu.matmul %52, %53, %cst_22 {dimension_numbers = #tpu.dot_dimension_numbers<[1], [0], [0], [1], [0, 0, 1, 1], [], []>} : vector<32x8xbf16>, vector<8x256xbf16>, vector<32x256xf32> -> vector<32x256xf32>
    %c0_23 = arith.constant 0 : index
    %c0_24 = arith.constant 0 : index
    %55 = vector.load %arg4[%c0_23, %c0_24] : memref<32x1xf32, #tpu.memory_space<vmem>>, vector<32x1xf32>
    %56 = vector.broadcast %55 : vector<32x1xf32> to vector<32x256xf32>
    %57 = arith.addf %54, %56 : vector<32x256xf32>
    %c0_25 = arith.constant 0 : index
    %c0_26 = arith.constant 0 : index
    %58 = vector.load %arg9[%c0_25, %c0_26] : memref<32x1xf32, #tpu.memory_space<vmem>>, vector<32x1xf32>
    %c0_27 = arith.constant 0 : index
    %c0_28 = arith.constant 0 : index
    %59 = vector.load %arg10[%c0_27, %c0_28] : memref<32x1xf32, #tpu.memory_space<vmem>>, vector<32x1xf32>
    %cst_29 = arith.constant dense<0.000000e+00> : vector<256xf32>
    %60 = vector.multi_reduction <add>, %51, %cst_29 [0] : vector<32x256xf32> to vector<256xf32>
    %61 = vector.shape_cast %60 : vector<256xf32> to vector<1x256xf32>
    %cst_30 = arith.constant 3.200000e+01 : f32
    %62 = vector.broadcast %cst_30 : f32 to vector<1x256xf32>
    %63 = arith.divf %61, %62 : vector<1x256xf32>
    %64 = vector.broadcast %63 : vector<1x256xf32> to vector<32x256xf32>
    %65 = arith.subf %51, %64 : vector<32x256xf32>
    %66 = arith.mulf %65, %65 : vector<32x256xf32>
    %cst_31 = arith.constant dense<0.000000e+00> : vector<256xf32>
    %67 = vector.multi_reduction <add>, %66, %cst_31 [0] : vector<32x256xf32> to vector<256xf32>
    %68 = vector.shape_cast %67 : vector<256xf32> to vector<1x256xf32>
    %cst_32 = arith.constant 3.200000e+01 : f32
    %69 = vector.broadcast %cst_32 : f32 to vector<1x256xf32>
    %70 = arith.divf %68, %69 : vector<1x256xf32>
    %71 = vector.broadcast %63 : vector<1x256xf32> to vector<32x256xf32>
    %72 = arith.subf %51, %71 : vector<32x256xf32>
    %cst_33 = arith.constant 9.99999974E-6 : f32
    %73 = vector.broadcast %cst_33 : f32 to vector<1x256xf32>
    %74 = arith.addf %70, %73 : vector<1x256xf32>
    %75 = math.rsqrt %74 : vector<1x256xf32>
    %76 = vector.broadcast %75 : vector<1x256xf32> to vector<32x256xf32>
    %77 = arith.mulf %72, %76 : vector<32x256xf32>
    %78 = vector.broadcast %58 : vector<32x1xf32> to vector<32x256xf32>
    %79 = arith.mulf %77, %78 : vector<32x256xf32>
    %80 = vector.broadcast %59 : vector<32x1xf32> to vector<32x256xf32>
    %81 = arith.addf %79, %80 : vector<32x256xf32>
    %c0_34 = arith.constant 0 : index
    %c0_35 = arith.constant 0 : index
    %82 = vector.load %arg11[%c0_34, %c0_35] : memref<96x32xbf16, #tpu.memory_space<vmem>>, vector<96x32xbf16>
    %83 = arith.truncf %81 : vector<32x256xf32> to vector<32x256xbf16>
    %cst_36 = arith.constant dense<0.000000e+00> : vector<96x256xf32>
    %84 = tpu.matmul %82, %83, %cst_36 {dimension_numbers = #tpu.dot_dimension_numbers<[1], [0], [0], [1], [0, 0, 1, 1], [], []>} : vector<96x32xbf16>, vector<32x256xbf16>, vector<96x256xf32> -> vector<96x256xf32>
    %85 = vector.extract_strided_slice %84 {offsets = [32, 0], sizes = [64, 256], strides = [1, 1]} : vector<96x256xf32> to vector<64x256xf32>
    %86 = vector.extract_strided_slice %85 {offsets = [0, 0], sizes = [64, 128], strides = [1, 1]} : vector<64x256xf32> to vector<64x128xf32>
    %cst_37 = arith.constant dense<0.000000e+00> : vector<64x256xf32>
    %87 = tpu.matmul %86, %16, %cst_37 {dimension_numbers = #tpu.dot_dimension_numbers<[1], [0], [0], [1], [0, 0, 1, 1], [], []>} : vector<64x128xf32>, vector<128x256xf32>, vector<64x256xf32> -> vector<64x256xf32>
    %88 = vector.extract_strided_slice %85 {offsets = [0, 128], sizes = [64, 128], strides = [1, 1]} : vector<64x256xf32> to vector<64x128xf32>
    %cst_38 = arith.constant dense<0.000000e+00> : vector<64x256xf32>
    %89 = tpu.matmul %88, %16, %cst_38 {dimension_numbers = #tpu.dot_dimension_numbers<[1], [0], [0], [1], [0, 0, 1, 1], [], []>} : vector<64x128xf32>, vector<128x256xf32>, vector<64x256xf32> -> vector<64x256xf32>
    %90 = vector.extract_strided_slice %87 {offsets = [0, 0], sizes = [32, 256], strides = [1, 1]} : vector<64x256xf32> to vector<32x256xf32>
    %91 = vector.extract_strided_slice %87 {offsets = [32, 0], sizes = [32, 256], strides = [1, 1]} : vector<64x256xf32> to vector<32x256xf32>
    %92 = arith.select %21, %90, %91 : vector<32x256xi1>, vector<32x256xf32>
    %93 = vector.extract_strided_slice %89 {offsets = [0, 0], sizes = [32, 256], strides = [1, 1]} : vector<64x256xf32> to vector<32x256xf32>
    %94 = vector.extract_strided_slice %89 {offsets = [32, 0], sizes = [32, 256], strides = [1, 1]} : vector<64x256xf32> to vector<32x256xf32>
    %95 = arith.select %21, %93, %94 : vector<32x256xi1>, vector<32x256xf32>
    %96 = vector.extract_strided_slice %84 {offsets = [0, 0], sizes = [32, 256], strides = [1, 1]} : vector<96x256xf32> to vector<32x256xf32>
    %97 = vector.extract_strided_slice %96 {offsets = [0, 0], sizes = [8, 256], strides = [1, 1]} : vector<32x256xf32> to vector<8x256xf32>
    %98 = vector.extract_strided_slice %92 {offsets = [0, 0], sizes = [8, 256], strides = [1, 1]} : vector<32x256xf32> to vector<8x256xf32>
    %99 = arith.mulf %97, %98 : vector<8x256xf32>
    %cst_39 = arith.constant dense<0.000000e+00> : vector<256xf32>
    %100 = vector.multi_reduction <add>, %99, %cst_39 [0] : vector<8x256xf32> to vector<256xf32>
    %101 = vector.shape_cast %100 : vector<256xf32> to vector<1x256xf32>
    %cst_40 = arith.constant 0.353553385 : f32
    %102 = vector.broadcast %cst_40 : f32 to vector<1x256xf32>
    %103 = arith.mulf %101, %102 : vector<1x256xf32>
    %104 = vector.extract_strided_slice %92 {offsets = [8, 0], sizes = [8, 256], strides = [1, 1]} : vector<32x256xf32> to vector<8x256xf32>
    %105 = arith.mulf %97, %104 : vector<8x256xf32>
    %cst_41 = arith.constant dense<0.000000e+00> : vector<256xf32>
    %106 = vector.multi_reduction <add>, %105, %cst_41 [0] : vector<8x256xf32> to vector<256xf32>
    %107 = vector.shape_cast %106 : vector<256xf32> to vector<1x256xf32>
    %cst_42 = arith.constant 0.353553385 : f32
    %108 = vector.broadcast %cst_42 : f32 to vector<1x256xf32>
    %109 = arith.mulf %107, %108 : vector<1x256xf32>
    %110 = vector.extract_strided_slice %92 {offsets = [16, 0], sizes = [8, 256], strides = [1, 1]} : vector<32x256xf32> to vector<8x256xf32>
    %111 = arith.mulf %97, %110 : vector<8x256xf32>
    %cst_43 = arith.constant dense<0.000000e+00> : vector<256xf32>
    %112 = vector.multi_reduction <add>, %111, %cst_43 [0] : vector<8x256xf32> to vector<256xf32>
    %113 = vector.shape_cast %112 : vector<256xf32> to vector<1x256xf32>
    %cst_44 = arith.constant 0.353553385 : f32
    %114 = vector.broadcast %cst_44 : f32 to vector<1x256xf32>
    %115 = arith.mulf %113, %114 : vector<1x256xf32>
    %116 = vector.extract_strided_slice %92 {offsets = [24, 0], sizes = [8, 256], strides = [1, 1]} : vector<32x256xf32> to vector<8x256xf32>
    %117 = arith.mulf %97, %116 : vector<8x256xf32>
    %cst_45 = arith.constant dense<0.000000e+00> : vector<256xf32>
    %118 = vector.multi_reduction <add>, %117, %cst_45 [0] : vector<8x256xf32> to vector<256xf32>
    %119 = vector.shape_cast %118 : vector<256xf32> to vector<1x256xf32>
    %cst_46 = arith.constant 0.353553385 : f32
    %120 = vector.broadcast %cst_46 : f32 to vector<1x256xf32>
    %121 = arith.mulf %119, %120 : vector<1x256xf32>
    %122 = arith.maximumf %103, %109 : vector<1x256xf32>
    %123 = arith.maximumf %122, %115 : vector<1x256xf32>
    %124 = arith.maximumf %123, %121 : vector<1x256xf32>
    %125 = arith.subf %103, %124 : vector<1x256xf32>
    %126 = math.exp %125 : vector<1x256xf32>
    %127 = arith.subf %109, %124 : vector<1x256xf32>
    %128 = math.exp %127 : vector<1x256xf32>
    %129 = arith.subf %115, %124 : vector<1x256xf32>
    %130 = math.exp %129 : vector<1x256xf32>
    %131 = arith.subf %121, %124 : vector<1x256xf32>
    %132 = math.exp %131 : vector<1x256xf32>
    %133 = arith.addf %126, %128 : vector<1x256xf32>
    %134 = arith.addf %133, %130 : vector<1x256xf32>
    %135 = arith.addf %134, %132 : vector<1x256xf32>
    %136 = vector.extract_strided_slice %95 {offsets = [0, 0], sizes = [8, 256], strides = [1, 1]} : vector<32x256xf32> to vector<8x256xf32>
    %137 = vector.broadcast %126 : vector<1x256xf32> to vector<8x256xf32>
    %138 = arith.mulf %137, %136 : vector<8x256xf32>
    %139 = vector.extract_strided_slice %95 {offsets = [8, 0], sizes = [8, 256], strides = [1, 1]} : vector<32x256xf32> to vector<8x256xf32>
    %140 = vector.broadcast %128 : vector<1x256xf32> to vector<8x256xf32>
    %141 = arith.mulf %140, %139 : vector<8x256xf32>
    %142 = arith.addf %138, %141 : vector<8x256xf32>
    %143 = vector.extract_strided_slice %95 {offsets = [16, 0], sizes = [8, 256], strides = [1, 1]} : vector<32x256xf32> to vector<8x256xf32>
    %144 = vector.broadcast %130 : vector<1x256xf32> to vector<8x256xf32>
    %145 = arith.mulf %144, %143 : vector<8x256xf32>
    %146 = arith.addf %142, %145 : vector<8x256xf32>
    %147 = vector.extract_strided_slice %95 {offsets = [24, 0], sizes = [8, 256], strides = [1, 1]} : vector<32x256xf32> to vector<8x256xf32>
    %148 = vector.broadcast %132 : vector<1x256xf32> to vector<8x256xf32>
    %149 = arith.mulf %148, %147 : vector<8x256xf32>
    %150 = arith.addf %146, %149 : vector<8x256xf32>
    %151 = vector.broadcast %135 : vector<1x256xf32> to vector<8x256xf32>
    %152 = arith.divf %150, %151 : vector<8x256xf32>
    %153 = vector.extract_strided_slice %96 {offsets = [8, 0], sizes = [8, 256], strides = [1, 1]} : vector<32x256xf32> to vector<8x256xf32>
    %154 = vector.extract_strided_slice %92 {offsets = [0, 0], sizes = [8, 256], strides = [1, 1]} : vector<32x256xf32> to vector<8x256xf32>
    %155 = arith.mulf %153, %154 : vector<8x256xf32>
    %cst_47 = arith.constant dense<0.000000e+00> : vector<256xf32>
    %156 = vector.multi_reduction <add>, %155, %cst_47 [0] : vector<8x256xf32> to vector<256xf32>
    %157 = vector.shape_cast %156 : vector<256xf32> to vector<1x256xf32>
    %cst_48 = arith.constant 0.353553385 : f32
    %158 = vector.broadcast %cst_48 : f32 to vector<1x256xf32>
    %159 = arith.mulf %157, %158 : vector<1x256xf32>
    %160 = vector.extract_strided_slice %92 {offsets = [8, 0], sizes = [8, 256], strides = [1, 1]} : vector<32x256xf32> to vector<8x256xf32>
    %161 = arith.mulf %153, %160 : vector<8x256xf32>
    %cst_49 = arith.constant dense<0.000000e+00> : vector<256xf32>
    %162 = vector.multi_reduction <add>, %161, %cst_49 [0] : vector<8x256xf32> to vector<256xf32>
    %163 = vector.shape_cast %162 : vector<256xf32> to vector<1x256xf32>
    %cst_50 = arith.constant 0.353553385 : f32
    %164 = vector.broadcast %cst_50 : f32 to vector<1x256xf32>
    %165 = arith.mulf %163, %164 : vector<1x256xf32>
    %166 = vector.extract_strided_slice %92 {offsets = [16, 0], sizes = [8, 256], strides = [1, 1]} : vector<32x256xf32> to vector<8x256xf32>
    %167 = arith.mulf %153, %166 : vector<8x256xf32>
    %cst_51 = arith.constant dense<0.000000e+00> : vector<256xf32>
    %168 = vector.multi_reduction <add>, %167, %cst_51 [0] : vector<8x256xf32> to vector<256xf32>
    %169 = vector.shape_cast %168 : vector<256xf32> to vector<1x256xf32>
    %cst_52 = arith.constant 0.353553385 : f32
    %170 = vector.broadcast %cst_52 : f32 to vector<1x256xf32>
    %171 = arith.mulf %169, %170 : vector<1x256xf32>
    %172 = vector.extract_strided_slice %92 {offsets = [24, 0], sizes = [8, 256], strides = [1, 1]} : vector<32x256xf32> to vector<8x256xf32>
    %173 = arith.mulf %153, %172 : vector<8x256xf32>
    %cst_53 = arith.constant dense<0.000000e+00> : vector<256xf32>
    %174 = vector.multi_reduction <add>, %173, %cst_53 [0] : vector<8x256xf32> to vector<256xf32>
    %175 = vector.shape_cast %174 : vector<256xf32> to vector<1x256xf32>
    %cst_54 = arith.constant 0.353553385 : f32
    %176 = vector.broadcast %cst_54 : f32 to vector<1x256xf32>
    %177 = arith.mulf %175, %176 : vector<1x256xf32>
    %178 = arith.maximumf %159, %165 : vector<1x256xf32>
    %179 = arith.maximumf %178, %171 : vector<1x256xf32>
    %180 = arith.maximumf %179, %177 : vector<1x256xf32>
    %181 = arith.subf %159, %180 : vector<1x256xf32>
    %182 = math.exp %181 : vector<1x256xf32>
    %183 = arith.subf %165, %180 : vector<1x256xf32>
    %184 = math.exp %183 : vector<1x256xf32>
    %185 = arith.subf %171, %180 : vector<1x256xf32>
    %186 = math.exp %185 : vector<1x256xf32>
    %187 = arith.subf %177, %180 : vector<1x256xf32>
    %188 = math.exp %187 : vector<1x256xf32>
    %189 = arith.addf %182, %184 : vector<1x256xf32>
    %190 = arith.addf %189, %186 : vector<1x256xf32>
    %191 = arith.addf %190, %188 : vector<1x256xf32>
    %192 = vector.extract_strided_slice %95 {offsets = [0, 0], sizes = [8, 256], strides = [1, 1]} : vector<32x256xf32> to vector<8x256xf32>
    %193 = vector.broadcast %182 : vector<1x256xf32> to vector<8x256xf32>
    %194 = arith.mulf %193, %192 : vector<8x256xf32>
    %195 = vector.extract_strided_slice %95 {offsets = [8, 0], sizes = [8, 256], strides = [1, 1]} : vector<32x256xf32> to vector<8x256xf32>
    %196 = vector.broadcast %184 : vector<1x256xf32> to vector<8x256xf32>
    %197 = arith.mulf %196, %195 : vector<8x256xf32>
    %198 = arith.addf %194, %197 : vector<8x256xf32>
    %199 = vector.extract_strided_slice %95 {offsets = [16, 0], sizes = [8, 256], strides = [1, 1]} : vector<32x256xf32> to vector<8x256xf32>
    %200 = vector.broadcast %186 : vector<1x256xf32> to vector<8x256xf32>
    %201 = arith.mulf %200, %199 : vector<8x256xf32>
    %202 = arith.addf %198, %201 : vector<8x256xf32>
    %203 = vector.extract_strided_slice %95 {offsets = [24, 0], sizes = [8, 256], strides = [1, 1]} : vector<32x256xf32> to vector<8x256xf32>
    %204 = vector.broadcast %188 : vector<1x256xf32> to vector<8x256xf32>
    %205 = arith.mulf %204, %203 : vector<8x256xf32>
    %206 = arith.addf %202, %205 : vector<8x256xf32>
    %207 = vector.broadcast %191 : vector<1x256xf32> to vector<8x256xf32>
    %208 = arith.divf %206, %207 : vector<8x256xf32>
    %209 = vector.extract_strided_slice %96 {offsets = [16, 0], sizes = [8, 256], strides = [1, 1]} : vector<32x256xf32> to vector<8x256xf32>
    %210 = vector.extract_strided_slice %92 {offsets = [0, 0], sizes = [8, 256], strides = [1, 1]} : vector<32x256xf32> to vector<8x256xf32>
    %211 = arith.mulf %209, %210 : vector<8x256xf32>
    %cst_55 = arith.constant dense<0.000000e+00> : vector<256xf32>
    %212 = vector.multi_reduction <add>, %211, %cst_55 [0] : vector<8x256xf32> to vector<256xf32>
    %213 = vector.shape_cast %212 : vector<256xf32> to vector<1x256xf32>
    %cst_56 = arith.constant 0.353553385 : f32
    %214 = vector.broadcast %cst_56 : f32 to vector<1x256xf32>
    %215 = arith.mulf %213, %214 : vector<1x256xf32>
    %216 = vector.extract_strided_slice %92 {offsets = [8, 0], sizes = [8, 256], strides = [1, 1]} : vector<32x256xf32> to vector<8x256xf32>
    %217 = arith.mulf %209, %216 : vector<8x256xf32>
    %cst_57 = arith.constant dense<0.000000e+00> : vector<256xf32>
    %218 = vector.multi_reduction <add>, %217, %cst_57 [0] : vector<8x256xf32> to vector<256xf32>
    %219 = vector.shape_cast %218 : vector<256xf32> to vector<1x256xf32>
    %cst_58 = arith.constant 0.353553385 : f32
    %220 = vector.broadcast %cst_58 : f32 to vector<1x256xf32>
    %221 = arith.mulf %219, %220 : vector<1x256xf32>
    %222 = vector.extract_strided_slice %92 {offsets = [16, 0], sizes = [8, 256], strides = [1, 1]} : vector<32x256xf32> to vector<8x256xf32>
    %223 = arith.mulf %209, %222 : vector<8x256xf32>
    %cst_59 = arith.constant dense<0.000000e+00> : vector<256xf32>
    %224 = vector.multi_reduction <add>, %223, %cst_59 [0] : vector<8x256xf32> to vector<256xf32>
    %225 = vector.shape_cast %224 : vector<256xf32> to vector<1x256xf32>
    %cst_60 = arith.constant 0.353553385 : f32
    %226 = vector.broadcast %cst_60 : f32 to vector<1x256xf32>
    %227 = arith.mulf %225, %226 : vector<1x256xf32>
    %228 = vector.extract_strided_slice %92 {offsets = [24, 0], sizes = [8, 256], strides = [1, 1]} : vector<32x256xf32> to vector<8x256xf32>
    %229 = arith.mulf %209, %228 : vector<8x256xf32>
    %cst_61 = arith.constant dense<0.000000e+00> : vector<256xf32>
    %230 = vector.multi_reduction <add>, %229, %cst_61 [0] : vector<8x256xf32> to vector<256xf32>
    %231 = vector.shape_cast %230 : vector<256xf32> to vector<1x256xf32>
    %cst_62 = arith.constant 0.353553385 : f32
    %232 = vector.broadcast %cst_62 : f32 to vector<1x256xf32>
    %233 = arith.mulf %231, %232 : vector<1x256xf32>
    %234 = arith.maximumf %215, %221 : vector<1x256xf32>
    %235 = arith.maximumf %234, %227 : vector<1x256xf32>
    %236 = arith.maximumf %235, %233 : vector<1x256xf32>
    %237 = arith.subf %215, %236 : vector<1x256xf32>
    %238 = math.exp %237 : vector<1x256xf32>
    %239 = arith.subf %221, %236 : vector<1x256xf32>
    %240 = math.exp %239 : vector<1x256xf32>
    %241 = arith.subf %227, %236 : vector<1x256xf32>
    %242 = math.exp %241 : vector<1x256xf32>
    %243 = arith.subf %233, %236 : vector<1x256xf32>
    %244 = math.exp %243 : vector<1x256xf32>
    %245 = arith.addf %238, %240 : vector<1x256xf32>
    %246 = arith.addf %245, %242 : vector<1x256xf32>
    %247 = arith.addf %246, %244 : vector<1x256xf32>
    %248 = vector.extract_strided_slice %95 {offsets = [0, 0], sizes = [8, 256], strides = [1, 1]} : vector<32x256xf32> to vector<8x256xf32>
    %249 = vector.broadcast %238 : vector<1x256xf32> to vector<8x256xf32>
    %250 = arith.mulf %249, %248 : vector<8x256xf32>
    %251 = vector.extract_strided_slice %95 {offsets = [8, 0], sizes = [8, 256], strides = [1, 1]} : vector<32x256xf32> to vector<8x256xf32>
    %252 = vector.broadcast %240 : vector<1x256xf32> to vector<8x256xf32>
    %253 = arith.mulf %252, %251 : vector<8x256xf32>
    %254 = arith.addf %250, %253 : vector<8x256xf32>
    %255 = vector.extract_strided_slice %95 {offsets = [16, 0], sizes = [8, 256], strides = [1, 1]} : vector<32x256xf32> to vector<8x256xf32>
    %256 = vector.broadcast %242 : vector<1x256xf32> to vector<8x256xf32>
    %257 = arith.mulf %256, %255 : vector<8x256xf32>
    %258 = arith.addf %254, %257 : vector<8x256xf32>
    %259 = vector.extract_strided_slice %95 {offsets = [24, 0], sizes = [8, 256], strides = [1, 1]} : vector<32x256xf32> to vector<8x256xf32>
    %260 = vector.broadcast %244 : vector<1x256xf32> to vector<8x256xf32>
    %261 = arith.mulf %260, %259 : vector<8x256xf32>
    %262 = arith.addf %258, %261 : vector<8x256xf32>
    %263 = vector.broadcast %247 : vector<1x256xf32> to vector<8x256xf32>
    %264 = arith.divf %262, %263 : vector<8x256xf32>
    %265 = vector.extract_strided_slice %96 {offsets = [24, 0], sizes = [8, 256], strides = [1, 1]} : vector<32x256xf32> to vector<8x256xf32>
    %266 = vector.extract_strided_slice %92 {offsets = [0, 0], sizes = [8, 256], strides = [1, 1]} : vector<32x256xf32> to vector<8x256xf32>
    %267 = arith.mulf %265, %266 : vector<8x256xf32>
    %cst_63 = arith.constant dense<0.000000e+00> : vector<256xf32>
    %268 = vector.multi_reduction <add>, %267, %cst_63 [0] : vector<8x256xf32> to vector<256xf32>
    %269 = vector.shape_cast %268 : vector<256xf32> to vector<1x256xf32>
    %cst_64 = arith.constant 0.353553385 : f32
    %270 = vector.broadcast %cst_64 : f32 to vector<1x256xf32>
    %271 = arith.mulf %269, %270 : vector<1x256xf32>
    %272 = vector.extract_strided_slice %92 {offsets = [8, 0], sizes = [8, 256], strides = [1, 1]} : vector<32x256xf32> to vector<8x256xf32>
    %273 = arith.mulf %265, %272 : vector<8x256xf32>
    %cst_65 = arith.constant dense<0.000000e+00> : vector<256xf32>
    %274 = vector.multi_reduction <add>, %273, %cst_65 [0] : vector<8x256xf32> to vector<256xf32>
    %275 = vector.shape_cast %274 : vector<256xf32> to vector<1x256xf32>
    %cst_66 = arith.constant 0.353553385 : f32
    %276 = vector.broadcast %cst_66 : f32 to vector<1x256xf32>
    %277 = arith.mulf %275, %276 : vector<1x256xf32>
    %278 = vector.extract_strided_slice %92 {offsets = [16, 0], sizes = [8, 256], strides = [1, 1]} : vector<32x256xf32> to vector<8x256xf32>
    %279 = arith.mulf %265, %278 : vector<8x256xf32>
    %cst_67 = arith.constant dense<0.000000e+00> : vector<256xf32>
    %280 = vector.multi_reduction <add>, %279, %cst_67 [0] : vector<8x256xf32> to vector<256xf32>
    %281 = vector.shape_cast %280 : vector<256xf32> to vector<1x256xf32>
    %cst_68 = arith.constant 0.353553385 : f32
    %282 = vector.broadcast %cst_68 : f32 to vector<1x256xf32>
    %283 = arith.mulf %281, %282 : vector<1x256xf32>
    %284 = vector.extract_strided_slice %92 {offsets = [24, 0], sizes = [8, 256], strides = [1, 1]} : vector<32x256xf32> to vector<8x256xf32>
    %285 = arith.mulf %265, %284 : vector<8x256xf32>
    %cst_69 = arith.constant dense<0.000000e+00> : vector<256xf32>
    %286 = vector.multi_reduction <add>, %285, %cst_69 [0] : vector<8x256xf32> to vector<256xf32>
    %287 = vector.shape_cast %286 : vector<256xf32> to vector<1x256xf32>
    %cst_70 = arith.constant 0.353553385 : f32
    %288 = vector.broadcast %cst_70 : f32 to vector<1x256xf32>
    %289 = arith.mulf %287, %288 : vector<1x256xf32>
    %290 = arith.maximumf %271, %277 : vector<1x256xf32>
    %291 = arith.maximumf %290, %283 : vector<1x256xf32>
    %292 = arith.maximumf %291, %289 : vector<1x256xf32>
    %293 = arith.subf %271, %292 : vector<1x256xf32>
    %294 = math.exp %293 : vector<1x256xf32>
    %295 = arith.subf %277, %292 : vector<1x256xf32>
    %296 = math.exp %295 : vector<1x256xf32>
    %297 = arith.subf %283, %292 : vector<1x256xf32>
    %298 = math.exp %297 : vector<1x256xf32>
    %299 = arith.subf %289, %292 : vector<1x256xf32>
    %300 = math.exp %299 : vector<1x256xf32>
    %301 = arith.addf %294, %296 : vector<1x256xf32>
    %302 = arith.addf %301, %298 : vector<1x256xf32>
    %303 = arith.addf %302, %300 : vector<1x256xf32>
    %304 = vector.extract_strided_slice %95 {offsets = [0, 0], sizes = [8, 256], strides = [1, 1]} : vector<32x256xf32> to vector<8x256xf32>
    %305 = vector.broadcast %294 : vector<1x256xf32> to vector<8x256xf32>
    %306 = arith.mulf %305, %304 : vector<8x256xf32>
    %307 = vector.extract_strided_slice %95 {offsets = [8, 0], sizes = [8, 256], strides = [1, 1]} : vector<32x256xf32> to vector<8x256xf32>
    %308 = vector.broadcast %296 : vector<1x256xf32> to vector<8x256xf32>
    %309 = arith.mulf %308, %307 : vector<8x256xf32>
    %310 = arith.addf %306, %309 : vector<8x256xf32>
    %311 = vector.extract_strided_slice %95 {offsets = [16, 0], sizes = [8, 256], strides = [1, 1]} : vector<32x256xf32> to vector<8x256xf32>
    %312 = vector.broadcast %298 : vector<1x256xf32> to vector<8x256xf32>
    %313 = arith.mulf %312, %311 : vector<8x256xf32>
    %314 = arith.addf %310, %313 : vector<8x256xf32>
    %315 = vector.extract_strided_slice %95 {offsets = [24, 0], sizes = [8, 256], strides = [1, 1]} : vector<32x256xf32> to vector<8x256xf32>
    %316 = vector.broadcast %300 : vector<1x256xf32> to vector<8x256xf32>
    %317 = arith.mulf %316, %315 : vector<8x256xf32>
    %318 = arith.addf %314, %317 : vector<8x256xf32>
    %319 = vector.broadcast %303 : vector<1x256xf32> to vector<8x256xf32>
    %320 = arith.divf %318, %319 : vector<8x256xf32>
    %321 = tpu.concatenate %152, %208, %264, %320 in 0 : vector<8x256xf32>, vector<8x256xf32>, vector<8x256xf32>, vector<8x256xf32> -> vector<32x256xf32>
    %c0_71 = arith.constant 0 : index
    %c0_72 = arith.constant 0 : index
    %322 = vector.load %arg12[%c0_71, %c0_72] : memref<32x32xbf16, #tpu.memory_space<vmem>>, vector<32x32xbf16>
    %323 = arith.truncf %321 : vector<32x256xf32> to vector<32x256xbf16>
    %cst_73 = arith.constant dense<0.000000e+00> : vector<32x256xf32>
    %324 = tpu.matmul %322, %323, %cst_73 {dimension_numbers = #tpu.dot_dimension_numbers<[1], [0], [0], [1], [0, 0, 1, 1], [], []>} : vector<32x32xbf16>, vector<32x256xbf16>, vector<32x256xf32> -> vector<32x256xf32>
    %c0_74 = arith.constant 0 : index
    %c0_75 = arith.constant 0 : index
    %325 = vector.load %arg13[%c0_74, %c0_75] : memref<32x1xf32, #tpu.memory_space<vmem>>, vector<32x1xf32>
    %326 = vector.broadcast %325 : vector<32x1xf32> to vector<32x256xf32>
    %327 = arith.addf %324, %326 : vector<32x256xf32>
    %328 = arith.addf %327, %51 : vector<32x256xf32>
    %c0_76 = arith.constant 0 : index
    %c0_77 = arith.constant 0 : index
    %329 = vector.load %arg14[%c0_76, %c0_77] : memref<32x1xf32, #tpu.memory_space<vmem>>, vector<32x1xf32>
    %c0_78 = arith.constant 0 : index
    %c0_79 = arith.constant 0 : index
    %330 = vector.load %arg15[%c0_78, %c0_79] : memref<32x1xf32, #tpu.memory_space<vmem>>, vector<32x1xf32>
    %cst_80 = arith.constant dense<0.000000e+00> : vector<256xf32>
    %331 = vector.multi_reduction <add>, %328, %cst_80 [0] : vector<32x256xf32> to vector<256xf32>
    %332 = vector.shape_cast %331 : vector<256xf32> to vector<1x256xf32>
    %cst_81 = arith.constant 3.200000e+01 : f32
    %333 = vector.broadcast %cst_81 : f32 to vector<1x256xf32>
    %334 = arith.divf %332, %333 : vector<1x256xf32>
    %335 = vector.broadcast %334 : vector<1x256xf32> to vector<32x256xf32>
    %336 = arith.subf %328, %335 : vector<32x256xf32>
    %337 = arith.mulf %336, %336 : vector<32x256xf32>
    %cst_82 = arith.constant dense<0.000000e+00> : vector<256xf32>
    %338 = vector.multi_reduction <add>, %337, %cst_82 [0] : vector<32x256xf32> to vector<256xf32>
    %339 = vector.shape_cast %338 : vector<256xf32> to vector<1x256xf32>
    %cst_83 = arith.constant 3.200000e+01 : f32
    %340 = vector.broadcast %cst_83 : f32 to vector<1x256xf32>
    %341 = arith.divf %339, %340 : vector<1x256xf32>
    %342 = vector.broadcast %334 : vector<1x256xf32> to vector<32x256xf32>
    %343 = arith.subf %328, %342 : vector<32x256xf32>
    %cst_84 = arith.constant 9.99999974E-6 : f32
    %344 = vector.broadcast %cst_84 : f32 to vector<1x256xf32>
    %345 = arith.addf %341, %344 : vector<1x256xf32>
    %346 = math.rsqrt %345 : vector<1x256xf32>
    %347 = vector.broadcast %346 : vector<1x256xf32> to vector<32x256xf32>
    %348 = arith.mulf %343, %347 : vector<32x256xf32>
    %349 = vector.broadcast %329 : vector<32x1xf32> to vector<32x256xf32>
    %350 = arith.mulf %348, %349 : vector<32x256xf32>
    %351 = vector.broadcast %330 : vector<32x1xf32> to vector<32x256xf32>
    %352 = arith.addf %350, %351 : vector<32x256xf32>
    %c0_85 = arith.constant 0 : index
    %c0_86 = arith.constant 0 : index
    %353 = vector.load %arg16[%c0_85, %c0_86] : memref<32x32xbf16, #tpu.memory_space<vmem>>, vector<32x32xbf16>
    %354 = arith.truncf %352 : vector<32x256xf32> to vector<32x256xbf16>
    %cst_87 = arith.constant dense<0.000000e+00> : vector<32x256xf32>
    %355 = tpu.matmul %353, %354, %cst_87 {dimension_numbers = #tpu.dot_dimension_numbers<[1], [0], [0], [1], [0, 0, 1, 1], [], []>} : vector<32x32xbf16>, vector<32x256xbf16>, vector<32x256xf32> -> vector<32x256xf32>
    %c0_88 = arith.constant 0 : index
    %c0_89 = arith.constant 0 : index
    %356 = vector.load %arg17[%c0_88, %c0_89] : memref<64x32xbf16, #tpu.memory_space<vmem>>, vector<64x32xbf16>
    %357 = arith.truncf %57 : vector<32x256xf32> to vector<32x256xbf16>
    %cst_90 = arith.constant dense<0.000000e+00> : vector<64x256xf32>
    %358 = tpu.matmul %356, %357, %cst_90 {dimension_numbers = #tpu.dot_dimension_numbers<[1], [0], [0], [1], [0, 0, 1, 1], [], []>} : vector<64x32xbf16>, vector<32x256xbf16>, vector<64x256xf32> -> vector<64x256xf32>
    %359 = vector.extract_strided_slice %358 {offsets = [0, 0], sizes = [64, 128], strides = [1, 1]} : vector<64x256xf32> to vector<64x128xf32>
    %cst_91 = arith.constant dense<0.000000e+00> : vector<64x256xf32>
    %360 = tpu.matmul %359, %16, %cst_91 {dimension_numbers = #tpu.dot_dimension_numbers<[1], [0], [0], [1], [0, 0, 1, 1], [], []>} : vector<64x128xf32>, vector<128x256xf32>, vector<64x256xf32> -> vector<64x256xf32>
    %361 = vector.extract_strided_slice %358 {offsets = [0, 128], sizes = [64, 128], strides = [1, 1]} : vector<64x256xf32> to vector<64x128xf32>
    %cst_92 = arith.constant dense<0.000000e+00> : vector<64x256xf32>
    %362 = tpu.matmul %361, %16, %cst_92 {dimension_numbers = #tpu.dot_dimension_numbers<[1], [0], [0], [1], [0, 0, 1, 1], [], []>} : vector<64x128xf32>, vector<128x256xf32>, vector<64x256xf32> -> vector<64x256xf32>
    %363 = vector.extract_strided_slice %360 {offsets = [0, 0], sizes = [32, 256], strides = [1, 1]} : vector<64x256xf32> to vector<32x256xf32>
    %364 = vector.extract_strided_slice %360 {offsets = [32, 0], sizes = [32, 256], strides = [1, 1]} : vector<64x256xf32> to vector<32x256xf32>
    %365 = arith.select %21, %363, %364 : vector<32x256xi1>, vector<32x256xf32>
    %366 = vector.extract_strided_slice %362 {offsets = [0, 0], sizes = [32, 256], strides = [1, 1]} : vector<64x256xf32> to vector<32x256xf32>
    %367 = vector.extract_strided_slice %362 {offsets = [32, 0], sizes = [32, 256], strides = [1, 1]} : vector<64x256xf32> to vector<32x256xf32>
    %368 = arith.select %21, %366, %367 : vector<32x256xi1>, vector<32x256xf32>
    %369 = vector.extract_strided_slice %355 {offsets = [0, 0], sizes = [8, 256], strides = [1, 1]} : vector<32x256xf32> to vector<8x256xf32>
    %370 = vector.extract_strided_slice %365 {offsets = [0, 0], sizes = [8, 256], strides = [1, 1]} : vector<32x256xf32> to vector<8x256xf32>
    %371 = arith.mulf %369, %370 : vector<8x256xf32>
    %cst_93 = arith.constant dense<0.000000e+00> : vector<256xf32>
    %372 = vector.multi_reduction <add>, %371, %cst_93 [0] : vector<8x256xf32> to vector<256xf32>
    %373 = vector.shape_cast %372 : vector<256xf32> to vector<1x256xf32>
    %cst_94 = arith.constant 0.353553385 : f32
    %374 = vector.broadcast %cst_94 : f32 to vector<1x256xf32>
    %375 = arith.mulf %373, %374 : vector<1x256xf32>
    %376 = vector.extract_strided_slice %365 {offsets = [8, 0], sizes = [8, 256], strides = [1, 1]} : vector<32x256xf32> to vector<8x256xf32>
    %377 = arith.mulf %369, %376 : vector<8x256xf32>
    %cst_95 = arith.constant dense<0.000000e+00> : vector<256xf32>
    %378 = vector.multi_reduction <add>, %377, %cst_95 [0] : vector<8x256xf32> to vector<256xf32>
    %379 = vector.shape_cast %378 : vector<256xf32> to vector<1x256xf32>
    %cst_96 = arith.constant 0.353553385 : f32
    %380 = vector.broadcast %cst_96 : f32 to vector<1x256xf32>
    %381 = arith.mulf %379, %380 : vector<1x256xf32>
    %382 = vector.extract_strided_slice %365 {offsets = [16, 0], sizes = [8, 256], strides = [1, 1]} : vector<32x256xf32> to vector<8x256xf32>
    %383 = arith.mulf %369, %382 : vector<8x256xf32>
    %cst_97 = arith.constant dense<0.000000e+00> : vector<256xf32>
    %384 = vector.multi_reduction <add>, %383, %cst_97 [0] : vector<8x256xf32> to vector<256xf32>
    %385 = vector.shape_cast %384 : vector<256xf32> to vector<1x256xf32>
    %cst_98 = arith.constant 0.353553385 : f32
    %386 = vector.broadcast %cst_98 : f32 to vector<1x256xf32>
    %387 = arith.mulf %385, %386 : vector<1x256xf32>
    %388 = vector.extract_strided_slice %365 {offsets = [24, 0], sizes = [8, 256], strides = [1, 1]} : vector<32x256xf32> to vector<8x256xf32>
    %389 = arith.mulf %369, %388 : vector<8x256xf32>
    %cst_99 = arith.constant dense<0.000000e+00> : vector<256xf32>
    %390 = vector.multi_reduction <add>, %389, %cst_99 [0] : vector<8x256xf32> to vector<256xf32>
    %391 = vector.shape_cast %390 : vector<256xf32> to vector<1x256xf32>
    %cst_100 = arith.constant 0.353553385 : f32
    %392 = vector.broadcast %cst_100 : f32 to vector<1x256xf32>
    %393 = arith.mulf %391, %392 : vector<1x256xf32>
    %394 = arith.maximumf %375, %381 : vector<1x256xf32>
    %395 = arith.maximumf %394, %387 : vector<1x256xf32>
    %396 = arith.maximumf %395, %393 : vector<1x256xf32>
    %397 = arith.subf %375, %396 : vector<1x256xf32>
    %398 = math.exp %397 : vector<1x256xf32>
    %399 = arith.subf %381, %396 : vector<1x256xf32>
    %400 = math.exp %399 : vector<1x256xf32>
    %401 = arith.subf %387, %396 : vector<1x256xf32>
    %402 = math.exp %401 : vector<1x256xf32>
    %403 = arith.subf %393, %396 : vector<1x256xf32>
    %404 = math.exp %403 : vector<1x256xf32>
    %405 = arith.addf %398, %400 : vector<1x256xf32>
    %406 = arith.addf %405, %402 : vector<1x256xf32>
    %407 = arith.addf %406, %404 : vector<1x256xf32>
    %408 = vector.extract_strided_slice %368 {offsets = [0, 0], sizes = [8, 256], strides = [1, 1]} : vector<32x256xf32> to vector<8x256xf32>
    %409 = vector.broadcast %398 : vector<1x256xf32> to vector<8x256xf32>
    %410 = arith.mulf %409, %408 : vector<8x256xf32>
    %411 = vector.extract_strided_slice %368 {offsets = [8, 0], sizes = [8, 256], strides = [1, 1]} : vector<32x256xf32> to vector<8x256xf32>
    %412 = vector.broadcast %400 : vector<1x256xf32> to vector<8x256xf32>
    %413 = arith.mulf %412, %411 : vector<8x256xf32>
    %414 = arith.addf %410, %413 : vector<8x256xf32>
    %415 = vector.extract_strided_slice %368 {offsets = [16, 0], sizes = [8, 256], strides = [1, 1]} : vector<32x256xf32> to vector<8x256xf32>
    %416 = vector.broadcast %402 : vector<1x256xf32> to vector<8x256xf32>
    %417 = arith.mulf %416, %415 : vector<8x256xf32>
    %418 = arith.addf %414, %417 : vector<8x256xf32>
    %419 = vector.extract_strided_slice %368 {offsets = [24, 0], sizes = [8, 256], strides = [1, 1]} : vector<32x256xf32> to vector<8x256xf32>
    %420 = vector.broadcast %404 : vector<1x256xf32> to vector<8x256xf32>
    %421 = arith.mulf %420, %419 : vector<8x256xf32>
    %422 = arith.addf %418, %421 : vector<8x256xf32>
    %423 = vector.broadcast %407 : vector<1x256xf32> to vector<8x256xf32>
    %424 = arith.divf %422, %423 : vector<8x256xf32>
    %425 = vector.extract_strided_slice %355 {offsets = [8, 0], sizes = [8, 256], strides = [1, 1]} : vector<32x256xf32> to vector<8x256xf32>
    %426 = vector.extract_strided_slice %365 {offsets = [0, 0], sizes = [8, 256], strides = [1, 1]} : vector<32x256xf32> to vector<8x256xf32>
    %427 = arith.mulf %425, %426 : vector<8x256xf32>
    %cst_101 = arith.constant dense<0.000000e+00> : vector<256xf32>
    %428 = vector.multi_reduction <add>, %427, %cst_101 [0] : vector<8x256xf32> to vector<256xf32>
    %429 = vector.shape_cast %428 : vector<256xf32> to vector<1x256xf32>
    %cst_102 = arith.constant 0.353553385 : f32
    %430 = vector.broadcast %cst_102 : f32 to vector<1x256xf32>
    %431 = arith.mulf %429, %430 : vector<1x256xf32>
    %432 = vector.extract_strided_slice %365 {offsets = [8, 0], sizes = [8, 256], strides = [1, 1]} : vector<32x256xf32> to vector<8x256xf32>
    %433 = arith.mulf %425, %432 : vector<8x256xf32>
    %cst_103 = arith.constant dense<0.000000e+00> : vector<256xf32>
    %434 = vector.multi_reduction <add>, %433, %cst_103 [0] : vector<8x256xf32> to vector<256xf32>
    %435 = vector.shape_cast %434 : vector<256xf32> to vector<1x256xf32>
    %cst_104 = arith.constant 0.353553385 : f32
    %436 = vector.broadcast %cst_104 : f32 to vector<1x256xf32>
    %437 = arith.mulf %435, %436 : vector<1x256xf32>
    %438 = vector.extract_strided_slice %365 {offsets = [16, 0], sizes = [8, 256], strides = [1, 1]} : vector<32x256xf32> to vector<8x256xf32>
    %439 = arith.mulf %425, %438 : vector<8x256xf32>
    %cst_105 = arith.constant dense<0.000000e+00> : vector<256xf32>
    %440 = vector.multi_reduction <add>, %439, %cst_105 [0] : vector<8x256xf32> to vector<256xf32>
    %441 = vector.shape_cast %440 : vector<256xf32> to vector<1x256xf32>
    %cst_106 = arith.constant 0.353553385 : f32
    %442 = vector.broadcast %cst_106 : f32 to vector<1x256xf32>
    %443 = arith.mulf %441, %442 : vector<1x256xf32>
    %444 = vector.extract_strided_slice %365 {offsets = [24, 0], sizes = [8, 256], strides = [1, 1]} : vector<32x256xf32> to vector<8x256xf32>
    %445 = arith.mulf %425, %444 : vector<8x256xf32>
    %cst_107 = arith.constant dense<0.000000e+00> : vector<256xf32>
    %446 = vector.multi_reduction <add>, %445, %cst_107 [0] : vector<8x256xf32> to vector<256xf32>
    %447 = vector.shape_cast %446 : vector<256xf32> to vector<1x256xf32>
    %cst_108 = arith.constant 0.353553385 : f32
    %448 = vector.broadcast %cst_108 : f32 to vector<1x256xf32>
    %449 = arith.mulf %447, %448 : vector<1x256xf32>
    %450 = arith.maximumf %431, %437 : vector<1x256xf32>
    %451 = arith.maximumf %450, %443 : vector<1x256xf32>
    %452 = arith.maximumf %451, %449 : vector<1x256xf32>
    %453 = arith.subf %431, %452 : vector<1x256xf32>
    %454 = math.exp %453 : vector<1x256xf32>
    %455 = arith.subf %437, %452 : vector<1x256xf32>
    %456 = math.exp %455 : vector<1x256xf32>
    %457 = arith.subf %443, %452 : vector<1x256xf32>
    %458 = math.exp %457 : vector<1x256xf32>
    %459 = arith.subf %449, %452 : vector<1x256xf32>
    %460 = math.exp %459 : vector<1x256xf32>
    %461 = arith.addf %454, %456 : vector<1x256xf32>
    %462 = arith.addf %461, %458 : vector<1x256xf32>
    %463 = arith.addf %462, %460 : vector<1x256xf32>
    %464 = vector.extract_strided_slice %368 {offsets = [0, 0], sizes = [8, 256], strides = [1, 1]} : vector<32x256xf32> to vector<8x256xf32>
    %465 = vector.broadcast %454 : vector<1x256xf32> to vector<8x256xf32>
    %466 = arith.mulf %465, %464 : vector<8x256xf32>
    %467 = vector.extract_strided_slice %368 {offsets = [8, 0], sizes = [8, 256], strides = [1, 1]} : vector<32x256xf32> to vector<8x256xf32>
    %468 = vector.broadcast %456 : vector<1x256xf32> to vector<8x256xf32>
    %469 = arith.mulf %468, %467 : vector<8x256xf32>
    %470 = arith.addf %466, %469 : vector<8x256xf32>
    %471 = vector.extract_strided_slice %368 {offsets = [16, 0], sizes = [8, 256], strides = [1, 1]} : vector<32x256xf32> to vector<8x256xf32>
    %472 = vector.broadcast %458 : vector<1x256xf32> to vector<8x256xf32>
    %473 = arith.mulf %472, %471 : vector<8x256xf32>
    %474 = arith.addf %470, %473 : vector<8x256xf32>
    %475 = vector.extract_strided_slice %368 {offsets = [24, 0], sizes = [8, 256], strides = [1, 1]} : vector<32x256xf32> to vector<8x256xf32>
    %476 = vector.broadcast %460 : vector<1x256xf32> to vector<8x256xf32>
    %477 = arith.mulf %476, %475 : vector<8x256xf32>
    %478 = arith.addf %474, %477 : vector<8x256xf32>
    %479 = vector.broadcast %463 : vector<1x256xf32> to vector<8x256xf32>
    %480 = arith.divf %478, %479 : vector<8x256xf32>
    %481 = vector.extract_strided_slice %355 {offsets = [16, 0], sizes = [8, 256], strides = [1, 1]} : vector<32x256xf32> to vector<8x256xf32>
    %482 = vector.extract_strided_slice %365 {offsets = [0, 0], sizes = [8, 256], strides = [1, 1]} : vector<32x256xf32> to vector<8x256xf32>
    %483 = arith.mulf %481, %482 : vector<8x256xf32>
    %cst_109 = arith.constant dense<0.000000e+00> : vector<256xf32>
    %484 = vector.multi_reduction <add>, %483, %cst_109 [0] : vector<8x256xf32> to vector<256xf32>
    %485 = vector.shape_cast %484 : vector<256xf32> to vector<1x256xf32>
    %cst_110 = arith.constant 0.353553385 : f32
    %486 = vector.broadcast %cst_110 : f32 to vector<1x256xf32>
    %487 = arith.mulf %485, %486 : vector<1x256xf32>
    %488 = vector.extract_strided_slice %365 {offsets = [8, 0], sizes = [8, 256], strides = [1, 1]} : vector<32x256xf32> to vector<8x256xf32>
    %489 = arith.mulf %481, %488 : vector<8x256xf32>
    %cst_111 = arith.constant dense<0.000000e+00> : vector<256xf32>
    %490 = vector.multi_reduction <add>, %489, %cst_111 [0] : vector<8x256xf32> to vector<256xf32>
    %491 = vector.shape_cast %490 : vector<256xf32> to vector<1x256xf32>
    %cst_112 = arith.constant 0.353553385 : f32
    %492 = vector.broadcast %cst_112 : f32 to vector<1x256xf32>
    %493 = arith.mulf %491, %492 : vector<1x256xf32>
    %494 = vector.extract_strided_slice %365 {offsets = [16, 0], sizes = [8, 256], strides = [1, 1]} : vector<32x256xf32> to vector<8x256xf32>
    %495 = arith.mulf %481, %494 : vector<8x256xf32>
    %cst_113 = arith.constant dense<0.000000e+00> : vector<256xf32>
    %496 = vector.multi_reduction <add>, %495, %cst_113 [0] : vector<8x256xf32> to vector<256xf32>
    %497 = vector.shape_cast %496 : vector<256xf32> to vector<1x256xf32>
    %cst_114 = arith.constant 0.353553385 : f32
    %498 = vector.broadcast %cst_114 : f32 to vector<1x256xf32>
    %499 = arith.mulf %497, %498 : vector<1x256xf32>
    %500 = vector.extract_strided_slice %365 {offsets = [24, 0], sizes = [8, 256], strides = [1, 1]} : vector<32x256xf32> to vector<8x256xf32>
    %501 = arith.mulf %481, %500 : vector<8x256xf32>
    %cst_115 = arith.constant dense<0.000000e+00> : vector<256xf32>
    %502 = vector.multi_reduction <add>, %501, %cst_115 [0] : vector<8x256xf32> to vector<256xf32>
    %503 = vector.shape_cast %502 : vector<256xf32> to vector<1x256xf32>
    %cst_116 = arith.constant 0.353553385 : f32
    %504 = vector.broadcast %cst_116 : f32 to vector<1x256xf32>
    %505 = arith.mulf %503, %504 : vector<1x256xf32>
    %506 = arith.maximumf %487, %493 : vector<1x256xf32>
    %507 = arith.maximumf %506, %499 : vector<1x256xf32>
    %508 = arith.maximumf %507, %505 : vector<1x256xf32>
    %509 = arith.subf %487, %508 : vector<1x256xf32>
    %510 = math.exp %509 : vector<1x256xf32>
    %511 = arith.subf %493, %508 : vector<1x256xf32>
    %512 = math.exp %511 : vector<1x256xf32>
    %513 = arith.subf %499, %508 : vector<1x256xf32>
    %514 = math.exp %513 : vector<1x256xf32>
    %515 = arith.subf %505, %508 : vector<1x256xf32>
    %516 = math.exp %515 : vector<1x256xf32>
    %517 = arith.addf %510, %512 : vector<1x256xf32>
    %518 = arith.addf %517, %514 : vector<1x256xf32>
    %519 = arith.addf %518, %516 : vector<1x256xf32>
    %520 = vector.extract_strided_slice %368 {offsets = [0, 0], sizes = [8, 256], strides = [1, 1]} : vector<32x256xf32> to vector<8x256xf32>
    %521 = vector.broadcast %510 : vector<1x256xf32> to vector<8x256xf32>
    %522 = arith.mulf %521, %520 : vector<8x256xf32>
    %523 = vector.extract_strided_slice %368 {offsets = [8, 0], sizes = [8, 256], strides = [1, 1]} : vector<32x256xf32> to vector<8x256xf32>
    %524 = vector.broadcast %512 : vector<1x256xf32> to vector<8x256xf32>
    %525 = arith.mulf %524, %523 : vector<8x256xf32>
    %526 = arith.addf %522, %525 : vector<8x256xf32>
    %527 = vector.extract_strided_slice %368 {offsets = [16, 0], sizes = [8, 256], strides = [1, 1]} : vector<32x256xf32> to vector<8x256xf32>
    %528 = vector.broadcast %514 : vector<1x256xf32> to vector<8x256xf32>
    %529 = arith.mulf %528, %527 : vector<8x256xf32>
    %530 = arith.addf %526, %529 : vector<8x256xf32>
    %531 = vector.extract_strided_slice %368 {offsets = [24, 0], sizes = [8, 256], strides = [1, 1]} : vector<32x256xf32> to vector<8x256xf32>
    %532 = vector.broadcast %516 : vector<1x256xf32> to vector<8x256xf32>
    %533 = arith.mulf %532, %531 : vector<8x256xf32>
    %534 = arith.addf %530, %533 : vector<8x256xf32>
    %535 = vector.broadcast %519 : vector<1x256xf32> to vector<8x256xf32>
    %536 = arith.divf %534, %535 : vector<8x256xf32>
    %537 = vector.extract_strided_slice %355 {offsets = [24, 0], sizes = [8, 256], strides = [1, 1]} : vector<32x256xf32> to vector<8x256xf32>
    %538 = vector.extract_strided_slice %365 {offsets = [0, 0], sizes = [8, 256], strides = [1, 1]} : vector<32x256xf32> to vector<8x256xf32>
    %539 = arith.mulf %537, %538 : vector<8x256xf32>
    %cst_117 = arith.constant dense<0.000000e+00> : vector<256xf32>
    %540 = vector.multi_reduction <add>, %539, %cst_117 [0] : vector<8x256xf32> to vector<256xf32>
    %541 = vector.shape_cast %540 : vector<256xf32> to vector<1x256xf32>
    %cst_118 = arith.constant 0.353553385 : f32
    %542 = vector.broadcast %cst_118 : f32 to vector<1x256xf32>
    %543 = arith.mulf %541, %542 : vector<1x256xf32>
    %544 = vector.extract_strided_slice %365 {offsets = [8, 0], sizes = [8, 256], strides = [1, 1]} : vector<32x256xf32> to vector<8x256xf32>
    %545 = arith.mulf %537, %544 : vector<8x256xf32>
    %cst_119 = arith.constant dense<0.000000e+00> : vector<256xf32>
    %546 = vector.multi_reduction <add>, %545, %cst_119 [0] : vector<8x256xf32> to vector<256xf32>
    %547 = vector.shape_cast %546 : vector<256xf32> to vector<1x256xf32>
    %cst_120 = arith.constant 0.353553385 : f32
    %548 = vector.broadcast %cst_120 : f32 to vector<1x256xf32>
    %549 = arith.mulf %547, %548 : vector<1x256xf32>
    %550 = vector.extract_strided_slice %365 {offsets = [16, 0], sizes = [8, 256], strides = [1, 1]} : vector<32x256xf32> to vector<8x256xf32>
    %551 = arith.mulf %537, %550 : vector<8x256xf32>
    %cst_121 = arith.constant dense<0.000000e+00> : vector<256xf32>
    %552 = vector.multi_reduction <add>, %551, %cst_121 [0] : vector<8x256xf32> to vector<256xf32>
    %553 = vector.shape_cast %552 : vector<256xf32> to vector<1x256xf32>
    %cst_122 = arith.constant 0.353553385 : f32
    %554 = vector.broadcast %cst_122 : f32 to vector<1x256xf32>
    %555 = arith.mulf %553, %554 : vector<1x256xf32>
    %556 = vector.extract_strided_slice %365 {offsets = [24, 0], sizes = [8, 256], strides = [1, 1]} : vector<32x256xf32> to vector<8x256xf32>
    %557 = arith.mulf %537, %556 : vector<8x256xf32>
    %cst_123 = arith.constant dense<0.000000e+00> : vector<256xf32>
    %558 = vector.multi_reduction <add>, %557, %cst_123 [0] : vector<8x256xf32> to vector<256xf32>
    %559 = vector.shape_cast %558 : vector<256xf32> to vector<1x256xf32>
    %cst_124 = arith.constant 0.353553385 : f32
    %560 = vector.broadcast %cst_124 : f32 to vector<1x256xf32>
    %561 = arith.mulf %559, %560 : vector<1x256xf32>
    %562 = arith.maximumf %543, %549 : vector<1x256xf32>
    %563 = arith.maximumf %562, %555 : vector<1x256xf32>
    %564 = arith.maximumf %563, %561 : vector<1x256xf32>
    %565 = arith.subf %543, %564 : vector<1x256xf32>
    %566 = math.exp %565 : vector<1x256xf32>
    %567 = arith.subf %549, %564 : vector<1x256xf32>
    %568 = math.exp %567 : vector<1x256xf32>
    %569 = arith.subf %555, %564 : vector<1x256xf32>
    %570 = math.exp %569 : vector<1x256xf32>
    %571 = arith.subf %561, %564 : vector<1x256xf32>
    %572 = math.exp %571 : vector<1x256xf32>
    %573 = arith.addf %566, %568 : vector<1x256xf32>
    %574 = arith.addf %573, %570 : vector<1x256xf32>
    %575 = arith.addf %574, %572 : vector<1x256xf32>
    %576 = vector.extract_strided_slice %368 {offsets = [0, 0], sizes = [8, 256], strides = [1, 1]} : vector<32x256xf32> to vector<8x256xf32>
    %577 = vector.broadcast %566 : vector<1x256xf32> to vector<8x256xf32>
    %578 = arith.mulf %577, %576 : vector<8x256xf32>
    %579 = vector.extract_strided_slice %368 {offsets = [8, 0], sizes = [8, 256], strides = [1, 1]} : vector<32x256xf32> to vector<8x256xf32>
    %580 = vector.broadcast %568 : vector<1x256xf32> to vector<8x256xf32>
    %581 = arith.mulf %580, %579 : vector<8x256xf32>
    %582 = arith.addf %578, %581 : vector<8x256xf32>
    %583 = vector.extract_strided_slice %368 {offsets = [16, 0], sizes = [8, 256], strides = [1, 1]} : vector<32x256xf32> to vector<8x256xf32>
    %584 = vector.broadcast %570 : vector<1x256xf32> to vector<8x256xf32>
    %585 = arith.mulf %584, %583 : vector<8x256xf32>
    %586 = arith.addf %582, %585 : vector<8x256xf32>
    %587 = vector.extract_strided_slice %368 {offsets = [24, 0], sizes = [8, 256], strides = [1, 1]} : vector<32x256xf32> to vector<8x256xf32>
    %588 = vector.broadcast %572 : vector<1x256xf32> to vector<8x256xf32>
    %589 = arith.mulf %588, %587 : vector<8x256xf32>
    %590 = arith.addf %586, %589 : vector<8x256xf32>
    %591 = vector.broadcast %575 : vector<1x256xf32> to vector<8x256xf32>
    %592 = arith.divf %590, %591 : vector<8x256xf32>
    %593 = tpu.concatenate %424, %480, %536, %592 in 0 : vector<8x256xf32>, vector<8x256xf32>, vector<8x256xf32>, vector<8x256xf32> -> vector<32x256xf32>
    %c0_125 = arith.constant 0 : index
    %c0_126 = arith.constant 0 : index
    %594 = vector.load %arg18[%c0_125, %c0_126] : memref<32x32xbf16, #tpu.memory_space<vmem>>, vector<32x32xbf16>
    %595 = arith.truncf %593 : vector<32x256xf32> to vector<32x256xbf16>
    %cst_127 = arith.constant dense<0.000000e+00> : vector<32x256xf32>
    %596 = tpu.matmul %594, %595, %cst_127 {dimension_numbers = #tpu.dot_dimension_numbers<[1], [0], [0], [1], [0, 0, 1, 1], [], []>} : vector<32x32xbf16>, vector<32x256xbf16>, vector<32x256xf32> -> vector<32x256xf32>
    %c0_128 = arith.constant 0 : index
    %c0_129 = arith.constant 0 : index
    %597 = vector.load %arg19[%c0_128, %c0_129] : memref<32x1xf32, #tpu.memory_space<vmem>>, vector<32x1xf32>
    %598 = vector.broadcast %597 : vector<32x1xf32> to vector<32x256xf32>
    %599 = arith.addf %596, %598 : vector<32x256xf32>
    %600 = arith.addf %599, %328 : vector<32x256xf32>
    %c0_130 = arith.constant 0 : index
    %c0_131 = arith.constant 0 : index
    %601 = vector.load %arg20[%c0_130, %c0_131] : memref<32x1xf32, #tpu.memory_space<vmem>>, vector<32x1xf32>
    %c0_132 = arith.constant 0 : index
    %c0_133 = arith.constant 0 : index
    %602 = vector.load %arg21[%c0_132, %c0_133] : memref<32x1xf32, #tpu.memory_space<vmem>>, vector<32x1xf32>
    %cst_134 = arith.constant dense<0.000000e+00> : vector<256xf32>
    %603 = vector.multi_reduction <add>, %600, %cst_134 [0] : vector<32x256xf32> to vector<256xf32>
    %604 = vector.shape_cast %603 : vector<256xf32> to vector<1x256xf32>
    %cst_135 = arith.constant 3.200000e+01 : f32
    %605 = vector.broadcast %cst_135 : f32 to vector<1x256xf32>
    %606 = arith.divf %604, %605 : vector<1x256xf32>
    %607 = vector.broadcast %606 : vector<1x256xf32> to vector<32x256xf32>
    %608 = arith.subf %600, %607 : vector<32x256xf32>
    %609 = arith.mulf %608, %608 : vector<32x256xf32>
    %cst_136 = arith.constant dense<0.000000e+00> : vector<256xf32>
    %610 = vector.multi_reduction <add>, %609, %cst_136 [0] : vector<32x256xf32> to vector<256xf32>
    %611 = vector.shape_cast %610 : vector<256xf32> to vector<1x256xf32>
    %cst_137 = arith.constant 3.200000e+01 : f32
    %612 = vector.broadcast %cst_137 : f32 to vector<1x256xf32>
    %613 = arith.divf %611, %612 : vector<1x256xf32>
    %614 = vector.broadcast %606 : vector<1x256xf32> to vector<32x256xf32>
    %615 = arith.subf %600, %614 : vector<32x256xf32>
    %cst_138 = arith.constant 9.99999974E-6 : f32
    %616 = vector.broadcast %cst_138 : f32 to vector<1x256xf32>
    %617 = arith.addf %613, %616 : vector<1x256xf32>
    %618 = math.rsqrt %617 : vector<1x256xf32>
    %619 = vector.broadcast %618 : vector<1x256xf32> to vector<32x256xf32>
    %620 = arith.mulf %615, %619 : vector<32x256xf32>
    %621 = vector.broadcast %601 : vector<32x1xf32> to vector<32x256xf32>
    %622 = arith.mulf %620, %621 : vector<32x256xf32>
    %623 = vector.broadcast %602 : vector<32x1xf32> to vector<32x256xf32>
    %624 = arith.addf %622, %623 : vector<32x256xf32>
    %c0_139 = arith.constant 0 : index
    %c0_140 = arith.constant 0 : index
    %625 = vector.load %arg22[%c0_139, %c0_140] : memref<256x32xbf16, #tpu.memory_space<vmem>>, vector<256x32xbf16>
    %626 = arith.truncf %624 : vector<32x256xf32> to vector<32x256xbf16>
    %cst_141 = arith.constant dense<0.000000e+00> : vector<256x256xf32>
    %627 = tpu.matmul %625, %626, %cst_141 {dimension_numbers = #tpu.dot_dimension_numbers<[1], [0], [0], [1], [0, 0, 1, 1], [], []>} : vector<256x32xbf16>, vector<32x256xbf16>, vector<256x256xf32> -> vector<256x256xf32>
    %c0_142 = arith.constant 0 : index
    %c0_143 = arith.constant 0 : index
    %628 = vector.load %arg23[%c0_142, %c0_143] : memref<256x1xf32, #tpu.memory_space<vmem>>, vector<256x1xf32>
    %629 = vector.broadcast %628 : vector<256x1xf32> to vector<256x256xf32>
    %630 = arith.addf %627, %629 : vector<256x256xf32>
    %631 = vector.extract_strided_slice %630 {offsets = [0, 0], sizes = [128, 256], strides = [1, 1]} : vector<256x256xf32> to vector<128x256xf32>
    %632 = vector.extract_strided_slice %630 {offsets = [128, 0], sizes = [128, 256], strides = [1, 1]} : vector<256x256xf32> to vector<128x256xf32>
    %cst_144 = arith.constant 5.000000e-01 : f32
    %633 = vector.broadcast %cst_144 : f32 to vector<128x256xf32>
    %634 = arith.mulf %633, %632 : vector<128x256xf32>
    %cst_145 = arith.constant 0.707106769 : f32
    %635 = vector.broadcast %cst_145 : f32 to vector<128x256xf32>
    %636 = arith.mulf %632, %635 : vector<128x256xf32>
    %637 = math.erf %636 : vector<128x256xf32>
    %cst_146 = arith.constant 1.000000e+00 : f32
    %638 = vector.broadcast %cst_146 : f32 to vector<128x256xf32>
    %639 = arith.addf %638, %637 : vector<128x256xf32>
    %640 = arith.mulf %634, %639 : vector<128x256xf32>
    %c0_147 = arith.constant 0 : index
    %c0_148 = arith.constant 0 : index
    %641 = vector.load %arg24[%c0_147, %c0_148] : memref<32x128xbf16, #tpu.memory_space<vmem>>, vector<32x128xbf16>
    %642 = arith.mulf %631, %640 : vector<128x256xf32>
    %643 = arith.truncf %642 : vector<128x256xf32> to vector<128x256xbf16>
    %cst_149 = arith.constant dense<0.000000e+00> : vector<32x256xf32>
    %644 = tpu.matmul %641, %643, %cst_149 {dimension_numbers = #tpu.dot_dimension_numbers<[1], [0], [0], [1], [0, 0, 1, 1], [], []>} : vector<32x128xbf16>, vector<128x256xbf16>, vector<32x256xf32> -> vector<32x256xf32>
    %c0_150 = arith.constant 0 : index
    %c0_151 = arith.constant 0 : index
    %645 = vector.load %arg25[%c0_150, %c0_151] : memref<32x1xf32, #tpu.memory_space<vmem>>, vector<32x1xf32>
    %646 = vector.broadcast %645 : vector<32x1xf32> to vector<32x256xf32>
    %647 = arith.addf %644, %646 : vector<32x256xf32>
    %648 = arith.addf %647, %600 : vector<32x256xf32>
    %c0_152 = arith.constant 0 : index
    %c0_153 = arith.constant 0 : index
    %649 = vector.load %arg26[%c0_152, %c0_153] : memref<32x32xbf16, #tpu.memory_space<vmem>>, vector<32x32xbf16>
    %650 = arith.truncf %648 : vector<32x256xf32> to vector<32x256xbf16>
    %cst_154 = arith.constant dense<0.000000e+00> : vector<32x256xf32>
    %651 = tpu.matmul %649, %650, %cst_154 {dimension_numbers = #tpu.dot_dimension_numbers<[1], [0], [0], [1], [0, 0, 1, 1], [], []>} : vector<32x32xbf16>, vector<32x256xbf16>, vector<32x256xf32> -> vector<32x256xf32>
    %c0_155 = arith.constant 0 : index
    %c0_156 = arith.constant 0 : index
    %652 = vector.load %arg27[%c0_155, %c0_156] : memref<32x1xf32, #tpu.memory_space<vmem>>, vector<32x1xf32>
    %653 = vector.broadcast %652 : vector<32x1xf32> to vector<32x256xf32>
    %654 = arith.addf %651, %653 : vector<32x256xf32>
    %655 = arith.addf %654, %1 : vector<32x256xf32>
    %c0_157 = arith.constant 0 : index
    %c0_158 = arith.constant 0 : index
    %c0_159 = arith.constant 0 : index
    %656 = vector.load %arg28[%c0_157, %c0_158, %c0_159] : memref<1x32x256xf32, #tpu.memory_space<vmem>>, vector<1x32x256xf32>
    %657 = vector.shape_cast %656 : vector<1x32x256xf32> to vector<32x256xf32>
    %658 = vector.shape_cast %655 : vector<32x256xf32> to vector<1x32x256xf32>
    tpu.vector_store %arg28[%c0_157, %c0_158, %c0_159], %658 {strides = array<i32>} : memref<1x32x256xf32, #tpu.memory_space<vmem>>, vector<1x32x256xf32>,
    return
  }
  func.func @transform_0(%arg0: i32) -> (i32, i32, i32) {
    %c0_i32 = arith.constant 0 : i32
    %c0_i32_0 = arith.constant 0 : i32
    %c0_i32_1 = arith.constant 0 : i32
    return %arg0, %c0_i32, %c0_i32_0 : i32, i32, i32
  }
  func.func @transform_1(%arg0: i32) -> (i32, i32, i32) {
    %c0_i32 = arith.constant 0 : i32
    %c0_i32_0 = arith.constant 0 : i32
    %c0_i32_1 = arith.constant 0 : i32
    return %arg0, %c0_i32, %c0_i32_0 : i32, i32, i32
  }
  func.func @transform_2(%arg0: i32) -> (i32, i32) {
    %c0_i32 = arith.constant 0 : i32
    %c0_i32_0 = arith.constant 0 : i32
    %c0_i32_1 = arith.constant 0 : i32
    return %c0_i32, %c0_i32_0 : i32, i32
  }
  func.func @transform_3(%arg0: i32) -> (i32, i32) {
    %c0_i32 = arith.constant 0 : i32
    %c0_i32_0 = arith.constant 0 : i32
    %c0_i32_1 = arith.constant 0 : i32
    return %c0_i32, %c0_i32_0 : i32, i32
  }
  func.func @transform_4(%arg0: i32) -> (i32, i32) {
    %c0_i32 = arith.constant 0 : i32
    %c0_i32_0 = arith.constant 0 : i32
    %c0_i32_1 = arith.constant 0 : i32
    return %c0_i32, %c0_i32_0 : i32, i32
  }
  func.func @transform_5(%arg0: i32) -> (i32, i32) {
    %c0_i32 = arith.constant 0 : i32
    %c0_i32_0 = arith.constant 0 : i32
    %c0_i32_1 = arith.constant 0 : i32
    return %c0_i32, %c0_i32_0 : i32, i32
  }
  func.func @transform_6(%arg0: i32) -> (i32, i32) {
    %c0_i32 = arith.constant 0 : i32
    %c0_i32_0 = arith.constant 0 : i32
    %c0_i32_1 = arith.constant 0 : i32
    return %c0_i32, %c0_i32_0 : i32, i32
  }
  func.func @transform_7(%arg0: i32) -> (i32, i32) {
    %c0_i32 = arith.constant 0 : i32
    %c0_i32_0 = arith.constant 0 : i32
    %c0_i32_1 = arith.constant 0 : i32
    return %c0_i32, %c0_i32_0 : i32, i32
  }
  func.func @transform_8(%arg0: i32) -> (i32, i32) {
    %c0_i32 = arith.constant 0 : i32
    %c0_i32_0 = arith.constant 0 : i32
    %c0_i32_1 = arith.constant 0 : i32
    return %c0_i32, %c0_i32_0 : i32, i32
  }
  func.func @transform_9(%arg0: i32) -> (i32, i32) {
    %c0_i32 = arith.constant 0 : i32
    %c0_i32_0 = arith.constant 0 : i32
    %c0_i32_1 = arith.constant 0 : i32
    return %c0_i32, %c0_i32_0 : i32, i32
  }
  func.func @transform_10(%arg0: i32) -> (i32, i32) {
    %c0_i32 = arith.constant 0 : i32
    %c0_i32_0 = arith.constant 0 : i32
    %c0_i32_1 = arith.constant 0 : i32
    return %c0_i32, %c0_i32_0 : i32, i32
  }
  func.func @transform_11(%arg0: i32) -> (i32, i32) {
    %c0_i32 = arith.constant 0 : i32
    %c0_i32_0 = arith.constant 0 : i32
    %c0_i32_1 = arith.constant 0 : i32
    return %c0_i32, %c0_i32_0 : i32, i32
  }
  func.func @transform_12(%arg0: i32) -> (i32, i32) {
    %c0_i32 = arith.constant 0 : i32
    %c0_i32_0 = arith.constant 0 : i32
    %c0_i32_1 = arith.constant 0 : i32
    return %c0_i32, %c0_i32_0 : i32, i32
  }
  func.func @transform_13(%arg0: i32) -> (i32, i32) {
    %c0_i32 = arith.constant 0 : i32
    %c0_i32_0 = arith.constant 0 : i32
    %c0_i32_1 = arith.constant 0 : i32
    return %c0_i32, %c0_i32_0 : i32, i32
  }
  func.func @transform_14(%arg0: i32) -> (i32, i32) {
    %c0_i32 = arith.constant 0 : i32
    %c0_i32_0 = arith.constant 0 : i32
    %c0_i32_1 = arith.constant 0 : i32
    return %c0_i32, %c0_i32_0 : i32, i32
  }
  func.func @transform_15(%arg0: i32) -> (i32, i32) {
    %c0_i32 = arith.constant 0 : i32
    %c0_i32_0 = arith.constant 0 : i32
    %c0_i32_1 = arith.constant 0 : i32
    return %c0_i32, %c0_i32_0 : i32, i32
  }
  func.func @transform_16(%arg0: i32) -> (i32, i32) {
    %c0_i32 = arith.constant 0 : i32
    %c0_i32_0 = arith.constant 0 : i32
    %c0_i32_1 = arith.constant 0 : i32
    return %c0_i32, %c0_i32_0 : i32, i32
  }
  func.func @transform_17(%arg0: i32) -> (i32, i32) {
    %c0_i32 = arith.constant 0 : i32
    %c0_i32_0 = arith.constant 0 : i32
    %c0_i32_1 = arith.constant 0 : i32
    return %c0_i32, %c0_i32_0 : i32, i32
  }
  func.func @transform_18(%arg0: i32) -> (i32, i32) {
    %c0_i32 = arith.constant 0 : i32
    %c0_i32_0 = arith.constant 0 : i32
    %c0_i32_1 = arith.constant 0 : i32
    return %c0_i32, %c0_i32_0 : i32, i32
  }
  func.func @transform_19(%arg0: i32) -> (i32, i32) {
    %c0_i32 = arith.constant 0 : i32
    %c0_i32_0 = arith.constant 0 : i32
    %c0_i32_1 = arith.constant 0 : i32
    return %c0_i32, %c0_i32_0 : i32, i32
  }
  func.func @transform_20(%arg0: i32) -> (i32, i32) {
    %c0_i32 = arith.constant 0 : i32
    %c0_i32_0 = arith.constant 0 : i32
    %c0_i32_1 = arith.constant 0 : i32
    return %c0_i32, %c0_i32_0 : i32, i32
  }
  func.func @transform_21(%arg0: i32) -> (i32, i32) {
    %c0_i32 = arith.constant 0 : i32
    %c0_i32_0 = arith.constant 0 : i32
    %c0_i32_1 = arith.constant 0 : i32
    return %c0_i32, %c0_i32_0 : i32, i32
  }
  func.func @transform_22(%arg0: i32) -> (i32, i32) {
    %c0_i32 = arith.constant 0 : i32
    %c0_i32_0 = arith.constant 0 : i32
    %c0_i32_1 = arith.constant 0 : i32
    return %c0_i32, %c0_i32_0 : i32, i32
  }
  func.func @transform_23(%arg0: i32) -> (i32, i32) {
    %c0_i32 = arith.constant 0 : i32
    %c0_i32_0 = arith.constant 0 : i32
    %c0_i32_1 = arith.constant 0 : i32
    return %c0_i32, %c0_i32_0 : i32, i32
  }
  func.func @transform_24(%arg0: i32) -> (i32, i32) {
    %c0_i32 = arith.constant 0 : i32
    %c0_i32_0 = arith.constant 0 : i32
    %c0_i32_1 = arith.constant 0 : i32
    return %c0_i32, %c0_i32_0 : i32, i32
  }
  func.func @transform_25(%arg0: i32) -> (i32, i32) {
    %c0_i32 = arith.constant 0 : i32
    %c0_i32_0 = arith.constant 0 : i32
    %c0_i32_1 = arith.constant 0 : i32
    return %c0_i32, %c0_i32_0 : i32, i32
  }
  func.func @transform_26(%arg0: i32) -> (i32, i32) {
    %c0_i32 = arith.constant 0 : i32
    %c0_i32_0 = arith.constant 0 : i32
    %c0_i32_1 = arith.constant 0 : i32
    return %c0_i32, %c0_i32_0 : i32, i32
  }
  func.func @transform_27(%arg0: i32) -> (i32, i32, i32) {
    %c0_i32 = arith.constant 0 : i32
    %c0_i32_0 = arith.constant 0 : i32
    %c0_i32_1 = arith.constant 0 : i32
    return %arg0, %c0_i32, %c0_i32_0 : i32, i32, i32
  }
}

</mosaic_0001>

<llo_original>
// kernel: spatial_transformer.1
$region0: #{spatial_transformer.1}
  #allocation0 [shape = 'u32[]', space=smem, size = 0x4, offset = 0x4, fixed_abs, tag = 'smem constant byte address 0x4 - core index']
  #allocation1 [shape = 'u32[72,128]{1,0:T(1,128)}', space=vmem, size = 0x9000, scoped, tag = 'internal scratch']
  %s0 = inlined_call_operand.vmem [shape: f32[2,32,256], index: 0, kind: input, shape index: {}]
  %s1 = inlined_call_operand.vmem [shape: f32[2,8,256], index: 1, kind: input, shape index: {}]
  %s2 = inlined_call_operand.vmem [shape: bf16[32,8], index: 2, kind: input, shape index: {}]
  %s3 = inlined_call_operand.vmem [shape: f32[32,1], index: 3, kind: input, shape index: {}]
  %s4 = inlined_call_operand.vmem [shape: f32[32,1], index: 4, kind: input, shape index: {}]
  %s5 = inlined_call_operand.vmem [shape: f32[32,1], index: 5, kind: input, shape index: {}]
  %s6 = inlined_call_operand.vmem [shape: bf16[32,32], index: 6, kind: input, shape index: {}]
  %s7 = inlined_call_operand.vmem [shape: f32[32,1], index: 7, kind: input, shape index: {}]
  %s8 = inlined_call_operand.vmem [shape: f32[32,1], index: 8, kind: input, shape index: {}]
  %s9 = inlined_call_operand.vmem [shape: f32[32,1], index: 9, kind: input, shape index: {}]
  %s10 = inlined_call_operand.vmem [shape: bf16[96,32], index: 10, kind: input, shape index: {}]
  %s11 = inlined_call_operand.vmem [shape: bf16[32,32], index: 11, kind: input, shape index: {}]
  %s12 = inlined_call_operand.vmem [shape: f32[32,1], index: 12, kind: input, shape index: {}]
  %s13 = inlined_call_operand.vmem [shape: f32[32,1], index: 13, kind: input, shape index: {}]
  %s14 = inlined_call_operand.vmem [shape: f32[32,1], index: 14, kind: input, shape index: {}]
  %s15 = inlined_call_operand.vmem [shape: bf16[32,32], index: 15, kind: input, shape index: {}]
  %s16 = inlined_call_operand.vmem [shape: bf16[64,32], index: 16, kind: input, shape index: {}]
  %s17 = inlined_call_operand.vmem [shape: bf16[32,32], index: 17, kind: input, shape index: {}]
  %s18 = inlined_call_operand.vmem [shape: f32[32,1], index: 18, kind: input, shape index: {}]
  %s19 = inlined_call_operand.vmem [shape: f32[32,1], index: 19, kind: input, shape index: {}]
  %s20 = inlined_call_operand.vmem [shape: f32[32,1], index: 20, kind: input, shape index: {}]
  %s21 = inlined_call_operand.vmem [shape: bf16[256,32], index: 21, kind: input, shape index: {}]
  %s22 = inlined_call_operand.vmem [shape: f32[256,1], index: 22, kind: input, shape index: {}]
  %s23 = inlined_call_operand.vmem [shape: bf16[32,128], index: 23, kind: input, shape index: {}]
  %s24 = inlined_call_operand.vmem [shape: f32[32,1], index: 24, kind: input, shape index: {}]
  %s25 = inlined_call_operand.vmem [shape: bf16[32,32], index: 25, kind: input, shape index: {}]
  %s26 = inlined_call_operand.vmem [shape: f32[32,1], index: 26, kind: input, shape index: {}]
  %s27 = inlined_call_operand.vmem [shape: f32[2,32,256], index: 27, kind: output, shape index: {}]
  %s28 = sld [smem:[#allocation0]]
  $region141: #{spatial_transformer.1} parent=0
    _
  %s30 = ssub.s32 1, %s28
  %s31 = scalar_select 0, %s30, %s28
  loop: start=0, step=1, limit=4
  $region2: #{spatial_transformer.1} parent=0 // loop_pre_header
    _
  $region3: #{spatial_transformer.1} parent=0 // loop_header
    %s33 = sphi 0, %s37
    %p34 = scmp.ge.s32.totalorder %s33, 4
    %s43 = sphi 0, %s45
    %s46 = sphi 0, %s43
    %s47 = sphi 0, %s46
    %s63 = sphi 0, %s47
    %s69 = sphi 0, %s71
    %s72 = sphi 0, %s69
    %s73 = sphi 0, %s72
    %s89 = sphi 0, %s73
    %s93 = sphi 0, %s93
    %s95 = sphi 0, %s93
    %s96 = sphi 0, %s95
    %s110 = sphi 0, %s96
    %s114 = sphi 0, %s114
    %s116 = sphi 0, %s114
    %s117 = sphi 0, %s116
    %s131 = sphi 0, %s117
    %s135 = sphi 0, %s135
    %s137 = sphi 0, %s135
    %s138 = sphi 0, %s137
    %s152 = sphi 0, %s138
    %s156 = sphi 0, %s156
    %s158 = sphi 0, %s156
    %s159 = sphi 0, %s158
    %s173 = sphi 0, %s159
    %s177 = sphi 0, %s177
    %s179 = sphi 0, %s177
    %s180 = sphi 0, %s179
    %s194 = sphi 0, %s180
    %s198 = sphi 0, %s198
    %s200 = sphi 0, %s198
    %s201 = sphi 0, %s200
    %s215 = sphi 0, %s201
    %s219 = sphi 0, %s219
    %s221 = sphi 0, %s219
    %s222 = sphi 0, %s221
    %s236 = sphi 0, %s222
    %s240 = sphi 0, %s240
    %s242 = sphi 0, %s240
    %s243 = sphi 0, %s242
    %s257 = sphi 0, %s243
    %s261 = sphi 0, %s261
    %s263 = sphi 0, %s261
    %s264 = sphi 0, %s263
    %s278 = sphi 0, %s264
    %s282 = sphi 0, %s282
    %s284 = sphi 0, %s282
    %s285 = sphi 0, %s284
    %s299 = sphi 0, %s285
    %s303 = sphi 0, %s303
    %s305 = sphi 0, %s303
    %s306 = sphi 0, %s305
    %s320 = sphi 0, %s306
    %s324 = sphi 0, %s324
    %s326 = sphi 0, %s324
    %s327 = sphi 0, %s326
    %s341 = sphi 0, %s327
    %s345 = sphi 0, %s345
    %s347 = sphi 0, %s345
    %s348 = sphi 0, %s347
    %s362 = sphi 0, %s348
    %s366 = sphi 0, %s366
    %s368 = sphi 0, %s366
    %s369 = sphi 0, %s368
    %s383 = sphi 0, %s369
    %s387 = sphi 0, %s387
    %s389 = sphi 0, %s387
    %s390 = sphi 0, %s389
    %s404 = sphi 0, %s390
    %s408 = sphi 0, %s408
    %s410 = sphi 0, %s408
    %s411 = sphi 0, %s410
    %s425 = sphi 0, %s411
    %s429 = sphi 0, %s429
    %s431 = sphi 0, %s429
    %s432 = sphi 0, %s431
    %s446 = sphi 0, %s432
    %s450 = sphi 0, %s450
    %s452 = sphi 0, %s450
    %s453 = sphi 0, %s452
    %s467 = sphi 0, %s453
    %s471 = sphi 0, %s471
    %s473 = sphi 0, %s471
    %s474 = sphi 0, %s473
    %s488 = sphi 0, %s474
    %s492 = sphi 0, %s492
    %s494 = sphi 0, %s492
    %s495 = sphi 0, %s494
    %s509 = sphi 0, %s495
    %s513 = sphi 0, %s513
    %s515 = sphi 0, %s513
    %s516 = sphi 0, %s515
    %s530 = sphi 0, %s516
    %s534 = sphi 0, %s534
    %s536 = sphi 0, %s534
    %s537 = sphi 0, %s536
    %s551 = sphi 0, %s537
    %s555 = sphi 0, %s555
    %s557 = sphi 0, %s555
    %s558 = sphi 0, %s557
    %s572 = sphi 0, %s558
    %s576 = sphi 0, %s576
    %s578 = sphi 0, %s576
    %s579 = sphi 0, %s578
    %s593 = sphi 0, %s579
    %s597 = sphi 0, %s597
    %s599 = sphi 0, %s597
    %s600 = sphi 0, %s599
    %s614 = sphi 0, %s600
    %s620 = sphi 0, %s622
    %s623 = sphi 0, %s620
    %s624 = sphi 0, %s623
    %s640 = sphi 0, %s624
  $region4: #{spatial_transformer.1} parent=0 // loop_header_branch
    %36 = sbr.rel (%p34) target = $region8
  $region5: #{spatial_transformer.1} parent=0 // loop_body
    %s38 = ssub.s32 %s33, 1
    %s39 = ssub.s32 %s33, 2
    %s40 = sadd.s32 %s33, 1
    %s41 = ssub.s32 %s33, %s40
    %p42 = scmp.eq.s32.totalorder %s41, 0
    %s44 = sadd.s32 %s43, 1
    %s45 = scalar_select %p42, %s43, %s44
    %p48 = pneg %p42
    %p49 = scmp.eq.s32.totalorder %s33, 1
    %p50 = por %p48, %p49
    %p51 = scmp.ne.s32.totalorder %s43, %s46
    %p52 = scmp.eq.s32.totalorder %s33, 0
    %p53 = por %p51, %p52
    %p54 = scmp.ne.s32.totalorder %s43, %s46
    %p55 = scmp.eq.s32.totalorder %s38, 1
    %p56 = por %p54, %p55
    %p57 = scmp.ne.s32.totalorder %s46, %s47
    %p58 = scmp.eq.s32.totalorder %s38, 0
    %p59 = por %p57, %p58
    %p60 = scmp.ne.s32.totalorder %s46, %s47
    %p61 = scmp.eq.s32.totalorder %s39, 1
    %p62 = por %p60, %p61
    %p64 = scmp.ne.s32.totalorder %s47, %s63
    %p65 = scmp.eq.s32.totalorder %s39, 0
    %p66 = por %p64, %p65
    %s67 = ssub.s32 %s33, %s40
    %p68 = scmp.eq.s32.totalorder %s67, 0
    %s70 = sadd.s32 %s69, 1
    %s71 = scalar_select %p68, %s69, %s70
    %p74 = pneg %p68
    %p75 = scmp.eq.s32.totalorder %s33, 1
    %p76 = por %p74, %p75
    %p77 = scmp.ne.s32.totalorder %s69, %s72
    %p78 = scmp.eq.s32.totalorder %s33, 0
    %p79 = por %p77, %p78
    %p80 = scmp.ne.s32.totalorder %s69, %s72
    %p81 = scmp.eq.s32.totalorder %s38, 1
    %p82 = por %p80, %p81
    %p83 = scmp.ne.s32.totalorder %s72, %s73
    %p84 = scmp.eq.s32.totalorder %s38, 0
    %p85 = por %p83, %p84
    %p86 = scmp.ne.s32.totalorder %s72, %s73
    %p87 = scmp.eq.s32.totalorder %s39, 1
    %p88 = por %p86, %p87
    %p90 = scmp.ne.s32.totalorder %s73, %s89
    %p91 = scmp.eq.s32.totalorder %s39, 0
    %p92 = por %p90, %p91
    %s94 = sadd.s32 %s93, 1
    %p97 = scmp.eq.s32.totalorder %s33, 1
    %p98 = scmp.ne.s32.totalorder %s93, %s95
    %p99 = scmp.eq.s32.totalorder %s33, 0
    %p100 = por %p98, %p99
    %p101 = scmp.ne.s32.totalorder %s93, %s95
    %p102 = scmp.eq.s32.totalorder %s38, 1
    %p103 = por %p101, %p102
    %p104 = scmp.ne.s32.totalorder %s95, %s96
    %p105 = scmp.eq.s32.totalorder %s38, 0
    %p106 = por %p104, %p105
    %p107 = scmp.ne.s32.totalorder %s95, %s96
    %p108 = scmp.eq.s32.totalorder %s39, 1
    %p109 = por %p107, %p108
    %p111 = scmp.ne.s32.totalorder %s96, %s110
    %p112 = scmp.eq.s32.totalorder %s39, 0
    %p113 = por %p111, %p112
    %s115 = sadd.s32 %s114, 1
    %p118 = scmp.eq.s32.totalorder %s33, 1
    %p119 = scmp.ne.s32.totalorder %s114, %s116
    %p120 = scmp.eq.s32.totalorder %s33, 0
    %p121 = por %p119, %p120
    %p122 = scmp.ne.s32.totalorder %s114, %s116
    %p123 = scmp.eq.s32.totalorder %s38, 1
    %p124 = por %p122, %p123
    %p125 = scmp.ne.s32.totalorder %s116, %s117
    %p126 = scmp.eq.s32.totalorder %s38, 0
    %p127 = por %p125, %p126
    %p128 = scmp.ne.s32.totalorder %s116, %s117
    %p129 = scmp.eq.s32.totalorder %s39, 1
    %p130 = por %p128, %p129
    %p132 = scmp.ne.s32.totalorder %s117, %s131
    %p133 = scmp.eq.s32.totalorder %s39, 0
    %p134 = por %p132, %p133
    %s136 = sadd.s32 %s135, 1
    %p139 = scmp.eq.s32.totalorder %s33, 1
    %p140 = scmp.ne.s32.totalorder %s135, %s137
    %p141 = scmp.eq.s32.totalorder %s33, 0
    %p142 = por %p140, %p141
    %p143 = scmp.ne.s32.totalorder %s135, %s137
    %p144 = scmp.eq.s32.totalorder %s38, 1
    %p145 = por %p143, %p144
    %p146 = scmp.ne.s32.totalorder %s137, %s138
    %p147 = scmp.eq.s32.totalorder %s38, 0
    %p148 = por %p146, %p147
    %p149 = scmp.ne.s32.totalorder %s137, %s138
    %p150 = scmp.eq.s32.totalorder %s39, 1
    %p151 = por %p149, %p150
    %p153 = scmp.ne.s32.totalorder %s138, %s152
    %p154 = scmp.eq.s32.totalorder %s39, 0
    %p155 = por %p153, %p154
    %s157 = sadd.s32 %s156, 1
    %p160 = scmp.eq.s32.totalorder %s33, 1
    %p161 = scmp.ne.s32.totalorder %s156, %s158
    %p162 = scmp.eq.s32.totalorder %s33, 0
    %p163 = por %p161, %p162
    %p164 = scmp.ne.s32.totalorder %s156, %s158
    %p165 = scmp.eq.s32.totalorder %s38, 1
    %p166 = por %p164, %p165
    %p167 = scmp.ne.s32.totalorder %s158, %s159
    %p168 = scmp.eq.s32.totalorder %s38, 0
    %p169 = por %p167, %p168
    %p170 = scmp.ne.s32.totalorder %s158, %s159
    %p171 = scmp.eq.s32.totalorder %s39, 1
    %p172 = por %p170, %p171
    %p174 = scmp.ne.s32.totalorder %s159, %s173
    %p175 = scmp.eq.s32.totalorder %s39, 0
    %p176 = por %p174, %p175
    %s178 = sadd.s32 %s177, 1
    %p181 = scmp.eq.s32.totalorder %s33, 1
    %p182 = scmp.ne.s32.totalorder %s177, %s179
    %p183 = scmp.eq.s32.totalorder %s33, 0
    %p184 = por %p182, %p183
    %p185 = scmp.ne.s32.totalorder %s177, %s179
    %p186 = scmp.eq.s32.totalorder %s38, 1
    %p187 = por %p185, %p186
    %p188 = scmp.ne.s32.totalorder %s179, %s180
    %p189 = scmp.eq.s32.totalorder %s38, 0
    %p190 = por %p188, %p189
    %p191 = scmp.ne.s32.totalorder %s179, %s180
    %p192 = scmp.eq.s32.totalorder %s39, 1
    %p193 = por %p191, %p192
    %p195 = scmp.ne.s32.totalorder %s180, %s194
    %p196 = scmp.eq.s32.totalorder %s39, 0
    %p197 = por %p195, %p196
    %s199 = sadd.s32 %s198, 1
    %p202 = scmp.eq.s32.totalorder %s33, 1
    %p203 = scmp.ne.s32.totalorder %s198, %s200
    %p204 = scmp.eq.s32.totalorder %s33, 0
    %p205 = por %p203, %p204
    %p206 = scmp.ne.s32.totalorder %s198, %s200
    %p207 = scmp.eq.s32.totalorder %s38, 1
    %p208 = por %p206, %p207
    %p209 = scmp.ne.s32.totalorder %s200, %s201
    %p210 = scmp.eq.s32.totalorder %s38, 0
    %p211 = por %p209, %p210
    %p212 = scmp.ne.s32.totalorder %s200, %s201
    %p213 = scmp.eq.s32.totalorder %s39, 1
    %p214 = por %p212, %p213
    %p216 = scmp.ne.s32.totalorder %s201, %s215
    %p217 = scmp.eq.s32.totalorder %s39, 0
    %p218 = por %p216, %p217
    %s220 = sadd.s32 %s219, 1
    %p223 = scmp.eq.s32.totalorder %s33, 1
    %p224 = scmp.ne.s32.totalorder %s219, %s221
    %p225 = scmp.eq.s32.totalorder %s33, 0
    %p226 = por %p224, %p225
    %p227 = scmp.ne.s32.totalorder %s219, %s221
    %p228 = scmp.eq.s32.totalorder %s38, 1
    %p229 = por %p227, %p228
    %p230 = scmp.ne.s32.totalorder %s221, %s222
    %p231 = scmp.eq.s32.totalorder %s38, 0
    %p232 = por %p230, %p231
    %p233 = scmp.ne.s32.totalorder %s221, %s222
    %p234 = scmp.eq.s32.totalorder %s39, 1
    %p235 = por %p233, %p234
    %p237 = scmp.ne.s32.totalorder %s222, %s236
    %p238 = scmp.eq.s32.totalorder %s39, 0
    %p239 = por %p237, %p238
    %s241 = sadd.s32 %s240, 1
    %p244 = scmp.eq.s32.totalorder %s33, 1
    %p245 = scmp.ne.s32.totalorder %s240, %s242
    %p246 = scmp.eq.s32.totalorder %s33, 0
    %p247 = por %p245, %p246
    %p248 = scmp.ne.s32.totalorder %s240, %s242
    %p249 = scmp.eq.s32.totalorder %s38, 1
    %p250 = por %p248, %p249
    %p251 = scmp.ne.s32.totalorder %s242, %s243
    %p252 = scmp.eq.s32.totalorder %s38, 0
    %p253 = por %p251, %p252
    %p254 = scmp.ne.s32.totalorder %s242, %s243
    %p255 = scmp.eq.s32.totalorder %s39, 1
    %p256 = por %p254, %p255
    %p258 = scmp.ne.s32.totalorder %s243, %s257
    %p259 = scmp.eq.s32.totalorder %s39, 0
    %p260 = por %p258, %p259
    %s262 = sadd.s32 %s261, 1
    %p265 = scmp.eq.s32.totalorder %s33, 1
    %p266 = scmp.ne.s32.totalorder %s261, %s263
    %p267 = scmp.eq.s32.totalorder %s33, 0
    %p268 = por %p266, %p267
    %p269 = scmp.ne.s32.totalorder %s261, %s263
    %p270 = scmp.eq.s32.totalorder %s38, 1
    %p271 = por %p269, %p270
    %p272 = scmp.ne.s32.totalorder %s263, %s264
    %p273 = scmp.eq.s32.totalorder %s38, 0
    %p274 = por %p272, %p273
    %p275 = scmp.ne.s32.totalorder %s263, %s264
    %p276 = scmp.eq.s32.totalorder %s39, 1
    %p277 = por %p275, %p276
    %p279 = scmp.ne.s32.totalorder %s264, %s278
    %p280 = scmp.eq.s32.totalorder %s39, 0
    %p281 = por %p279, %p280
    %s283 = sadd.s32 %s282, 1
    %p286 = scmp.eq.s32.totalorder %s33, 1
    %p287 = scmp.ne.s32.totalorder %s282, %s284
    %p288 = scmp.eq.s32.totalorder %s33, 0
    %p289 = por %p287, %p288
    %p290 = scmp.ne.s32.totalorder %s282, %s284
    %p291 = scmp.eq.s32.totalorder %s38, 1
    %p292 = por %p290, %p291
    %p293 = scmp.ne.s32.totalorder %s284, %s285
    %p294 = scmp.eq.s32.totalorder %s38, 0
    %p295 = por %p293, %p294
    %p296 = scmp.ne.s32.totalorder %s284, %s285
    %p297 = scmp.eq.s32.totalorder %s39, 1
    %p298 = por %p296, %p297
    %p300 = scmp.ne.s32.totalorder %s285, %s299
    %p301 = scmp.eq.s32.totalorder %s39, 0
    %p302 = por %p300, %p301
    %s304 = sadd.s32 %s303, 1
    %p307 = scmp.eq.s32.totalorder %s33, 1
    %p308 = scmp.ne.s32.totalorder %s303, %s305
    %p309 = scmp.eq.s32.totalorder %s33, 0
    %p310 = por %p308, %p309
    %p311 = scmp.ne.s32.totalorder %s303, %s305
    %p312 = scmp.eq.s32.totalorder %s38, 1
    %p313 = por %p311, %p312
    %p314 = scmp.ne.s32.totalorder %s305, %s306
    %p315 = scmp.eq.s32.totalorder %s38, 0
    %p316 = por %p314, %p315
    %p317 = scmp.ne.s32.totalorder %s305, %s306
    %p318 = scmp.eq.s32.totalorder %s39, 1
    %p319 = por %p317, %p318
    %p321 = scmp.ne.s32.totalorder %s306, %s320
    %p322 = scmp.eq.s32.totalorder %s39, 0
    %p323 = por %p321, %p322
    %s325 = sadd.s32 %s324, 1
    %p328 = scmp.eq.s32.totalorder %s33, 1
    %p329 = scmp.ne.s32.totalorder %s324, %s326
    %p330 = scmp.eq.s32.totalorder %s33, 0
    %p331 = por %p329, %p330
    %p332 = scmp.ne.s32.totalorder %s324, %s326
    %p333 = scmp.eq.s32.totalorder %s38, 1
    %p334 = por %p332, %p333
    %p335 = scmp.ne.s32.totalorder %s326, %s327
    %p336 = scmp.eq.s32.totalorder %s38, 0
    %p337 = por %p335, %p336
    %p338 = scmp.ne.s32.totalorder %s326, %s327
    %p339 = scmp.eq.s32.totalorder %s39, 1
    %p340 = por %p338, %p339
    %p342 = scmp.ne.s32.totalorder %s327, %s341
    %p343 = scmp.eq.s32.totalorder %s39, 0
    %p344 = por %p342, %p343
    %s346 = sadd.s32 %s345, 1
    %p349 = scmp.eq.s32.totalorder %s33, 1
    %p350 = scmp.ne.s32.totalorder %s345, %s347
    %p351 = scmp.eq.s32.totalorder %s33, 0
    %p352 = por %p350, %p351
    %p353 = scmp.ne.s32.totalorder %s345, %s347
    %p354 = scmp.eq.s32.totalorder %s38, 1
    %p355 = por %p353, %p354
    %p356 = scmp.ne.s32.totalorder %s347, %s348
    %p357 = scmp.eq.s32.totalorder %s38, 0
    %p358 = por %p356, %p357
    %p359 = scmp.ne.s32.totalorder %s347, %s348
    %p360 = scmp.eq.s32.totalorder %s39, 1
    %p361 = por %p359, %p360
    %p363 = scmp.ne.s32.totalorder %s348, %s362
    %p364 = scmp.eq.s32.totalorder %s39, 0
    %p365 = por %p363, %p364
    %s367 = sadd.s32 %s366, 1
    %p370 = scmp.eq.s32.totalorder %s33, 1
    %p371 = scmp.ne.s32.totalorder %s366, %s368
    %p372 = scmp.eq.s32.totalorder %s33, 0
    %p373 = por %p371, %p372
    %p374 = scmp.ne.s32.totalorder %s366, %s368
    %p375 = scmp.eq.s32.totalorder %s38, 1
    %p376 = por %p374, %p375
    %p377 = scmp.ne.s32.totalorder %s368, %s369
    %p378 = scmp.eq.s32.totalorder %s38, 0
    %p379 = por %p377, %p378
    %p380 = scmp.ne.s32.totalorder %s368, %s369
    %p381 = scmp.eq.s32.totalorder %s39, 1
    %p382 = por %p380, %p381
    %p384 = scmp.ne.s32.totalorder %s369, %s383
    %p385 = scmp.eq.s32.totalorder %s39, 0
    %p386 = por %p384, %p385
    %s388 = sadd.s32 %s387, 1
    %p391 = scmp.eq.s32.totalorder %s33, 1
    %p392 = scmp.ne.s32.totalorder %s387, %s389
    %p393 = scmp.eq.s32.totalorder %s33, 0
    %p394 = por %p392, %p393
    %p395 = scmp.ne.s32.totalorder %s387, %s389
    %p396 = scmp.eq.s32.totalorder %s38, 1
    %p397 = por %p395, %p396
    %p398 = scmp.ne.s32.totalorder %s389, %s390
    %p399 = scmp.eq.s32.totalorder %s38, 0
    %p400 = por %p398, %p399
    %p401 = scmp.ne.s32.totalorder %s389, %s390
    %p402 = scmp.eq.s32.totalorder %s39, 1
    %p403 = por %p401, %p402
    %p405 = scmp.ne.s32.totalorder %s390, %s404
    %p406 = scmp.eq.s32.totalorder %s39, 0
    %p407 = por %p405, %p406
    %s409 = sadd.s32 %s408, 1
    %p412 = scmp.eq.s32.totalorder %s33, 1
    %p413 = scmp.ne.s32.totalorder %s408, %s410
    %p414 = scmp.eq.s32.totalorder %s33, 0
    %p415 = por %p413, %p414
    %p416 = scmp.ne.s32.totalorder %s408, %s410
    %p417 = scmp.eq.s32.totalorder %s38, 1
    %p418 = por %p416, %p417
    %p419 = scmp.ne.s32.totalorder %s410, %s411
    %p420 = scmp.eq.s32.totalorder %s38, 0
    %p421 = por %p419, %p420
    %p422 = scmp.ne.s32.totalorder %s410, %s411
    %p423 = scmp.eq.s32.totalorder %s39, 1
    %p424 = por %p422, %p423
    %p426 = scmp.ne.s32.totalorder %s411, %s425
    %p427 = scmp.eq.s32.totalorder %s39, 0
    %p428 = por %p426, %p427
    %s430 = sadd.s32 %s429, 1
    %p433 = scmp.eq.s32.totalorder %s33, 1
    %p434 = scmp.ne.s32.totalorder %s429, %s431
    %p435 = scmp.eq.s32.totalorder %s33, 0
    %p436 = por %p434, %p435
    %p437 = scmp.ne.s32.totalorder %s429, %s431
    %p438 = scmp.eq.s32.totalorder %s38, 1
    %p439 = por %p437, %p438
    %p440 = scmp.ne.s32.totalorder %s431, %s432
    %p441 = scmp.eq.s32.totalorder %s38, 0
    %p442 = por %p440, %p441
    %p443 = scmp.ne.s32.totalorder %s431, %s432
    %p444 = scmp.eq.s32.totalorder %s39, 1
    %p445 = por %p443, %p444
    %p447 = scmp.ne.s32.totalorder %s432, %s446
    %p448 = scmp.eq.s32.totalorder %s39, 0
    %p449 = por %p447, %p448
    %s451 = sadd.s32 %s450, 1
    %p454 = scmp.eq.s32.totalorder %s33, 1
    %p455 = scmp.ne.s32.totalorder %s450, %s452
    %p456 = scmp.eq.s32.totalorder %s33, 0
    %p457 = por %p455, %p456
    %p458 = scmp.ne.s32.totalorder %s450, %s452
    %p459 = scmp.eq.s32.totalorder %s38, 1
    %p460 = por %p458, %p459
    %p461 = scmp.ne.s32.totalorder %s452, %s453
    %p462 = scmp.eq.s32.totalorder %s38, 0
    %p463 = por %p461, %p462
    %p464 = scmp.ne.s32.totalorder %s452, %s453
    %p465 = scmp.eq.s32.totalorder %s39, 1
    %p466 = por %p464, %p465
    %p468 = scmp.ne.s32.totalorder %s453, %s467
    %p469 = scmp.eq.s32.totalorder %s39, 0
    %p470 = por %p468, %p469
    %s472 = sadd.s32 %s471, 1
    %p475 = scmp.eq.s32.totalorder %s33, 1
    %p476 = scmp.ne.s32.totalorder %s471, %s473
    %p477 = scmp.eq.s32.totalorder %s33, 0
    %p478 = por %p476, %p477
    %p479 = scmp.ne.s32.totalorder %s471, %s473
    %p480 = scmp.eq.s32.totalorder %s38, 1
    %p481 = por %p479, %p480
    %p482 = scmp.ne.s32.totalorder %s473, %s474
    %p483 = scmp.eq.s32.totalorder %s38, 0
    %p484 = por %p482, %p483
    %p485 = scmp.ne.s32.totalorder %s473, %s474
    %p486 = scmp.eq.s32.totalorder %s39, 1
    %p487 = por %p485, %p486
    %p489 = scmp.ne.s32.totalorder %s474, %s488
    %p490 = scmp.eq.s32.totalorder %s39, 0
    %p491 = por %p489, %p490
    %s493 = sadd.s32 %s492, 1
    %p496 = scmp.eq.s32.totalorder %s33, 1
    %p497 = scmp.ne.s32.totalorder %s492, %s494
    %p498 = scmp.eq.s32.totalorder %s33, 0
    %p499 = por %p497, %p498
    %p500 = scmp.ne.s32.totalorder %s492, %s494
    %p501 = scmp.eq.s32.totalorder %s38, 1
    %p502 = por %p500, %p501
    %p503 = scmp.ne.s32.totalorder %s494, %s495
    %p504 = scmp.eq.s32.totalorder %s38, 0
    %p505 = por %p503, %p504
    %p506 = scmp.ne.s32.totalorder %s494, %s495
    %p507 = scmp.eq.s32.totalorder %s39, 1
    %p508 = por %p506, %p507
    %p510 = scmp.ne.s32.totalorder %s495, %s509
    %p511 = scmp.eq.s32.totalorder %s39, 0
    %p512 = por %p510, %p511
    %s514 = sadd.s32 %s513, 1
    %p517 = scmp.eq.s32.totalorder %s33, 1
    %p518 = scmp.ne.s32.totalorder %s513, %s515
    %p519 = scmp.eq.s32.totalorder %s33, 0
    %p520 = por %p518, %p519
    %p521 = scmp.ne.s32.totalorder %s513, %s515
    %p522 = scmp.eq.s32.totalorder %s38, 1
    %p523 = por %p521, %p522
    %p524 = scmp.ne.s32.totalorder %s515, %s516
    %p525 = scmp.eq.s32.totalorder %s38, 0
    %p526 = por %p524, %p525
    %p527 = scmp.ne.s32.totalorder %s515, %s516
    %p528 = scmp.eq.s32.totalorder %s39, 1
    %p529 = por %p527, %p528
    %p531 = scmp.ne.s32.totalorder %s516, %s530
    %p532 = scmp.eq.s32.totalorder %s39, 0
    %p533 = por %p531, %p532
    %s535 = sadd.s32 %s534, 1
    %p538 = scmp.eq.s32.totalorder %s33, 1
    %p539 = scmp.ne.s32.totalorder %s534, %s536
    %p540 = scmp.eq.s32.totalorder %s33, 0
    %p541 = por %p539, %p540
    %p542 = scmp.ne.s32.totalorder %s534, %s536
    %p543 = scmp.eq.s32.totalorder %s38, 1
    %p544 = por %p542, %p543
    %p545 = scmp.ne.s32.totalorder %s536, %s537
    %p546 = scmp.eq.s32.totalorder %s38, 0
    %p547 = por %p545, %p546
    %p548 = scmp.ne.s32.totalorder %s536, %s537
    %p549 = scmp.eq.s32.totalorder %s39, 1
    %p550 = por %p548, %p549
    %p552 = scmp.ne.s32.totalorder %s537, %s551
    %p553 = scmp.eq.s32.totalorder %s39, 0
    %p554 = por %p552, %p553
    %s556 = sadd.s32 %s555, 1
    %p559 = scmp.eq.s32.totalorder %s33, 1
    %p560 = scmp.ne.s32.totalorder %s555, %s557
    %p561 = scmp.eq.s32.totalorder %s33, 0
    %p562 = por %p560, %p561
    %p563 = scmp.ne.s32.totalorder %s555, %s557
    %p564 = scmp.eq.s32.totalorder %s38, 1
    %p565 = por %p563, %p564
    %p566 = scmp.ne.s32.totalorder %s557, %s558
    %p567 = scmp.eq.s32.totalorder %s38, 0
    %p568 = por %p566, %p567
    %p569 = scmp.ne.s32.totalorder %s557, %s558
    %p570 = scmp.eq.s32.totalorder %s39, 1
    %p571 = por %p569, %p570
    %p573 = scmp.ne.s32.totalorder %s558, %s572
    %p574 = scmp.eq.s32.totalorder %s39, 0
    %p575 = por %p573, %p574
    %s577 = sadd.s32 %s576, 1
    %p580 = scmp.eq.s32.totalorder %s33, 1
    %p581 = scmp.ne.s32.totalorder %s576, %s578
    %p582 = scmp.eq.s32.totalorder %s33, 0
    %p583 = por %p581, %p582
    %p584 = scmp.ne.s32.totalorder %s576, %s578
    %p585 = scmp.eq.s32.totalorder %s38, 1
    %p586 = por %p584, %p585
    %p587 = scmp.ne.s32.totalorder %s578, %s579
    %p588 = scmp.eq.s32.totalorder %s38, 0
    %p589 = por %p587, %p588
    %p590 = scmp.ne.s32.totalorder %s578, %s579
    %p591 = scmp.eq.s32.totalorder %s39, 1
    %p592 = por %p590, %p591
    %p594 = scmp.ne.s32.totalorder %s579, %s593
    %p595 = scmp.eq.s32.totalorder %s39, 0
    %p596 = por %p594, %p595
    %s598 = sadd.s32 %s597, 1
    %p601 = scmp.eq.s32.totalorder %s33, 1
    %p602 = scmp.ne.s32.totalorder %s597, %s599
    %p603 = scmp.eq.s32.totalorder %s33, 0
    %p604 = por %p602, %p603
    %p605 = scmp.ne.s32.totalorder %s597, %s599
    %p606 = scmp.eq.s32.totalorder %s38, 1
    %p607 = por %p605, %p606
    %p608 = scmp.ne.s32.totalorder %s599, %s600
    %p609 = scmp.eq.s32.totalorder %s38, 0
    %p610 = por %p608, %p609
    %p611 = scmp.ne.s32.totalorder %s599, %s600
    %p612 = scmp.eq.s32.totalorder %s39, 1
    %p613 = por %p611, %p612
    %p615 = scmp.ne.s32.totalorder %s600, %s614
    %p616 = scmp.eq.s32.totalorder %s39, 0
    %p617 = por %p615, %p616
    %s618 = ssub.s32 %s33, %s40
    %p619 = scmp.eq.s32.totalorder %s618, 0
    %s621 = sadd.s32 %s620, 1
    %s622 = scalar_select %p619, %s620, %s621
    %p625 = pneg %p619
    %p626 = scmp.eq.s32.totalorder %s33, 1
    %p627 = por %p625, %p626
    %p628 = scmp.ne.s32.totalorder %s620, %s623
    %p629 = scmp.eq.s32.totalorder %s33, 0
    %p630 = por %p628, %p629
    %p631 = scmp.ne.s32.totalorder %s620, %s623
    %p632 = scmp.eq.s32.totalorder %s38, 1
    %p633 = por %p631, %p632
    %p634 = scmp.ne.s32.totalorder %s623, %s624
    %p635 = scmp.eq.s32.totalorder %s38, 0
    %p636 = por %p634, %p635
    %p637 = scmp.ne.s32.totalorder %s623, %s624
    %p638 = scmp.eq.s32.totalorder %s39, 1
    %p639 = por %p637, %p638
    %p641 = scmp.ne.s32.totalorder %s624, %s640
    %p642 = scmp.eq.s32.totalorder %s39, 0
    %p643 = por %p641, %p642
    %p644 = scmp.le.s32.totalorder 1, %s33
    %p645 = scmp.lt.s32.totalorder %s33, 3
    %p646 = pnand %p644, %p645
    %p647 = pneg %p646
    // Predicated region
    $region9: #{spatial_transformer.1} parent=5 // pred_check
      _
    $region10: #{spatial_transformer.1} parent=5 // pred_check_branch
      %649 = sbr.rel (%p646) target = $region12
    $region11: #{spatial_transformer.1} parent=5 // pred_region
      %s650 = ssub.s32 %s33, 1
      // Predicated region
      $region13: #{spatial_transformer.1} parent=11 // pred_check
        %p651 = pneg %p106
      $region14: #{spatial_transformer.1} parent=11 // pred_check_branch
        %653 = sbr.rel (%p651) target = $region16
      $region15: #{spatial_transformer.1} parent=11 // pred_region
        _
      $region16: #{spatial_transformer.1} parent=11 // pred_fallthru
        _
      // Predicated region
      $region17: #{spatial_transformer.1} parent=11 // pred_check
        %p654 = pneg %p127
      $region18: #{spatial_transformer.1} parent=11 // pred_check_branch
        %656 = sbr.rel (%p654) target = $region20
      $region19: #{spatial_transformer.1} parent=11 // pred_region
        _
      $region20: #{spatial_transformer.1} parent=11 // pred_fallthru
        _
      // Predicated region
      $region21: #{spatial_transformer.1} parent=11 // pred_check
        %p657 = pneg %p148
      $region22: #{spatial_transformer.1} parent=11 // pred_check_branch
        %659 = sbr.rel (%p657) target = $region24
      $region23: #{spatial_transformer.1} parent=11 // pred_region
        _
      $region24: #{spatial_transformer.1} parent=11 // pred_fallthru
        _
      // Predicated region
      $region25: #{spatial_transformer.1} parent=11 // pred_check
        %p660 = pneg %p169
      $region26: #{spatial_transformer.1} parent=11 // pred_check_branch
        %662 = sbr.rel (%p660) target = $region28
      $region27: #{spatial_transformer.1} parent=11 // pred_region
        _
      $region28: #{spatial_transformer.1} parent=11 // pred_fallthru
        _
      // Predicated region
      $region29: #{spatial_transformer.1} parent=11 // pred_check
        %p663 = pneg %p190
      $region30: #{spatial_transformer.1} parent=11 // pred_check_branch
        %665 = sbr.rel (%p663) target = $region32
      $region31: #{spatial_transformer.1} parent=11 // pred_region
        _
      $region32: #{spatial_transformer.1} parent=11 // pred_fallthru
        _
      // Predicated region
      $region33: #{spatial_transformer.1} parent=11 // pred_check
        %p666 = pneg %p211
      $region34: #{spatial_transformer.1} parent=11 // pred_check_branch
        %668 = sbr.rel (%p666) target = $region36
      $region35: #{spatial_transformer.1} parent=11 // pred_region
        _
      $region36: #{spatial_transformer.1} parent=11 // pred_fallthru
        _
      // Predicated region
      $region37: #{spatial_transformer.1} parent=11 // pred_check
        %p669 = pneg %p232
      $region38: #{spatial_transformer.1} parent=11 // pred_check_branch
        %671 = sbr.rel (%p669) target = $region40
      $region39: #{spatial_transformer.1} parent=11 // pred_region
        _
      $region40: #{spatial_transformer.1} parent=11 // pred_fallthru
        _
      // Predicated region
      $region41: #{spatial_transformer.1} parent=11 // pred_check
        %p672 = pneg %p253
      $region42: #{spatial_transformer.1} parent=11 // pred_check_branch
        %674 = sbr.rel (%p672) target = $region44
      $region43: #{spatial_transformer.1} parent=11 // pred_region
        _
      $region44: #{spatial_transformer.1} parent=11 // pred_fallthru
        _
      // Predicated region
      $region45: #{spatial_transformer.1} parent=11 // pred_check
        %p675 = pneg %p274
      $region46: #{spatial_transformer.1} parent=11 // pred_check_branch
        %677 = sbr.rel (%p675) target = $region48
      $region47: #{spatial_transformer.1} parent=11 // pred_region
        _
      $region48: #{spatial_transformer.1} parent=11 // pred_fallthru
        _
      // Predicated region
      $region49: #{spatial_transformer.1} parent=11 // pred_check
        %p678 = pneg %p295
      $region50: #{spatial_transformer.1} parent=11 // pred_check_branch
        %680 = sbr.rel (%p678) target = $region52
      $region51: #{spatial_transformer.1} parent=11 // pred_region
        _
      $region52: #{spatial_transformer.1} parent=11 // pred_fallthru
        _
      // Predicated region
      $region53: #{spatial_transformer.1} parent=11 // pred_check
        %p681 = pneg %p316
      $region54: #{spatial_transformer.1} parent=11 // pred_check_branch
        %683 = sbr.rel (%p681) target = $region56
      $region55: #{spatial_transformer.1} parent=11 // pred_region
        _
      $region56: #{spatial_transformer.1} parent=11 // pred_fallthru
        _
      // Predicated region
      $region57: #{spatial_transformer.1} parent=11 // pred_check
        %p684 = pneg %p337
      $region58: #{spatial_transformer.1} parent=11 // pred_check_branch
        %686 = sbr.rel (%p684) target = $region60
      $region59: #{spatial_transformer.1} parent=11 // pred_region
        _
      $region60: #{spatial_transformer.1} parent=11 // pred_fallthru
        _
      // Predicated region
      $region61: #{spatial_transformer.1} parent=11 // pred_check
        %p687 = pneg %p358
      $region62: #{spatial_transformer.1} parent=11 // pred_check_branch
        %689 = sbr.rel (%p687) target = $region64
      $region63: #{spatial_transformer.1} parent=11 // pred_region
        _
      $region64: #{spatial_transformer.1} parent=11 // pred_fallthru
        _
      // Predicated region
      $region65: #{spatial_transformer.1} parent=11 // pred_check
        %p690 = pneg %p379
      $region66: #{spatial_transformer.1} parent=11 // pred_check_branch
        %692 = sbr.rel (%p690) target = $region68
      $region67: #{spatial_transformer.1} parent=11 // pred_region
        _
      $region68: #{spatial_transformer.1} parent=11 // pred_fallthru
        _
      // Predicated region
      $region69: #{spatial_transformer.1} parent=11 // pred_check
        %p693 = pneg %p400
      $region70: #{spatial_transformer.1} parent=11 // pred_check_branch
        %695 = sbr.rel (%p693) target = $region72
      $region71: #{spatial_transformer.1} parent=11 // pred_region
        _
      $region72: #{spatial_transformer.1} parent=11 // pred_fallthru
        _
      // Predicated region
      $region73: #{spatial_transformer.1} parent=11 // pred_check
        %p696 = pneg %p421
      $region74: #{spatial_transformer.1} parent=11 // pred_check_branch
        %698 = sbr.rel (%p696) target = $region76
      $region75: #{spatial_transformer.1} parent=11 // pred_region
        _
      $region76: #{spatial_transformer.1} parent=11 // pred_fallthru
        _
      // Predicated region
      $region77: #{spatial_transformer.1} parent=11 // pred_check
        %p699 = pneg %p442
      $region78: #{spatial_transformer.1} parent=11 // pred_check_branch
        %701 = sbr.rel (%p699) target = $region80
      $region79: #{spatial_transformer.1} parent=11 // pred_region
        _
      $region80: #{spatial_transformer.1} parent=11 // pred_fallthru
        _
      // Predicated region
      $region81: #{spatial_transformer.1} parent=11 // pred_check
        %p702 = pneg %p463
      $region82: #{spatial_transformer.1} parent=11 // pred_check_branch
        %704 = sbr.rel (%p702) target = $region84
      $region83: #{spatial_transformer.1} parent=11 // pred_region
        _
      $region84: #{spatial_transformer.1} parent=11 // pred_fallthru
        _
      // Predicated region
      $region85: #{spatial_transformer.1} parent=11 // pred_check
        %p705 = pneg %p484
      $region86: #{spatial_transformer.1} parent=11 // pred_check_branch
        %707 = sbr.rel (%p705) target = $region88
      $region87: #{spatial_transformer.1} parent=11 // pred_region
        _
      $region88: #{spatial_transformer.1} parent=11 // pred_fallthru
        _
      // Predicated region
      $region89: #{spatial_transformer.1} parent=11 // pred_check
        %p708 = pneg %p505
      $region90: #{spatial_transformer.1} parent=11 // pred_check_branch
        %710 = sbr.rel (%p708) target = $region92
      $region91: #{spatial_transformer.1} parent=11 // pred_region
        _
      $region92: #{spatial_transformer.1} parent=11 // pred_fallthru
        _
      // Predicated region
      $region93: #{spatial_transformer.1} parent=11 // pred_check
        %p711 = pneg %p526
      $region94: #{spatial_transformer.1} parent=11 // pred_check_branch
        %713 = sbr.rel (%p711) target = $region96
      $region95: #{spatial_transformer.1} parent=11 // pred_region
        _
      $region96: #{spatial_transformer.1} parent=11 // pred_fallthru
        _
      // Predicated region
      $region97: #{spatial_transformer.1} parent=11 // pred_check
        %p714 = pneg %p547
      $region98: #{spatial_transformer.1} parent=11 // pred_check_branch
        %716 = sbr.rel (%p714) target = $region100
      $region99: #{spatial_transformer.1} parent=11 // pred_region
        _
      $region100: #{spatial_transformer.1} parent=11 // pred_fallthru
        _
      // Predicated region
      $region101: #{spatial_transformer.1} parent=11 // pred_check
        %p717 = pneg %p568
      $region102: #{spatial_transformer.1} parent=11 // pred_check_branch
        %719 = sbr.rel (%p717) target = $region104
      $region103: #{spatial_transformer.1} parent=11 // pred_region
        _
      $region104: #{spatial_transformer.1} parent=11 // pred_fallthru
        _
      // Predicated region
      $region105: #{spatial_transformer.1} parent=11 // pred_check
        %p720 = pneg %p589
      $region106: #{spatial_transformer.1} parent=11 // pred_check_branch
        %722 = sbr.rel (%p720) target = $region108
      $region107: #{spatial_transformer.1} parent=11 // pred_region
        _
      $region108: #{spatial_transformer.1} parent=11 // pred_fallthru
        _
      // Predicated region
      $region109: #{spatial_transformer.1} parent=11 // pred_check
        %p723 = pneg %p610
      $region110: #{spatial_transformer.1} parent=11 // pred_check_branch
        %725 = sbr.rel (%p723) target = $region112
      $region111: #{spatial_transformer.1} parent=11 // pred_region
        _
      $region112: #{spatial_transformer.1} parent=11 // pred_fallthru
        _
    $region12: #{spatial_transformer.1} parent=5 // pred_fallthru
      _
    %p726 = scmp.lt.s32.totalorder %s33, 2
    // Predicated region
    $region113: #{spatial_transformer.1} parent=5 // pred_check
      %p727 = pneg %p726
    $region114: #{spatial_transformer.1} parent=5 // pred_check_branch
      %729 = sbr.rel (%p727) target = $region116
    $region115: #{spatial_transformer.1} parent=5 // pred_region
      // Predicated region
      $region117: #{spatial_transformer.1} parent=115 // pred_check
        %p730 = pneg %p53
      $region118: #{spatial_transformer.1} parent=115 // pred_check_branch
        %732 = sbr.rel (%p730) target = $region120
      $region119: #{spatial_transformer.1} parent=115 // pred_region
        %p733 = scmp.lt.s32.totalorder %s33, 1
        %s734 = scalar_select %p733, %s33, 1
        %s735 = smul.addr %s734, 8
        %s736 = smul.addr %s735, 8
        %s737 = scalar_lea.vmem %s0, %s736
      $region120: #{spatial_transformer.1} parent=115 // pred_fallthru
        _
      // Predicated region
      $region121: #{spatial_transformer.1} parent=115 // pred_check
        %p738 = pneg %p79
      $region122: #{spatial_transformer.1} parent=115 // pred_check_branch
        %740 = sbr.rel (%p738) target = $region124
      $region123: #{spatial_transformer.1} parent=115 // pred_region
        %p741 = scmp.lt.s32.totalorder %s33, 1
        %s742 = scalar_select %p741, %s33, 1
        %s743 = smul.addr %s742, 2
        %s744 = smul.addr %s743, 8
        %s745 = scalar_lea.vmem %s1, %s744
      $region124: #{spatial_transformer.1} parent=115 // pred_fallthru
        _
    $region116: #{spatial_transformer.1} parent=5 // pred_fallthru
      _
    %p746 = scmp.le.s32.totalorder 1, %s33
    %p747 = scmp.lt.s32.totalorder %s33, 3
    %p748 = pnand %p746, %p747
    %p749 = pneg %p748
    // Predicated region
    $region125: #{spatial_transformer.1} parent=5 // pred_check
      _
    $region126: #{spatial_transformer.1} parent=5 // pred_check_branch
      %751 = sbr.rel (%p748) target = $region128
    $region127: #{spatial_transformer.1} parent=5 // pred_region
      %s752 = ssub.s32 %s33, 1
      %p753 = scmp.lt.s32.totalorder %s38, 1
      %s754 = scalar_select %p753, %s38, 1
      %s755 = smul.addr %s754, 8
      %s756 = smul.addr %s755, 8
      %s757 = scalar_lea.vmem %s0, %s756
      %p758 = pneg %p59
      %p759 = pneg %p56
      %p760 = scmp.lt.s32.totalorder %s38, 1
      %s761 = scalar_select %p760, %s38, 1
      %s762 = smul.addr %s761, 2
      %s763 = smul.addr %s762, 8
      %s764 = scalar_lea.vmem %s1, %s763
      %p765 = pneg %p85
      %p766 = pneg %p82
      %p767 = pneg %p106
      %p768 = pneg %p103
      %p769 = pneg %p127
      %p770 = pneg %p124
      %p771 = pneg %p148
      %p772 = pneg %p145
      %p773 = pneg %p169
      %p774 = pneg %p166
      %p775 = pneg %p190
      %p776 = pneg %p187
      %p777 = pneg %p211
      %p778 = pneg %p208
      %p779 = pneg %p232
      %p780 = pneg %p229
      %p781 = pneg %p253
      %p782 = pneg %p250
      %p783 = pneg %p274
      %p784 = pneg %p271
      %p785 = pneg %p295
      %p786 = pneg %p292
      %p787 = pneg %p316
      %p788 = pneg %p313
      %p789 = pneg %p337
      %p790 = pneg %p334
      %p791 = pneg %p358
      %p792 = pneg %p355
      %p793 = pneg %p379
      %p794 = pneg %p376
      %p795 = pneg %p400
      %p796 = pneg %p397
      %p797 = pneg %p421
      %p798 = pneg %p418
      %p799 = pneg %p442
      %p800 = pneg %p439
      %p801 = pneg %p463
      %p802 = pneg %p460
      %p803 = pneg %p484
      %p804 = pneg %p481
      %p805 = pneg %p505
      %p806 = pneg %p502
      %p807 = pneg %p526
      %p808 = pneg %p523
      %p809 = pneg %p547
      %p810 = pneg %p544
      %p811 = pneg %p568
      %p812 = pneg %p565
      %p813 = pneg %p589
      %p814 = pneg %p586
      %p815 = pneg %p610
      %p816 = pneg %p607
      %p817 = pneg %p636
      %p818 = pneg %p633
      %p819 = scmp.lt.s32.totalorder %s38, 1
      %s820 = scalar_select %p819, %s38, 1
      %s821 = smul.addr %s820, 8
      %s822 = smul.addr %s821, 8
      %s823 = scalar_lea.vmem %s27, %s822
      %p824 = scmp.lt.s32.totalorder %s38, 1
      %s825 = scalar_select %p824, %s38, 1
      %s826 = smul.addr %s825, 8
      %s827 = smul.addr %s826, 8
      %s828 = scalar_lea.vmem %s0, %s827
      %p829 = scmp.lt.s32.totalorder %s38, 1
      %s830 = scalar_select %p829, %s38, 1
      %s831 = smul.addr %s830, 2
      %s832 = smul.addr %s831, 8
      %s833 = scalar_lea.vmem %s1, %s832
      %p834 = scmp.lt.s32.totalorder %s38, 1
      %s835 = scalar_select %p834, %s38, 1
      %s836 = smul.addr %s835, 8
      %s837 = smul.addr %s836, 8
      %s838 = scalar_lea.vmem %s27, %s837
      %v840 = vld [vmem:[%s828] sm:$0xff]
      %v841 = vld [vmem:[%s828 + $0x8] sm:$0xff]
      %v842 = vld [vmem:[%s828 + $0x10] sm:$0xff]
      %v843 = vld [vmem:[%s828 + $0x18] sm:$0xff]
      %v844 = vld [vmem:[%s828 + $0x20] sm:$0xff]
      %v845 = vld [vmem:[%s828 + $0x28] sm:$0xff]
      %v846 = vld [vmem:[%s828 + $0x30] sm:$0xff]
      %v847 = vld [vmem:[%s828 + $0x38] sm:$0xff]
      %v848 = vld [vmem:[%s833] sm:$0xff]
      %v849 = vld [vmem:[%s833 + $0x8] sm:$0xff]
      %v850 = vlaneseq
      %v851 = vshrl.u32 %v850, 7
      %v852 = vadd.s32 %v851, 8
      %v853 = vadd.s32 %v851, 16
      %v854 = vadd.s32 %v851, 24
      %v855 = vadd.s32 %v851, 32
      %v856 = vadd.s32 %v851, 40
      %v857 = vadd.s32 %v851, 48
      %v858 = vadd.s32 %v851, 56
      %v859 = vadd.s32 %v851, 64
      %v860 = vadd.s32 %v851, 72
      %v861 = vadd.s32 %v851, 80
      %v862 = vadd.s32 %v851, 88
      %v863 = vadd.s32 %v851, 96
      %v864 = vadd.s32 %v851, 104
      %v865 = vadd.s32 %v851, 112
      %v866 = vadd.s32 %v851, 120
      %v867 = vlaneseq
      %v868 = vand.u32 %v867, 127
      %v869 = vadd.s32 %v868, 128
      %v870 = vmul.u32 %v851, 2
      %v871 = vmul.u32 %v852, 2
      %v872 = vmul.u32 %v853, 2
      %v873 = vmul.u32 %v854, 2
      %v874 = vmul.u32 %v855, 2
      %v875 = vmul.u32 %v856, 2
      %v876 = vmul.u32 %v857, 2
      %v877 = vmul.u32 %v858, 2
      %v878 = vmul.u32 %v859, 2
      %v879 = vmul.u32 %v860, 2
      %v880 = vmul.u32 %v861, 2
      %v881 = vmul.u32 %v862, 2
      %v882 = vmul.u32 %v863, 2
      %v883 = vmul.u32 %v864, 2
      %v884 = vmul.u32 %v865, 2
      %v885 = vmul.u32 %v866, 2
      %vm886 = vcmp.eq.s32.totalorder %v868, %v870
      %vm887 = vcmp.eq.s32.totalorder %v869, %v870
      %vm888 = vcmp.eq.s32.totalorder %v868, %v871
      %vm889 = vcmp.eq.s32.totalorder %v869, %v871
      %vm890 = vcmp.eq.s32.totalorder %v868, %v872
      %vm891 = vcmp.eq.s32.totalorder %v869, %v872
      %vm892 = vcmp.eq.s32.totalorder %v868, %v873
      %vm893 = vcmp.eq.s32.totalorder %v869, %v873
      %vm894 = vcmp.eq.s32.totalorder %v868, %v874
      %vm895 = vcmp.eq.s32.totalorder %v869, %v874
      %vm896 = vcmp.eq.s32.totalorder %v868, %v875
      %vm897 = vcmp.eq.s32.totalorder %v869, %v875
      %vm898 = vcmp.eq.s32.totalorder %v868, %v876
      %vm899 = vcmp.eq.s32.totalorder %v869, %v876
      %vm900 = vcmp.eq.s32.totalorder %v868, %v877
      %vm901 = vcmp.eq.s32.totalorder %v869, %v877
      %vm902 = vcmp.eq.s32.totalorder %v868, %v878
      %vm903 = vcmp.eq.s32.totalorder %v869, %v878
      %vm904 = vcmp.eq.s32.totalorder %v868, %v879
      %vm905 = vcmp.eq.s32.totalorder %v869, %v879
      %vm906 = vcmp.eq.s32.totalorder %v868, %v880
      %vm907 = vcmp.eq.s32.totalorder %v869, %v880
      %vm908 = vcmp.eq.s32.totalorder %v868, %v881
      %vm909 = vcmp.eq.s32.totalorder %v869, %v881
      %vm910 = vcmp.eq.s32.totalorder %v868, %v882
      %vm911 = vcmp.eq.s32.totalorder %v869, %v882
      %vm912 = vcmp.eq.s32.totalorder %v868, %v883
      %vm913 = vcmp.eq.s32.totalorder %v869, %v883
      %vm914 = vcmp.eq.s32.totalorder %v868, %v884
      %vm915 = vcmp.eq.s32.totalorder %v869, %v884
      %vm916 = vcmp.eq.s32.totalorder %v868, %v885
      %vm917 = vcmp.eq.s32.totalorder %v869, %v885
      %v918 = vadd.s32 %v870, 1
      %v919 = vadd.s32 %v871, 1
      %v920 = vadd.s32 %v872, 1
      %v921 = vadd.s32 %v873, 1
      %v922 = vadd.s32 %v874, 1
      %v923 = vadd.s32 %v875, 1
      %v924 = vadd.s32 %v876, 1
      %v925 = vadd.s32 %v877, 1
      %v926 = vadd.s32 %v878, 1
      %v927 = vadd.s32 %v879, 1
      %v928 = vadd.s32 %v880, 1
      %v929 = vadd.s32 %v881, 1
      %v930 = vadd.s32 %v882, 1
      %v931 = vadd.s32 %v883, 1
      %v932 = vadd.s32 %v884, 1
      %v933 = vadd.s32 %v885, 1
      %vm934 = vcmp.eq.s32.totalorder %v868, %v918
      %vm935 = vcmp.eq.s32.totalorder %v869, %v918
      %vm936 = vcmp.eq.s32.totalorder %v868, %v919
      %vm937 = vcmp.eq.s32.totalorder %v869, %v919
      %vm938 = vcmp.eq.s32.totalorder %v868, %v920
      %vm939 = vcmp.eq.s32.totalorder %v869, %v920
      %vm940 = vcmp.eq.s32.totalorder %v868, %v921
      %vm941 = vcmp.eq.s32.totalorder %v869, %v921
      %vm942 = vcmp.eq.s32.totalorder %v868, %v922
      %vm943 = vcmp.eq.s32.totalorder %v869, %v922
      %vm944 = vcmp.eq.s32.totalorder %v868, %v923
      %vm945 = vcmp.eq.s32.totalorder %v869, %v923
      %vm946 = vcmp.eq.s32.totalorder %v868, %v924
      %vm947 = vcmp.eq.s32.totalorder %v869, %v924
      %vm948 = vcmp.eq.s32.totalorder %v868, %v925
      %vm949 = vcmp.eq.s32.totalorder %v869, %v925
      %vm950 = vcmp.eq.s32.totalorder %v868, %v926
      %vm951 = vcmp.eq.s32.totalorder %v869, %v926
      %vm952 = vcmp.eq.s32.totalorder %v868, %v927
      %vm953 = vcmp.eq.s32.totalorder %v869, %v927
      %vm954 = vcmp.eq.s32.totalorder %v868, %v928
      %vm955 = vcmp.eq.s32.totalorder %v869, %v928
      %vm956 = vcmp.eq.s32.totalorder %v868, %v929
      %vm957 = vcmp.eq.s32.totalorder %v869, %v929
      %vm958 = vcmp.eq.s32.totalorder %v868, %v930
      %vm959 = vcmp.eq.s32.totalorder %v869, %v930
      %vm960 = vcmp.eq.s32.totalorder %v868, %v931
      %vm961 = vcmp.eq.s32.totalorder %v869, %v931
      %vm962 = vcmp.eq.s32.totalorder %v868, %v932
      %vm963 = vcmp.eq.s32.totalorder %v869, %v932
      %vm964 = vcmp.eq.s32.totalorder %v868, %v933
      %vm965 = vcmp.eq.s32.totalorder %v869, %v933
      %vm966 = vmor %vm886, %vm934
      %vm967 = vmor %vm887, %vm935
      %vm968 = vmor %vm888, %vm936
      %vm969 = vmor %vm889, %vm937
      %vm970 = vmor %vm890, %vm938
      %vm971 = vmor %vm891, %vm939
      %vm972 = vmor %vm892, %vm940
      %vm973 = vmor %vm893, %vm941
      %vm974 = vmor %vm894, %vm942
      %vm975 = vmor %vm895, %vm943
      %vm976 = vmor %vm896, %vm944
      %vm977 = vmor %vm897, %vm945
      %vm978 = vmor %vm898, %vm946
      %vm979 = vmor %vm899, %vm947
      %vm980 = vmor %vm900, %vm948
      %vm981 = vmor %vm901, %vm949
      %vm982 = vmor %vm902, %vm950
      %vm983 = vmor %vm903, %vm951
      %vm984 = vmor %vm904, %vm952
      %vm985 = vmor %vm905, %vm953
      %vm986 = vmor %vm906, %vm954
      %vm987 = vmor %vm907, %vm955
      %vm988 = vmor %vm908, %vm956
      %vm989 = vmor %vm909, %vm957
      %vm990 = vmor %vm910, %vm958
      %vm991 = vmor %vm911, %vm959
      %vm992 = vmor %vm912, %vm960
      %vm993 = vmor %vm913, %vm961
      %vm994 = vmor %vm914, %vm962
      %vm995 = vmor %vm915, %vm963
      %vm996 = vmor %vm916, %vm964
      %vm997 = vmor %vm917, %vm965
      %v998 = vsel %vm966, 1, 0
      %v999 = vsel %vm967, 1, 0
      %v1000 = vsel %vm968, 1, 0
      %v1001 = vsel %vm969, 1, 0
      %v1002 = vsel %vm970, 1, 0
      %v1003 = vsel %vm971, 1, 0
      %v1004 = vsel %vm972, 1, 0
      %v1005 = vsel %vm973, 1, 0
      %v1006 = vsel %vm974, 1, 0
      %v1007 = vsel %vm975, 1, 0
      %v1008 = vsel %vm976, 1, 0
      %v1009 = vsel %vm977, 1, 0
      %v1010 = vsel %vm978, 1, 0
      %v1011 = vsel %vm979, 1, 0
      %v1012 = vsel %vm980, 1, 0
      %v1013 = vsel %vm981, 1, 0
      %v1014 = vsel %vm982, 1, 0
      %v1015 = vsel %vm983, 1, 0
      %v1016 = vsel %vm984, 1, 0
      %v1017 = vsel %vm985, 1, 0
      %v1018 = vsel %vm986, 1, 0
      %v1019 = vsel %vm987, 1, 0
      %v1020 = vsel %vm988, 1, 0
      %v1021 = vsel %vm989, 1, 0
      %v1022 = vsel %vm990, 1, 0
      %v1023 = vsel %vm991, 1, 0
      %v1024 = vsel %vm992, 1, 0
      %v1025 = vsel %vm993, 1, 0
      %v1026 = vsel %vm994, 1, 0
      %v1027 = vsel %vm995, 1, 0
      %v1028 = vsel %vm996, 1, 0
      %v1029 = vsel %vm997, 1, 0
      %v1030 = vcvt.s32.f32 %v998
      %v1031 = vcvt.s32.f32 %v999
      %v1032 = vcvt.s32.f32 %v1000
      %v1033 = vcvt.s32.f32 %v1001
      %v1034 = vcvt.s32.f32 %v1002
      %v1035 = vcvt.s32.f32 %v1003
      %v1036 = vcvt.s32.f32 %v1004
      %v1037 = vcvt.s32.f32 %v1005
      %v1038 = vcvt.s32.f32 %v1006
      %v1039 = vcvt.s32.f32 %v1007
      %v1040 = vcvt.s32.f32 %v1008
      %v1041 = vcvt.s32.f32 %v1009
      %v1042 = vcvt.s32.f32 %v1010
      %v1043 = vcvt.s32.f32 %v1011
      %v1044 = vcvt.s32.f32 %v1012
      %v1045 = vcvt.s32.f32 %v1013
      %v1046 = vcvt.s32.f32 %v1014
      %v1047 = vcvt.s32.f32 %v1015
      %v1048 = vcvt.s32.f32 %v1016
      %v1049 = vcvt.s32.f32 %v1017
      %v1050 = vcvt.s32.f32 %v1018
      %v1051 = vcvt.s32.f32 %v1019
      %v1052 = vcvt.s32.f32 %v1020
      %v1053 = vcvt.s32.f32 %v1021
      %v1054 = vcvt.s32.f32 %v1022
      %v1055 = vcvt.s32.f32 %v1023
      %v1056 = vcvt.s32.f32 %v1024
      %v1057 = vcvt.s32.f32 %v1025
      %v1058 = vcvt.s32.f32 %v1026
      %v1059 = vcvt.s32.f32 %v1027
      %v1060 = vcvt.s32.f32 %v1028
      %v1061 = vcvt.s32.f32 %v1029
      %v1062 = vand.u32 %v868, 1
      %v1063 = vand.u32 %v869, 1
      %vm1064 = vcmp.eq.s32.totalorder %v1062, 0
      %vm1065 = vcmp.eq.s32.totalorder %v1063, 0
      %v1066 = vadd.f32 %v840, %v841
      %1067 = vadd.xlane.f32.xlu0 %v1066
      %v1068 = vpop.xlane.xlu0 %1067
      %v1069 = vadd.f32 %v842, %v843
      %1070 = vadd.xlane.f32.xlu0 %v1069
      %v1071 = vpop.xlane.xlu0 %1070
      %v1072 = vadd.f32 %v844, %v845
      %1073 = vadd.xlane.f32.xlu0 %v1072
      %v1074 = vpop.xlane.xlu0 %1073
      %v1075 = vadd.f32 %v846, %v847
      %1076 = vadd.xlane.f32.xlu0 %v1075
      %v1077 = vpop.xlane.xlu0 %1076
      %v1078 = vrcp.pop 256.0
      %v1079 = vmul.f32 256.0, %v1078
      %v1080 = vsub.f32 1.0, %v1079
      %v1081 = vmul.f32 %v1078, %v1080
      %v1082 = vadd.f32 %v1078, %v1081
      %vm1083 = vweird.f32 %v1078
      %v1084 = vsel %vm1083, %v1078, %v1082
      %v1085 = vmul.f32 %v1068, %v1084
      %v1086 = vmul.f32 %v1071, %v1084
      %v1087 = vmul.f32 %v1074, %v1084
      %v1088 = vmul.f32 %v1077, %v1084
      %v1089 = vsub.f32 %v840, %v1085
      %v1090 = vsub.f32 %v841, %v1085
      %v1091 = vsub.f32 %v842, %v1086
      %v1092 = vsub.f32 %v843, %v1086
      %v1093 = vsub.f32 %v844, %v1087
      %v1094 = vsub.f32 %v845, %v1087
      %v1095 = vsub.f32 %v846, %v1088
      %v1096 = vsub.f32 %v847, %v1088
      %v1097 = vmul.f32 %v1089, %v1089
      %v1098 = vmul.f32 %v1090, %v1090
      %v1099 = vmul.f32 %v1091, %v1091
      %v1100 = vmul.f32 %v1092, %v1092
      %v1101 = vmul.f32 %v1093, %v1093
      %v1102 = vmul.f32 %v1094, %v1094
      %v1103 = vmul.f32 %v1095, %v1095
      %v1104 = vmul.f32 %v1096, %v1096
      %v1105 = vadd.f32 %v1097, %v1098
      %1106 = vadd.xlane.f32.xlu0 %v1105
      %v1107 = vpop.xlane.xlu0 %1106
      %v1108 = vadd.f32 %v1099, %v1100
      %1109 = vadd.xlane.f32.xlu0 %v1108
      %v1110 = vpop.xlane.xlu0 %1109
      %v1111 = vadd.f32 %v1101, %v1102
      %1112 = vadd.xlane.f32.xlu0 %v1111
      %v1113 = vpop.xlane.xlu0 %1112
      %v1114 = vadd.f32 %v1103, %v1104
      %1115 = vadd.xlane.f32.xlu0 %v1114
      %v1116 = vpop.xlane.xlu0 %1115
      %v1117 = vmul.f32 %v1107, %v1084
      %v1118 = vmul.f32 %v1110, %v1084
      %v1119 = vmul.f32 %v1113, %v1084
      %v1120 = vmul.f32 %v1116, %v1084
      %v1121 = vadd.f32 %v1117, 1e-06
      %v1122 = vadd.f32 %v1118, 1e-06
      %v1123 = vadd.f32 %v1119, 1e-06
      %v1124 = vadd.f32 %v1120, 1e-06
      %v1125 = vrsqrt.pop %v1121
      %v1126 = vmul.f32 %v1125, %v1121
      %v1127 = vmul.f32 %v1126, %v1125
      %v1128 = vmul.f32 0.5, %v1127
      %v1129 = vsub.f32 1.5, %v1128
      %v1130 = vmul.f32 %v1125, %v1129
      %vm1131 = vweird.f32 %v1121
      %vm1132 = vweird.f32 %v1125
      %vm1133 = vmor %vm1131, %vm1132
      %v1134 = vsel %vm1133, %v1125, %v1130
      %v1135 = vrsqrt.pop %v1122
      %v1136 = vmul.f32 %v1135, %v1122
      %v1137 = vmul.f32 %v1136, %v1135
      %v1138 = vmul.f32 0.5, %v1137
      %v1139 = vsub.f32 1.5, %v1138
      %v1140 = vmul.f32 %v1135, %v1139
      %vm1141 = vweird.f32 %v1122
      %vm1142 = vweird.f32 %v1135
      %vm1143 = vmor %vm1141, %vm1142
      %v1144 = vsel %vm1143, %v1135, %v1140
      %v1145 = vrsqrt.pop %v1123
      %v1146 = vmul.f32 %v1145, %v1123
      %v1147 = vmul.f32 %v1146, %v1145
      %v1148 = vmul.f32 0.5, %v1147
      %v1149 = vsub.f32 1.5, %v1148
      %v1150 = vmul.f32 %v1145, %v1149
      %vm1151 = vweird.f32 %v1123
      %vm1152 = vweird.f32 %v1145
      %vm1153 = vmor %vm1151, %vm1152
      %v1154 = vsel %vm1153, %v1145, %v1150
      %v1155 = vrsqrt.pop %v1124
      %v1156 = vmul.f32 %v1155, %v1124
      %v1157 = vmul.f32 %v1156, %v1155
      %v1158 = vmul.f32 0.5, %v1157
      %v1159 = vsub.f32 1.5, %v1158
      %v1160 = vmul.f32 %v1155, %v1159
      %vm1161 = vweird.f32 %v1124
      %vm1162 = vweird.f32 %v1155
      %vm1163 = vmor %vm1161, %vm1162
      %v1164 = vsel %vm1163, %v1155, %v1160
      %v1165 = vmul.f32 %v1089, %v1134
      %v1166 = vmul.f32 %v1090, %v1134
      %v1167 = vmul.f32 %v1091, %v1144
      %v1168 = vmul.f32 %v1092, %v1144
      %v1169 = vmul.f32 %v1093, %v1154
      %v1170 = vmul.f32 %v1094, %v1154
      %v1171 = vmul.f32 %v1095, %v1164
      %v1172 = vmul.f32 %v1096, %v1164
      %v1173 = vld [vmem:[%s4] sm:$0xff]
      %v1174 = vld [vmem:[%s4 + $0x8] sm:$0xff]
      %v1175 = vld [vmem:[%s4 + $0x10] sm:$0xff]
      %v1176 = vld [vmem:[%s4 + $0x18] sm:$0xff]
      %1178 = vset.pattern.permute.xlu0 0
      %1179 = vperm.xlu0 %1178, %v1173
      %v1180 = vpop.permute.xlu0 %1179
      %1183 = vset.pattern.permute.xlu0 0
      %1184 = vperm.xlu0 %1183, %v1174
      %v1185 = vpop.permute.xlu0 %1184
      %1188 = vset.pattern.permute.xlu0 0
      %1189 = vperm.xlu0 %1188, %v1175
      %v1190 = vpop.permute.xlu0 %1189
      %1193 = vset.pattern.permute.xlu0 0
      %1194 = vperm.xlu0 %1193, %v1176
      %v1195 = vpop.permute.xlu0 %1194
      %v1197 = vmul.f32 %v1165, %v1180
      %v1198 = vmul.f32 %v1166, %v1180
      %v1199 = vmul.f32 %v1167, %v1185
      %v1200 = vmul.f32 %v1168, %v1185
      %v1201 = vmul.f32 %v1169, %v1190
      %v1202 = vmul.f32 %v1170, %v1190
      %v1203 = vmul.f32 %v1171, %v1195
      %v1204 = vmul.f32 %v1172, %v1195
      %v1205 = vld [vmem:[%s5] sm:$0xff]
      %v1206 = vld [vmem:[%s5 + $0x8] sm:$0xff]
      %v1207 = vld [vmem:[%s5 + $0x10] sm:$0xff]
      %v1208 = vld [vmem:[%s5 + $0x18] sm:$0xff]
      %1210 = vset.pattern.permute.xlu0 0
      %1211 = vperm.xlu0 %1210, %v1205
      %v1212 = vpop.permute.xlu0 %1211
      %1215 = vset.pattern.permute.xlu0 0
      %1216 = vperm.xlu0 %1215, %v1206
      %v1217 = vpop.permute.xlu0 %1216
      %1220 = vset.pattern.permute.xlu0 0
      %1221 = vperm.xlu0 %1220, %v1207
      %v1222 = vpop.permute.xlu0 %1221
      %1225 = vset.pattern.permute.xlu0 0
      %1226 = vperm.xlu0 %1225, %v1208
      %v1227 = vpop.permute.xlu0 %1226
      %v1229 = vadd.f32 %v1197, %v1212
      %v1230 = vadd.f32 %v1198, %v1212
      %v1231 = vadd.f32 %v1199, %v1217
      %v1232 = vadd.f32 %v1200, %v1217
      %v1233 = vadd.f32 %v1201, %v1222
      %v1234 = vadd.f32 %v1202, %v1222
      %v1235 = vadd.f32 %v1203, %v1227
      %v1236 = vadd.f32 %v1204, %v1227
      %v1237 = vld [vmem:[%s6] sm:$0xf]
      %v1238 = vld [vmem:[%s6 + $0x4] sm:$0xf]
      %v1239 = vld [vmem:[%s6 + $0x8] sm:$0xf]
      %v1240 = vld [vmem:[%s6 + $0xc] sm:$0xf]
      %v1241 = vpack.c.bf16 %v1231, %v1229
      %v1242 = vpack.c.bf16 %v1232, %v1230
      %v1243 = vpack.c.bf16 %v1235, %v1233
      %v1244 = vpack.c.bf16 %v1236, %v1234
      %v1245 = vld [vmem:[%s7] sm:$0xff]
      %v1246 = vld [vmem:[%s7 + $0x8] sm:$0xff]
      %v1247 = vld [vmem:[%s7 + $0x10] sm:$0xff]
      %v1248 = vld [vmem:[%s7 + $0x18] sm:$0xff]
      %1250 = vset.pattern.permute.xlu0 0
      %1251 = vperm.xlu0 %1250, %v1245
      %v1252 = vpop.permute.xlu0 %1251
      %1255 = vset.pattern.permute.xlu0 0
      %1256 = vperm.xlu0 %1255, %v1246
      %v1257 = vpop.permute.xlu0 %1256
      %1260 = vset.pattern.permute.xlu0 0
      %1261 = vperm.xlu0 %1260, %v1247
      %v1262 = vpop.permute.xlu0 %1261
      %1265 = vset.pattern.permute.xlu0 0
      %1266 = vperm.xlu0 %1265, %v1248
      %v1267 = vpop.permute.xlu0 %1266
      %v1273 = vunpack.c.l.b16 %v1237
      %v1274 = vunpack.c.l.b16 %v1238
      %v1275 = vunpack.c.l.b16 %v1239
      %v1276 = vunpack.c.l.b16 %v1240
      %v1277 = vpack.c.b16 %v1274, %v1273
      %v1278 = vpack.c.b16 %v1276, %v1275
      %vm1279 = vcmask 261120
      %v1281 = vsel %vm1279, %v1277, 0
      %v1284 = vsel %vm1279, %v1278, 0
      %1286 = vmatpush.bf16.msra.mxu0 0
      %1287 = vmatpush.bf16.msra.mxu0 0
      %1288 = vmatpush.bf16.msra.mxu0 0
      %1289 = vmatpush.bf16.msra.mxu0 0
      %1290 = vmatpush.bf16.msra.mxu0 0
      %1291 = vmatpush.bf16.msra.mxu0 0
      %1292 = vmatpush.bf16.msra.mxu0 %v1243
      %1293 = vmatpush.bf16.msra.mxu0 %v1241
      %1294 = vmatmul.bf16.gmra.mxu0 %v1281
      %v1295 = vpop.f32.mrf.mxu0
      %v1296 = vadd.f32 %v1252, %v1295
      %v1297 = vpop.f32.mrf.mxu0
      %v1298 = vadd.f32 %v1257, %v1297
      %1299 = vmatmul.bf16.gmra.mxu0 %v1284
      %v1300 = vpop.f32.mrf.mxu0
      %v1301 = vadd.f32 %v1262, %v1300
      %v1302 = vpop.f32.mrf.mxu0
      %v1303 = vadd.f32 %v1267, %v1302
      %1304 = vdwg.mxu0
      %1305 = vmatpush.bf16.msra.mxu0 0
      %1306 = vmatpush.bf16.msra.mxu0 0
      %1307 = vmatpush.bf16.msra.mxu0 0
      %1308 = vmatpush.bf16.msra.mxu0 0
      %1309 = vmatpush.bf16.msra.mxu0 0
      %1310 = vmatpush.bf16.msra.mxu0 0
      %1311 = vmatpush.bf16.msra.mxu0 %v1244
      %1312 = vmatpush.bf16.msra.mxu0 %v1242
      %1313 = vmatmul.bf16.gmra.mxu0 %v1281
      %v1314 = vpop.f32.mrf.mxu0
      %v1315 = vadd.f32 %v1252, %v1314
      %v1316 = vpop.f32.mrf.mxu0
      %v1317 = vadd.f32 %v1257, %v1316
      %1318 = vmatmul.bf16.gmra.mxu0 %v1284
      %v1319 = vpop.f32.mrf.mxu0
      %v1320 = vadd.f32 %v1262, %v1319
      %v1321 = vpop.f32.mrf.mxu0
      %v1322 = vadd.f32 %v1267, %v1321
      %1323 = vdwg.mxu0
      %v1324 = vld [vmem:[%s2] sm:$0xf]
      %v1325 = vld [vmem:[%s2 + $0x4] sm:$0xf]
      %v1326 = vld [vmem:[%s2 + $0x8] sm:$0xf]
      %v1327 = vld [vmem:[%s2 + $0xc] sm:$0xf]
      %v1328 = vpack.c.bf16 %v848, %v848
      %v1329 = vpack.c.bf16 %v849, %v849
      %v1330 = vld [vmem:[%s3] sm:$0xff]
      %v1331 = vld [vmem:[%s3 + $0x8] sm:$0xff]
      %v1332 = vld [vmem:[%s3 + $0x10] sm:$0xff]
      %v1333 = vld [vmem:[%s3 + $0x18] sm:$0xff]
      %1335 = vset.pattern.permute.xlu0 0
      %1336 = vperm.xlu0 %1335, %v1330
      %v1337 = vpop.permute.xlu0 %1336
      %1340 = vset.pattern.permute.xlu0 0
      %1341 = vperm.xlu0 %1340, %v1331
      %v1342 = vpop.permute.xlu0 %1341
      %1345 = vset.pattern.permute.xlu0 0
      %1346 = vperm.xlu0 %1345, %v1332
      %v1347 = vpop.permute.xlu0 %1346
      %1350 = vset.pattern.permute.xlu0 0
      %1351 = vperm.xlu0 %1350, %v1333
      %v1352 = vpop.permute.xlu0 %1351
      %v1358 = vunpack.c.l.b16 %v1324
      %v1359 = vunpack.c.l.b16 %v1325
      %v1360 = vunpack.c.l.b16 %v1326
      %v1361 = vunpack.c.l.b16 %v1327
      %v1362 = vpack.c.b16 %v1359, %v1358
      %v1363 = vpack.c.b16 %v1361, %v1360
      %vm1364 = vcmask 64512
      %v1366 = vsel %vm1364, %v1362, 0
      %v1369 = vsel %vm1364, %v1363, 0
      %vm1371 = vcmask 1043456
      %v1373 = vsel %vm1371, %v1328, 0
      %v1376 = vsel %vm1371, %v1329, 0
      %1378 = vmatpush.bf16.msra.mxu0 0
      %1379 = vmatpush.bf16.msra.mxu0 0
      %1380 = vmatpush.bf16.msra.mxu0 0
      %1381 = vmatpush.bf16.msra.mxu0 0
      %1382 = vmatpush.bf16.msra.mxu0 0
      %1383 = vmatpush.bf16.msra.mxu0 0
      %1384 = vmatpush.bf16.msra.mxu0 0
      %1385 = vmatpush.bf16.msra.mxu0 %v1373
      %1386 = vmatmul.bf16.gmra.mxu0 %v1366
      %v1387 = vpop.f32.mrf.mxu0
      %v1388 = vadd.f32 %v1337, %v1387
      %v1389 = vpop.f32.mrf.mxu0
      %v1390 = vadd.f32 %v1342, %v1389
      %1391 = vmatmul.bf16.gmra.mxu0 %v1369
      %v1392 = vpop.f32.mrf.mxu0
      %v1393 = vadd.f32 %v1347, %v1392
      %v1394 = vpop.f32.mrf.mxu0
      %v1395 = vadd.f32 %v1352, %v1394
      %1396 = vdwg.mxu0
      %1397 = vmatpush.bf16.msra.mxu0 0
      %1398 = vmatpush.bf16.msra.mxu0 0
      %1399 = vmatpush.bf16.msra.mxu0 0
      %1400 = vmatpush.bf16.msra.mxu0 0
      %1401 = vmatpush.bf16.msra.mxu0 0
      %1402 = vmatpush.bf16.msra.mxu0 0
      %1403 = vmatpush.bf16.msra.mxu0 0
      %1404 = vmatpush.bf16.msra.mxu0 %v1376
      %1405 = vmatmul.bf16.gmra.mxu0 %v1366
      %v1406 = vpop.f32.mrf.mxu0
      %v1407 = vadd.f32 %v1337, %v1406
      %v1408 = vpop.f32.mrf.mxu0
      %v1409 = vadd.f32 %v1342, %v1408
      %1410 = vmatmul.bf16.gmra.mxu0 %v1369
      %v1411 = vpop.f32.mrf.mxu0
      %v1412 = vadd.f32 %v1347, %v1411
      %v1413 = vpop.f32.mrf.mxu0
      %v1414 = vadd.f32 %v1352, %v1413
      %1415 = vdwg.mxu0
      %v1416 = vld [vmem:[%s8] sm:$0xff]
      %v1417 = vld [vmem:[%s8 + $0x8] sm:$0xff]
      %v1418 = vld [vmem:[%s8 + $0x10] sm:$0xff]
      %v1419 = vld [vmem:[%s8 + $0x18] sm:$0xff]
      %v1420 = vld [vmem:[%s9] sm:$0xff]
      %v1421 = vld [vmem:[%s9 + $0x8] sm:$0xff]
      %v1422 = vld [vmem:[%s9 + $0x10] sm:$0xff]
      %v1423 = vld [vmem:[%s9 + $0x18] sm:$0xff]
      %v1424 = vadd.f32 %v1296, %v1298
      %v1425 = vadd.f32 %v1424, %v1301
      %v1426 = vadd.f32 %v1425, %v1303
      %v1427 = vrot.slane %v1426, 4
      %v1428 = vadd.f32 %v1426, %v1427
      %v1429 = vrot.slane %v1428, 2
      %v1430 = vadd.f32 %v1428, %v1429
      %v1431 = vrot.slane %v1430, 1
      %v1432 = vadd.f32 %v1430, %v1431
      %v1433 = vadd.f32 %v1315, %v1317
      %v1434 = vadd.f32 %v1433, %v1320
      %v1435 = vadd.f32 %v1434, %v1322
      %v1436 = vrot.slane %v1435, 4
      %v1437 = vadd.f32 %v1435, %v1436
      %v1438 = vrot.slane %v1437, 2
      %v1439 = vadd.f32 %v1437, %v1438
      %v1440 = vrot.slane %v1439, 1
      %v1441 = vadd.f32 %v1439, %v1440
      %v1442 = vrcp.pop 32.0
      %v1443 = vmul.f32 32.0, %v1442
      %v1444 = vsub.f32 1.0, %v1443
      %v1445 = vmul.f32 %v1442, %v1444
      %v1446 = vadd.f32 %v1442, %v1445
      %vm1447 = vweird.f32 %v1442
      %v1448 = vsel %vm1447, %v1442, %v1446
      %v1449 = vmul.f32 %v1432, %v1448
      %v1450 = vmul.f32 %v1441, %v1448
      %v1451 = vsub.f32 %v1296, %v1449
      %v1452 = vsub.f32 %v1315, %v1450
      %v1453 = vsub.f32 %v1298, %v1449
      %v1454 = vsub.f32 %v1317, %v1450
      %v1455 = vsub.f32 %v1301, %v1449
      %v1456 = vsub.f32 %v1320, %v1450
      %v1457 = vsub.f32 %v1303, %v1449
      %v1458 = vsub.f32 %v1322, %v1450
      %v1459 = vmul.f32 %v1451, %v1451
      %v1460 = vmul.f32 %v1452, %v1452
      %v1461 = vmul.f32 %v1453, %v1453
      %v1462 = vmul.f32 %v1454, %v1454
      %v1463 = vmul.f32 %v1455, %v1455
      %v1464 = vmul.f32 %v1456, %v1456
      %v1465 = vmul.f32 %v1457, %v1457
      %v1466 = vmul.f32 %v1458, %v1458
      %v1467 = vadd.f32 %v1459, %v1461
      %v1468 = vadd.f32 %v1467, %v1463
      %v1469 = vadd.f32 %v1468, %v1465
      %v1470 = vrot.slane %v1469, 4
      %v1471 = vadd.f32 %v1469, %v1470
      %v1472 = vrot.slane %v1471, 2
      %v1473 = vadd.f32 %v1471, %v1472
      %v1474 = vrot.slane %v1473, 1
      %v1475 = vadd.f32 %v1473, %v1474
      %v1476 = vadd.f32 %v1460, %v1462
      %v1477 = vadd.f32 %v1476, %v1464
      %v1478 = vadd.f32 %v1477, %v1466
      %v1479 = vrot.slane %v1478, 4
      %v1480 = vadd.f32 %v1478, %v1479
      %v1481 = vrot.slane %v1480, 2
      %v1482 = vadd.f32 %v1480, %v1481
      %v1483 = vrot.slane %v1482, 1
      %v1484 = vadd.f32 %v1482, %v1483
      %v1485 = vmul.f32 %v1475, %v1448
      %v1486 = vmul.f32 %v1484, %v1448
      %v1487 = vadd.f32 %v1485, 1e-05
      %v1488 = vadd.f32 %v1486, 1e-05
      %v1489 = vrsqrt.pop %v1487
      %v1490 = vmul.f32 %v1489, %v1487
      %v1491 = vmul.f32 %v1490, %v1489
      %v1492 = vmul.f32 0.5, %v1491
      %v1493 = vsub.f32 1.5, %v1492
      %v1494 = vmul.f32 %v1489, %v1493
      %vm1495 = vweird.f32 %v1487
      %vm1496 = vweird.f32 %v1489
      %vm1497 = vmor %vm1495, %vm1496
      %v1498 = vsel %vm1497, %v1489, %v1494
      %v1499 = vrsqrt.pop %v1488
      %v1500 = vmul.f32 %v1499, %v1488
      %v1501 = vmul.f32 %v1500, %v1499
      %v1502 = vmul.f32 0.5, %v1501
      %v1503 = vsub.f32 1.5, %v1502
      %v1504 = vmul.f32 %v1499, %v1503
      %vm1505 = vweird.f32 %v1488
      %vm1506 = vweird.f32 %v1499
      %vm1507 = vmor %vm1505, %vm1506
      %v1508 = vsel %vm1507, %v1499, %v1504
      %v1509 = vmul.f32 %v1451, %v1498
      %v1510 = vmul.f32 %v1452, %v1508
      %v1511 = vmul.f32 %v1453, %v1498
      %v1512 = vmul.f32 %v1454, %v1508
      %v1513 = vmul.f32 %v1455, %v1498
      %v1514 = vmul.f32 %v1456, %v1508
      %v1515 = vmul.f32 %v1457, %v1498
      %v1516 = vmul.f32 %v1458, %v1508
      %1518 = vset.pattern.permute.xlu0 0
      %1519 = vperm.xlu0 %1518, %v1416
      %v1520 = vpop.permute.xlu0 %1519
      %1523 = vset.pattern.permute.xlu0 0
      %1524 = vperm.xlu0 %1523, %v1417
      %v1525 = vpop.permute.xlu0 %1524
      %1528 = vset.pattern.permute.xlu0 0
      %1529 = vperm.xlu0 %1528, %v1418
      %v1530 = vpop.permute.xlu0 %1529
      %1533 = vset.pattern.permute.xlu0 0
      %1534 = vperm.xlu0 %1533, %v1419
      %v1535 = vpop.permute.xlu0 %1534
      %v1537 = vmul.f32 %v1509, %v1520
      %v1538 = vmul.f32 %v1510, %v1520
      %v1539 = vmul.f32 %v1511, %v1525
      %v1540 = vmul.f32 %v1512, %v1525
      %v1541 = vmul.f32 %v1513, %v1530
      %v1542 = vmul.f32 %v1514, %v1530
      %v1543 = vmul.f32 %v1515, %v1535
      %v1544 = vmul.f32 %v1516, %v1535
      %1546 = vset.pattern.permute.xlu0 0
      %1547 = vperm.xlu0 %1546, %v1420
      %v1548 = vpop.permute.xlu0 %1547
      %1551 = vset.pattern.permute.xlu0 0
      %1552 = vperm.xlu0 %1551, %v1421
      %v1553 = vpop.permute.xlu0 %1552
      %1556 = vset.pattern.permute.xlu0 0
      %1557 = vperm.xlu0 %1556, %v1422
      %v1558 = vpop.permute.xlu0 %1557
      %1561 = vset.pattern.permute.xlu0 0
      %1562 = vperm.xlu0 %1561, %v1423
      %v1563 = vpop.permute.xlu0 %1562
      %v1565 = vadd.f32 %v1537, %v1548
      %v1566 = vadd.f32 %v1538, %v1548
      %v1567 = vadd.f32 %v1539, %v1553
      %v1568 = vadd.f32 %v1540, %v1553
      %v1569 = vadd.f32 %v1541, %v1558
      %v1570 = vadd.f32 %v1542, %v1558
      %v1571 = vadd.f32 %v1543, %v1563
      %v1572 = vadd.f32 %v1544, %v1563
      %v1573 = vld [vmem:[%s10] sm:$0xf]
      %v1574 = vld [vmem:[%s10 + $0x4] sm:$0xf]
      %v1575 = vld [vmem:[%s10 + $0x8] sm:$0xf]
      %v1576 = vld [vmem:[%s10 + $0xc] sm:$0xf]
      %v1577 = vld [vmem:[%s10 + $0x10] sm:$0xf]
      %v1578 = vld [vmem:[%s10 + $0x14] sm:$0xf]
      %v1579 = vld [vmem:[%s10 + $0x18] sm:$0xf]
      %v1580 = vld [vmem:[%s10 + $0x1c] sm:$0xf]
      %v1581 = vld [vmem:[%s10 + $0x20] sm:$0xf]
      %v1582 = vld [vmem:[%s10 + $0x24] sm:$0xf]
      %v1583 = vld [vmem:[%s10 + $0x28] sm:$0xf]
      %v1584 = vld [vmem:[%s10 + $0x2c] sm:$0xf]
      %v1585 = vpack.c.bf16 %v1567, %v1565
      %v1586 = vpack.c.bf16 %v1568, %v1566
      %v1587 = vpack.c.bf16 %v1571, %v1569
      %v1588 = vpack.c.bf16 %v1572, %v1570
      %v1601 = vunpack.c.l.b16 %v1573
      %v1602 = vunpack.c.l.b16 %v1574
      %v1603 = vunpack.c.l.b16 %v1575
      %v1604 = vunpack.c.l.b16 %v1576
      %v1605 = vunpack.c.l.b16 %v1577
      %v1606 = vunpack.c.l.b16 %v1578
      %v1607 = vunpack.c.l.b16 %v1579
      %v1608 = vunpack.c.l.b16 %v1580
      %v1609 = vunpack.c.l.b16 %v1581
      %v1610 = vunpack.c.l.b16 %v1582
      %v1611 = vunpack.c.l.b16 %v1583
      %v1612 = vunpack.c.l.b16 %v1584
      %v1613 = vpack.c.b16 %v1602, %v1601
      %v1614 = vpack.c.b16 %v1604, %v1603
      %v1615 = vpack.c.b16 %v1606, %v1605
      %v1616 = vpack.c.b16 %v1608, %v1607
      %v1617 = vpack.c.b16 %v1610, %v1609
      %v1618 = vpack.c.b16 %v1612, %v1611
      %v1620 = vsel %vm1279, %v1613, 0
      %v1623 = vsel %vm1279, %v1614, 0
      %v1626 = vsel %vm1279, %v1615, 0
      %v1629 = vsel %vm1279, %v1616, 0
      %v1632 = vsel %vm1279, %v1617, 0
      %v1635 = vsel %vm1279, %v1618, 0
      %1637 = vmatpush.bf16.msra.mxu0 0
      %1638 = vmatpush.bf16.msra.mxu0 0
      %1639 = vmatpush.bf16.msra.mxu0 0
      %1640 = vmatpush.bf16.msra.mxu0 0
      %1641 = vmatpush.bf16.msra.mxu0 0
      %1642 = vmatpush.bf16.msra.mxu0 0
      %1643 = vmatpush.bf16.msra.mxu0 %v1587
      %1644 = vmatpush.bf16.msra.mxu0 %v1585
      %1645 = vmatmul.bf16.gmra.mxu0 %v1620
      %v1646 = vpop.f32.mrf.mxu0
      %v1647 = vadd.f32 0.0, %v1646
      %v1648 = vpop.f32.mrf.mxu0
      %v1649 = vadd.f32 0.0, %v1648
      %1650 = vmatmul.bf16.gmra.mxu0 %v1623
      %v1651 = vpop.f32.mrf.mxu0
      %v1652 = vadd.f32 0.0, %v1651
      %v1653 = vpop.f32.mrf.mxu0
      %v1654 = vadd.f32 0.0, %v1653
      %1655 = vmatmul.bf16.gmra.mxu0 %v1626
      %v1656 = vpop.f32.mrf.mxu0
      %v1657 = vadd.f32 0.0, %v1656
      %v1658 = vpop.f32.mrf.mxu0
      %v1659 = vadd.f32 0.0, %v1658
      %1660 = vmatmul.bf16.gmra.mxu0 %v1629
      %v1661 = vpop.f32.mrf.mxu0
      %v1662 = vadd.f32 0.0, %v1661
      %v1663 = vpop.f32.mrf.mxu0
      %v1664 = vadd.f32 0.0, %v1663
      %1665 = vmatmul.bf16.gmra.mxu0 %v1632
      %v1666 = vpop.f32.mrf.mxu0
      %v1667 = vadd.f32 0.0, %v1666
      %v1668 = vpop.f32.mrf.mxu0
      %v1669 = vadd.f32 0.0, %v1668
      %1670 = vmatmul.bf16.gmra.mxu0 %v1635
      %v1671 = vpop.f32.mrf.mxu0
      %v1672 = vadd.f32 0.0, %v1671
      %v1673 = vpop.f32.mrf.mxu0
      %v1674 = vadd.f32 0.0, %v1673
      %1675 = vdwg.mxu0
      %1676 = vmatpush.bf16.msra.mxu0 0
      %1677 = vmatpush.bf16.msra.mxu0 0
      %1678 = vmatpush.bf16.msra.mxu0 0
      %1679 = vmatpush.bf16.msra.mxu0 0
      %1680 = vmatpush.bf16.msra.mxu0 0
      %1681 = vmatpush.bf16.msra.mxu0 0
      %1682 = vmatpush.bf16.msra.mxu0 %v1588
      %1683 = vmatpush.bf16.msra.mxu0 %v1586
      %1684 = vmatmul.bf16.gmra.mxu0 %v1620
      %v1685 = vpop.f32.mrf.mxu0
      %v1686 = vadd.f32 0.0, %v1685
      %v1687 = vpop.f32.mrf.mxu0
      %v1688 = vadd.f32 0.0, %v1687
      %1689 = vmatmul.bf16.gmra.mxu0 %v1623
      %v1690 = vpop.f32.mrf.mxu0
      %v1691 = vadd.f32 0.0, %v1690
      %v1692 = vpop.f32.mrf.mxu0
      %v1693 = vadd.f32 0.0, %v1692
      %1694 = vmatmul.bf16.gmra.mxu0 %v1626
      %v1695 = vpop.f32.mrf.mxu0
      %v1696 = vadd.f32 0.0, %v1695
      %v1697 = vpop.f32.mrf.mxu0
      %v1698 = vadd.f32 0.0, %v1697
      %1699 = vmatmul.bf16.gmra.mxu0 %v1629
      %v1700 = vpop.f32.mrf.mxu0
      %v1701 = vadd.f32 0.0, %v1700
      %v1702 = vpop.f32.mrf.mxu0
      %v1703 = vadd.f32 0.0, %v1702
      %1704 = vmatmul.bf16.gmra.mxu0 %v1632
      %v1705 = vpop.f32.mrf.mxu0
      %v1706 = vadd.f32 0.0, %v1705
      %v1707 = vpop.f32.mrf.mxu0
      %v1708 = vadd.f32 0.0, %v1707
      %1709 = vmatmul.bf16.gmra.mxu0 %v1635
      %v1710 = vpop.f32.mrf.mxu0
      %v1711 = vadd.f32 0.0, %v1710
      %v1712 = vpop.f32.mrf.mxu0
      %v1713 = vadd.f32 0.0, %v1712
      %1714 = vdwg.mxu0
      %1715 = vmatpush.msra.mxu0 %v1060
      %1716 = vmatpush.msra.mxu0 %v1058
      %1717 = vmatpush.msra.mxu0 %v1056
      %1718 = vmatpush.msra.mxu0 %v1054
      %1719 = vmatpush.msra.mxu0 %v1052
      %1720 = vmatpush.msra.mxu0 %v1050
      %1721 = vmatpush.msra.mxu0 %v1048
      %1722 = vmatpush.msra.mxu0 %v1046
      %1723 = vmatpush.msra.mxu0 %v1044
      %1724 = vmatpush.msra.mxu0 %v1042
      %1725 = vmatpush.msra.mxu0 %v1040
      %1726 = vmatpush.msra.mxu0 %v1038
      %1727 = vmatpush.msra.mxu0 %v1036
      %1728 = vmatpush.msra.mxu0 %v1034
      %1729 = vmatpush.msra.mxu0 %v1032
      %1730 = vmatpush.msra.mxu0 %v1030
      %1731 = vmatmul.f32.gmra.mxu0 %v1657
      %v1732 = vpop.f32.mrf.mxu0
      %v1733 = vadd.f32 0.0, %v1732
      %1734 = vmatmul.f32.gmra.mxu0 %v1659
      %v1735 = vpop.f32.mrf.mxu0
      %v1736 = vadd.f32 0.0, %v1735
      %1737 = vmatmul.f32.gmra.mxu0 %v1662
      %v1738 = vpop.f32.mrf.mxu0
      %v1739 = vadd.f32 0.0, %v1738
      %1740 = vmatmul.f32.gmra.mxu0 %v1664
      %v1741 = vpop.f32.mrf.mxu0
      %v1742 = vadd.f32 0.0, %v1741
      %1743 = vmatmul.f32.gmra.mxu0 %v1667
      %v1744 = vpop.f32.mrf.mxu0
      %v1745 = vadd.f32 0.0, %v1744
      %1746 = vmatmul.f32.gmra.mxu0 %v1669
      %v1747 = vpop.f32.mrf.mxu0
      %v1748 = vadd.f32 0.0, %v1747
      %1749 = vmatmul.f32.gmra.mxu0 %v1672
      %v1750 = vpop.f32.mrf.mxu0
      %v1751 = vadd.f32 0.0, %v1750
      %1752 = vmatmul.f32.gmra.mxu0 %v1674
      %v1753 = vpop.f32.mrf.mxu0
      %v1754 = vadd.f32 0.0, %v1753
      %1755 = vdwg.mxu0
      %1756 = vmatpush.msra.mxu0 %v1061
      %1757 = vmatpush.msra.mxu0 %v1059
      %1758 = vmatpush.msra.mxu0 %v1057
      %1759 = vmatpush.msra.mxu0 %v1055
      %1760 = vmatpush.msra.mxu0 %v1053
      %1761 = vmatpush.msra.mxu0 %v1051
      %1762 = vmatpush.msra.mxu0 %v1049
      %1763 = vmatpush.msra.mxu0 %v1047
      %1764 = vmatpush.msra.mxu0 %v1045
      %1765 = vmatpush.msra.mxu0 %v1043
      %1766 = vmatpush.msra.mxu0 %v1041
      %1767 = vmatpush.msra.mxu0 %v1039
      %1768 = vmatpush.msra.mxu0 %v1037
      %1769 = vmatpush.msra.mxu0 %v1035
      %1770 = vmatpush.msra.mxu0 %v1033
      %1771 = vmatpush.msra.mxu0 %v1031
      %1772 = vmatmul.f32.gmra.mxu0 %v1657
      %v1773 = vpop.f32.mrf.mxu0
      %v1774 = vadd.f32 0.0, %v1773
      %1775 = vmatmul.f32.gmra.mxu0 %v1659
      %v1776 = vpop.f32.mrf.mxu0
      %v1777 = vadd.f32 0.0, %v1776
      %1778 = vmatmul.f32.gmra.mxu0 %v1662
      %v1779 = vpop.f32.mrf.mxu0
      %v1780 = vadd.f32 0.0, %v1779
      %1781 = vmatmul.f32.gmra.mxu0 %v1664
      %v1782 = vpop.f32.mrf.mxu0
      %v1783 = vadd.f32 0.0, %v1782
      %1784 = vmatmul.f32.gmra.mxu0 %v1667
      %v1785 = vpop.f32.mrf.mxu0
      %v1786 = vadd.f32 0.0, %v1785
      %1787 = vmatmul.f32.gmra.mxu0 %v1669
      %v1788 = vpop.f32.mrf.mxu0
      %v1789 = vadd.f32 0.0, %v1788
      %1790 = vmatmul.f32.gmra.mxu0 %v1672
      %v1791 = vpop.f32.mrf.mxu0
      %v1792 = vadd.f32 0.0, %v1791
      %1793 = vmatmul.f32.gmra.mxu0 %v1674
      %v1794 = vpop.f32.mrf.mxu0
      %v1795 = vadd.f32 0.0, %v1794
      %1796 = vdwg.mxu0
      %1797 = vmatpush.msra.mxu0 %v1060
      %1798 = vmatpush.msra.mxu0 %v1058
      %1799 = vmatpush.msra.mxu0 %v1056
      %1800 = vmatpush.msra.mxu0 %v1054
      %1801 = vmatpush.msra.mxu0 %v1052
      %1802 = vmatpush.msra.mxu0 %v1050
      %1803 = vmatpush.msra.mxu0 %v1048
      %1804 = vmatpush.msra.mxu0 %v1046
      %1805 = vmatpush.msra.mxu0 %v1044
      %1806 = vmatpush.msra.mxu0 %v1042
      %1807 = vmatpush.msra.mxu0 %v1040
      %1808 = vmatpush.msra.mxu0 %v1038
      %1809 = vmatpush.msra.mxu0 %v1036
      %1810 = vmatpush.msra.mxu0 %v1034
      %1811 = vmatpush.msra.mxu0 %v1032
      %1812 = vmatpush.msra.mxu0 %v1030
      %1813 = vmatmul.f32.gmra.mxu0 %v1696
      %v1814 = vpop.f32.mrf.mxu0
      %v1815 = vadd.f32 0.0, %v1814
      %1816 = vmatmul.f32.gmra.mxu0 %v1698
      %v1817 = vpop.f32.mrf.mxu0
      %v1818 = vadd.f32 0.0, %v1817
      %1819 = vmatmul.f32.gmra.mxu0 %v1701
      %v1820 = vpop.f32.mrf.mxu0
      %v1821 = vadd.f32 0.0, %v1820
      %1822 = vmatmul.f32.gmra.mxu0 %v1703
      %v1823 = vpop.f32.mrf.mxu0
      %v1824 = vadd.f32 0.0, %v1823
      %1825 = vmatmul.f32.gmra.mxu0 %v1706
      %v1826 = vpop.f32.mrf.mxu0
      %v1827 = vadd.f32 0.0, %v1826
      %1828 = vmatmul.f32.gmra.mxu0 %v1708
      %v1829 = vpop.f32.mrf.mxu0
      %v1830 = vadd.f32 0.0, %v1829
      %1831 = vmatmul.f32.gmra.mxu0 %v1711
      %v1832 = vpop.f32.mrf.mxu0
      %v1833 = vadd.f32 0.0, %v1832
      %1834 = vmatmul.f32.gmra.mxu0 %v1713
      %v1835 = vpop.f32.mrf.mxu0
      %v1836 = vadd.f32 0.0, %v1835
      %1837 = vdwg.mxu0
      %1838 = vmatpush.msra.mxu0 %v1061
      %1839 = vmatpush.msra.mxu0 %v1059
      %1840 = vmatpush.msra.mxu0 %v1057
      %1841 = vmatpush.msra.mxu0 %v1055
      %1842 = vmatpush.msra.mxu0 %v1053
      %1843 = vmatpush.msra.mxu0 %v1051
      %1844 = vmatpush.msra.mxu0 %v1049
      %1845 = vmatpush.msra.mxu0 %v1047
      %1846 = vmatpush.msra.mxu0 %v1045
      %1847 = vmatpush.msra.mxu0 %v1043
      %1848 = vmatpush.msra.mxu0 %v1041
      %1849 = vmatpush.msra.mxu0 %v1039
      %1850 = vmatpush.msra.mxu0 %v1037
      %1851 = vmatpush.msra.mxu0 %v1035
      %1852 = vmatpush.msra.mxu0 %v1033
      %1853 = vmatpush.msra.mxu0 %v1031
      %1854 = vmatmul.f32.gmra.mxu0 %v1696
      %v1855 = vpop.f32.mrf.mxu0
      %v1856 = vadd.f32 0.0, %v1855
      %1857 = vmatmul.f32.gmra.mxu0 %v1698
      %v1858 = vpop.f32.mrf.mxu0
      %v1859 = vadd.f32 0.0, %v1858
      %1860 = vmatmul.f32.gmra.mxu0 %v1701
      %v1861 = vpop.f32.mrf.mxu0
      %v1862 = vadd.f32 0.0, %v1861
      %1863 = vmatmul.f32.gmra.mxu0 %v1703
      %v1864 = vpop.f32.mrf.mxu0
      %v1865 = vadd.f32 0.0, %v1864
      %1866 = vmatmul.f32.gmra.mxu0 %v1706
      %v1867 = vpop.f32.mrf.mxu0
      %v1868 = vadd.f32 0.0, %v1867
      %1869 = vmatmul.f32.gmra.mxu0 %v1708
      %v1870 = vpop.f32.mrf.mxu0
      %v1871 = vadd.f32 0.0, %v1870
      %1872 = vmatmul.f32.gmra.mxu0 %v1711
      %v1873 = vpop.f32.mrf.mxu0
      %v1874 = vadd.f32 0.0, %v1873
      %1875 = vmatmul.f32.gmra.mxu0 %v1713
      %v1876 = vpop.f32.mrf.mxu0
      %v1877 = vadd.f32 0.0, %v1876
      %1878 = vdwg.mxu0
      %v1879 = vsel %vm1064, %v1733, %v1745
      %v1880 = vsel %vm1065, %v1774, %v1786
      %v1881 = vsel %vm1064, %v1736, %v1748
      %v1882 = vsel %vm1065, %v1777, %v1789
      %v1883 = vsel %vm1064, %v1739, %v1751
      %v1884 = vsel %vm1065, %v1780, %v1792
      %v1885 = vsel %vm1064, %v1742, %v1754
      %v1886 = vsel %vm1065, %v1783, %v1795
      %v1887 = vsel %vm1064, %v1815, %v1827
      %v1888 = vsel %vm1065, %v1856, %v1868
      %v1889 = vsel %vm1064, %v1818, %v1830
      %v1890 = vsel %vm1065, %v1859, %v1871
      %v1891 = vsel %vm1064, %v1821, %v1833
      %v1892 = vsel %vm1065, %v1862, %v1874
      %v1893 = vsel %vm1064, %v1824, %v1836
      %v1894 = vsel %vm1065, %v1865, %v1877
      %v1895 = vmul.f32 %v1647, %v1879
      %v1896 = vmul.f32 %v1686, %v1880
      %v1897 = vrot.slane %v1895, 4
      %v1898 = vadd.f32 %v1895, %v1897
      %v1899 = vrot.slane %v1898, 2
      %v1900 = vadd.f32 %v1898, %v1899
      %v1901 = vrot.slane %v1900, 1
      %v1902 = vadd.f32 %v1900, %v1901
      %v1903 = vrot.slane %v1896, 4
      %v1904 = vadd.f32 %v1896, %v1903
      %v1905 = vrot.slane %v1904, 2
      %v1906 = vadd.f32 %v1904, %v1905
      %v1907 = vrot.slane %v1906, 1
      %v1908 = vadd.f32 %v1906, %v1907
      %v1909 = vmul.f32 %v1902, 0.35355338
      %v1910 = vmul.f32 %v1908, 0.35355338
      %v1911 = vmul.f32 %v1647, %v1881
      %v1912 = vmul.f32 %v1686, %v1882
      %v1913 = vrot.slane %v1911, 4
      %v1914 = vadd.f32 %v1911, %v1913
      %v1915 = vrot.slane %v1914, 2
      %v1916 = vadd.f32 %v1914, %v1915
      %v1917 = vrot.slane %v1916, 1
      %v1918 = vadd.f32 %v1916, %v1917
      %v1919 = vrot.slane %v1912, 4
      %v1920 = vadd.f32 %v1912, %v1919
      %v1921 = vrot.slane %v1920, 2
      %v1922 = vadd.f32 %v1920, %v1921
      %v1923 = vrot.slane %v1922, 1
      %v1924 = vadd.f32 %v1922, %v1923
      %v1925 = vmul.f32 %v1918, 0.35355338
      %v1926 = vmul.f32 %v1924, 0.35355338
      %v1927 = vmul.f32 %v1647, %v1883
      %v1928 = vmul.f32 %v1686, %v1884
      %v1929 = vrot.slane %v1927, 4
      %v1930 = vadd.f32 %v1927, %v1929
      %v1931 = vrot.slane %v1930, 2
      %v1932 = vadd.f32 %v1930, %v1931
      %v1933 = vrot.slane %v1932, 1
      %v1934 = vadd.f32 %v1932, %v1933
      %v1935 = vrot.slane %v1928, 4
      %v1936 = vadd.f32 %v1928, %v1935
      %v1937 = vrot.slane %v1936, 2
      %v1938 = vadd.f32 %v1936, %v1937
      %v1939 = vrot.slane %v1938, 1
      %v1940 = vadd.f32 %v1938, %v1939
      %v1941 = vmul.f32 %v1934, 0.35355338
      %v1942 = vmul.f32 %v1940, 0.35355338
      %v1943 = vmul.f32 %v1647, %v1885
      %v1944 = vmul.f32 %v1686, %v1886
      %v1945 = vrot.slane %v1943, 4
      %v1946 = vadd.f32 %v1943, %v1945
      %v1947 = vrot.slane %v1946, 2
      %v1948 = vadd.f32 %v1946, %v1947
      %v1949 = vrot.slane %v1948, 1
      %v1950 = vadd.f32 %v1948, %v1949
      %v1951 = vrot.slane %v1944, 4
      %v1952 = vadd.f32 %v1944, %v1951
      %v1953 = vrot.slane %v1952, 2
      %v1954 = vadd.f32 %v1952, %v1953
      %v1955 = vrot.slane %v1954, 1
      %v1956 = vadd.f32 %v1954, %v1955
      %v1957 = vmul.f32 %v1950, 0.35355338
      %v1958 = vmul.f32 %v1956, 0.35355338
      %v1959 = vmax.f32 %v1909, %v1925
      %v1960 = vmax.f32 %v1910, %v1926
      %v1961 = vmax.f32 %v1959, %v1941
      %v1962 = vmax.f32 %v1960, %v1942
      %v1963 = vmax.f32 %v1961, %v1957
      %v1964 = vmax.f32 %v1962, %v1958
      %v1965 = vsub.f32 %v1909, %v1963
      %v1966 = vsub.f32 %v1910, %v1964
      %v1967 = vmul.f32 %v1965, 1.442695
      %v1968 = vpow.pop %v1967
      %v1969 = vmul.f32 %v1966, 1.442695
      %v1970 = vpow.pop %v1969
      %v1971 = vsub.f32 %v1925, %v1963
      %v1972 = vsub.f32 %v1926, %v1964
      %v1973 = vmul.f32 %v1971, 1.442695
      %v1974 = vpow.pop %v1973
      %v1975 = vmul.f32 %v1972, 1.442695
      %v1976 = vpow.pop %v1975
      %v1977 = vsub.f32 %v1941, %v1963
      %v1978 = vsub.f32 %v1942, %v1964
      %v1979 = vmul.f32 %v1977, 1.442695
      %v1980 = vpow.pop %v1979
      %v1981 = vmul.f32 %v1978, 1.442695
      %v1982 = vpow.pop %v1981
      %v1983 = vsub.f32 %v1957, %v1963
      %v1984 = vsub.f32 %v1958, %v1964
      %v1985 = vmul.f32 %v1983, 1.442695
      %v1986 = vpow.pop %v1985
      %v1987 = vmul.f32 %v1984, 1.442695
      %v1988 = vpow.pop %v1987
      %v1989 = vadd.f32 %v1968, %v1974
      %v1990 = vadd.f32 %v1970, %v1976
      %v1991 = vadd.f32 %v1989, %v1980
      %v1992 = vadd.f32 %v1990, %v1982
      %v1993 = vadd.f32 %v1991, %v1986
      %v1994 = vadd.f32 %v1992, %v1988
      %v1995 = vmul.f32 %v1968, %v1887
      %v1996 = vmul.f32 %v1970, %v1888
      %v1997 = vmul.f32 %v1974, %v1889
      %v1998 = vmul.f32 %v1976, %v1890
      %v1999 = vadd.f32 %v1995, %v1997
      %v2000 = vadd.f32 %v1996, %v1998
      %v2001 = vmul.f32 %v1980, %v1891
      %v2002 = vmul.f32 %v1982, %v1892
      %v2003 = vadd.f32 %v1999, %v2001
      %v2004 = vadd.f32 %v2000, %v2002
      %v2005 = vmul.f32 %v1986, %v1893
      %v2006 = vmul.f32 %v1988, %v1894
      %v2007 = vadd.f32 %v2003, %v2005
      %v2008 = vadd.f32 %v2004, %v2006
      %v2009 = vrcp.pop %v1993
      %v2010 = vmul.f32 %v1993, %v2009
      %v2011 = vsub.f32 1.0, %v2010
      %v2012 = vmul.f32 %v2009, %v2011
      %v2013 = vadd.f32 %v2009, %v2012
      %vm2014 = vweird.f32 %v1993
      %vm2015 = vweird.f32 %v2009
      %vm2016 = vmor %vm2014, %vm2015
      %v2017 = vsel %vm2016, %v2009, %v2013
      %v2018 = vand.u32 2147483647, %v1993
      %vm2019 = vcmp.eq.f32.partialorder %v2018, 8.507059e+37
      %v2020 = vand.u32 %v1993, 2147483648
      %v2021 = vor.u32 1.1754944e-38, %v2020
      %v2022 = vsel %vm2019, %v2021, %v2017
      %v2023 = vmul.f32 %v2007, %v2022
      %v2024 = vrcp.pop %v1994
      %v2025 = vmul.f32 %v1994, %v2024
      %v2026 = vsub.f32 1.0, %v2025
      %v2027 = vmul.f32 %v2024, %v2026
      %v2028 = vadd.f32 %v2024, %v2027
      %vm2029 = vweird.f32 %v1994
      %vm2030 = vweird.f32 %v2024
      %vm2031 = vmor %vm2029, %vm2030
      %v2032 = vsel %vm2031, %v2024, %v2028
      %v2033 = vand.u32 2147483647, %v1994
      %vm2034 = vcmp.eq.f32.partialorder %v2033, 8.507059e+37
      %v2035 = vand.u32 %v1994, 2147483648
      %v2036 = vor.u32 1.1754944e-38, %v2035
      %v2037 = vsel %vm2034, %v2036, %v2032
      %v2038 = vmul.f32 %v2008, %v2037
      %v2039 = vmul.f32 %v1649, %v1879
      %v2040 = vmul.f32 %v1688, %v1880
      %v2041 = vrot.slane %v2039, 4
      %v2042 = vadd.f32 %v2039, %v2041
      %v2043 = vrot.slane %v2042, 2
      %v2044 = vadd.f32 %v2042, %v2043
      %v2045 = vrot.slane %v2044, 1
      %v2046 = vadd.f32 %v2044, %v2045
      %v2047 = vrot.slane %v2040, 4
      %v2048 = vadd.f32 %v2040, %v2047
      %v2049 = vrot.slane %v2048, 2
      %v2050 = vadd.f32 %v2048, %v2049
      %v2051 = vrot.slane %v2050, 1
      %v2052 = vadd.f32 %v2050, %v2051
      %v2053 = vmul.f32 %v2046, 0.35355338
      %v2054 = vmul.f32 %v2052, 0.35355338
      %v2055 = vmul.f32 %v1649, %v1881
      %v2056 = vmul.f32 %v1688, %v1882
      %v2057 = vrot.slane %v2055, 4
      %v2058 = vadd.f32 %v2055, %v2057
      %v2059 = vrot.slane %v2058, 2
      %v2060 = vadd.f32 %v2058, %v2059
      %v2061 = vrot.slane %v2060, 1
      %v2062 = vadd.f32 %v2060, %v2061
      %v2063 = vrot.slane %v2056, 4
      %v2064 = vadd.f32 %v2056, %v2063
      %v2065 = vrot.slane %v2064, 2
      %v2066 = vadd.f32 %v2064, %v2065
      %v2067 = vrot.slane %v2066, 1
      %v2068 = vadd.f32 %v2066, %v2067
      %v2069 = vmul.f32 %v2062, 0.35355338
      %v2070 = vmul.f32 %v2068, 0.35355338
      %v2071 = vmul.f32 %v1649, %v1883
      %v2072 = vmul.f32 %v1688, %v1884
      %v2073 = vrot.slane %v2071, 4
      %v2074 = vadd.f32 %v2071, %v2073
      %v2075 = vrot.slane %v2074, 2
      %v2076 = vadd.f32 %v2074, %v2075
      %v2077 = vrot.slane %v2076, 1
      %v2078 = vadd.f32 %v2076, %v2077
      %v2079 = vrot.slane %v2072, 4
      %v2080 = vadd.f32 %v2072, %v2079
      %v2081 = vrot.slane %v2080, 2
      %v2082 = vadd.f32 %v2080, %v2081
      %v2083 = vrot.slane %v2082, 1
      %v2084 = vadd.f32 %v2082, %v2083
      %v2085 = vmul.f32 %v2078, 0.35355338
      %v2086 = vmul.f32 %v2084, 0.35355338
      %v2087 = vmul.f32 %v1649, %v1885
      %v2088 = vmul.f32 %v1688, %v1886
      %v2089 = vrot.slane %v2087, 4
      %v2090 = vadd.f32 %v2087, %v2089
      %v2091 = vrot.slane %v2090, 2
      %v2092 = vadd.f32 %v2090, %v2091
      %v2093 = vrot.slane %v2092, 1
      %v2094 = vadd.f32 %v2092, %v2093
      %v2095 = vrot.slane %v2088, 4
      %v2096 = vadd.f32 %v2088, %v2095
      %v2097 = vrot.slane %v2096, 2
      %v2098 = vadd.f32 %v2096, %v2097
      %v2099 = vrot.slane %v2098, 1
      %v2100 = vadd.f32 %v2098, %v2099
      %v2101 = vmul.f32 %v2094, 0.35355338
      %v2102 = vmul.f32 %v2100, 0.35355338
      %v2103 = vmax.f32 %v2053, %v2069
      %v2104 = vmax.f32 %v2054, %v2070
      %v2105 = vmax.f32 %v2103, %v2085
      %v2106 = vmax.f32 %v2104, %v2086
      %v2107 = vmax.f32 %v2105, %v2101
      %v2108 = vmax.f32 %v2106, %v2102
      %v2109 = vsub.f32 %v2053, %v2107
      %v2110 = vsub.f32 %v2054, %v2108
      %v2111 = vmul.f32 %v2109, 1.442695
      %v2112 = vpow.pop %v2111
      %v2113 = vmul.f32 %v2110, 1.442695
      %v2114 = vpow.pop %v2113
      %v2115 = vsub.f32 %v2069, %v2107
      %v2116 = vsub.f32 %v2070, %v2108
      %v2117 = vmul.f32 %v2115, 1.442695
      %v2118 = vpow.pop %v2117
      %v2119 = vmul.f32 %v2116, 1.442695
      %v2120 = vpow.pop %v2119
      %v2121 = vsub.f32 %v2085, %v2107
      %v2122 = vsub.f32 %v2086, %v2108
      %v2123 = vmul.f32 %v2121, 1.442695
      %v2124 = vpow.pop %v2123
      %v2125 = vmul.f32 %v2122, 1.442695
      %v2126 = vpow.pop %v2125
      %v2127 = vsub.f32 %v2101, %v2107
      %v2128 = vsub.f32 %v2102, %v2108
      %v2129 = vmul.f32 %v2127, 1.442695
      %v2130 = vpow.pop %v2129
      %v2131 = vmul.f32 %v2128, 1.442695
      %v2132 = vpow.pop %v2131
      %v2133 = vadd.f32 %v2112, %v2118
      %v2134 = vadd.f32 %v2114, %v2120
      %v2135 = vadd.f32 %v2133, %v2124
      %v2136 = vadd.f32 %v2134, %v2126
      %v2137 = vadd.f32 %v2135, %v2130
      %v2138 = vadd.f32 %v2136, %v2132
      %v2139 = vmul.f32 %v2112, %v1887
      %v2140 = vmul.f32 %v2114, %v1888
      %v2141 = vmul.f32 %v2118, %v1889
      %v2142 = vmul.f32 %v2120, %v1890
      %v2143 = vadd.f32 %v2139, %v2141
      %v2144 = vadd.f32 %v2140, %v2142
      %v2145 = vmul.f32 %v2124, %v1891
      %v2146 = vmul.f32 %v2126, %v1892
      %v2147 = vadd.f32 %v2143, %v2145
      %v2148 = vadd.f32 %v2144, %v2146
      %v2149 = vmul.f32 %v2130, %v1893
      %v2150 = vmul.f32 %v2132, %v1894
      %v2151 = vadd.f32 %v2147, %v2149
      %v2152 = vadd.f32 %v2148, %v2150
      %v2153 = vrcp.pop %v2137
      %v2154 = vmul.f32 %v2137, %v2153
      %v2155 = vsub.f32 1.0, %v2154
      %v2156 = vmul.f32 %v2153, %v2155
      %v2157 = vadd.f32 %v2153, %v2156
      %vm2158 = vweird.f32 %v2137
      %vm2159 = vweird.f32 %v2153
      %vm2160 = vmor %vm2158, %vm2159
      %v2161 = vsel %vm2160, %v2153, %v2157
      %v2162 = vand.u32 2147483647, %v2137
      %vm2163 = vcmp.eq.f32.partialorder %v2162, 8.507059e+37
      %v2164 = vand.u32 %v2137, 2147483648
      %v2165 = vor.u32 1.1754944e-38, %v2164
      %v2166 = vsel %vm2163, %v2165, %v2161
      %v2167 = vmul.f32 %v2151, %v2166
      %v2168 = vrcp.pop %v2138
      %v2169 = vmul.f32 %v2138, %v2168
      %v2170 = vsub.f32 1.0, %v2169
      %v2171 = vmul.f32 %v2168, %v2170
      %v2172 = vadd.f32 %v2168, %v2171
      %vm2173 = vweird.f32 %v2138
      %vm2174 = vweird.f32 %v2168
      %vm2175 = vmor %vm2173, %vm2174
      %v2176 = vsel %vm2175, %v2168, %v2172
      %v2177 = vand.u32 2147483647, %v2138
      %vm2178 = vcmp.eq.f32.partialorder %v2177, 8.507059e+37
      %v2179 = vand.u32 %v2138, 2147483648
      %v2180 = vor.u32 1.1754944e-38, %v2179
      %v2181 = vsel %vm2178, %v2180, %v2176
      %v2182 = vmul.f32 %v2152, %v2181
      %v2183 = vmul.f32 %v1652, %v1879
      %v2184 = vmul.f32 %v1691, %v1880
      %v2185 = vrot.slane %v2183, 4
      %v2186 = vadd.f32 %v2183, %v2185
      %v2187 = vrot.slane %v2186, 2
      %v2188 = vadd.f32 %v2186, %v2187
      %v2189 = vrot.slane %v2188, 1
      %v2190 = vadd.f32 %v2188, %v2189
      %v2191 = vrot.slane %v2184, 4
      %v2192 = vadd.f32 %v2184, %v2191
      %v2193 = vrot.slane %v2192, 2
      %v2194 = vadd.f32 %v2192, %v2193
      %v2195 = vrot.slane %v2194, 1
      %v2196 = vadd.f32 %v2194, %v2195
      %v2197 = vmul.f32 %v2190, 0.35355338
      %v2198 = vmul.f32 %v2196, 0.35355338
      %v2199 = vmul.f32 %v1652, %v1881
      %v2200 = vmul.f32 %v1691, %v1882
      %v2201 = vrot.slane %v2199, 4
      %v2202 = vadd.f32 %v2199, %v2201
      %v2203 = vrot.slane %v2202, 2
      %v2204 = vadd.f32 %v2202, %v2203
      %v2205 = vrot.slane %v2204, 1
      %v2206 = vadd.f32 %v2204, %v2205
      %v2207 = vrot.slane %v2200, 4
      %v2208 = vadd.f32 %v2200, %v2207
      %v2209 = vrot.slane %v2208, 2
      %v2210 = vadd.f32 %v2208, %v2209
      %v2211 = vrot.slane %v2210, 1
      %v2212 = vadd.f32 %v2210, %v2211
      %v2213 = vmul.f32 %v2206, 0.35355338
      %v2214 = vmul.f32 %v2212, 0.35355338
      %v2215 = vmul.f32 %v1652, %v1883
      %v2216 = vmul.f32 %v1691, %v1884
      %v2217 = vrot.slane %v2215, 4
      %v2218 = vadd.f32 %v2215, %v2217
      %v2219 = vrot.slane %v2218, 2
      %v2220 = vadd.f32 %v2218, %v2219
      %v2221 = vrot.slane %v2220, 1
      %v2222 = vadd.f32 %v2220, %v2221
      %v2223 = vrot.slane %v2216, 4
      %v2224 = vadd.f32 %v2216, %v2223
      %v2225 = vrot.slane %v2224, 2
      %v2226 = vadd.f32 %v2224, %v2225
      %v2227 = vrot.slane %v2226, 1
      %v2228 = vadd.f32 %v2226, %v2227
      %v2229 = vmul.f32 %v2222, 0.35355338
      %v2230 = vmul.f32 %v2228, 0.35355338
      %v2231 = vmul.f32 %v1652, %v1885
      %v2232 = vmul.f32 %v1691, %v1886
      %v2233 = vrot.slane %v2231, 4
      %v2234 = vadd.f32 %v2231, %v2233
      %v2235 = vrot.slane %v2234, 2
      %v2236 = vadd.f32 %v2234, %v2235
      %v2237 = vrot.slane %v2236, 1
      %v2238 = vadd.f32 %v2236, %v2237
      %v2239 = vrot.slane %v2232, 4
      %v2240 = vadd.f32 %v2232, %v2239
      %v2241 = vrot.slane %v2240, 2
      %v2242 = vadd.f32 %v2240, %v2241
      %v2243 = vrot.slane %v2242, 1
      %v2244 = vadd.f32 %v2242, %v2243
      %v2245 = vmul.f32 %v2238, 0.35355338
      %v2246 = vmul.f32 %v2244, 0.35355338
      %v2247 = vmax.f32 %v2197, %v2213
      %v2248 = vmax.f32 %v2198, %v2214
      %v2249 = vmax.f32 %v2247, %v2229
      %v2250 = vmax.f32 %v2248, %v2230
      %v2251 = vmax.f32 %v2249, %v2245
      %v2252 = vmax.f32 %v2250, %v2246
      %v2253 = vsub.f32 %v2197, %v2251
      %v2254 = vsub.f32 %v2198, %v2252
      %v2255 = vmul.f32 %v2253, 1.442695
      %v2256 = vpow.pop %v2255
      %v2257 = vmul.f32 %v2254, 1.442695
      %v2258 = vpow.pop %v2257
      %v2259 = vsub.f32 %v2213, %v2251
      %v2260 = vsub.f32 %v2214, %v2252
      %v2261 = vmul.f32 %v2259, 1.442695
      %v2262 = vpow.pop %v2261
      %v2263 = vmul.f32 %v2260, 1.442695
      %v2264 = vpow.pop %v2263
      %v2265 = vsub.f32 %v2229, %v2251
      %v2266 = vsub.f32 %v2230, %v2252
      %v2267 = vmul.f32 %v2265, 1.442695
      %v2268 = vpow.pop %v2267
      %v2269 = vmul.f32 %v2266, 1.442695
      %v2270 = vpow.pop %v2269
      %v2271 = vsub.f32 %v2245, %v2251
      %v2272 = vsub.f32 %v2246, %v2252
      %v2273 = vmul.f32 %v2271, 1.442695
      %v2274 = vpow.pop %v2273
      %v2275 = vmul.f32 %v2272, 1.442695
      %v2276 = vpow.pop %v2275
      %v2277 = vadd.f32 %v2256, %v2262
      %v2278 = vadd.f32 %v2258, %v2264
      %v2279 = vadd.f32 %v2277, %v2268
      %v2280 = vadd.f32 %v2278, %v2270
      %v2281 = vadd.f32 %v2279, %v2274
      %v2282 = vadd.f32 %v2280, %v2276
      %v2283 = vmul.f32 %v2256, %v1887
      %v2284 = vmul.f32 %v2258, %v1888
      %v2285 = vmul.f32 %v2262, %v1889
      %v2286 = vmul.f32 %v2264, %v1890
      %v2287 = vadd.f32 %v2283, %v2285
      %v2288 = vadd.f32 %v2284, %v2286
      %v2289 = vmul.f32 %v2268, %v1891
      %v2290 = vmul.f32 %v2270, %v1892
      %v2291 = vadd.f32 %v2287, %v2289
      %v2292 = vadd.f32 %v2288, %v2290
      %v2293 = vmul.f32 %v2274, %v1893
      %v2294 = vmul.f32 %v2276, %v1894
      %v2295 = vadd.f32 %v2291, %v2293
      %v2296 = vadd.f32 %v2292, %v2294
      %v2297 = vrcp.pop %v2281
      %v2298 = vmul.f32 %v2281, %v2297
      %v2299 = vsub.f32 1.0, %v2298
      %v2300 = vmul.f32 %v2297, %v2299
      %v2301 = vadd.f32 %v2297, %v2300
      %vm2302 = vweird.f32 %v2281
      %vm2303 = vweird.f32 %v2297
      %vm2304 = vmor %vm2302, %vm2303
      %v2305 = vsel %vm2304, %v2297, %v2301
      %v2306 = vand.u32 2147483647, %v2281
      %vm2307 = vcmp.eq.f32.partialorder %v2306, 8.507059e+37
      %v2308 = vand.u32 %v2281, 2147483648
      %v2309 = vor.u32 1.1754944e-38, %v2308
      %v2310 = vsel %vm2307, %v2309, %v2305
      %v2311 = vmul.f32 %v2295, %v2310
      %v2312 = vrcp.pop %v2282
      %v2313 = vmul.f32 %v2282, %v2312
      %v2314 = vsub.f32 1.0, %v2313
      %v2315 = vmul.f32 %v2312, %v2314
      %v2316 = vadd.f32 %v2312, %v2315
      %vm2317 = vweird.f32 %v2282
      %vm2318 = vweird.f32 %v2312
      %vm2319 = vmor %vm2317, %vm2318
      %v2320 = vsel %vm2319, %v2312, %v2316
      %v2321 = vand.u32 2147483647, %v2282
      %vm2322 = vcmp.eq.f32.partialorder %v2321, 8.507059e+37
      %v2323 = vand.u32 %v2282, 2147483648
      %v2324 = vor.u32 1.1754944e-38, %v2323
      %v2325 = vsel %vm2322, %v2324, %v2320
      %v2326 = vmul.f32 %v2296, %v2325
      %v2327 = vmul.f32 %v1654, %v1879
      %v2328 = vmul.f32 %v1693, %v1880
      %v2329 = vrot.slane %v2327, 4
      %v2330 = vadd.f32 %v2327, %v2329
      %v2331 = vrot.slane %v2330, 2
      %v2332 = vadd.f32 %v2330, %v2331
      %v2333 = vrot.slane %v2332, 1
      %v2334 = vadd.f32 %v2332, %v2333
      %v2335 = vrot.slane %v2328, 4
      %v2336 = vadd.f32 %v2328, %v2335
      %v2337 = vrot.slane %v2336, 2
      %v2338 = vadd.f32 %v2336, %v2337
      %v2339 = vrot.slane %v2338, 1
      %v2340 = vadd.f32 %v2338, %v2339
      %v2341 = vmul.f32 %v2334, 0.35355338
      %v2342 = vmul.f32 %v2340, 0.35355338
      %v2343 = vmul.f32 %v1654, %v1881
      %v2344 = vmul.f32 %v1693, %v1882
      %v2345 = vrot.slane %v2343, 4
      %v2346 = vadd.f32 %v2343, %v2345
      %v2347 = vrot.slane %v2346, 2
      %v2348 = vadd.f32 %v2346, %v2347
      %v2349 = vrot.slane %v2348, 1
      %v2350 = vadd.f32 %v2348, %v2349
      %v2351 = vrot.slane %v2344, 4
      %v2352 = vadd.f32 %v2344, %v2351
      %v2353 = vrot.slane %v2352, 2
      %v2354 = vadd.f32 %v2352, %v2353
      %v2355 = vrot.slane %v2354, 1
      %v2356 = vadd.f32 %v2354, %v2355
      %v2357 = vmul.f32 %v2350, 0.35355338
      %v2358 = vmul.f32 %v2356, 0.35355338
      %v2359 = vmul.f32 %v1654, %v1883
      %v2360 = vmul.f32 %v1693, %v1884
      %v2361 = vrot.slane %v2359, 4
      %v2362 = vadd.f32 %v2359, %v2361
      %v2363 = vrot.slane %v2362, 2
      %v2364 = vadd.f32 %v2362, %v2363
      %v2365 = vrot.slane %v2364, 1
      %v2366 = vadd.f32 %v2364, %v2365
      %v2367 = vrot.slane %v2360, 4
      %v2368 = vadd.f32 %v2360, %v2367
      %v2369 = vrot.slane %v2368, 2
      %v2370 = vadd.f32 %v2368, %v2369
      %v2371 = vrot.slane %v2370, 1
      %v2372 = vadd.f32 %v2370, %v2371
      %v2373 = vmul.f32 %v2366, 0.35355338
      %v2374 = vmul.f32 %v2372, 0.35355338
      %v2375 = vmul.f32 %v1654, %v1885
      %v2376 = vmul.f32 %v1693, %v1886
      %v2377 = vrot.slane %v2375, 4
      %v2378 = vadd.f32 %v2375, %v2377
      %v2379 = vrot.slane %v2378, 2
      %v2380 = vadd.f32 %v2378, %v2379
      %v2381 = vrot.slane %v2380, 1
      %v2382 = vadd.f32 %v2380, %v2381
      %v2383 = vrot.slane %v2376, 4
      %v2384 = vadd.f32 %v2376, %v2383
      %v2385 = vrot.slane %v2384, 2
      %v2386 = vadd.f32 %v2384, %v2385
      %v2387 = vrot.slane %v2386, 1
      %v2388 = vadd.f32 %v2386, %v2387
      %v2389 = vmul.f32 %v2382, 0.35355338
      %v2390 = vmul.f32 %v2388, 0.35355338
      %v2391 = vmax.f32 %v2341, %v2357
      %v2392 = vmax.f32 %v2342, %v2358
      %v2393 = vmax.f32 %v2391, %v2373
      %v2394 = vmax.f32 %v2392, %v2374
      %v2395 = vmax.f32 %v2393, %v2389
      %v2396 = vmax.f32 %v2394, %v2390
      %v2397 = vsub.f32 %v2341, %v2395
      %v2398 = vsub.f32 %v2342, %v2396
      %v2399 = vmul.f32 %v2397, 1.442695
      %v2400 = vpow.pop %v2399
      %v2401 = vmul.f32 %v2398, 1.442695
      %v2402 = vpow.pop %v2401
      %v2403 = vsub.f32 %v2357, %v2395
      %v2404 = vsub.f32 %v2358, %v2396
      %v2405 = vmul.f32 %v2403, 1.442695
      %v2406 = vpow.pop %v2405
      %v2407 = vmul.f32 %v2404, 1.442695
      %v2408 = vpow.pop %v2407
      %v2409 = vsub.f32 %v2373, %v2395
      %v2410 = vsub.f32 %v2374, %v2396
      %v2411 = vmul.f32 %v2409, 1.442695
      %v2412 = vpow.pop %v2411
      %v2413 = vmul.f32 %v2410, 1.442695
      %v2414 = vpow.pop %v2413
      %v2415 = vsub.f32 %v2389, %v2395
      %v2416 = vsub.f32 %v2390, %v2396
      %v2417 = vmul.f32 %v2415, 1.442695
      %v2418 = vpow.pop %v2417
      %v2419 = vmul.f32 %v2416, 1.442695
      %v2420 = vpow.pop %v2419
      %v2421 = vadd.f32 %v2400, %v2406
      %v2422 = vadd.f32 %v2402, %v2408
      %v2423 = vadd.f32 %v2421, %v2412
      %v2424 = vadd.f32 %v2422, %v2414
      %v2425 = vadd.f32 %v2423, %v2418
      %v2426 = vadd.f32 %v2424, %v2420
      %v2427 = vmul.f32 %v2400, %v1887
      %v2428 = vmul.f32 %v2402, %v1888
      %v2429 = vmul.f32 %v2406, %v1889
      %v2430 = vmul.f32 %v2408, %v1890
      %v2431 = vadd.f32 %v2427, %v2429
      %v2432 = vadd.f32 %v2428, %v2430
      %v2433 = vmul.f32 %v2412, %v1891
      %v2434 = vmul.f32 %v2414, %v1892
      %v2435 = vadd.f32 %v2431, %v2433
      %v2436 = vadd.f32 %v2432, %v2434
      %v2437 = vmul.f32 %v2418, %v1893
      %v2438 = vmul.f32 %v2420, %v1894
      %v2439 = vadd.f32 %v2435, %v2437
      %v2440 = vadd.f32 %v2436, %v2438
      %v2441 = vrcp.pop %v2425
      %v2442 = vmul.f32 %v2425, %v2441
      %v2443 = vsub.f32 1.0, %v2442
      %v2444 = vmul.f32 %v2441, %v2443
      %v2445 = vadd.f32 %v2441, %v2444
      %vm2446 = vweird.f32 %v2425
      %vm2447 = vweird.f32 %v2441
      %vm2448 = vmor %vm2446, %vm2447
      %v2449 = vsel %vm2448, %v2441, %v2445
      %v2450 = vand.u32 2147483647, %v2425
      %vm2451 = vcmp.eq.f32.partialorder %v2450, 8.507059e+37
      %v2452 = vand.u32 %v2425, 2147483648
      %v2453 = vor.u32 1.1754944e-38, %v2452
      %v2454 = vsel %vm2451, %v2453, %v2449
      %v2455 = vmul.f32 %v2439, %v2454
      %v2456 = vrcp.pop %v2426
      %v2457 = vmul.f32 %v2426, %v2456
      %v2458 = vsub.f32 1.0, %v2457
      %v2459 = vmul.f32 %v2456, %v2458
      %v2460 = vadd.f32 %v2456, %v2459
      %vm2461 = vweird.f32 %v2426
      %vm2462 = vweird.f32 %v2456
      %vm2463 = vmor %vm2461, %vm2462
      %v2464 = vsel %vm2463, %v2456, %v2460
      %v2465 = vand.u32 2147483647, %v2426
      %vm2466 = vcmp.eq.f32.partialorder %v2465, 8.507059e+37
      %v2467 = vand.u32 %v2426, 2147483648
      %v2468 = vor.u32 1.1754944e-38, %v2467
      %v2469 = vsel %vm2466, %v2468, %v2464
      %v2470 = vmul.f32 %v2440, %v2469
      %v2471 = vld [vmem:[%s11] sm:$0xf]
      %v2472 = vld [vmem:[%s11 + $0x4] sm:$0xf]
      %v2473 = vld [vmem:[%s11 + $0x8] sm:$0xf]
      %v2474 = vld [vmem:[%s11 + $0xc] sm:$0xf]
      %v2475 = vpack.c.bf16 %v2167, %v2023
      %v2476 = vpack.c.bf16 %v2182, %v2038
      %v2477 = vpack.c.bf16 %v2455, %v2311
      %v2478 = vpack.c.bf16 %v2470, %v2326
      %v2479 = vld [vmem:[%s12] sm:$0xff]
      %v2480 = vld [vmem:[%s12 + $0x8] sm:$0xff]
      %v2481 = vld [vmem:[%s12 + $0x10] sm:$0xff]
      %v2482 = vld [vmem:[%s12 + $0x18] sm:$0xff]
      %2484 = vset.pattern.permute.xlu0 0
      %2485 = vperm.xlu0 %2484, %v2479
      %v2486 = vpop.permute.xlu0 %2485
      %2489 = vset.pattern.permute.xlu0 0
      %2490 = vperm.xlu0 %2489, %v2480
      %v2491 = vpop.permute.xlu0 %2490
      %2494 = vset.pattern.permute.xlu0 0
      %2495 = vperm.xlu0 %2494, %v2481
      %v2496 = vpop.permute.xlu0 %2495
      %2499 = vset.pattern.permute.xlu0 0
      %2500 = vperm.xlu0 %2499, %v2482
      %v2501 = vpop.permute.xlu0 %2500
      %v2507 = vunpack.c.l.b16 %v2471
      %v2508 = vunpack.c.l.b16 %v2472
      %v2509 = vunpack.c.l.b16 %v2473
      %v2510 = vunpack.c.l.b16 %v2474
      %v2511 = vpack.c.b16 %v2508, %v2507
      %v2512 = vpack.c.b16 %v2510, %v2509
      %v2514 = vsel %vm1279, %v2511, 0
      %v2517 = vsel %vm1279, %v2512, 0
      %2519 = vmatpush.bf16.msra.mxu0 0
      %2520 = vmatpush.bf16.msra.mxu0 0
      %2521 = vmatpush.bf16.msra.mxu0 0
      %2522 = vmatpush.bf16.msra.mxu0 0
      %2523 = vmatpush.bf16.msra.mxu0 0
      %2524 = vmatpush.bf16.msra.mxu0 0
      %2525 = vmatpush.bf16.msra.mxu0 %v2477
      %2526 = vmatpush.bf16.msra.mxu0 %v2475
      %2527 = vmatmul.bf16.gmra.mxu0 %v2514
      %v2528 = vpop.f32.mrf.mxu0
      %v2529 = vadd.f32 %v2486, %v2528
      %v2530 = vpop.f32.mrf.mxu0
      %v2531 = vadd.f32 %v2491, %v2530
      %2532 = vmatmul.bf16.gmra.mxu0 %v2517
      %v2533 = vpop.f32.mrf.mxu0
      %v2534 = vadd.f32 %v2496, %v2533
      %v2535 = vpop.f32.mrf.mxu0
      %v2536 = vadd.f32 %v2501, %v2535
      %2537 = vdwg.mxu0
      %2538 = vmatpush.bf16.msra.mxu0 0
      %2539 = vmatpush.bf16.msra.mxu0 0
      %2540 = vmatpush.bf16.msra.mxu0 0
      %2541 = vmatpush.bf16.msra.mxu0 0
      %2542 = vmatpush.bf16.msra.mxu0 0
      %2543 = vmatpush.bf16.msra.mxu0 0
      %2544 = vmatpush.bf16.msra.mxu0 %v2478
      %2545 = vmatpush.bf16.msra.mxu0 %v2476
      %2546 = vmatmul.bf16.gmra.mxu0 %v2514
      %v2547 = vpop.f32.mrf.mxu0
      %v2548 = vadd.f32 %v2486, %v2547
      %v2549 = vpop.f32.mrf.mxu0
      %v2550 = vadd.f32 %v2491, %v2549
      %2551 = vmatmul.bf16.gmra.mxu0 %v2517
      %v2552 = vpop.f32.mrf.mxu0
      %v2553 = vadd.f32 %v2496, %v2552
      %v2554 = vpop.f32.mrf.mxu0
      %v2555 = vadd.f32 %v2501, %v2554
      %2556 = vdwg.mxu0
      %v2557 = vadd.f32 %v2529, %v1296
      %v2558 = vadd.f32 %v2548, %v1315
      %v2559 = vadd.f32 %v2531, %v1298
      %v2560 = vadd.f32 %v2550, %v1317
      %v2561 = vadd.f32 %v2534, %v1301
      %v2562 = vadd.f32 %v2553, %v1320
      %v2563 = vadd.f32 %v2536, %v1303
      %v2564 = vadd.f32 %v2555, %v1322
      %v2565 = vld [vmem:[%s13] sm:$0xff]
      %v2566 = vld [vmem:[%s13 + $0x8] sm:$0xff]
      %v2567 = vld [vmem:[%s13 + $0x10] sm:$0xff]
      %v2568 = vld [vmem:[%s13 + $0x18] sm:$0xff]
      %v2569 = vld [vmem:[%s14] sm:$0xff]
      %v2570 = vld [vmem:[%s14 + $0x8] sm:$0xff]
      %v2571 = vld [vmem:[%s14 + $0x10] sm:$0xff]
      %v2572 = vld [vmem:[%s14 + $0x18] sm:$0xff]
      %v2573 = vadd.f32 %v2557, %v2559
      %v2574 = vadd.f32 %v2573, %v2561
      %v2575 = vadd.f32 %v2574, %v2563
      %v2576 = vrot.slane %v2575, 4
      %v2577 = vadd.f32 %v2575, %v2576
      %v2578 = vrot.slane %v2577, 2
      %v2579 = vadd.f32 %v2577, %v2578
      %v2580 = vrot.slane %v2579, 1
      %v2581 = vadd.f32 %v2579, %v2580
      %v2582 = vadd.f32 %v2558, %v2560
      %v2583 = vadd.f32 %v2582, %v2562
      %v2584 = vadd.f32 %v2583, %v2564
      %v2585 = vrot.slane %v2584, 4
      %v2586 = vadd.f32 %v2584, %v2585
      %v2587 = vrot.slane %v2586, 2
      %v2588 = vadd.f32 %v2586, %v2587
      %v2589 = vrot.slane %v2588, 1
      %v2590 = vadd.f32 %v2588, %v2589
      %v2591 = vmul.f32 %v2581, %v1448
      %v2592 = vmul.f32 %v2590, %v1448
      %v2593 = vsub.f32 %v2557, %v2591
      %v2594 = vsub.f32 %v2558, %v2592
      %v2595 = vsub.f32 %v2559, %v2591
      %v2596 = vsub.f32 %v2560, %v2592
      %v2597 = vsub.f32 %v2561, %v2591
      %v2598 = vsub.f32 %v2562, %v2592
      %v2599 = vsub.f32 %v2563, %v2591
      %v2600 = vsub.f32 %v2564, %v2592
      %v2601 = vmul.f32 %v2593, %v2593
      %v2602 = vmul.f32 %v2594, %v2594
      %v2603 = vmul.f32 %v2595, %v2595
      %v2604 = vmul.f32 %v2596, %v2596
      %v2605 = vmul.f32 %v2597, %v2597
      %v2606 = vmul.f32 %v2598, %v2598
      %v2607 = vmul.f32 %v2599, %v2599
      %v2608 = vmul.f32 %v2600, %v2600
      %v2609 = vadd.f32 %v2601, %v2603
      %v2610 = vadd.f32 %v2609, %v2605
      %v2611 = vadd.f32 %v2610, %v2607
      %v2612 = vrot.slane %v2611, 4
      %v2613 = vadd.f32 %v2611, %v2612
      %v2614 = vrot.slane %v2613, 2
      %v2615 = vadd.f32 %v2613, %v2614
      %v2616 = vrot.slane %v2615, 1
      %v2617 = vadd.f32 %v2615, %v2616
      %v2618 = vadd.f32 %v2602, %v2604
      %v2619 = vadd.f32 %v2618, %v2606
      %v2620 = vadd.f32 %v2619, %v2608
      %v2621 = vrot.slane %v2620, 4
      %v2622 = vadd.f32 %v2620, %v2621
      %v2623 = vrot.slane %v2622, 2
      %v2624 = vadd.f32 %v2622, %v2623
      %v2625 = vrot.slane %v2624, 1
      %v2626 = vadd.f32 %v2624, %v2625
      %v2627 = vmul.f32 %v2617, %v1448
      %v2628 = vmul.f32 %v2626, %v1448
      %v2629 = vadd.f32 %v2627, 1e-05
      %v2630 = vadd.f32 %v2628, 1e-05
      %v2631 = vrsqrt.pop %v2629
      %v2632 = vmul.f32 %v2631, %v2629
      %v2633 = vmul.f32 %v2632, %v2631
      %v2634 = vmul.f32 0.5, %v2633
      %v2635 = vsub.f32 1.5, %v2634
      %v2636 = vmul.f32 %v2631, %v2635
      %vm2637 = vweird.f32 %v2629
      %vm2638 = vweird.f32 %v2631
      %vm2639 = vmor %vm2637, %vm2638
      %v2640 = vsel %vm2639, %v2631, %v2636
      %v2641 = vrsqrt.pop %v2630
      %v2642 = vmul.f32 %v2641, %v2630
      %v2643 = vmul.f32 %v2642, %v2641
      %v2644 = vmul.f32 0.5, %v2643
      %v2645 = vsub.f32 1.5, %v2644
      %v2646 = vmul.f32 %v2641, %v2645
      %vm2647 = vweird.f32 %v2630
      %vm2648 = vweird.f32 %v2641
      %vm2649 = vmor %vm2647, %vm2648
      %v2650 = vsel %vm2649, %v2641, %v2646
      %v2651 = vmul.f32 %v2593, %v2640
      %v2652 = vmul.f32 %v2594, %v2650
      %v2653 = vmul.f32 %v2595, %v2640
      %v2654 = vmul.f32 %v2596, %v2650
      %v2655 = vmul.f32 %v2597, %v2640
      %v2656 = vmul.f32 %v2598, %v2650
      %v2657 = vmul.f32 %v2599, %v2640
      %v2658 = vmul.f32 %v2600, %v2650
      %2660 = vset.pattern.permute.xlu0 0
      %2661 = vperm.xlu0 %2660, %v2565
      %v2662 = vpop.permute.xlu0 %2661
      %2665 = vset.pattern.permute.xlu0 0
      %2666 = vperm.xlu0 %2665, %v2566
      %v2667 = vpop.permute.xlu0 %2666
      %2670 = vset.pattern.permute.xlu0 0
      %2671 = vperm.xlu0 %2670, %v2567
      %v2672 = vpop.permute.xlu0 %2671
      %2675 = vset.pattern.permute.xlu0 0
      %2676 = vperm.xlu0 %2675, %v2568
      %v2677 = vpop.permute.xlu0 %2676
      %v2679 = vmul.f32 %v2651, %v2662
      %v2680 = vmul.f32 %v2652, %v2662
      %v2681 = vmul.f32 %v2653, %v2667
      %v2682 = vmul.f32 %v2654, %v2667
      %v2683 = vmul.f32 %v2655, %v2672
      %v2684 = vmul.f32 %v2656, %v2672
      %v2685 = vmul.f32 %v2657, %v2677
      %v2686 = vmul.f32 %v2658, %v2677
      %2688 = vset.pattern.permute.xlu0 0
      %2689 = vperm.xlu0 %2688, %v2569
      %v2690 = vpop.permute.xlu0 %2689
      %2693 = vset.pattern.permute.xlu0 0
      %2694 = vperm.xlu0 %2693, %v2570
      %v2695 = vpop.permute.xlu0 %2694
      %2698 = vset.pattern.permute.xlu0 0
      %2699 = vperm.xlu0 %2698, %v2571
      %v2700 = vpop.permute.xlu0 %2699
      %2703 = vset.pattern.permute.xlu0 0
      %2704 = vperm.xlu0 %2703, %v2572
      %v2705 = vpop.permute.xlu0 %2704
      %v2707 = vadd.f32 %v2679, %v2690
      %v2708 = vadd.f32 %v2680, %v2690
      %v2709 = vadd.f32 %v2681, %v2695
      %v2710 = vadd.f32 %v2682, %v2695
      %v2711 = vadd.f32 %v2683, %v2700
      %v2712 = vadd.f32 %v2684, %v2700
      %v2713 = vadd.f32 %v2685, %v2705
      %v2714 = vadd.f32 %v2686, %v2705
      %v2715 = vld [vmem:[%s15] sm:$0xf]
      %v2716 = vld [vmem:[%s15 + $0x4] sm:$0xf]
      %v2717 = vld [vmem:[%s15 + $0x8] sm:$0xf]
      %v2718 = vld [vmem:[%s15 + $0xc] sm:$0xf]
      %v2719 = vpack.c.bf16 %v2709, %v2707
      %v2720 = vpack.c.bf16 %v2710, %v2708
      %v2721 = vpack.c.bf16 %v2713, %v2711
      %v2722 = vpack.c.bf16 %v2714, %v2712
      %v2727 = vunpack.c.l.b16 %v2715
      %v2728 = vunpack.c.l.b16 %v2716
      %v2729 = vunpack.c.l.b16 %v2717
      %v2730 = vunpack.c.l.b16 %v2718
      %v2731 = vpack.c.b16 %v2728, %v2727
      %v2732 = vpack.c.b16 %v2730, %v2729
      %v2734 = vsel %vm1279, %v2731, 0
      %v2737 = vsel %vm1279, %v2732, 0
      %2739 = vmatpush.bf16.msra.mxu0 0
      %2740 = vmatpush.bf16.msra.mxu0 0
      %2741 = vmatpush.bf16.msra.mxu0 0
      %2742 = vmatpush.bf16.msra.mxu0 0
      %2743 = vmatpush.bf16.msra.mxu0 0
      %2744 = vmatpush.bf16.msra.mxu0 0
      %2745 = vmatpush.bf16.msra.mxu0 %v2721
      %2746 = vmatpush.bf16.msra.mxu0 %v2719
      %2747 = vmatmul.bf16.gmra.mxu0 %v2734
      %v2748 = vpop.f32.mrf.mxu0
      %v2749 = vadd.f32 0.0, %v2748
      %v2750 = vpop.f32.mrf.mxu0
      %v2751 = vadd.f32 0.0, %v2750
      %2752 = vmatmul.bf16.gmra.mxu0 %v2737
      %v2753 = vpop.f32.mrf.mxu0
      %v2754 = vadd.f32 0.0, %v2753
      %v2755 = vpop.f32.mrf.mxu0
      %v2756 = vadd.f32 0.0, %v2755
      %2757 = vdwg.mxu0
      %2758 = vmatpush.bf16.msra.mxu0 0
      %2759 = vmatpush.bf16.msra.mxu0 0
      %2760 = vmatpush.bf16.msra.mxu0 0
      %2761 = vmatpush.bf16.msra.mxu0 0
      %2762 = vmatpush.bf16.msra.mxu0 0
      %2763 = vmatpush.bf16.msra.mxu0 0
      %2764 = vmatpush.bf16.msra.mxu0 %v2722
      %2765 = vmatpush.bf16.msra.mxu0 %v2720
      %2766 = vmatmul.bf16.gmra.mxu0 %v2734
      %v2767 = vpop.f32.mrf.mxu0
      %v2768 = vadd.f32 0.0, %v2767
      %v2769 = vpop.f32.mrf.mxu0
      %v2770 = vadd.f32 0.0, %v2769
      %2771 = vmatmul.bf16.gmra.mxu0 %v2737
      %v2772 = vpop.f32.mrf.mxu0
      %v2773 = vadd.f32 0.0, %v2772
      %v2774 = vpop.f32.mrf.mxu0
      %v2775 = vadd.f32 0.0, %v2774
      %2776 = vdwg.mxu0
      %v2777 = vld [vmem:[%s16] sm:$0xf]
      %v2778 = vld [vmem:[%s16 + $0x4] sm:$0xf]
      %v2779 = vld [vmem:[%s16 + $0x8] sm:$0xf]
      %v2780 = vld [vmem:[%s16 + $0xc] sm:$0xf]
      %v2781 = vld [vmem:[%s16 + $0x10] sm:$0xf]
      %v2782 = vld [vmem:[%s16 + $0x14] sm:$0xf]
      %v2783 = vld [vmem:[%s16 + $0x18] sm:$0xf]
      %v2784 = vld [vmem:[%s16 + $0x1c] sm:$0xf]
      %v2785 = vpack.c.bf16 %v1390, %v1388
      %v2786 = vpack.c.bf16 %v1409, %v1407
      %v2787 = vpack.c.bf16 %v1395, %v1393
      %v2788 = vpack.c.bf16 %v1414, %v1412
      %v2797 = vunpack.c.l.b16 %v2777
      %v2798 = vunpack.c.l.b16 %v2778
      %v2799 = vunpack.c.l.b16 %v2779
      %v2800 = vunpack.c.l.b16 %v2780
      %v2801 = vunpack.c.l.b16 %v2781
      %v2802 = vunpack.c.l.b16 %v2782
      %v2803 = vunpack.c.l.b16 %v2783
      %v2804 = vunpack.c.l.b16 %v2784
      %v2805 = vpack.c.b16 %v2798, %v2797
      %v2806 = vpack.c.b16 %v2800, %v2799
      %v2807 = vpack.c.b16 %v2802, %v2801
      %v2808 = vpack.c.b16 %v2804, %v2803
      %v2810 = vsel %vm1279, %v2805, 0
      %v2813 = vsel %vm1279, %v2806, 0
      %v2816 = vsel %vm1279, %v2807, 0
      %v2819 = vsel %vm1279, %v2808, 0
      %2821 = vmatpush.bf16.msra.mxu0 0
      %2822 = vmatpush.bf16.msra.mxu0 0
      %2823 = vmatpush.bf16.msra.mxu0 0
      %2824 = vmatpush.bf16.msra.mxu0 0
      %2825 = vmatpush.bf16.msra.mxu0 0
      %2826 = vmatpush.bf16.msra.mxu0 0
      %2827 = vmatpush.bf16.msra.mxu0 %v2787
      %2828 = vmatpush.bf16.msra.mxu0 %v2785
      %2829 = vmatmul.bf16.gmra.mxu0 %v2810
      %v2830 = vpop.f32.mrf.mxu0
      %v2831 = vadd.f32 0.0, %v2830
      %v2832 = vpop.f32.mrf.mxu0
      %v2833 = vadd.f32 0.0, %v2832
      %2834 = vmatmul.bf16.gmra.mxu0 %v2813
      %v2835 = vpop.f32.mrf.mxu0
      %v2836 = vadd.f32 0.0, %v2835
      %v2837 = vpop.f32.mrf.mxu0
      %v2838 = vadd.f32 0.0, %v2837
      %2839 = vmatmul.bf16.gmra.mxu0 %v2816
      %v2840 = vpop.f32.mrf.mxu0
      %v2841 = vadd.f32 0.0, %v2840
      %v2842 = vpop.f32.mrf.mxu0
      %v2843 = vadd.f32 0.0, %v2842
      %2844 = vmatmul.bf16.gmra.mxu0 %v2819
      %v2845 = vpop.f32.mrf.mxu0
      %v2846 = vadd.f32 0.0, %v2845
      %v2847 = vpop.f32.mrf.mxu0
      %v2848 = vadd.f32 0.0, %v2847
      %2849 = vdwg.mxu0
      %2850 = vmatpush.bf16.msra.mxu0 0
      %2851 = vmatpush.bf16.msra.mxu0 0
      %2852 = vmatpush.bf16.msra.mxu0 0
      %2853 = vmatpush.bf16.msra.mxu0 0
      %2854 = vmatpush.bf16.msra.mxu0 0
      %2855 = vmatpush.bf16.msra.mxu0 0
      %2856 = vmatpush.bf16.msra.mxu0 %v2788
      %2857 = vmatpush.bf16.msra.mxu0 %v2786
      %2858 = vmatmul.bf16.gmra.mxu0 %v2810
      %v2859 = vpop.f32.mrf.mxu0
      %v2860 = vadd.f32 0.0, %v2859
      %v2861 = vpop.f32.mrf.mxu0
      %v2862 = vadd.f32 0.0, %v2861
      %2863 = vmatmul.bf16.gmra.mxu0 %v2813
      %v2864 = vpop.f32.mrf.mxu0
      %v2865 = vadd.f32 0.0, %v2864
      %v2866 = vpop.f32.mrf.mxu0
      %v2867 = vadd.f32 0.0, %v2866
      %2868 = vmatmul.bf16.gmra.mxu0 %v2816
      %v2869 = vpop.f32.mrf.mxu0
      %v2870 = vadd.f32 0.0, %v2869
      %v2871 = vpop.f32.mrf.mxu0
      %v2872 = vadd.f32 0.0, %v2871
      %2873 = vmatmul.bf16.gmra.mxu0 %v2819
      %v2874 = vpop.f32.mrf.mxu0
      %v2875 = vadd.f32 0.0, %v2874
      %v2876 = vpop.f32.mrf.mxu0
      %v2877 = vadd.f32 0.0, %v2876
      %2878 = vdwg.mxu0
      %2879 = vmatpush.msra.mxu0 %v1060
      %2880 = vmatpush.msra.mxu0 %v1058
      %2881 = vmatpush.msra.mxu0 %v1056
      %2882 = vmatpush.msra.mxu0 %v1054
      %2883 = vmatpush.msra.mxu0 %v1052
      %2884 = vmatpush.msra.mxu0 %v1050
      %2885 = vmatpush.msra.mxu0 %v1048
      %2886 = vmatpush.msra.mxu0 %v1046
      %2887 = vmatpush.msra.mxu0 %v1044
      %2888 = vmatpush.msra.mxu0 %v1042
      %2889 = vmatpush.msra.mxu0 %v1040
      %2890 = vmatpush.msra.mxu0 %v1038
      %2891 = vmatpush.msra.mxu0 %v1036
      %2892 = vmatpush.msra.mxu0 %v1034
      %2893 = vmatpush.msra.mxu0 %v1032
      %2894 = vmatpush.msra.mxu0 %v1030
      %2895 = vmatmul.f32.gmra.mxu0 %v2831
      %v2896 = vpop.f32.mrf.mxu0
      %v2897 = vadd.f32 0.0, %v2896
      %2898 = vmatmul.f32.gmra.mxu0 %v2833
      %v2899 = vpop.f32.mrf.mxu0
      %v2900 = vadd.f32 0.0, %v2899
      %2901 = vmatmul.f32.gmra.mxu0 %v2836
      %v2902 = vpop.f32.mrf.mxu0
      %v2903 = vadd.f32 0.0, %v2902
      %2904 = vmatmul.f32.gmra.mxu0 %v2838
      %v2905 = vpop.f32.mrf.mxu0
      %v2906 = vadd.f32 0.0, %v2905
      %2907 = vmatmul.f32.gmra.mxu0 %v2841
      %v2908 = vpop.f32.mrf.mxu0
      %v2909 = vadd.f32 0.0, %v2908
      %2910 = vmatmul.f32.gmra.mxu0 %v2843
      %v2911 = vpop.f32.mrf.mxu0
      %v2912 = vadd.f32 0.0, %v2911
      %2913 = vmatmul.f32.gmra.mxu0 %v2846
      %v2914 = vpop.f32.mrf.mxu0
      %v2915 = vadd.f32 0.0, %v2914
      %2916 = vmatmul.f32.gmra.mxu0 %v2848
      %v2917 = vpop.f32.mrf.mxu0
      %v2918 = vadd.f32 0.0, %v2917
      %2919 = vdwg.mxu0
      %2920 = vmatpush.msra.mxu0 %v1061
      %2921 = vmatpush.msra.mxu0 %v1059
      %2922 = vmatpush.msra.mxu0 %v1057
      %2923 = vmatpush.msra.mxu0 %v1055
      %2924 = vmatpush.msra.mxu0 %v1053
      %2925 = vmatpush.msra.mxu0 %v1051
      %2926 = vmatpush.msra.mxu0 %v1049
      %2927 = vmatpush.msra.mxu0 %v1047
      %2928 = vmatpush.msra.mxu0 %v1045
      %2929 = vmatpush.msra.mxu0 %v1043
      %2930 = vmatpush.msra.mxu0 %v1041
      %2931 = vmatpush.msra.mxu0 %v1039
      %2932 = vmatpush.msra.mxu0 %v1037
      %2933 = vmatpush.msra.mxu0 %v1035
      %2934 = vmatpush.msra.mxu0 %v1033
      %2935 = vmatpush.msra.mxu0 %v1031
      %2936 = vmatmul.f32.gmra.mxu0 %v2831
      %v2937 = vpop.f32.mrf.mxu0
      %v2938 = vadd.f32 0.0, %v2937
      %2939 = vmatmul.f32.gmra.mxu0 %v2833
      %v2940 = vpop.f32.mrf.mxu0
      %v2941 = vadd.f32 0.0, %v2940
      %2942 = vmatmul.f32.gmra.mxu0 %v2836
      %v2943 = vpop.f32.mrf.mxu0
      %v2944 = vadd.f32 0.0, %v2943
      %2945 = vmatmul.f32.gmra.mxu0 %v2838
      %v2946 = vpop.f32.mrf.mxu0
      %v2947 = vadd.f32 0.0, %v2946
      %2948 = vmatmul.f32.gmra.mxu0 %v2841
      %v2949 = vpop.f32.mrf.mxu0
      %v2950 = vadd.f32 0.0, %v2949
      %2951 = vmatmul.f32.gmra.mxu0 %v2843
      %v2952 = vpop.f32.mrf.mxu0
      %v2953 = vadd.f32 0.0, %v2952
      %2954 = vmatmul.f32.gmra.mxu0 %v2846
      %v2955 = vpop.f32.mrf.mxu0
      %v2956 = vadd.f32 0.0, %v2955
      %2957 = vmatmul.f32.gmra.mxu0 %v2848
      %v2958 = vpop.f32.mrf.mxu0
      %v2959 = vadd.f32 0.0, %v2958
      %2960 = vdwg.mxu0
      %2961 = vmatpush.msra.mxu0 %v1060
      %2962 = vmatpush.msra.mxu0 %v1058
      %2963 = vmatpush.msra.mxu0 %v1056
      %2964 = vmatpush.msra.mxu0 %v1054
      %2965 = vmatpush.msra.mxu0 %v1052
      %2966 = vmatpush.msra.mxu0 %v1050
      %2967 = vmatpush.msra.mxu0 %v1048
      %2968 = vmatpush.msra.mxu0 %v1046
      %2969 = vmatpush.msra.mxu0 %v1044
      %2970 = vmatpush.msra.mxu0 %v1042
      %2971 = vmatpush.msra.mxu0 %v1040
      %2972 = vmatpush.msra.mxu0 %v1038
      %2973 = vmatpush.msra.mxu0 %v1036
      %2974 = vmatpush.msra.mxu0 %v1034
      %2975 = vmatpush.msra.mxu0 %v1032
      %2976 = vmatpush.msra.mxu0 %v1030
      %2977 = vmatmul.f32.gmra.mxu0 %v2860
      %v2978 = vpop.f32.mrf.mxu0
      %v2979 = vadd.f32 0.0, %v2978
      %2980 = vmatmul.f32.gmra.mxu0 %v2862
      %v2981 = vpop.f32.mrf.mxu0
      %v2982 = vadd.f32 0.0, %v2981
      %2983 = vmatmul.f32.gmra.mxu0 %v2865
      %v2984 = vpop.f32.mrf.mxu0
      %v2985 = vadd.f32 0.0, %v2984
      %2986 = vmatmul.f32.gmra.mxu0 %v2867
      %v2987 = vpop.f32.mrf.mxu0
      %v2988 = vadd.f32 0.0, %v2987
      %2989 = vmatmul.f32.gmra.mxu0 %v2870
      %v2990 = vpop.f32.mrf.mxu0
      %v2991 = vadd.f32 0.0, %v2990
      %2992 = vmatmul.f32.gmra.mxu0 %v2872
      %v2993 = vpop.f32.mrf.mxu0
      %v2994 = vadd.f32 0.0, %v2993
      %2995 = vmatmul.f32.gmra.mxu0 %v2875
      %v2996 = vpop.f32.mrf.mxu0
      %v2997 = vadd.f32 0.0, %v2996
      %2998 = vmatmul.f32.gmra.mxu0 %v2877
      %v2999 = vpop.f32.mrf.mxu0
      %v3000 = vadd.f32 0.0, %v2999
      %3001 = vdwg.mxu0
      %3002 = vmatpush.msra.mxu0 %v1061
      %3003 = vmatpush.msra.mxu0 %v1059
      %3004 = vmatpush.msra.mxu0 %v1057
      %3005 = vmatpush.msra.mxu0 %v1055
      %3006 = vmatpush.msra.mxu0 %v1053
      %3007 = vmatpush.msra.mxu0 %v1051
      %3008 = vmatpush.msra.mxu0 %v1049
      %3009 = vmatpush.msra.mxu0 %v1047
      %3010 = vmatpush.msra.mxu0 %v1045
      %3011 = vmatpush.msra.mxu0 %v1043
      %3012 = vmatpush.msra.mxu0 %v1041
      %3013 = vmatpush.msra.mxu0 %v1039
      %3014 = vmatpush.msra.mxu0 %v1037
      %3015 = vmatpush.msra.mxu0 %v1035
      %3016 = vmatpush.msra.mxu0 %v1033
      %3017 = vmatpush.msra.mxu0 %v1031
      %3018 = vmatmul.f32.gmra.mxu0 %v2860
      %v3019 = vpop.f32.mrf.mxu0
      %v3020 = vadd.f32 0.0, %v3019
      %3021 = vmatmul.f32.gmra.mxu0 %v2862
      %v3022 = vpop.f32.mrf.mxu0
      %v3023 = vadd.f32 0.0, %v3022
      %3024 = vmatmul.f32.gmra.mxu0 %v2865
      %v3025 = vpop.f32.mrf.mxu0
      %v3026 = vadd.f32 0.0, %v3025
      %3027 = vmatmul.f32.gmra.mxu0 %v2867
      %v3028 = vpop.f32.mrf.mxu0
      %v3029 = vadd.f32 0.0, %v3028
      %3030 = vmatmul.f32.gmra.mxu0 %v2870
      %v3031 = vpop.f32.mrf.mxu0
      %v3032 = vadd.f32 0.0, %v3031
      %3033 = vmatmul.f32.gmra.mxu0 %v2872
      %v3034 = vpop.f32.mrf.mxu0
      %v3035 = vadd.f32 0.0, %v3034
      %3036 = vmatmul.f32.gmra.mxu0 %v2875
      %v3037 = vpop.f32.mrf.mxu0
      %v3038 = vadd.f32 0.0, %v3037
      %3039 = vmatmul.f32.gmra.mxu0 %v2877
      %v3040 = vpop.f32.mrf.mxu0
      %v3041 = vadd.f32 0.0, %v3040
      %3042 = vdwg.mxu0
      %v3043 = vsel %vm1064, %v2897, %v2909
      %v3044 = vsel %vm1065, %v2938, %v2950
      %v3045 = vsel %vm1064, %v2900, %v2912
      %v3046 = vsel %vm1065, %v2941, %v2953
      %v3047 = vsel %vm1064, %v2903, %v2915
      %v3048 = vsel %vm1065, %v2944, %v2956
      %v3049 = vsel %vm1064, %v2906, %v2918
      %v3050 = vsel %vm1065, %v2947, %v2959
      %v3051 = vsel %vm1064, %v2979, %v2991
      %v3052 = vsel %vm1065, %v3020, %v3032
      %v3053 = vsel %vm1064, %v2982, %v2994
      %v3054 = vsel %vm1065, %v3023, %v3035
      %v3055 = vsel %vm1064, %v2985, %v2997
      %v3056 = vsel %vm1065, %v3026, %v3038
      %v3057 = vsel %vm1064, %v2988, %v3000
      %v3058 = vsel %vm1065, %v3029, %v3041
      %v3059 = vmul.f32 %v2749, %v3043
      %v3060 = vmul.f32 %v2768, %v3044
      %v3061 = vrot.slane %v3059, 4
      %v3062 = vadd.f32 %v3059, %v3061
      %v3063 = vrot.slane %v3062, 2
      %v3064 = vadd.f32 %v3062, %v3063
      %v3065 = vrot.slane %v3064, 1
      %v3066 = vadd.f32 %v3064, %v3065
      %v3067 = vrot.slane %v3060, 4
      %v3068 = vadd.f32 %v3060, %v3067
      %v3069 = vrot.slane %v3068, 2
      %v3070 = vadd.f32 %v3068, %v3069
      %v3071 = vrot.slane %v3070, 1
      %v3072 = vadd.f32 %v3070, %v3071
      %v3073 = vmul.f32 %v3066, 0.35355338
      %v3074 = vmul.f32 %v3072, 0.35355338
      %v3075 = vmul.f32 %v2749, %v3045
      %v3076 = vmul.f32 %v2768, %v3046
      %v3077 = vrot.slane %v3075, 4
      %v3078 = vadd.f32 %v3075, %v3077
      %v3079 = vrot.slane %v3078, 2
      %v3080 = vadd.f32 %v3078, %v3079
      %v3081 = vrot.slane %v3080, 1
      %v3082 = vadd.f32 %v3080, %v3081
      %v3083 = vrot.slane %v3076, 4
      %v3084 = vadd.f32 %v3076, %v3083
      %v3085 = vrot.slane %v3084, 2
      %v3086 = vadd.f32 %v3084, %v3085
      %v3087 = vrot.slane %v3086, 1
      %v3088 = vadd.f32 %v3086, %v3087
      %v3089 = vmul.f32 %v3082, 0.35355338
      %v3090 = vmul.f32 %v3088, 0.35355338
      %v3091 = vmul.f32 %v2749, %v3047
      %v3092 = vmul.f32 %v2768, %v3048
      %v3093 = vrot.slane %v3091, 4
      %v3094 = vadd.f32 %v3091, %v3093
      %v3095 = vrot.slane %v3094, 2
      %v3096 = vadd.f32 %v3094, %v3095
      %v3097 = vrot.slane %v3096, 1
      %v3098 = vadd.f32 %v3096, %v3097
      %v3099 = vrot.slane %v3092, 4
      %v3100 = vadd.f32 %v3092, %v3099
      %v3101 = vrot.slane %v3100, 2
      %v3102 = vadd.f32 %v3100, %v3101
      %v3103 = vrot.slane %v3102, 1
      %v3104 = vadd.f32 %v3102, %v3103
      %v3105 = vmul.f32 %v3098, 0.35355338
      %v3106 = vmul.f32 %v3104, 0.35355338
      %v3107 = vmul.f32 %v2749, %v3049
      %v3108 = vmul.f32 %v2768, %v3050
      %v3109 = vrot.slane %v3107, 4
      %v3110 = vadd.f32 %v3107, %v3109
      %v3111 = vrot.slane %v3110, 2
      %v3112 = vadd.f32 %v3110, %v3111
      %v3113 = vrot.slane %v3112, 1
      %v3114 = vadd.f32 %v3112, %v3113
      %v3115 = vrot.slane %v3108, 4
      %v3116 = vadd.f32 %v3108, %v3115
      %v3117 = vrot.slane %v3116, 2
      %v3118 = vadd.f32 %v3116, %v3117
      %v3119 = vrot.slane %v3118, 1
      %v3120 = vadd.f32 %v3118, %v3119
      %v3121 = vmul.f32 %v3114, 0.35355338
      %v3122 = vmul.f32 %v3120, 0.35355338
      %v3123 = vmax.f32 %v3073, %v3089
      %v3124 = vmax.f32 %v3074, %v3090
      %v3125 = vmax.f32 %v3123, %v3105
      %v3126 = vmax.f32 %v3124, %v3106
      %v3127 = vmax.f32 %v3125, %v3121
      %v3128 = vmax.f32 %v3126, %v3122
      %v3129 = vsub.f32 %v3073, %v3127
      %v3130 = vsub.f32 %v3074, %v3128
      %v3131 = vmul.f32 %v3129, 1.442695
      %v3132 = vpow.pop %v3131
      %v3133 = vmul.f32 %v3130, 1.442695
      %v3134 = vpow.pop %v3133
      %v3135 = vsub.f32 %v3089, %v3127
      %v3136 = vsub.f32 %v3090, %v3128
      %v3137 = vmul.f32 %v3135, 1.442695
      %v3138 = vpow.pop %v3137
      %v3139 = vmul.f32 %v3136, 1.442695
      %v3140 = vpow.pop %v3139
      %v3141 = vsub.f32 %v3105, %v3127
      %v3142 = vsub.f32 %v3106, %v3128
      %v3143 = vmul.f32 %v3141, 1.442695
      %v3144 = vpow.pop %v3143
      %v3145 = vmul.f32 %v3142, 1.442695
      %v3146 = vpow.pop %v3145
      %v3147 = vsub.f32 %v3121, %v3127
      %v3148 = vsub.f32 %v3122, %v3128
      %v3149 = vmul.f32 %v3147, 1.442695
      %v3150 = vpow.pop %v3149
      %v3151 = vmul.f32 %v3148, 1.442695
      %v3152 = vpow.pop %v3151
      %v3153 = vadd.f32 %v3132, %v3138
      %v3154 = vadd.f32 %v3134, %v3140
      %v3155 = vadd.f32 %v3153, %v3144
      %v3156 = vadd.f32 %v3154, %v3146
      %v3157 = vadd.f32 %v3155, %v3150
      %v3158 = vadd.f32 %v3156, %v3152
      %v3159 = vmul.f32 %v3132, %v3051
      %v3160 = vmul.f32 %v3134, %v3052
      %v3161 = vmul.f32 %v3138, %v3053
      %v3162 = vmul.f32 %v3140, %v3054
      %v3163 = vadd.f32 %v3159, %v3161
      %v3164 = vadd.f32 %v3160, %v3162
      %v3165 = vmul.f32 %v3144, %v3055
      %v3166 = vmul.f32 %v3146, %v3056
      %v3167 = vadd.f32 %v3163, %v3165
      %v3168 = vadd.f32 %v3164, %v3166
      %v3169 = vmul.f32 %v3150, %v3057
      %v3170 = vmul.f32 %v3152, %v3058
      %v3171 = vadd.f32 %v3167, %v3169
      %v3172 = vadd.f32 %v3168, %v3170
      %v3173 = vrcp.pop %v3157
      %v3174 = vmul.f32 %v3157, %v3173
      %v3175 = vsub.f32 1.0, %v3174
      %v3176 = vmul.f32 %v3173, %v3175
      %v3177 = vadd.f32 %v3173, %v3176
      %vm3178 = vweird.f32 %v3157
      %vm3179 = vweird.f32 %v3173
      %vm3180 = vmor %vm3178, %vm3179
      %v3181 = vsel %vm3180, %v3173, %v3177
      %v3182 = vand.u32 2147483647, %v3157
      %vm3183 = vcmp.eq.f32.partialorder %v3182, 8.507059e+37
      %v3184 = vand.u32 %v3157, 2147483648
      %v3185 = vor.u32 1.1754944e-38, %v3184
      %v3186 = vsel %vm3183, %v3185, %v3181
      %v3187 = vmul.f32 %v3171, %v3186
      %v3188 = vrcp.pop %v3158
      %v3189 = vmul.f32 %v3158, %v3188
      %v3190 = vsub.f32 1.0, %v3189
      %v3191 = vmul.f32 %v3188, %v3190
      %v3192 = vadd.f32 %v3188, %v3191
      %vm3193 = vweird.f32 %v3158
      %vm3194 = vweird.f32 %v3188
      %vm3195 = vmor %vm3193, %vm3194
      %v3196 = vsel %vm3195, %v3188, %v3192
      %v3197 = vand.u32 2147483647, %v3158
      %vm3198 = vcmp.eq.f32.partialorder %v3197, 8.507059e+37
      %v3199 = vand.u32 %v3158, 2147483648
      %v3200 = vor.u32 1.1754944e-38, %v3199
      %v3201 = vsel %vm3198, %v3200, %v3196
      %v3202 = vmul.f32 %v3172, %v3201
      %v3203 = vmul.f32 %v2751, %v3043
      %v3204 = vmul.f32 %v2770, %v3044
      %v3205 = vrot.slane %v3203, 4
      %v3206 = vadd.f32 %v3203, %v3205
      %v3207 = vrot.slane %v3206, 2
      %v3208 = vadd.f32 %v3206, %v3207
      %v3209 = vrot.slane %v3208, 1
      %v3210 = vadd.f32 %v3208, %v3209
      %v3211 = vrot.slane %v3204, 4
      %v3212 = vadd.f32 %v3204, %v3211
      %v3213 = vrot.slane %v3212, 2
      %v3214 = vadd.f32 %v3212, %v3213
      %v3215 = vrot.slane %v3214, 1
      %v3216 = vadd.f32 %v3214, %v3215
      %v3217 = vmul.f32 %v3210, 0.35355338
      %v3218 = vmul.f32 %v3216, 0.35355338
      %v3219 = vmul.f32 %v2751, %v3045
      %v3220 = vmul.f32 %v2770, %v3046
      %v3221 = vrot.slane %v3219, 4
      %v3222 = vadd.f32 %v3219, %v3221
      %v3223 = vrot.slane %v3222, 2
      %v3224 = vadd.f32 %v3222, %v3223
      %v3225 = vrot.slane %v3224, 1
      %v3226 = vadd.f32 %v3224, %v3225
      %v3227 = vrot.slane %v3220, 4
      %v3228 = vadd.f32 %v3220, %v3227
      %v3229 = vrot.slane %v3228, 2
      %v3230 = vadd.f32 %v3228, %v3229
      %v3231 = vrot.slane %v3230, 1
      %v3232 = vadd.f32 %v3230, %v3231
      %v3233 = vmul.f32 %v3226, 0.35355338
      %v3234 = vmul.f32 %v3232, 0.35355338
      %v3235 = vmul.f32 %v2751, %v3047
      %v3236 = vmul.f32 %v2770, %v3048
      %v3237 = vrot.slane %v3235, 4
      %v3238 = vadd.f32 %v3235, %v3237
      %v3239 = vrot.slane %v3238, 2
      %v3240 = vadd.f32 %v3238, %v3239
      %v3241 = vrot.slane %v3240, 1
      %v3242 = vadd.f32 %v3240, %v3241
      %v3243 = vrot.slane %v3236, 4
      %v3244 = vadd.f32 %v3236, %v3243
      %v3245 = vrot.slane %v3244, 2
      %v3246 = vadd.f32 %v3244, %v3245
      %v3247 = vrot.slane %v3246, 1
      %v3248 = vadd.f32 %v3246, %v3247
      %v3249 = vmul.f32 %v3242, 0.35355338
      %v3250 = vmul.f32 %v3248, 0.35355338
      %v3251 = vmul.f32 %v2751, %v3049
      %v3252 = vmul.f32 %v2770, %v3050
      %v3253 = vrot.slane %v3251, 4
      %v3254 = vadd.f32 %v3251, %v3253
      %v3255 = vrot.slane %v3254, 2
      %v3256 = vadd.f32 %v3254, %v3255
      %v3257 = vrot.slane %v3256, 1
      %v3258 = vadd.f32 %v3256, %v3257
      %v3259 = vrot.slane %v3252, 4
      %v3260 = vadd.f32 %v3252, %v3259
      %v3261 = vrot.slane %v3260, 2
      %v3262 = vadd.f32 %v3260, %v3261
      %v3263 = vrot.slane %v3262, 1
      %v3264 = vadd.f32 %v3262, %v3263
      %v3265 = vmul.f32 %v3258, 0.35355338
      %v3266 = vmul.f32 %v3264, 0.35355338
      %v3267 = vmax.f32 %v3217, %v3233
      %v3268 = vmax.f32 %v3218, %v3234
      %v3269 = vmax.f32 %v3267, %v3249
      %v3270 = vmax.f32 %v3268, %v3250
      %v3271 = vmax.f32 %v3269, %v3265
      %v3272 = vmax.f32 %v3270, %v3266
      %v3273 = vsub.f32 %v3217, %v3271
      %v3274 = vsub.f32 %v3218, %v3272
      %v3275 = vmul.f32 %v3273, 1.442695
      %v3276 = vpow.pop %v3275
      %v3277 = vmul.f32 %v3274, 1.442695
      %v3278 = vpow.pop %v3277
      %v3279 = vsub.f32 %v3233, %v3271
      %v3280 = vsub.f32 %v3234, %v3272
      %v3281 = vmul.f32 %v3279, 1.442695
      %v3282 = vpow.pop %v3281
      %v3283 = vmul.f32 %v3280, 1.442695
      %v3284 = vpow.pop %v3283
      %v3285 = vsub.f32 %v3249, %v3271
      %v3286 = vsub.f32 %v3250, %v3272
      %v3287 = vmul.f32 %v3285, 1.442695
      %v3288 = vpow.pop %v3287
      %v3289 = vmul.f32 %v3286, 1.442695
      %v3290 = vpow.pop %v3289
      %v3291 = vsub.f32 %v3265, %v3271
      %v3292 = vsub.f32 %v3266, %v3272
      %v3293 = vmul.f32 %v3291, 1.442695
      %v3294 = vpow.pop %v3293
      %v3295 = vmul.f32 %v3292, 1.442695
      %v3296 = vpow.pop %v3295
      %v3297 = vadd.f32 %v3276, %v3282
      %v3298 = vadd.f32 %v3278, %v3284
      %v3299 = vadd.f32 %v3297, %v3288
      %v3300 = vadd.f32 %v3298, %v3290
      %v3301 = vadd.f32 %v3299, %v3294
      %v3302 = vadd.f32 %v3300, %v3296
      %v3303 = vmul.f32 %v3276, %v3051
      %v3304 = vmul.f32 %v3278, %v3052
      %v3305 = vmul.f32 %v3282, %v3053
      %v3306 = vmul.f32 %v3284, %v3054
      %v3307 = vadd.f32 %v3303, %v3305
      %v3308 = vadd.f32 %v3304, %v3306
      %v3309 = vmul.f32 %v3288, %v3055
      %v3310 = vmul.f32 %v3290, %v3056
      %v3311 = vadd.f32 %v3307, %v3309
      %v3312 = vadd.f32 %v3308, %v3310
      %v3313 = vmul.f32 %v3294, %v3057
      %v3314 = vmul.f32 %v3296, %v3058
      %v3315 = vadd.f32 %v3311, %v3313
      %v3316 = vadd.f32 %v3312, %v3314
      %v3317 = vrcp.pop %v3301
      %v3318 = vmul.f32 %v3301, %v3317
      %v3319 = vsub.f32 1.0, %v3318
      %v3320 = vmul.f32 %v3317, %v3319
      %v3321 = vadd.f32 %v3317, %v3320
      %vm3322 = vweird.f32 %v3301
      %vm3323 = vweird.f32 %v3317
      %vm3324 = vmor %vm3322, %vm3323
      %v3325 = vsel %vm3324, %v3317, %v3321
      %v3326 = vand.u32 2147483647, %v3301
      %vm3327 = vcmp.eq.f32.partialorder %v3326, 8.507059e+37
      %v3328 = vand.u32 %v3301, 2147483648
      %v3329 = vor.u32 1.1754944e-38, %v3328
      %v3330 = vsel %vm3327, %v3329, %v3325
      %v3331 = vmul.f32 %v3315, %v3330
      %v3332 = vrcp.pop %v3302
      %v3333 = vmul.f32 %v3302, %v3332
      %v3334 = vsub.f32 1.0, %v3333
      %v3335 = vmul.f32 %v3332, %v3334
      %v3336 = vadd.f32 %v3332, %v3335
      %vm3337 = vweird.f32 %v3302
      %vm3338 = vweird.f32 %v3332
      %vm3339 = vmor %vm3337, %vm3338
      %v3340 = vsel %vm3339, %v3332, %v3336
      %v3341 = vand.u32 2147483647, %v3302
      %vm3342 = vcmp.eq.f32.partialorder %v3341, 8.507059e+37
      %v3343 = vand.u32 %v3302, 2147483648
      %v3344 = vor.u32 1.1754944e-38, %v3343
      %v3345 = vsel %vm3342, %v3344, %v3340
      %v3346 = vmul.f32 %v3316, %v3345
      %v3347 = vmul.f32 %v2754, %v3043
      %v3348 = vmul.f32 %v2773, %v3044
      %v3349 = vrot.slane %v3347, 4
      %v3350 = vadd.f32 %v3347, %v3349
      %v3351 = vrot.slane %v3350, 2
      %v3352 = vadd.f32 %v3350, %v3351
      %v3353 = vrot.slane %v3352, 1
      %v3354 = vadd.f32 %v3352, %v3353
      %v3355 = vrot.slane %v3348, 4
      %v3356 = vadd.f32 %v3348, %v3355
      %v3357 = vrot.slane %v3356, 2
      %v3358 = vadd.f32 %v3356, %v3357
      %v3359 = vrot.slane %v3358, 1
      %v3360 = vadd.f32 %v3358, %v3359
      %v3361 = vmul.f32 %v3354, 0.35355338
      %v3362 = vmul.f32 %v3360, 0.35355338
      %v3363 = vmul.f32 %v2754, %v3045
      %v3364 = vmul.f32 %v2773, %v3046
      %v3365 = vrot.slane %v3363, 4
      %v3366 = vadd.f32 %v3363, %v3365
      %v3367 = vrot.slane %v3366, 2
      %v3368 = vadd.f32 %v3366, %v3367
      %v3369 = vrot.slane %v3368, 1
      %v3370 = vadd.f32 %v3368, %v3369
      %v3371 = vrot.slane %v3364, 4
      %v3372 = vadd.f32 %v3364, %v3371
      %v3373 = vrot.slane %v3372, 2
      %v3374 = vadd.f32 %v3372, %v3373
      %v3375 = vrot.slane %v3374, 1
      %v3376 = vadd.f32 %v3374, %v3375
      %v3377 = vmul.f32 %v3370, 0.35355338
      %v3378 = vmul.f32 %v3376, 0.35355338
      %v3379 = vmul.f32 %v2754, %v3047
      %v3380 = vmul.f32 %v2773, %v3048
      %v3381 = vrot.slane %v3379, 4
      %v3382 = vadd.f32 %v3379, %v3381
      %v3383 = vrot.slane %v3382, 2
      %v3384 = vadd.f32 %v3382, %v3383
      %v3385 = vrot.slane %v3384, 1
      %v3386 = vadd.f32 %v3384, %v3385
      %v3387 = vrot.slane %v3380, 4
      %v3388 = vadd.f32 %v3380, %v3387
      %v3389 = vrot.slane %v3388, 2
      %v3390 = vadd.f32 %v3388, %v3389
      %v3391 = vrot.slane %v3390, 1
      %v3392 = vadd.f32 %v3390, %v3391
      %v3393 = vmul.f32 %v3386, 0.35355338
      %v3394 = vmul.f32 %v3392, 0.35355338
      %v3395 = vmul.f32 %v2754, %v3049
      %v3396 = vmul.f32 %v2773, %v3050
      %v3397 = vrot.slane %v3395, 4
      %v3398 = vadd.f32 %v3395, %v3397
      %v3399 = vrot.slane %v3398, 2
      %v3400 = vadd.f32 %v3398, %v3399
      %v3401 = vrot.slane %v3400, 1
      %v3402 = vadd.f32 %v3400, %v3401
      %v3403 = vrot.slane %v3396, 4
      %v3404 = vadd.f32 %v3396, %v3403
      %v3405 = vrot.slane %v3404, 2
      %v3406 = vadd.f32 %v3404, %v3405
      %v3407 = vrot.slane %v3406, 1
      %v3408 = vadd.f32 %v3406, %v3407
      %v3409 = vmul.f32 %v3402, 0.35355338
      %v3410 = vmul.f32 %v3408, 0.35355338
      %v3411 = vmax.f32 %v3361, %v3377
      %v3412 = vmax.f32 %v3362, %v3378
      %v3413 = vmax.f32 %v3411, %v3393
      %v3414 = vmax.f32 %v3412, %v3394
      %v3415 = vmax.f32 %v3413, %v3409
      %v3416 = vmax.f32 %v3414, %v3410
      %v3417 = vsub.f32 %v3361, %v3415
      %v3418 = vsub.f32 %v3362, %v3416
      %v3419 = vmul.f32 %v3417, 1.442695
      %v3420 = vpow.pop %v3419
      %v3421 = vmul.f32 %v3418, 1.442695
      %v3422 = vpow.pop %v3421
      %v3423 = vsub.f32 %v3377, %v3415
      %v3424 = vsub.f32 %v3378, %v3416
      %v3425 = vmul.f32 %v3423, 1.442695
      %v3426 = vpow.pop %v3425
      %v3427 = vmul.f32 %v3424, 1.442695
      %v3428 = vpow.pop %v3427
      %v3429 = vsub.f32 %v3393, %v3415
      %v3430 = vsub.f32 %v3394, %v3416
      %v3431 = vmul.f32 %v3429, 1.442695
      %v3432 = vpow.pop %v3431
      %v3433 = vmul.f32 %v3430, 1.442695
      %v3434 = vpow.pop %v3433
      %v3435 = vsub.f32 %v3409, %v3415
      %v3436 = vsub.f32 %v3410, %v3416
      %v3437 = vmul.f32 %v3435, 1.442695
      %v3438 = vpow.pop %v3437
      %v3439 = vmul.f32 %v3436, 1.442695
      %v3440 = vpow.pop %v3439
      %v3441 = vadd.f32 %v3420, %v3426
      %v3442 = vadd.f32 %v3422, %v3428
      %v3443 = vadd.f32 %v3441, %v3432
      %v3444 = vadd.f32 %v3442, %v3434
      %v3445 = vadd.f32 %v3443, %v3438
      %v3446 = vadd.f32 %v3444, %v3440
      %v3447 = vmul.f32 %v3420, %v3051
      %v3448 = vmul.f32 %v3422, %v3052
      %v3449 = vmul.f32 %v3426, %v3053
      %v3450 = vmul.f32 %v3428, %v3054
      %v3451 = vadd.f32 %v3447, %v3449
      %v3452 = vadd.f32 %v3448, %v3450
      %v3453 = vmul.f32 %v3432, %v3055
      %v3454 = vmul.f32 %v3434, %v3056
      %v3455 = vadd.f32 %v3451, %v3453
      %v3456 = vadd.f32 %v3452, %v3454
      %v3457 = vmul.f32 %v3438, %v3057
      %v3458 = vmul.f32 %v3440, %v3058
      %v3459 = vadd.f32 %v3455, %v3457
      %v3460 = vadd.f32 %v3456, %v3458
      %v3461 = vrcp.pop %v3445
      %v3462 = vmul.f32 %v3445, %v3461
      %v3463 = vsub.f32 1.0, %v3462
      %v3464 = vmul.f32 %v3461, %v3463
      %v3465 = vadd.f32 %v3461, %v3464
      %vm3466 = vweird.f32 %v3445
      %vm3467 = vweird.f32 %v3461
      %vm3468 = vmor %vm3466, %vm3467
      %v3469 = vsel %vm3468, %v3461, %v3465
      %v3470 = vand.u32 2147483647, %v3445
      %vm3471 = vcmp.eq.f32.partialorder %v3470, 8.507059e+37
      %v3472 = vand.u32 %v3445, 2147483648
      %v3473 = vor.u32 1.1754944e-38, %v3472
      %v3474 = vsel %vm3471, %v3473, %v3469
      %v3475 = vmul.f32 %v3459, %v3474
      %v3476 = vrcp.pop %v3446
      %v3477 = vmul.f32 %v3446, %v3476
      %v3478 = vsub.f32 1.0, %v3477
      %v3479 = vmul.f32 %v3476, %v3478
      %v3480 = vadd.f32 %v3476, %v3479
      %vm3481 = vweird.f32 %v3446
      %vm3482 = vweird.f32 %v3476
      %vm3483 = vmor %vm3481, %vm3482
      %v3484 = vsel %vm3483, %v3476, %v3480
      %v3485 = vand.u32 2147483647, %v3446
      %vm3486 = vcmp.eq.f32.partialorder %v3485, 8.507059e+37
      %v3487 = vand.u32 %v3446, 2147483648
      %v3488 = vor.u32 1.1754944e-38, %v3487
      %v3489 = vsel %vm3486, %v3488, %v3484
      %v3490 = vmul.f32 %v3460, %v3489
      %v3491 = vmul.f32 %v2756, %v3043
      %v3492 = vmul.f32 %v2775, %v3044
      %v3493 = vrot.slane %v3491, 4
      %v3494 = vadd.f32 %v3491, %v3493
      %v3495 = vrot.slane %v3494, 2
      %v3496 = vadd.f32 %v3494, %v3495
      %v3497 = vrot.slane %v3496, 1
      %v3498 = vadd.f32 %v3496, %v3497
      %v3499 = vrot.slane %v3492, 4
      %v3500 = vadd.f32 %v3492, %v3499
      %v3501 = vrot.slane %v3500, 2
      %v3502 = vadd.f32 %v3500, %v3501
      %v3503 = vrot.slane %v3502, 1
      %v3504 = vadd.f32 %v3502, %v3503
      %v3505 = vmul.f32 %v3498, 0.35355338
      %v3506 = vmul.f32 %v3504, 0.35355338
      %v3507 = vmul.f32 %v2756, %v3045
      %v3508 = vmul.f32 %v2775, %v3046
      %v3509 = vrot.slane %v3507, 4
      %v3510 = vadd.f32 %v3507, %v3509
      %v3511 = vrot.slane %v3510, 2
      %v3512 = vadd.f32 %v3510, %v3511
      %v3513 = vrot.slane %v3512, 1
      %v3514 = vadd.f32 %v3512, %v3513
      %v3515 = vrot.slane %v3508, 4
      %v3516 = vadd.f32 %v3508, %v3515
      %v3517 = vrot.slane %v3516, 2
      %v3518 = vadd.f32 %v3516, %v3517
      %v3519 = vrot.slane %v3518, 1
      %v3520 = vadd.f32 %v3518, %v3519
      %v3521 = vmul.f32 %v3514, 0.35355338
      %v3522 = vmul.f32 %v3520, 0.35355338
      %v3523 = vmul.f32 %v2756, %v3047
      %v3524 = vmul.f32 %v2775, %v3048
      %v3525 = vrot.slane %v3523, 4
      %v3526 = vadd.f32 %v3523, %v3525
      %v3527 = vrot.slane %v3526, 2
      %v3528 = vadd.f32 %v3526, %v3527
      %v3529 = vrot.slane %v3528, 1
      %v3530 = vadd.f32 %v3528, %v3529
      %v3531 = vrot.slane %v3524, 4
      %v3532 = vadd.f32 %v3524, %v3531
      %v3533 = vrot.slane %v3532, 2
      %v3534 = vadd.f32 %v3532, %v3533
      %v3535 = vrot.slane %v3534, 1
      %v3536 = vadd.f32 %v3534, %v3535
      %v3537 = vmul.f32 %v3530, 0.35355338
      %v3538 = vmul.f32 %v3536, 0.35355338
      %v3539 = vmul.f32 %v2756, %v3049
      %v3540 = vmul.f32 %v2775, %v3050
      %v3541 = vrot.slane %v3539, 4
      %v3542 = vadd.f32 %v3539, %v3541
      %v3543 = vrot.slane %v3542, 2
      %v3544 = vadd.f32 %v3542, %v3543
      %v3545 = vrot.slane %v3544, 1
      %v3546 = vadd.f32 %v3544, %v3545
      %v3547 = vrot.slane %v3540, 4
      %v3548 = vadd.f32 %v3540, %v3547
      %v3549 = vrot.slane %v3548, 2
      %v3550 = vadd.f32 %v3548, %v3549
      %v3551 = vrot.slane %v3550, 1
      %v3552 = vadd.f32 %v3550, %v3551
      %v3553 = vmul.f32 %v3546, 0.35355338
      %v3554 = vmul.f32 %v3552, 0.35355338
      %v3555 = vmax.f32 %v3505, %v3521
      %v3556 = vmax.f32 %v3506, %v3522
      %v3557 = vmax.f32 %v3555, %v3537
      %v3558 = vmax.f32 %v3556, %v3538
      %v3559 = vmax.f32 %v3557, %v3553
      %v3560 = vmax.f32 %v3558, %v3554
      %v3561 = vsub.f32 %v3505, %v3559
      %v3562 = vsub.f32 %v3506, %v3560
      %v3563 = vmul.f32 %v3561, 1.442695
      %v3564 = vpow.pop %v3563
      %v3565 = vmul.f32 %v3562, 1.442695
      %v3566 = vpow.pop %v3565
      %v3567 = vsub.f32 %v3521, %v3559
      %v3568 = vsub.f32 %v3522, %v3560
      %v3569 = vmul.f32 %v3567, 1.442695
      %v3570 = vpow.pop %v3569
      %v3571 = vmul.f32 %v3568, 1.442695
      %v3572 = vpow.pop %v3571
      %v3573 = vsub.f32 %v3537, %v3559
      %v3574 = vsub.f32 %v3538, %v3560
      %v3575 = vmul.f32 %v3573, 1.442695
      %v3576 = vpow.pop %v3575
      %v3577 = vmul.f32 %v3574, 1.442695
      %v3578 = vpow.pop %v3577
      %v3579 = vsub.f32 %v3553, %v3559
      %v3580 = vsub.f32 %v3554, %v3560
      %v3581 = vmul.f32 %v3579, 1.442695
      %v3582 = vpow.pop %v3581
      %v3583 = vmul.f32 %v3580, 1.442695
      %v3584 = vpow.pop %v3583
      %v3585 = vadd.f32 %v3564, %v3570
      %v3586 = vadd.f32 %v3566, %v3572
      %v3587 = vadd.f32 %v3585, %v3576
      %v3588 = vadd.f32 %v3586, %v3578
      %v3589 = vadd.f32 %v3587, %v3582
      %v3590 = vadd.f32 %v3588, %v3584
      %v3591 = vmul.f32 %v3564, %v3051
      %v3592 = vmul.f32 %v3566, %v3052
      %v3593 = vmul.f32 %v3570, %v3053
      %v3594 = vmul.f32 %v3572, %v3054
      %v3595 = vadd.f32 %v3591, %v3593
      %v3596 = vadd.f32 %v3592, %v3594
      %v3597 = vmul.f32 %v3576, %v3055
      %v3598 = vmul.f32 %v3578, %v3056
      %v3599 = vadd.f32 %v3595, %v3597
      %v3600 = vadd.f32 %v3596, %v3598
      %v3601 = vmul.f32 %v3582, %v3057
      %v3602 = vmul.f32 %v3584, %v3058
      %v3603 = vadd.f32 %v3599, %v3601
      %v3604 = vadd.f32 %v3600, %v3602
      %v3605 = vrcp.pop %v3589
      %v3606 = vmul.f32 %v3589, %v3605
      %v3607 = vsub.f32 1.0, %v3606
      %v3608 = vmul.f32 %v3605, %v3607
      %v3609 = vadd.f32 %v3605, %v3608
      %vm3610 = vweird.f32 %v3589
      %vm3611 = vweird.f32 %v3605
      %vm3612 = vmor %vm3610, %vm3611
      %v3613 = vsel %vm3612, %v3605, %v3609
      %v3614 = vand.u32 2147483647, %v3589
      %vm3615 = vcmp.eq.f32.partialorder %v3614, 8.507059e+37
      %v3616 = vand.u32 %v3589, 2147483648
      %v3617 = vor.u32 1.1754944e-38, %v3616
      %v3618 = vsel %vm3615, %v3617, %v3613
      %v3619 = vmul.f32 %v3603, %v3618
      %v3620 = vrcp.pop %v3590
      %v3621 = vmul.f32 %v3590, %v3620
      %v3622 = vsub.f32 1.0, %v3621
      %v3623 = vmul.f32 %v3620, %v3622
      %v3624 = vadd.f32 %v3620, %v3623
      %vm3625 = vweird.f32 %v3590
      %vm3626 = vweird.f32 %v3620
      %vm3627 = vmor %vm3625, %vm3626
      %v3628 = vsel %vm3627, %v3620, %v3624
      %v3629 = vand.u32 2147483647, %v3590
      %vm3630 = vcmp.eq.f32.partialorder %v3629, 8.507059e+37
      %v3631 = vand.u32 %v3590, 2147483648
      %v3632 = vor.u32 1.1754944e-38, %v3631
      %v3633 = vsel %vm3630, %v3632, %v3628
      %v3634 = vmul.f32 %v3604, %v3633
      %v3635 = vld [vmem:[%s17] sm:$0xf]
      %v3636 = vld [vmem:[%s17 + $0x4] sm:$0xf]
      %v3637 = vld [vmem:[%s17 + $0x8] sm:$0xf]
      %v3638 = vld [vmem:[%s17 + $0xc] sm:$0xf]
      %v3639 = vpack.c.bf16 %v3331, %v3187
      %v3640 = vpack.c.bf16 %v3346, %v3202
      %v3641 = vpack.c.bf16 %v3619, %v3475
      %v3642 = vpack.c.bf16 %v3634, %v3490
      %v3643 = vld [vmem:[%s18] sm:$0xff]
      %v3644 = vld [vmem:[%s18 + $0x8] sm:$0xff]
      %v3645 = vld [vmem:[%s18 + $0x10] sm:$0xff]
      %v3646 = vld [vmem:[%s18 + $0x18] sm:$0xff]
      %3648 = vset.pattern.permute.xlu0 0
      %3649 = vperm.xlu0 %3648, %v3643
      %v3650 = vpop.permute.xlu0 %3649
      %3653 = vset.pattern.permute.xlu0 0
      %3654 = vperm.xlu0 %3653, %v3644
      %v3655 = vpop.permute.xlu0 %3654
      %3658 = vset.pattern.permute.xlu0 0
      %3659 = vperm.xlu0 %3658, %v3645
      %v3660 = vpop.permute.xlu0 %3659
      %3663 = vset.pattern.permute.xlu0 0
      %3664 = vperm.xlu0 %3663, %v3646
      %v3665 = vpop.permute.xlu0 %3664
      %v3671 = vunpack.c.l.b16 %v3635
      %v3672 = vunpack.c.l.b16 %v3636
      %v3673 = vunpack.c.l.b16 %v3637
      %v3674 = vunpack.c.l.b16 %v3638
      %v3675 = vpack.c.b16 %v3672, %v3671
      %v3676 = vpack.c.b16 %v3674, %v3673
      %v3678 = vsel %vm1279, %v3675, 0
      %v3681 = vsel %vm1279, %v3676, 0
      %3683 = vmatpush.bf16.msra.mxu0 0
      %3684 = vmatpush.bf16.msra.mxu0 0
      %3685 = vmatpush.bf16.msra.mxu0 0
      %3686 = vmatpush.bf16.msra.mxu0 0
      %3687 = vmatpush.bf16.msra.mxu0 0
      %3688 = vmatpush.bf16.msra.mxu0 0
      %3689 = vmatpush.bf16.msra.mxu0 %v3641
      %3690 = vmatpush.bf16.msra.mxu0 %v3639
      %3691 = vmatmul.bf16.gmra.mxu0 %v3678
      %v3692 = vpop.f32.mrf.mxu0
      %v3693 = vadd.f32 %v3650, %v3692
      %v3694 = vpop.f32.mrf.mxu0
      %v3695 = vadd.f32 %v3655, %v3694
      %3696 = vmatmul.bf16.gmra.mxu0 %v3681
      %v3697 = vpop.f32.mrf.mxu0
      %v3698 = vadd.f32 %v3660, %v3697
      %v3699 = vpop.f32.mrf.mxu0
      %v3700 = vadd.f32 %v3665, %v3699
      %3701 = vdwg.mxu0
      %3702 = vmatpush.bf16.msra.mxu0 0
      %3703 = vmatpush.bf16.msra.mxu0 0
      %3704 = vmatpush.bf16.msra.mxu0 0
      %3705 = vmatpush.bf16.msra.mxu0 0
      %3706 = vmatpush.bf16.msra.mxu0 0
      %3707 = vmatpush.bf16.msra.mxu0 0
      %3708 = vmatpush.bf16.msra.mxu0 %v3642
      %3709 = vmatpush.bf16.msra.mxu0 %v3640
      %3710 = vmatmul.bf16.gmra.mxu0 %v3678
      %v3711 = vpop.f32.mrf.mxu0
      %v3712 = vadd.f32 %v3650, %v3711
      %v3713 = vpop.f32.mrf.mxu0
      %v3714 = vadd.f32 %v3655, %v3713
      %3715 = vmatmul.bf16.gmra.mxu0 %v3681
      %v3716 = vpop.f32.mrf.mxu0
      %v3717 = vadd.f32 %v3660, %v3716
      %v3718 = vpop.f32.mrf.mxu0
      %v3719 = vadd.f32 %v3665, %v3718
      %3720 = vdwg.mxu0
      %v3721 = vadd.f32 %v3693, %v2557
      %v3722 = vadd.f32 %v3712, %v2558
      %v3723 = vadd.f32 %v3695, %v2559
      %v3724 = vadd.f32 %v3714, %v2560
      %v3725 = vadd.f32 %v3698, %v2561
      %v3726 = vadd.f32 %v3717, %v2562
      %v3727 = vadd.f32 %v3700, %v2563
      %v3728 = vadd.f32 %v3719, %v2564
      %v3729 = vld [vmem:[%s19] sm:$0xff]
      %v3730 = vld [vmem:[%s19 + $0x8] sm:$0xff]
      %v3731 = vld [vmem:[%s19 + $0x10] sm:$0xff]
      %v3732 = vld [vmem:[%s19 + $0x18] sm:$0xff]
      %v3733 = vld [vmem:[%s20] sm:$0xff]
      %v3734 = vld [vmem:[%s20 + $0x8] sm:$0xff]
      %v3735 = vld [vmem:[%s20 + $0x10] sm:$0xff]
      %v3736 = vld [vmem:[%s20 + $0x18] sm:$0xff]
      %v3737 = vadd.f32 %v3721, %v3723
      %v3738 = vadd.f32 %v3737, %v3725
      %v3739 = vadd.f32 %v3738, %v3727
      %v3740 = vrot.slane %v3739, 4
      %v3741 = vadd.f32 %v3739, %v3740
      %v3742 = vrot.slane %v3741, 2
      %v3743 = vadd.f32 %v3741, %v3742
      %v3744 = vrot.slane %v3743, 1
      %v3745 = vadd.f32 %v3743, %v3744
      %v3746 = vadd.f32 %v3722, %v3724
      %v3747 = vadd.f32 %v3746, %v3726
      %v3748 = vadd.f32 %v3747, %v3728
      %v3749 = vrot.slane %v3748, 4
      %v3750 = vadd.f32 %v3748, %v3749
      %v3751 = vrot.slane %v3750, 2
      %v3752 = vadd.f32 %v3750, %v3751
      %v3753 = vrot.slane %v3752, 1
      %v3754 = vadd.f32 %v3752, %v3753
      %v3755 = vmul.f32 %v3745, %v1448
      %v3756 = vmul.f32 %v3754, %v1448
      %v3757 = vsub.f32 %v3721, %v3755
      %v3758 = vsub.f32 %v3722, %v3756
      %v3759 = vsub.f32 %v3723, %v3755
      %v3760 = vsub.f32 %v3724, %v3756
      %v3761 = vsub.f32 %v3725, %v3755
      %v3762 = vsub.f32 %v3726, %v3756
      %v3763 = vsub.f32 %v3727, %v3755
      %v3764 = vsub.f32 %v3728, %v3756
      %v3765 = vmul.f32 %v3757, %v3757
      %v3766 = vmul.f32 %v3758, %v3758
      %v3767 = vmul.f32 %v3759, %v3759
      %v3768 = vmul.f32 %v3760, %v3760
      %v3769 = vmul.f32 %v3761, %v3761
      %v3770 = vmul.f32 %v3762, %v3762
      %v3771 = vmul.f32 %v3763, %v3763
      %v3772 = vmul.f32 %v3764, %v3764
      %v3773 = vadd.f32 %v3765, %v3767
      %v3774 = vadd.f32 %v3773, %v3769
      %v3775 = vadd.f32 %v3774, %v3771
      %v3776 = vrot.slane %v3775, 4
      %v3777 = vadd.f32 %v3775, %v3776
      %v3778 = vrot.slane %v3777, 2
      %v3779 = vadd.f32 %v3777, %v3778
      %v3780 = vrot.slane %v3779, 1
      %v3781 = vadd.f32 %v3779, %v3780
      %v3782 = vadd.f32 %v3766, %v3768
      %v3783 = vadd.f32 %v3782, %v3770
      %v3784 = vadd.f32 %v3783, %v3772
      %v3785 = vrot.slane %v3784, 4
      %v3786 = vadd.f32 %v3784, %v3785
      %v3787 = vrot.slane %v3786, 2
      %v3788 = vadd.f32 %v3786, %v3787
      %v3789 = vrot.slane %v3788, 1
      %v3790 = vadd.f32 %v3788, %v3789
      %v3791 = vmul.f32 %v3781, %v1448
      %v3792 = vmul.f32 %v3790, %v1448
      %v3793 = vadd.f32 %v3791, 1e-05
      %v3794 = vadd.f32 %v3792, 1e-05
      %v3795 = vrsqrt.pop %v3793
      %v3796 = vmul.f32 %v3795, %v3793
      %v3797 = vmul.f32 %v3796, %v3795
      %v3798 = vmul.f32 0.5, %v3797
      %v3799 = vsub.f32 1.5, %v3798
      %v3800 = vmul.f32 %v3795, %v3799
      %vm3801 = vweird.f32 %v3793
      %vm3802 = vweird.f32 %v3795
      %vm3803 = vmor %vm3801, %vm3802
      %v3804 = vsel %vm3803, %v3795, %v3800
      %v3805 = vrsqrt.pop %v3794
      %v3806 = vmul.f32 %v3805, %v3794
      %v3807 = vmul.f32 %v3806, %v3805
      %v3808 = vmul.f32 0.5, %v3807
      %v3809 = vsub.f32 1.5, %v3808
      %v3810 = vmul.f32 %v3805, %v3809
      %vm3811 = vweird.f32 %v3794
      %vm3812 = vweird.f32 %v3805
      %vm3813 = vmor %vm3811, %vm3812
      %v3814 = vsel %vm3813, %v3805, %v3810
      %v3815 = vmul.f32 %v3757, %v3804
      %v3816 = vmul.f32 %v3758, %v3814
      %v3817 = vmul.f32 %v3759, %v3804
      %v3818 = vmul.f32 %v3760, %v3814
      %v3819 = vmul.f32 %v3761, %v3804
      %v3820 = vmul.f32 %v3762, %v3814
      %v3821 = vmul.f32 %v3763, %v3804
      %v3822 = vmul.f32 %v3764, %v3814
      %3824 = vset.pattern.permute.xlu0 0
      %3825 = vperm.xlu0 %3824, %v3729
      %v3826 = vpop.permute.xlu0 %3825
      %3829 = vset.pattern.permute.xlu0 0
      %3830 = vperm.xlu0 %3829, %v3730
      %v3831 = vpop.permute.xlu0 %3830
      %3834 = vset.pattern.permute.xlu0 0
      %3835 = vperm.xlu0 %3834, %v3731
      %v3836 = vpop.permute.xlu0 %3835
      %3839 = vset.pattern.permute.xlu0 0
      %3840 = vperm.xlu0 %3839, %v3732
      %v3841 = vpop.permute.xlu0 %3840
      %v3843 = vmul.f32 %v3815, %v3826
      %v3844 = vmul.f32 %v3816, %v3826
      %v3845 = vmul.f32 %v3817, %v3831
      %v3846 = vmul.f32 %v3818, %v3831
      %v3847 = vmul.f32 %v3819, %v3836
      %v3848 = vmul.f32 %v3820, %v3836
      %v3849 = vmul.f32 %v3821, %v3841
      %v3850 = vmul.f32 %v3822, %v3841
      %3852 = vset.pattern.permute.xlu0 0
      %3853 = vperm.xlu0 %3852, %v3733
      %v3854 = vpop.permute.xlu0 %3853
      %3857 = vset.pattern.permute.xlu0 0
      %3858 = vperm.xlu0 %3857, %v3734
      %v3859 = vpop.permute.xlu0 %3858
      %3862 = vset.pattern.permute.xlu0 0
      %3863 = vperm.xlu0 %3862, %v3735
      %v3864 = vpop.permute.xlu0 %3863
      %3867 = vset.pattern.permute.xlu0 0
      %3868 = vperm.xlu0 %3867, %v3736
      %v3869 = vpop.permute.xlu0 %3868
      %v3871 = vadd.f32 %v3843, %v3854
      %v3872 = vadd.f32 %v3844, %v3854
      %v3873 = vadd.f32 %v3845, %v3859
      %v3874 = vadd.f32 %v3846, %v3859
      %v3875 = vadd.f32 %v3847, %v3864
      %v3876 = vadd.f32 %v3848, %v3864
      %v3877 = vadd.f32 %v3849, %v3869
      %v3878 = vadd.f32 %v3850, %v3869
      %v3879 = vld [vmem:[%s21] sm:$0xf]
      %v3880 = vld [vmem:[%s21 + $0x4] sm:$0xf]
      %v3881 = vld [vmem:[%s21 + $0x8] sm:$0xf]
      %v3882 = vld [vmem:[%s21 + $0xc] sm:$0xf]
      %v3883 = vld [vmem:[%s21 + $0x10] sm:$0xf]
      %v3884 = vld [vmem:[%s21 + $0x14] sm:$0xf]
      %v3885 = vld [vmem:[%s21 + $0x18] sm:$0xf]
      %v3886 = vld [vmem:[%s21 + $0x1c] sm:$0xf]
      %v3887 = vld [vmem:[%s21 + $0x20] sm:$0xf]
      %v3888 = vld [vmem:[%s21 + $0x24] sm:$0xf]
      %v3889 = vld [vmem:[%s21 + $0x28] sm:$0xf]
      %v3890 = vld [vmem:[%s21 + $0x2c] sm:$0xf]
      %v3891 = vld [vmem:[%s21 + $0x30] sm:$0xf]
      %v3892 = vld [vmem:[%s21 + $0x34] sm:$0xf]
      %v3893 = vld [vmem:[%s21 + $0x38] sm:$0xf]
      %v3894 = vld [vmem:[%s21 + $0x3c] sm:$0xf]
      %v3895 = vld [vmem:[%s21 + $0x40] sm:$0xf]
      %v3896 = vld [vmem:[%s21 + $0x44] sm:$0xf]
      %v3897 = vld [vmem:[%s21 + $0x48] sm:$0xf]
      %v3898 = vld [vmem:[%s21 + $0x4c] sm:$0xf]
      %v3899 = vld [vmem:[%s21 + $0x50] sm:$0xf]
      %v3900 = vld [vmem:[%s21 + $0x54] sm:$0xf]
      %v3901 = vld [vmem:[%s21 + $0x58] sm:$0xf]
      %v3902 = vld [vmem:[%s21 + $0x5c] sm:$0xf]
      %v3903 = vld [vmem:[%s21 + $0x60] sm:$0xf]
      %v3904 = vld [vmem:[%s21 + $0x64] sm:$0xf]
      %v3905 = vld [vmem:[%s21 + $0x68] sm:$0xf]
      %v3906 = vld [vmem:[%s21 + $0x6c] sm:$0xf]
      %v3907 = vld [vmem:[%s21 + $0x70] sm:$0xf]
      %v3908 = vld [vmem:[%s21 + $0x74] sm:$0xf]
      %v3909 = vld [vmem:[%s21 + $0x78] sm:$0xf]
      %v3910 = vld [vmem:[%s21 + $0x7c] sm:$0xf]
      %v3911 = vpack.c.bf16 %v3873, %v3871
      %v3912 = vpack.c.bf16 %v3874, %v3872
      %v3913 = vpack.c.bf16 %v3877, %v3875
      %v3914 = vpack.c.bf16 %v3878, %v3876
      %v3915 = vld [vmem:[%s22] sm:$0xff]
      %v3916 = vld [vmem:[%s22 + $0x8] sm:$0xff]
      %v3917 = vld [vmem:[%s22 + $0x10] sm:$0xff]
      %v3918 = vld [vmem:[%s22 + $0x18] sm:$0xff]
      %v3919 = vld [vmem:[%s22 + $0x20] sm:$0xff]
      %v3920 = vld [vmem:[%s22 + $0x28] sm:$0xff]
      %v3921 = vld [vmem:[%s22 + $0x30] sm:$0xff]
      %v3922 = vld [vmem:[%s22 + $0x38] sm:$0xff]
      %v3923 = vld [vmem:[%s22 + $0x40] sm:$0xff]
      %v3924 = vld [vmem:[%s22 + $0x48] sm:$0xff]
      %v3925 = vld [vmem:[%s22 + $0x50] sm:$0xff]
      %v3926 = vld [vmem:[%s22 + $0x58] sm:$0xff]
      %v3927 = vld [vmem:[%s22 + $0x60] sm:$0xff]
      %v3928 = vld [vmem:[%s22 + $0x68] sm:$0xff]
      %v3929 = vld [vmem:[%s22 + $0x70] sm:$0xff]
      %v3930 = vld [vmem:[%s22 + $0x78] sm:$0xff]
      %v3931 = vld [vmem:[%s22 + $0x80] sm:$0xff]
      %v3932 = vld [vmem:[%s22 + $0x88] sm:$0xff]
      %v3933 = vld [vmem:[%s22 + $0x90] sm:$0xff]
      %v3934 = vld [vmem:[%s22 + $0x98] sm:$0xff]
      %v3935 = vld [vmem:[%s22 + $0xa0] sm:$0xff]
      %v3936 = vld [vmem:[%s22 + $0xa8] sm:$0xff]
      %v3937 = vld [vmem:[%s22 + $0xb0] sm:$0xff]
      %v3938 = vld [vmem:[%s22 + $0xb8] sm:$0xff]
      %v3939 = vld [vmem:[%s22 + $0xc0] sm:$0xff]
      %v3940 = vld [vmem:[%s22 + $0xc8] sm:$0xff]
      %v3941 = vld [vmem:[%s22 + $0xd0] sm:$0xff]
      %v3942 = vld [vmem:[%s22 + $0xd8] sm:$0xff]
      %v3943 = vld [vmem:[%s22 + $0xe0] sm:$0xff]
      %v3944 = vld [vmem:[%s22 + $0xe8] sm:$0xff]
      %v3945 = vld [vmem:[%s22 + $0xf0] sm:$0xff]
      %v3946 = vld [vmem:[%s22 + $0xf8] sm:$0xff]
      %3948 = vset.pattern.permute.xlu0 0
      %3949 = vperm.xlu0 %3948, %v3915
      %v3950 = vpop.permute.xlu0 %3949
      %3953 = vset.pattern.permute.xlu0 0
      %3954 = vperm.xlu0 %3953, %v3916
      %v3955 = vpop.permute.xlu0 %3954
      %3958 = vset.pattern.permute.xlu0 0
      %3959 = vperm.xlu0 %3958, %v3917
      %v3960 = vpop.permute.xlu0 %3959
      %3963 = vset.pattern.permute.xlu0 0
      %3964 = vperm.xlu0 %3963, %v3918
      %v3965 = vpop.permute.xlu0 %3964
      %3968 = vset.pattern.permute.xlu0 0
      %3969 = vperm.xlu0 %3968, %v3919
      %v3970 = vpop.permute.xlu0 %3969
      %3973 = vset.pattern.permute.xlu0 0
      %3974 = vperm.xlu0 %3973, %v3920
      %v3975 = vpop.permute.xlu0 %3974
      %3978 = vset.pattern.permute.xlu0 0
      %3979 = vperm.xlu0 %3978, %v3921
      %v3980 = vpop.permute.xlu0 %3979
      %3983 = vset.pattern.permute.xlu0 0
      %3984 = vperm.xlu0 %3983, %v3922
      %v3985 = vpop.permute.xlu0 %3984
      %3988 = vset.pattern.permute.xlu0 0
      %3989 = vperm.xlu0 %3988, %v3923
      %v3990 = vpop.permute.xlu0 %3989
      %3993 = vset.pattern.permute.xlu0 0
      %3994 = vperm.xlu0 %3993, %v3924
      %v3995 = vpop.permute.xlu0 %3994
      %3998 = vset.pattern.permute.xlu0 0
      %3999 = vperm.xlu0 %3998, %v3925
      %v4000 = vpop.permute.xlu0 %3999
      %4003 = vset.pattern.permute.xlu0 0
      %4004 = vperm.xlu0 %4003, %v3926
      %v4005 = vpop.permute.xlu0 %4004
      %4008 = vset.pattern.permute.xlu0 0
      %4009 = vperm.xlu0 %4008, %v3927
      %v4010 = vpop.permute.xlu0 %4009
      %4013 = vset.pattern.permute.xlu0 0
      %4014 = vperm.xlu0 %4013, %v3928
      %v4015 = vpop.permute.xlu0 %4014
      %4018 = vset.pattern.permute.xlu0 0
      %4019 = vperm.xlu0 %4018, %v3929
      %v4020 = vpop.permute.xlu0 %4019
      %4023 = vset.pattern.permute.xlu0 0
      %4024 = vperm.xlu0 %4023, %v3930
      %v4025 = vpop.permute.xlu0 %4024
      %4028 = vset.pattern.permute.xlu0 0
      %4029 = vperm.xlu0 %4028, %v3931
      %v4030 = vpop.permute.xlu0 %4029
      %4033 = vset.pattern.permute.xlu0 0
      %4034 = vperm.xlu0 %4033, %v3932
      %v4035 = vpop.permute.xlu0 %4034
      %4038 = vset.pattern.permute.xlu0 0
      %4039 = vperm.xlu0 %4038, %v3933
      %v4040 = vpop.permute.xlu0 %4039
      %4043 = vset.pattern.permute.xlu0 0
      %4044 = vperm.xlu0 %4043, %v3934
      %v4045 = vpop.permute.xlu0 %4044
      %4048 = vset.pattern.permute.xlu0 0
      %4049 = vperm.xlu0 %4048, %v3935
      %v4050 = vpop.permute.xlu0 %4049
      %4053 = vset.pattern.permute.xlu0 0
      %4054 = vperm.xlu0 %4053, %v3936
      %v4055 = vpop.permute.xlu0 %4054
      %4058 = vset.pattern.permute.xlu0 0
      %4059 = vperm.xlu0 %4058, %v3937
      %v4060 = vpop.permute.xlu0 %4059
      %4063 = vset.pattern.permute.xlu0 0
      %4064 = vperm.xlu0 %4063, %v3938
      %v4065 = vpop.permute.xlu0 %4064
      %4068 = vset.pattern.permute.xlu0 0
      %4069 = vperm.xlu0 %4068, %v3939
      %v4070 = vpop.permute.xlu0 %4069
      %4073 = vset.pattern.permute.xlu0 0
      %4074 = vperm.xlu0 %4073, %v3940
      %v4075 = vpop.permute.xlu0 %4074
      %4078 = vset.pattern.permute.xlu0 0
      %4079 = vperm.xlu0 %4078, %v3941
      %v4080 = vpop.permute.xlu0 %4079
      %4083 = vset.pattern.permute.xlu0 0
      %4084 = vperm.xlu0 %4083, %v3942
      %v4085 = vpop.permute.xlu0 %4084
      %4088 = vset.pattern.permute.xlu0 0
      %4089 = vperm.xlu0 %4088, %v3943
      %v4090 = vpop.permute.xlu0 %4089
      %4093 = vset.pattern.permute.xlu0 0
      %4094 = vperm.xlu0 %4093, %v3944
      %v4095 = vpop.permute.xlu0 %4094
      %4098 = vset.pattern.permute.xlu0 0
      %4099 = vperm.xlu0 %4098, %v3945
      %v4100 = vpop.permute.xlu0 %4099
      %4103 = vset.pattern.permute.xlu0 0
      %4104 = vperm.xlu0 %4103, %v3946
      %v4105 = vpop.permute.xlu0 %4104
      %v4139 = vunpack.c.l.b16 %v3879
      %v4140 = vunpack.c.l.b16 %v3880
      %v4141 = vunpack.c.l.b16 %v3881
      %v4142 = vunpack.c.l.b16 %v3882
      %v4143 = vunpack.c.l.b16 %v3883
      %v4144 = vunpack.c.l.b16 %v3884
      %v4145 = vunpack.c.l.b16 %v3885
      %v4146 = vunpack.c.l.b16 %v3886
      %v4147 = vunpack.c.l.b16 %v3887
      %v4148 = vunpack.c.l.b16 %v3888
      %v4149 = vunpack.c.l.b16 %v3889
      %v4150 = vunpack.c.l.b16 %v3890
      %v4151 = vunpack.c.l.b16 %v3891
      %v4152 = vunpack.c.l.b16 %v3892
      %v4153 = vunpack.c.l.b16 %v3893
      %v4154 = vunpack.c.l.b16 %v3894
      %v4155 = vunpack.c.l.b16 %v3895
      %v4156 = vunpack.c.l.b16 %v3896
      %v4157 = vunpack.c.l.b16 %v3897
      %v4158 = vunpack.c.l.b16 %v3898
      %v4159 = vunpack.c.l.b16 %v3899
      %v4160 = vunpack.c.l.b16 %v3900
      %v4161 = vunpack.c.l.b16 %v3901
      %v4162 = vunpack.c.l.b16 %v3902
      %v4163 = vunpack.c.l.b16 %v3903
      %v4164 = vunpack.c.l.b16 %v3904
      %v4165 = vunpack.c.l.b16 %v3905
      %v4166 = vunpack.c.l.b16 %v3906
      %v4167 = vunpack.c.l.b16 %v3907
      %v4168 = vunpack.c.l.b16 %v3908
      %v4169 = vunpack.c.l.b16 %v3909
      %v4170 = vunpack.c.l.b16 %v3910
      %v4171 = vpack.c.b16 %v4140, %v4139
      %v4172 = vpack.c.b16 %v4142, %v4141
      %v4173 = vpack.c.b16 %v4144, %v4143
      %v4174 = vpack.c.b16 %v4146, %v4145
      %v4175 = vpack.c.b16 %v4148, %v4147
      %v4176 = vpack.c.b16 %v4150, %v4149
      %v4177 = vpack.c.b16 %v4152, %v4151
      %v4178 = vpack.c.b16 %v4154, %v4153
      %v4179 = vpack.c.b16 %v4156, %v4155
      %v4180 = vpack.c.b16 %v4158, %v4157
      %v4181 = vpack.c.b16 %v4160, %v4159
      %v4182 = vpack.c.b16 %v4162, %v4161
      %v4183 = vpack.c.b16 %v4164, %v4163
      %v4184 = vpack.c.b16 %v4166, %v4165
      %v4185 = vpack.c.b16 %v4168, %v4167
      %v4186 = vpack.c.b16 %v4170, %v4169
      %v4188 = vsel %vm1279, %v4171, 0
      %v4191 = vsel %vm1279, %v4172, 0
      %v4194 = vsel %vm1279, %v4173, 0
      %v4197 = vsel %vm1279, %v4174, 0
      %v4200 = vsel %vm1279, %v4175, 0
      %v4203 = vsel %vm1279, %v4176, 0
      %v4206 = vsel %vm1279, %v4177, 0
      %v4209 = vsel %vm1279, %v4178, 0
      %v4212 = vsel %vm1279, %v4179, 0
      %v4215 = vsel %vm1279, %v4180, 0
      %v4218 = vsel %vm1279, %v4181, 0
      %v4221 = vsel %vm1279, %v4182, 0
      %v4224 = vsel %vm1279, %v4183, 0
      %v4227 = vsel %vm1279, %v4184, 0
      %v4230 = vsel %vm1279, %v4185, 0
      %v4233 = vsel %vm1279, %v4186, 0
      %4235 = vmatpush.bf16.msra.mxu0 0
      %4236 = vmatpush.bf16.msra.mxu0 0
      %4237 = vmatpush.bf16.msra.mxu0 0
      %4238 = vmatpush.bf16.msra.mxu0 0
      %4239 = vmatpush.bf16.msra.mxu0 0
      %4240 = vmatpush.bf16.msra.mxu0 0
      %4241 = vmatpush.bf16.msra.mxu0 %v3913
      %4242 = vmatpush.bf16.msra.mxu0 %v3911
      %4243 = vmatmul.bf16.gmra.mxu0 %v4188
      %v4244 = vpop.f32.mrf.mxu0
      %v4245 = vadd.f32 %v3950, %v4244
      %v4246 = vpop.f32.mrf.mxu0
      %v4247 = vadd.f32 %v3955, %v4246
      %4248 = vmatmul.bf16.gmra.mxu0 %v4191
      %v4249 = vpop.f32.mrf.mxu0
      %v4250 = vadd.f32 %v3960, %v4249
      %v4251 = vpop.f32.mrf.mxu0
      %v4252 = vadd.f32 %v3965, %v4251
      %4253 = vmatmul.bf16.gmra.mxu0 %v4194
      %v4254 = vpop.f32.mrf.mxu0
      %v4255 = vadd.f32 %v3970, %v4254
      %v4256 = vpop.f32.mrf.mxu0
      %v4257 = vadd.f32 %v3975, %v4256
      %4258 = vmatmul.bf16.gmra.mxu0 %v4197
      %v4259 = vpop.f32.mrf.mxu0
      %v4260 = vadd.f32 %v3980, %v4259
      %v4261 = vpop.f32.mrf.mxu0
      %v4262 = vadd.f32 %v3985, %v4261
      %4263 = vmatmul.bf16.gmra.mxu0 %v4200
      %v4264 = vpop.f32.mrf.mxu0
      %v4265 = vadd.f32 %v3990, %v4264
      %v4266 = vpop.f32.mrf.mxu0
      %v4267 = vadd.f32 %v3995, %v4266
      %4268 = vmatmul.bf16.gmra.mxu0 %v4203
      %v4269 = vpop.f32.mrf.mxu0
      %v4270 = vadd.f32 %v4000, %v4269
      %v4271 = vpop.f32.mrf.mxu0
      %v4272 = vadd.f32 %v4005, %v4271
      %4273 = vmatmul.bf16.gmra.mxu0 %v4206
      %v4274 = vpop.f32.mrf.mxu0
      %v4275 = vadd.f32 %v4010, %v4274
      %v4276 = vpop.f32.mrf.mxu0
      %v4277 = vadd.f32 %v4015, %v4276
      %4278 = vmatmul.bf16.gmra.mxu0 %v4209
      %v4279 = vpop.f32.mrf.mxu0
      %v4280 = vadd.f32 %v4020, %v4279
      %v4281 = vpop.f32.mrf.mxu0
      %v4282 = vadd.f32 %v4025, %v4281
      %4283 = vmatmul.bf16.gmra.mxu0 %v4212
      %v4284 = vpop.f32.mrf.mxu0
      %v4285 = vadd.f32 %v4030, %v4284
      %v4286 = vpop.f32.mrf.mxu0
      %v4287 = vadd.f32 %v4035, %v4286
      %4288 = vmatmul.bf16.gmra.mxu0 %v4215
      %v4289 = vpop.f32.mrf.mxu0
      %v4290 = vadd.f32 %v4040, %v4289
      %v4291 = vpop.f32.mrf.mxu0
      %v4292 = vadd.f32 %v4045, %v4291
      %4293 = vmatmul.bf16.gmra.mxu0 %v4218
      %v4294 = vpop.f32.mrf.mxu0
      %v4295 = vadd.f32 %v4050, %v4294
      %v4296 = vpop.f32.mrf.mxu0
      %v4297 = vadd.f32 %v4055, %v4296
      %4298 = vmatmul.bf16.gmra.mxu0 %v4221
      %v4299 = vpop.f32.mrf.mxu0
      %v4300 = vadd.f32 %v4060, %v4299
      %v4301 = vpop.f32.mrf.mxu0
      %v4302 = vadd.f32 %v4065, %v4301
      %4303 = vmatmul.bf16.gmra.mxu0 %v4224
      %v4304 = vpop.f32.mrf.mxu0
      %v4305 = vadd.f32 %v4070, %v4304
      %v4306 = vpop.f32.mrf.mxu0
      %v4307 = vadd.f32 %v4075, %v4306
      %4308 = vmatmul.bf16.gmra.mxu0 %v4227
      %v4309 = vpop.f32.mrf.mxu0
      %v4310 = vadd.f32 %v4080, %v4309
      %v4311 = vpop.f32.mrf.mxu0
      %v4312 = vadd.f32 %v4085, %v4311
      %4313 = vmatmul.bf16.gmra.mxu0 %v4230
      %v4314 = vpop.f32.mrf.mxu0
      %v4315 = vadd.f32 %v4090, %v4314
      %v4316 = vpop.f32.mrf.mxu0
      %v4317 = vadd.f32 %v4095, %v4316
      %4318 = vmatmul.bf16.gmra.mxu0 %v4233
      %v4319 = vpop.f32.mrf.mxu0
      %v4320 = vadd.f32 %v4100, %v4319
      %v4321 = vpop.f32.mrf.mxu0
      %v4322 = vadd.f32 %v4105, %v4321
      %4323 = vdwg.mxu0
      %4324 = vmatpush.bf16.msra.mxu0 0
      %4325 = vmatpush.bf16.msra.mxu0 0
      %4326 = vmatpush.bf16.msra.mxu0 0
      %4327 = vmatpush.bf16.msra.mxu0 0
      %4328 = vmatpush.bf16.msra.mxu0 0
      %4329 = vmatpush.bf16.msra.mxu0 0
      %4330 = vmatpush.bf16.msra.mxu0 %v3914
      %4331 = vmatpush.bf16.msra.mxu0 %v3912
      %4332 = vmatmul.bf16.gmra.mxu0 %v4188
      %v4333 = vpop.f32.mrf.mxu0
      %v4334 = vadd.f32 %v3950, %v4333
      %v4335 = vpop.f32.mrf.mxu0
      %v4336 = vadd.f32 %v3955, %v4335
      %4337 = vmatmul.bf16.gmra.mxu0 %v4191
      %v4338 = vpop.f32.mrf.mxu0
      %v4339 = vadd.f32 %v3960, %v4338
      %v4340 = vpop.f32.mrf.mxu0
      %v4341 = vadd.f32 %v3965, %v4340
      %4342 = vmatmul.bf16.gmra.mxu0 %v4194
      %v4343 = vpop.f32.mrf.mxu0
      %v4344 = vadd.f32 %v3970, %v4343
      %v4345 = vpop.f32.mrf.mxu0
      %v4346 = vadd.f32 %v3975, %v4345
      %4347 = vmatmul.bf16.gmra.mxu0 %v4197
      %v4348 = vpop.f32.mrf.mxu0
      %v4349 = vadd.f32 %v3980, %v4348
      %v4350 = vpop.f32.mrf.mxu0
      %v4351 = vadd.f32 %v3985, %v4350
      %4352 = vmatmul.bf16.gmra.mxu0 %v4200
      %v4353 = vpop.f32.mrf.mxu0
      %v4354 = vadd.f32 %v3990, %v4353
      %v4355 = vpop.f32.mrf.mxu0
      %v4356 = vadd.f32 %v3995, %v4355
      %4357 = vmatmul.bf16.gmra.mxu0 %v4203
      %v4358 = vpop.f32.mrf.mxu0
      %v4359 = vadd.f32 %v4000, %v4358
      %v4360 = vpop.f32.mrf.mxu0
      %v4361 = vadd.f32 %v4005, %v4360
      %4362 = vmatmul.bf16.gmra.mxu0 %v4206
      %v4363 = vpop.f32.mrf.mxu0
      %v4364 = vadd.f32 %v4010, %v4363
      %v4365 = vpop.f32.mrf.mxu0
      %v4366 = vadd.f32 %v4015, %v4365
      %4367 = vmatmul.bf16.gmra.mxu0 %v4209
      %v4368 = vpop.f32.mrf.mxu0
      %v4369 = vadd.f32 %v4020, %v4368
      %v4370 = vpop.f32.mrf.mxu0
      %v4371 = vadd.f32 %v4025, %v4370
      %4372 = vmatmul.bf16.gmra.mxu0 %v4212
      %v4373 = vpop.f32.mrf.mxu0
      %v4374 = vadd.f32 %v4030, %v4373
      %v4375 = vpop.f32.mrf.mxu0
      %v4376 = vadd.f32 %v4035, %v4375
      %4377 = vmatmul.bf16.gmra.mxu0 %v4215
      %v4378 = vpop.f32.mrf.mxu0
      %v4379 = vadd.f32 %v4040, %v4378
      %v4380 = vpop.f32.mrf.mxu0
      %v4381 = vadd.f32 %v4045, %v4380
      %4382 = vmatmul.bf16.gmra.mxu0 %v4218
      %v4383 = vpop.f32.mrf.mxu0
      %v4384 = vadd.f32 %v4050, %v4383
      %v4385 = vpop.f32.mrf.mxu0
      %v4386 = vadd.f32 %v4055, %v4385
      %4387 = vmatmul.bf16.gmra.mxu0 %v4221
      %v4388 = vpop.f32.mrf.mxu0
      %v4389 = vadd.f32 %v4060, %v4388
      %v4390 = vpop.f32.mrf.mxu0
      %v4391 = vadd.f32 %v4065, %v4390
      %4392 = vmatmul.bf16.gmra.mxu0 %v4224
      %v4393 = vpop.f32.mrf.mxu0
      %v4394 = vadd.f32 %v4070, %v4393
      %v4395 = vpop.f32.mrf.mxu0
      %v4396 = vadd.f32 %v4075, %v4395
      %4397 = vmatmul.bf16.gmra.mxu0 %v4227
      %v4398 = vpop.f32.mrf.mxu0
      %v4399 = vadd.f32 %v4080, %v4398
      %v4400 = vpop.f32.mrf.mxu0
      %v4401 = vadd.f32 %v4085, %v4400
      %4402 = vmatmul.bf16.gmra.mxu0 %v4230
      %v4403 = vpop.f32.mrf.mxu0
      %v4404 = vadd.f32 %v4090, %v4403
      %v4405 = vpop.f32.mrf.mxu0
      %v4406 = vadd.f32 %v4095, %v4405
      %4407 = vmatmul.bf16.gmra.mxu0 %v4233
      %v4408 = vpop.f32.mrf.mxu0
      %v4409 = vadd.f32 %v4100, %v4408
      %v4410 = vpop.f32.mrf.mxu0
      %v4411 = vadd.f32 %v4105, %v4410
      %4412 = vdwg.mxu0
      %v4413 = vmul.f32 %v4285, 0.5
      %v4414 = vmul.f32 %v4374, 0.5
      %v4415 = vmul.f32 %v4287, 0.5
      %v4416 = vmul.f32 %v4376, 0.5
      %v4417 = vmul.f32 %v4290, 0.5
      %v4418 = vmul.f32 %v4379, 0.5
      %v4419 = vmul.f32 %v4292, 0.5
      %v4420 = vmul.f32 %v4381, 0.5
      %v4421 = vmul.f32 %v4295, 0.5
      %v4422 = vmul.f32 %v4384, 0.5
      %v4423 = vmul.f32 %v4297, 0.5
      %v4424 = vmul.f32 %v4386, 0.5
      %v4425 = vmul.f32 %v4300, 0.5
      %v4426 = vmul.f32 %v4389, 0.5
      %v4427 = vmul.f32 %v4302, 0.5
      %v4428 = vmul.f32 %v4391, 0.5
      %v4429 = vmul.f32 %v4305, 0.5
      %v4430 = vmul.f32 %v4394, 0.5
      %v4431 = vmul.f32 %v4307, 0.5
      %v4432 = vmul.f32 %v4396, 0.5
      %v4433 = vmul.f32 %v4310, 0.5
      %v4434 = vmul.f32 %v4399, 0.5
      %v4435 = vmul.f32 %v4312, 0.5
      %v4436 = vmul.f32 %v4401, 0.5
      %v4437 = vmul.f32 %v4315, 0.5
      %v4438 = vmul.f32 %v4404, 0.5
      %v4439 = vmul.f32 %v4317, 0.5
      %v4440 = vmul.f32 %v4406, 0.5
      %v4441 = vmul.f32 %v4320, 0.5
      %v4442 = vmul.f32 %v4409, 0.5
      %v4443 = vmul.f32 %v4322, 0.5
      %v4444 = vmul.f32 %v4411, 0.5
      %v4445 = vmul.f32 %v4285, 0.70710677
      %v4446 = vmul.f32 %v4374, 0.70710677
      %v4447 = vmul.f32 %v4287, 0.70710677
      %v4448 = vmul.f32 %v4376, 0.70710677
      %v4449 = vmul.f32 %v4290, 0.70710677
      %v4450 = vmul.f32 %v4379, 0.70710677
      %v4451 = vmul.f32 %v4292, 0.70710677
      %v4452 = vmul.f32 %v4381, 0.70710677
      %v4453 = vmul.f32 %v4295, 0.70710677
      %v4454 = vmul.f32 %v4384, 0.70710677
      %v4455 = vmul.f32 %v4297, 0.70710677
      %v4456 = vmul.f32 %v4386, 0.70710677
      %v4457 = vmul.f32 %v4300, 0.70710677
      %v4458 = vmul.f32 %v4389, 0.70710677
      %v4459 = vmul.f32 %v4302, 0.70710677
      %v4460 = vmul.f32 %v4391, 0.70710677
      %v4461 = vmul.f32 %v4305, 0.70710677
      %v4462 = vmul.f32 %v4394, 0.70710677
      %v4463 = vmul.f32 %v4307, 0.70710677
      %v4464 = vmul.f32 %v4396, 0.70710677
      %v4465 = vmul.f32 %v4310, 0.70710677
      %v4466 = vmul.f32 %v4399, 0.70710677
      %v4467 = vmul.f32 %v4312, 0.70710677
      %v4468 = vmul.f32 %v4401, 0.70710677
      %v4469 = vmul.f32 %v4315, 0.70710677
      %v4470 = vmul.f32 %v4404, 0.70710677
      %v4471 = vmul.f32 %v4317, 0.70710677
      %v4472 = vmul.f32 %v4406, 0.70710677
      %v4473 = vmul.f32 %v4320, 0.70710677
      %v4474 = vmul.f32 %v4409, 0.70710677
      %v4475 = vmul.f32 %v4322, 0.70710677
      %v4476 = vmul.f32 %v4411, 0.70710677
      %v4477 = vmul.f32 %v4445, %v4445
      %v4478 = vmin.f32 16.0, %v4477
      %v4479 = vmul.f32 %v4478, 2.1237322e-06
      %v4480 = vadd.f32 %v4479, 0.00028619796
      %v4481 = vmul.f32 %v4478, %v4480
      %v4482 = vadd.f32 %v4481, 0.0036580483
      %v4483 = vmul.f32 %v4478, %v4482
      %v4484 = vadd.f32 %v4483, 0.05243302
      %v4485 = vmul.f32 %v4478, %v4484
      %v4486 = vadd.f32 %v4485, 0.18741608
      %v4487 = vmul.f32 %v4478, %v4486
      %v4488 = vadd.f32 %v4487, 1.1283791
      %v4489 = vmul.f32 %v4445, %v4488
      %v4490 = vmul.f32 %v4478, 3.8918573e-05
      %v4491 = vadd.f32 %v4490, 0.001143296
      %v4492 = vmul.f32 %v4478, %v4491
      %v4493 = vadd.f32 %v4492, 0.014752088
      %v4494 = vmul.f32 %v4478, %v4493
      %v4495 = vadd.f32 %v4494, 0.112945676
      %v4496 = vmul.f32 %v4478, %v4495
      %v4497 = vadd.f32 %v4496, 0.4994258
      %v4498 = vmul.f32 %v4478, %v4497
      %v4499 = vadd.f32 %v4498, 1.0
      %v4500 = vrcp.pop %v4499
      %v4501 = vmul.f32 %v4499, %v4500
      %v4502 = vsub.f32 1.0, %v4501
      %v4503 = vmul.f32 %v4500, %v4502
      %v4504 = vadd.f32 %v4500, %v4503
      %vm4505 = vweird.f32 %v4499
      %vm4506 = vweird.f32 %v4500
      %vm4507 = vmor %vm4505, %vm4506
      %v4508 = vsel %vm4507, %v4500, %v4504
      %v4509 = vand.u32 2147483647, %v4499
      %vm4510 = vcmp.eq.f32.partialorder %v4509, 8.507059e+37
      %v4511 = vand.u32 %v4499, 2147483648
      %v4512 = vor.u32 1.1754944e-38, %v4511
      %v4513 = vsel %vm4510, %v4512, %v4508
      %v4514 = vmul.f32 %v4489, %v4513
      %v4515 = vmin.f32 %v4514, 1.0
      %v4516 = vmax.f32 %v4515, -1.0
      %v4517 = vmul.f32 %v4446, %v4446
      %v4518 = vmin.f32 16.0, %v4517
      %v4519 = vmul.f32 %v4518, 2.1237322e-06
      %v4520 = vadd.f32 %v4519, 0.00028619796
      %v4521 = vmul.f32 %v4518, %v4520
      %v4522 = vadd.f32 %v4521, 0.0036580483
      %v4523 = vmul.f32 %v4518, %v4522
      %v4524 = vadd.f32 %v4523, 0.05243302
      %v4525 = vmul.f32 %v4518, %v4524
      %v4526 = vadd.f32 %v4525, 0.18741608
      %v4527 = vmul.f32 %v4518, %v4526
      %v4528 = vadd.f32 %v4527, 1.1283791
      %v4529 = vmul.f32 %v4446, %v4528
      %v4530 = vmul.f32 %v4518, 3.8918573e-05
      %v4531 = vadd.f32 %v4530, 0.001143296
      %v4532 = vmul.f32 %v4518, %v4531
      %v4533 = vadd.f32 %v4532, 0.014752088
      %v4534 = vmul.f32 %v4518, %v4533
      %v4535 = vadd.f32 %v4534, 0.112945676
      %v4536 = vmul.f32 %v4518, %v4535
      %v4537 = vadd.f32 %v4536, 0.4994258
      %v4538 = vmul.f32 %v4518, %v4537
      %v4539 = vadd.f32 %v4538, 1.0
      %v4540 = vrcp.pop %v4539
      %v4541 = vmul.f32 %v4539, %v4540
      %v4542 = vsub.f32 1.0, %v4541
      %v4543 = vmul.f32 %v4540, %v4542
      %v4544 = vadd.f32 %v4540, %v4543
      %vm4545 = vweird.f32 %v4539
      %vm4546 = vweird.f32 %v4540
      %vm4547 = vmor %vm4545, %vm4546
      %v4548 = vsel %vm4547, %v4540, %v4544
      %v4549 = vand.u32 2147483647, %v4539
      %vm4550 = vcmp.eq.f32.partialorder %v4549, 8.507059e+37
      %v4551 = vand.u32 %v4539, 2147483648
      %v4552 = vor.u32 1.1754944e-38, %v4551
      %v4553 = vsel %vm4550, %v4552, %v4548
      %v4554 = vmul.f32 %v4529, %v4553
      %v4555 = vmin.f32 %v4554, 1.0
      %v4556 = vmax.f32 %v4555, -1.0
      %v4557 = vmul.f32 %v4447, %v4447
      %v4558 = vmin.f32 16.0, %v4557
      %v4559 = vmul.f32 %v4558, 2.1237322e-06
      %v4560 = vadd.f32 %v4559, 0.00028619796
      %v4561 = vmul.f32 %v4558, %v4560
      %v4562 = vadd.f32 %v4561, 0.0036580483
      %v4563 = vmul.f32 %v4558, %v4562
      %v4564 = vadd.f32 %v4563, 0.05243302
      %v4565 = vmul.f32 %v4558, %v4564
      %v4566 = vadd.f32 %v4565, 0.18741608
      %v4567 = vmul.f32 %v4558, %v4566
      %v4568 = vadd.f32 %v4567, 1.1283791
      %v4569 = vmul.f32 %v4447, %v4568
      %v4570 = vmul.f32 %v4558, 3.8918573e-05
      %v4571 = vadd.f32 %v4570, 0.001143296
      %v4572 = vmul.f32 %v4558, %v4571
      %v4573 = vadd.f32 %v4572, 0.014752088
      %v4574 = vmul.f32 %v4558, %v4573
      %v4575 = vadd.f32 %v4574, 0.112945676
      %v4576 = vmul.f32 %v4558, %v4575
      %v4577 = vadd.f32 %v4576, 0.4994258
      %v4578 = vmul.f32 %v4558, %v4577
      %v4579 = vadd.f32 %v4578, 1.0
      %v4580 = vrcp.pop %v4579
      %v4581 = vmul.f32 %v4579, %v4580
      %v4582 = vsub.f32 1.0, %v4581
      %v4583 = vmul.f32 %v4580, %v4582
      %v4584 = vadd.f32 %v4580, %v4583
      %vm4585 = vweird.f32 %v4579
      %vm4586 = vweird.f32 %v4580
      %vm4587 = vmor %vm4585, %vm4586
      %v4588 = vsel %vm4587, %v4580, %v4584
      %v4589 = vand.u32 2147483647, %v4579
      %vm4590 = vcmp.eq.f32.partialorder %v4589, 8.507059e+37
      %v4591 = vand.u32 %v4579, 2147483648
      %v4592 = vor.u32 1.1754944e-38, %v4591
      %v4593 = vsel %vm4590, %v4592, %v4588
      %v4594 = vmul.f32 %v4569, %v4593
      %v4595 = vmin.f32 %v4594, 1.0
      %v4596 = vmax.f32 %v4595, -1.0
      %v4597 = vmul.f32 %v4448, %v4448
      %v4598 = vmin.f32 16.0, %v4597
      %v4599 = vmul.f32 %v4598, 2.1237322e-06
      %v4600 = vadd.f32 %v4599, 0.00028619796
      %v4601 = vmul.f32 %v4598, %v4600
      %v4602 = vadd.f32 %v4601, 0.0036580483
      %v4603 = vmul.f32 %v4598, %v4602
      %v4604 = vadd.f32 %v4603, 0.05243302
      %v4605 = vmul.f32 %v4598, %v4604
      %v4606 = vadd.f32 %v4605, 0.18741608
      %v4607 = vmul.f32 %v4598, %v4606
      %v4608 = vadd.f32 %v4607, 1.1283791
      %v4609 = vmul.f32 %v4448, %v4608
      %v4610 = vmul.f32 %v4598, 3.8918573e-05
      %v4611 = vadd.f32 %v4610, 0.001143296
      %v4612 = vmul.f32 %v4598, %v4611
      %v4613 = vadd.f32 %v4612, 0.014752088
      %v4614 = vmul.f32 %v4598, %v4613
      %v4615 = vadd.f32 %v4614, 0.112945676
      %v4616 = vmul.f32 %v4598, %v4615
      %v4617 = vadd.f32 %v4616, 0.4994258
      %v4618 = vmul.f32 %v4598, %v4617
      %v4619 = vadd.f32 %v4618, 1.0
      %v4620 = vrcp.pop %v4619
      %v4621 = vmul.f32 %v4619, %v4620
      %v4622 = vsub.f32 1.0, %v4621
      %v4623 = vmul.f32 %v4620, %v4622
      %v4624 = vadd.f32 %v4620, %v4623
      %vm4625 = vweird.f32 %v4619
      %vm4626 = vweird.f32 %v4620
      %vm4627 = vmor %vm4625, %vm4626
      %v4628 = vsel %vm4627, %v4620, %v4624
      %v4629 = vand.u32 2147483647, %v4619
      %vm4630 = vcmp.eq.f32.partialorder %v4629, 8.507059e+37
      %v4631 = vand.u32 %v4619, 2147483648
      %v4632 = vor.u32 1.1754944e-38, %v4631
      %v4633 = vsel %vm4630, %v4632, %v4628
      %v4634 = vmul.f32 %v4609, %v4633
      %v4635 = vmin.f32 %v4634, 1.0
      %v4636 = vmax.f32 %v4635, -1.0
      %v4637 = vmul.f32 %v4449, %v4449
      %v4638 = vmin.f32 16.0, %v4637
      %v4639 = vmul.f32 %v4638, 2.1237322e-06
      %v4640 = vadd.f32 %v4639, 0.00028619796
      %v4641 = vmul.f32 %v4638, %v4640
      %v4642 = vadd.f32 %v4641, 0.0036580483
      %v4643 = vmul.f32 %v4638, %v4642
      %v4644 = vadd.f32 %v4643, 0.05243302
      %v4645 = vmul.f32 %v4638, %v4644
      %v4646 = vadd.f32 %v4645, 0.18741608
      %v4647 = vmul.f32 %v4638, %v4646
      %v4648 = vadd.f32 %v4647, 1.1283791
      %v4649 = vmul.f32 %v4449, %v4648
      %v4650 = vmul.f32 %v4638, 3.8918573e-05
      %v4651 = vadd.f32 %v4650, 0.001143296
      %v4652 = vmul.f32 %v4638, %v4651
      %v4653 = vadd.f32 %v4652, 0.014752088
      %v4654 = vmul.f32 %v4638, %v4653
      %v4655 = vadd.f32 %v4654, 0.112945676
      %v4656 = vmul.f32 %v4638, %v4655
      %v4657 = vadd.f32 %v4656, 0.4994258
      %v4658 = vmul.f32 %v4638, %v4657
      %v4659 = vadd.f32 %v4658, 1.0
      %v4660 = vrcp.pop %v4659
      %v4661 = vmul.f32 %v4659, %v4660
      %v4662 = vsub.f32 1.0, %v4661
      %v4663 = vmul.f32 %v4660, %v4662
      %v4664 = vadd.f32 %v4660, %v4663
      %vm4665 = vweird.f32 %v4659
      %vm4666 = vweird.f32 %v4660
      %vm4667 = vmor %vm4665, %vm4666
      %v4668 = vsel %vm4667, %v4660, %v4664
      %v4669 = vand.u32 2147483647, %v4659
      %vm4670 = vcmp.eq.f32.partialorder %v4669, 8.507059e+37
      %v4671 = vand.u32 %v4659, 2147483648
      %v4672 = vor.u32 1.1754944e-38, %v4671
      %v4673 = vsel %vm4670, %v4672, %v4668
      %v4674 = vmul.f32 %v4649, %v4673
      %v4675 = vmin.f32 %v4674, 1.0
      %v4676 = vmax.f32 %v4675, -1.0
      %v4677 = vmul.f32 %v4450, %v4450
      %v4678 = vmin.f32 16.0, %v4677
      %v4679 = vmul.f32 %v4678, 2.1237322e-06
      %v4680 = vadd.f32 %v4679, 0.00028619796
      %v4681 = vmul.f32 %v4678, %v4680
      %v4682 = vadd.f32 %v4681, 0.0036580483
      %v4683 = vmul.f32 %v4678, %v4682
      %v4684 = vadd.f32 %v4683, 0.05243302
      %v4685 = vmul.f32 %v4678, %v4684
      %v4686 = vadd.f32 %v4685, 0.18741608
      %v4687 = vmul.f32 %v4678, %v4686
      %v4688 = vadd.f32 %v4687, 1.1283791
      %v4689 = vmul.f32 %v4450, %v4688
      %v4690 = vmul.f32 %v4678, 3.8918573e-05
      %v4691 = vadd.f32 %v4690, 0.001143296
      %v4692 = vmul.f32 %v4678, %v4691
      %v4693 = vadd.f32 %v4692, 0.014752088
      %v4694 = vmul.f32 %v4678, %v4693
      %v4695 = vadd.f32 %v4694, 0.112945676
      %v4696 = vmul.f32 %v4678, %v4695
      %v4697 = vadd.f32 %v4696, 0.4994258
      %v4698 = vmul.f32 %v4678, %v4697
      %v4699 = vadd.f32 %v4698, 1.0
      %v4700 = vrcp.pop %v4699
      %v4701 = vmul.f32 %v4699, %v4700
      %v4702 = vsub.f32 1.0, %v4701
      %v4703 = vmul.f32 %v4700, %v4702
      %v4704 = vadd.f32 %v4700, %v4703
      %vm4705 = vweird.f32 %v4699
      %vm4706 = vweird.f32 %v4700
      %vm4707 = vmor %vm4705, %vm4706
      %v4708 = vsel %vm4707, %v4700, %v4704
      %v4709 = vand.u32 2147483647, %v4699
      %vm4710 = vcmp.eq.f32.partialorder %v4709, 8.507059e+37
      %v4711 = vand.u32 %v4699, 2147483648
      %v4712 = vor.u32 1.1754944e-38, %v4711
      %v4713 = vsel %vm4710, %v4712, %v4708
      %v4714 = vmul.f32 %v4689, %v4713
      %v4715 = vmin.f32 %v4714, 1.0
      %v4716 = vmax.f32 %v4715, -1.0
      %v4717 = vmul.f32 %v4451, %v4451
      %v4718 = vmin.f32 16.0, %v4717
      %v4719 = vmul.f32 %v4718, 2.1237322e-06
      %v4720 = vadd.f32 %v4719, 0.00028619796
      %v4721 = vmul.f32 %v4718, %v4720
      %v4722 = vadd.f32 %v4721, 0.0036580483
      %v4723 = vmul.f32 %v4718, %v4722
      %v4724 = vadd.f32 %v4723, 0.05243302
      %v4725 = vmul.f32 %v4718, %v4724
      %v4726 = vadd.f32 %v4725, 0.18741608
      %v4727 = vmul.f32 %v4718, %v4726
      %v4728 = vadd.f32 %v4727, 1.1283791
      %v4729 = vmul.f32 %v4451, %v4728
      %v4730 = vmul.f32 %v4718, 3.8918573e-05
      %v4731 = vadd.f32 %v4730, 0.001143296
      %v4732 = vmul.f32 %v4718, %v4731
      %v4733 = vadd.f32 %v4732, 0.014752088
      %v4734 = vmul.f32 %v4718, %v4733
      %v4735 = vadd.f32 %v4734, 0.112945676
      %v4736 = vmul.f32 %v4718, %v4735
      %v4737 = vadd.f32 %v4736, 0.4994258
      %v4738 = vmul.f32 %v4718, %v4737
      %v4739 = vadd.f32 %v4738, 1.0
      %v4740 = vrcp.pop %v4739
      %v4741 = vmul.f32 %v4739, %v4740
      %v4742 = vsub.f32 1.0, %v4741
      %v4743 = vmul.f32 %v4740, %v4742
      %v4744 = vadd.f32 %v4740, %v4743
      %vm4745 = vweird.f32 %v4739
      %vm4746 = vweird.f32 %v4740
      %vm4747 = vmor %vm4745, %vm4746
      %v4748 = vsel %vm4747, %v4740, %v4744
      %v4749 = vand.u32 2147483647, %v4739
      %vm4750 = vcmp.eq.f32.partialorder %v4749, 8.507059e+37
      %v4751 = vand.u32 %v4739, 2147483648
      %v4752 = vor.u32 1.1754944e-38, %v4751
      %v4753 = vsel %vm4750, %v4752, %v4748
      %v4754 = vmul.f32 %v4729, %v4753
      %v4755 = vmin.f32 %v4754, 1.0
      %v4756 = vmax.f32 %v4755, -1.0
      %v4757 = vmul.f32 %v4452, %v4452
      %v4758 = vmin.f32 16.0, %v4757
      %v4759 = vmul.f32 %v4758, 2.1237322e-06
      %v4760 = vadd.f32 %v4759, 0.00028619796
      %v4761 = vmul.f32 %v4758, %v4760
      %v4762 = vadd.f32 %v4761, 0.0036580483
      %v4763 = vmul.f32 %v4758, %v4762
      %v4764 = vadd.f32 %v4763, 0.05243302
      %v4765 = vmul.f32 %v4758, %v4764
      %v4766 = vadd.f32 %v4765, 0.18741608
      %v4767 = vmul.f32 %v4758, %v4766
      %v4768 = vadd.f32 %v4767, 1.1283791
      %v4769 = vmul.f32 %v4452, %v4768
      %v4770 = vmul.f32 %v4758, 3.8918573e-05
      %v4771 = vadd.f32 %v4770, 0.001143296
      %v4772 = vmul.f32 %v4758, %v4771
      %v4773 = vadd.f32 %v4772, 0.014752088
      %v4774 = vmul.f32 %v4758, %v4773
      %v4775 = vadd.f32 %v4774, 0.112945676
      %v4776 = vmul.f32 %v4758, %v4775
      %v4777 = vadd.f32 %v4776, 0.4994258
      %v4778 = vmul.f32 %v4758, %v4777
      %v4779 = vadd.f32 %v4778, 1.0
      %v4780 = vrcp.pop %v4779
      %v4781 = vmul.f32 %v4779, %v4780
      %v4782 = vsub.f32 1.0, %v4781
      %v4783 = vmul.f32 %v4780, %v4782
      %v4784 = vadd.f32 %v4780, %v4783
      %vm4785 = vweird.f32 %v4779
      %vm4786 = vweird.f32 %v4780
      %vm4787 = vmor %vm4785, %vm4786
      %v4788 = vsel %vm4787, %v4780, %v4784
      %v4789 = vand.u32 2147483647, %v4779
      %vm4790 = vcmp.eq.f32.partialorder %v4789, 8.507059e+37
      %v4791 = vand.u32 %v4779, 2147483648
      %v4792 = vor.u32 1.1754944e-38, %v4791
      %v4793 = vsel %vm4790, %v4792, %v4788
      %v4794 = vmul.f32 %v4769, %v4793
      %v4795 = vmin.f32 %v4794, 1.0
      %v4796 = vmax.f32 %v4795, -1.0
      %v4797 = vmul.f32 %v4453, %v4453
      %v4798 = vmin.f32 16.0, %v4797
      %v4799 = vmul.f32 %v4798, 2.1237322e-06
      %v4800 = vadd.f32 %v4799, 0.00028619796
      %v4801 = vmul.f32 %v4798, %v4800
      %v4802 = vadd.f32 %v4801, 0.0036580483
      %v4803 = vmul.f32 %v4798, %v4802
      %v4804 = vadd.f32 %v4803, 0.05243302
      %v4805 = vmul.f32 %v4798, %v4804
      %v4806 = vadd.f32 %v4805, 0.18741608
      %v4807 = vmul.f32 %v4798, %v4806
      %v4808 = vadd.f32 %v4807, 1.1283791
      %v4809 = vmul.f32 %v4453, %v4808
      %v4810 = vmul.f32 %v4798, 3.8918573e-05
      %v4811 = vadd.f32 %v4810, 0.001143296
      %v4812 = vmul.f32 %v4798, %v4811
      %v4813 = vadd.f32 %v4812, 0.014752088
      %v4814 = vmul.f32 %v4798, %v4813
      %v4815 = vadd.f32 %v4814, 0.112945676
      %v4816 = vmul.f32 %v4798, %v4815
      %v4817 = vadd.f32 %v4816, 0.4994258
      %v4818 = vmul.f32 %v4798, %v4817
      %v4819 = vadd.f32 %v4818, 1.0
      %v4820 = vrcp.pop %v4819
      %v4821 = vmul.f32 %v4819, %v4820
      %v4822 = vsub.f32 1.0, %v4821
      %v4823 = vmul.f32 %v4820, %v4822
      %v4824 = vadd.f32 %v4820, %v4823
      %vm4825 = vweird.f32 %v4819
      %vm4826 = vweird.f32 %v4820
      %vm4827 = vmor %vm4825, %vm4826
      %v4828 = vsel %vm4827, %v4820, %v4824
      %v4829 = vand.u32 2147483647, %v4819
      %vm4830 = vcmp.eq.f32.partialorder %v4829, 8.507059e+37
      %v4831 = vand.u32 %v4819, 2147483648
      %v4832 = vor.u32 1.1754944e-38, %v4831
      %v4833 = vsel %vm4830, %v4832, %v4828
      %v4834 = vmul.f32 %v4809, %v4833
      %v4835 = vmin.f32 %v4834, 1.0
      %v4836 = vmax.f32 %v4835, -1.0
      %v4837 = vmul.f32 %v4454, %v4454
      %v4838 = vmin.f32 16.0, %v4837
      %v4839 = vmul.f32 %v4838, 2.1237322e-06
      %v4840 = vadd.f32 %v4839, 0.00028619796
      %v4841 = vmul.f32 %v4838, %v4840
      %v4842 = vadd.f32 %v4841, 0.0036580483
      %v4843 = vmul.f32 %v4838, %v4842
      %v4844 = vadd.f32 %v4843, 0.05243302
      %v4845 = vmul.f32 %v4838, %v4844
      %v4846 = vadd.f32 %v4845, 0.18741608
      %v4847 = vmul.f32 %v4838, %v4846
      %v4848 = vadd.f32 %v4847, 1.1283791
      %v4849 = vmul.f32 %v4454, %v4848
      %v4850 = vmul.f32 %v4838, 3.8918573e-05
      %v4851 = vadd.f32 %v4850, 0.001143296
      %v4852 = vmul.f32 %v4838, %v4851
      %v4853 = vadd.f32 %v4852, 0.014752088
      %v4854 = vmul.f32 %v4838, %v4853
      %v4855 = vadd.f32 %v4854, 0.112945676
      %v4856 = vmul.f32 %v4838, %v4855
      %v4857 = vadd.f32 %v4856, 0.4994258
      %v4858 = vmul.f32 %v4838, %v4857
      %v4859 = vadd.f32 %v4858, 1.0
      %v4860 = vrcp.pop %v4859
      %v4861 = vmul.f32 %v4859, %v4860
      %v4862 = vsub.f32 1.0, %v4861
      %v4863 = vmul.f32 %v4860, %v4862
      %v4864 = vadd.f32 %v4860, %v4863
      %vm4865 = vweird.f32 %v4859
      %vm4866 = vweird.f32 %v4860
      %vm4867 = vmor %vm4865, %vm4866
      %v4868 = vsel %vm4867, %v4860, %v4864
      %v4869 = vand.u32 2147483647, %v4859
      %vm4870 = vcmp.eq.f32.partialorder %v4869, 8.507059e+37
      %v4871 = vand.u32 %v4859, 2147483648
      %v4872 = vor.u32 1.1754944e-38, %v4871
      %v4873 = vsel %vm4870, %v4872, %v4868
      %v4874 = vmul.f32 %v4849, %v4873
      %v4875 = vmin.f32 %v4874, 1.0
      %v4876 = vmax.f32 %v4875, -1.0
      %v4877 = vmul.f32 %v4455, %v4455
      %v4878 = vmin.f32 16.0, %v4877
      %v4879 = vmul.f32 %v4878, 2.1237322e-06
      %v4880 = vadd.f32 %v4879, 0.00028619796
      %v4881 = vmul.f32 %v4878, %v4880
      %v4882 = vadd.f32 %v4881, 0.0036580483
      %v4883 = vmul.f32 %v4878, %v4882
      %v4884 = vadd.f32 %v4883, 0.05243302
      %v4885 = vmul.f32 %v4878, %v4884
      %v4886 = vadd.f32 %v4885, 0.18741608
      %v4887 = vmul.f32 %v4878, %v4886
      %v4888 = vadd.f32 %v4887, 1.1283791
      %v4889 = vmul.f32 %v4455, %v4888
      %v4890 = vmul.f32 %v4878, 3.8918573e-05
      %v4891 = vadd.f32 %v4890, 0.001143296
      %v4892 = vmul.f32 %v4878, %v4891
      %v4893 = vadd.f32 %v4892, 0.014752088
      %v4894 = vmul.f32 %v4878, %v4893
      %v4895 = vadd.f32 %v4894, 0.112945676
      %v4896 = vmul.f32 %v4878, %v4895
      %v4897 = vadd.f32 %v4896, 0.4994258
      %v4898 = vmul.f32 %v4878, %v4897
      %v4899 = vadd.f32 %v4898, 1.0
      %v4900 = vrcp.pop %v4899
      %v4901 = vmul.f32 %v4899, %v4900
      %v4902 = vsub.f32 1.0, %v4901
      %v4903 = vmul.f32 %v4900, %v4902
      %v4904 = vadd.f32 %v4900, %v4903
      %vm4905 = vweird.f32 %v4899
      %vm4906 = vweird.f32 %v4900
      %vm4907 = vmor %vm4905, %vm4906
      %v4908 = vsel %vm4907, %v4900, %v4904
      %v4909 = vand.u32 2147483647, %v4899
      %vm4910 = vcmp.eq.f32.partialorder %v4909, 8.507059e+37
      %v4911 = vand.u32 %v4899, 2147483648
      %v4912 = vor.u32 1.1754944e-38, %v4911
      %v4913 = vsel %vm4910, %v4912, %v4908
      %v4914 = vmul.f32 %v4889, %v4913
      %v4915 = vmin.f32 %v4914, 1.0
      %v4916 = vmax.f32 %v4915, -1.0
      %v4917 = vmul.f32 %v4456, %v4456
      %v4918 = vmin.f32 16.0, %v4917
      %v4919 = vmul.f32 %v4918, 2.1237322e-06
      %v4920 = vadd.f32 %v4919, 0.00028619796
      %v4921 = vmul.f32 %v4918, %v4920
      %v4922 = vadd.f32 %v4921, 0.0036580483
      %v4923 = vmul.f32 %v4918, %v4922
      %v4924 = vadd.f32 %v4923, 0.05243302
      %v4925 = vmul.f32 %v4918, %v4924
      %v4926 = vadd.f32 %v4925, 0.18741608
      %v4927 = vmul.f32 %v4918, %v4926
      %v4928 = vadd.f32 %v4927, 1.1283791
      %v4929 = vmul.f32 %v4456, %v4928
      %v4930 = vmul.f32 %v4918, 3.8918573e-05
      %v4931 = vadd.f32 %v4930, 0.001143296
      %v4932 = vmul.f32 %v4918, %v4931
      %v4933 = vadd.f32 %v4932, 0.014752088
      %v4934 = vmul.f32 %v4918, %v4933
      %v4935 = vadd.f32 %v4934, 0.112945676
      %v4936 = vmul.f32 %v4918, %v4935
      %v4937 = vadd.f32 %v4936, 0.4994258
      %v4938 = vmul.f32 %v4918, %v4937
      %v4939 = vadd.f32 %v4938, 1.0
      %v4940 = vrcp.pop %v4939
      %v4941 = vmul.f32 %v4939, %v4940
      %v4942 = vsub.f32 1.0, %v4941
      %v4943 = vmul.f32 %v4940, %v4942
      %v4944 = vadd.f32 %v4940, %v4943
      %vm4945 = vweird.f32 %v4939
      %vm4946 = vweird.f32 %v4940
      %vm4947 = vmor %vm4945, %vm4946
      %v4948 = vsel %vm4947, %v4940, %v4944
      %v4949 = vand.u32 2147483647, %v4939
      %vm4950 = vcmp.eq.f32.partialorder %v4949, 8.507059e+37
      %v4951 = vand.u32 %v4939, 2147483648
      %v4952 = vor.u32 1.1754944e-38, %v4951
      %v4953 = vsel %vm4950, %v4952, %v4948
      %v4954 = vmul.f32 %v4929, %v4953
      %v4955 = vmin.f32 %v4954, 1.0
      %v4956 = vmax.f32 %v4955, -1.0
      %v4957 = vmul.f32 %v4457, %v4457
      %v4958 = vmin.f32 16.0, %v4957
      %v4959 = vmul.f32 %v4958, 2.1237322e-06
      %v4960 = vadd.f32 %v4959, 0.00028619796
      %v4961 = vmul.f32 %v4958, %v4960
      %v4962 = vadd.f32 %v4961, 0.0036580483
      %v4963 = vmul.f32 %v4958, %v4962
      %v4964 = vadd.f32 %v4963, 0.05243302
      %v4965 = vmul.f32 %v4958, %v4964
      %v4966 = vadd.f32 %v4965, 0.18741608
      %v4967 = vmul.f32 %v4958, %v4966
      %v4968 = vadd.f32 %v4967, 1.1283791
      %v4969 = vmul.f32 %v4457, %v4968
      %v4970 = vmul.f32 %v4958, 3.8918573e-05
      %v4971 = vadd.f32 %v4970, 0.001143296
      %v4972 = vmul.f32 %v4958, %v4971
      %v4973 = vadd.f32 %v4972, 0.014752088
      %v4974 = vmul.f32 %v4958, %v4973
      %v4975 = vadd.f32 %v4974, 0.112945676
      %v4976 = vmul.f32 %v4958, %v4975
      %v4977 = vadd.f32 %v4976, 0.4994258
      %v4978 = vmul.f32 %v4958, %v4977
      %v4979 = vadd.f32 %v4978, 1.0
      %v4980 = vrcp.pop %v4979
      %v4981 = vmul.f32 %v4979, %v4980
      %v4982 = vsub.f32 1.0, %v4981
      %v4983 = vmul.f32 %v4980, %v4982
      %v4984 = vadd.f32 %v4980, %v4983
      %vm4985 = vweird.f32 %v4979
      %vm4986 = vweird.f32 %v4980
      %vm4987 = vmor %vm4985, %vm4986
      %v4988 = vsel %vm4987, %v4980, %v4984
      %v4989 = vand.u32 2147483647, %v4979
      %vm4990 = vcmp.eq.f32.partialorder %v4989, 8.507059e+37
      %v4991 = vand.u32 %v4979, 2147483648
      %v4992 = vor.u32 1.1754944e-38, %v4991
      %v4993 = vsel %vm4990, %v4992, %v4988
      %v4994 = vmul.f32 %v4969, %v4993
      %v4995 = vmin.f32 %v4994, 1.0
      %v4996 = vmax.f32 %v4995, -1.0
      %v4997 = vmul.f32 %v4458, %v4458
      %v4998 = vmin.f32 16.0, %v4997
      %v4999 = vmul.f32 %v4998, 2.1237322e-06
      %v5000 = vadd.f32 %v4999, 0.00028619796
      %v5001 = vmul.f32 %v4998, %v5000
      %v5002 = vadd.f32 %v5001, 0.0036580483
      %v5003 = vmul.f32 %v4998, %v5002
      %v5004 = vadd.f32 %v5003, 0.05243302
      %v5005 = vmul.f32 %v4998, %v5004
      %v5006 = vadd.f32 %v5005, 0.18741608
      %v5007 = vmul.f32 %v4998, %v5006
      %v5008 = vadd.f32 %v5007, 1.1283791
      %v5009 = vmul.f32 %v4458, %v5008
      %v5010 = vmul.f32 %v4998, 3.8918573e-05
      %v5011 = vadd.f32 %v5010, 0.001143296
      %v5012 = vmul.f32 %v4998, %v5011
      %v5013 = vadd.f32 %v5012, 0.014752088
      %v5014 = vmul.f32 %v4998, %v5013
      %v5015 = vadd.f32 %v5014, 0.112945676
      %v5016 = vmul.f32 %v4998, %v5015
      %v5017 = vadd.f32 %v5016, 0.4994258
      %v5018 = vmul.f32 %v4998, %v5017
      %v5019 = vadd.f32 %v5018, 1.0
      %v5020 = vrcp.pop %v5019
      %v5021 = vmul.f32 %v5019, %v5020
      %v5022 = vsub.f32 1.0, %v5021
      %v5023 = vmul.f32 %v5020, %v5022
      %v5024 = vadd.f32 %v5020, %v5023
      %vm5025 = vweird.f32 %v5019
      %vm5026 = vweird.f32 %v5020
      %vm5027 = vmor %vm5025, %vm5026
      %v5028 = vsel %vm5027, %v5020, %v5024
      %v5029 = vand.u32 2147483647, %v5019
      %vm5030 = vcmp.eq.f32.partialorder %v5029, 8.507059e+37
      %v5031 = vand.u32 %v5019, 2147483648
      %v5032 = vor.u32 1.1754944e-38, %v5031
      %v5033 = vsel %vm5030, %v5032, %v5028
      %v5034 = vmul.f32 %v5009, %v5033
      %v5035 = vmin.f32 %v5034, 1.0
      %v5036 = vmax.f32 %v5035, -1.0
      %v5037 = vmul.f32 %v4459, %v4459
      %v5038 = vmin.f32 16.0, %v5037
      %v5039 = vmul.f32 %v5038, 2.1237322e-06
      %v5040 = vadd.f32 %v5039, 0.00028619796
      %v5041 = vmul.f32 %v5038, %v5040
      %v5042 = vadd.f32 %v5041, 0.0036580483
      %v5043 = vmul.f32 %v5038, %v5042
      %v5044 = vadd.f32 %v5043, 0.05243302
      %v5045 = vmul.f32 %v5038, %v5044
      %v5046 = vadd.f32 %v5045, 0.18741608
      %v5047 = vmul.f32 %v5038, %v5046
      %v5048 = vadd.f32 %v5047, 1.1283791
      %v5049 = vmul.f32 %v4459, %v5048
      %v5050 = vmul.f32 %v5038, 3.8918573e-05
      %v5051 = vadd.f32 %v5050, 0.001143296
      %v5052 = vmul.f32 %v5038, %v5051
      %v5053 = vadd.f32 %v5052, 0.014752088
      %v5054 = vmul.f32 %v5038, %v5053
      %v5055 = vadd.f32 %v5054, 0.112945676
      %v5056 = vmul.f32 %v5038, %v5055
      %v5057 = vadd.f32 %v5056, 0.4994258
      %v5058 = vmul.f32 %v5038, %v5057
      %v5059 = vadd.f32 %v5058, 1.0
      %v5060 = vrcp.pop %v5059
      %v5061 = vmul.f32 %v5059, %v5060
      %v5062 = vsub.f32 1.0, %v5061
      %v5063 = vmul.f32 %v5060, %v5062
      %v5064 = vadd.f32 %v5060, %v5063
      %vm5065 = vweird.f32 %v5059
      %vm5066 = vweird.f32 %v5060
      %vm5067 = vmor %vm5065, %vm5066
      %v5068 = vsel %vm5067, %v5060, %v5064
      %v5069 = vand.u32 2147483647, %v5059
      %vm5070 = vcmp.eq.f32.partialorder %v5069, 8.507059e+37
      %v5071 = vand.u32 %v5059, 2147483648
      %v5072 = vor.u32 1.1754944e-38, %v5071
      %v5073 = vsel %vm5070, %v5072, %v5068
      %v5074 = vmul.f32 %v5049, %v5073
      %v5075 = vmin.f32 %v5074, 1.0
      %v5076 = vmax.f32 %v5075, -1.0
      %v5077 = vmul.f32 %v4460, %v4460
      %v5078 = vmin.f32 16.0, %v5077
      %v5079 = vmul.f32 %v5078, 2.1237322e-06
      %v5080 = vadd.f32 %v5079, 0.00028619796
      %v5081 = vmul.f32 %v5078, %v5080
      %v5082 = vadd.f32 %v5081, 0.0036580483
      %v5083 = vmul.f32 %v5078, %v5082
      %v5084 = vadd.f32 %v5083, 0.05243302
      %v5085 = vmul.f32 %v5078, %v5084
      %v5086 = vadd.f32 %v5085, 0.18741608
      %v5087 = vmul.f32 %v5078, %v5086
      %v5088 = vadd.f32 %v5087, 1.1283791
      %v5089 = vmul.f32 %v4460, %v5088
      %v5090 = vmul.f32 %v5078, 3.8918573e-05
      %v5091 = vadd.f32 %v5090, 0.001143296
      %v5092 = vmul.f32 %v5078, %v5091
      %v5093 = vadd.f32 %v5092, 0.014752088
      %v5094 = vmul.f32 %v5078, %v5093
      %v5095 = vadd.f32 %v5094, 0.112945676
      %v5096 = vmul.f32 %v5078, %v5095
      %v5097 = vadd.f32 %v5096, 0.4994258
      %v5098 = vmul.f32 %v5078, %v5097
      %v5099 = vadd.f32 %v5098, 1.0
      %v5100 = vrcp.pop %v5099
      %v5101 = vmul.f32 %v5099, %v5100
      %v5102 = vsub.f32 1.0, %v5101
      %v5103 = vmul.f32 %v5100, %v5102
      %v5104 = vadd.f32 %v5100, %v5103
      %vm5105 = vweird.f32 %v5099
      %vm5106 = vweird.f32 %v5100
      %vm5107 = vmor %vm5105, %vm5106
      %v5108 = vsel %vm5107, %v5100, %v5104
      %v5109 = vand.u32 2147483647, %v5099
      %vm5110 = vcmp.eq.f32.partialorder %v5109, 8.507059e+37
      %v5111 = vand.u32 %v5099, 2147483648
      %v5112 = vor.u32 1.1754944e-38, %v5111
      %v5113 = vsel %vm5110, %v5112, %v5108
      %v5114 = vmul.f32 %v5089, %v5113
      %v5115 = vmin.f32 %v5114, 1.0
      %v5116 = vmax.f32 %v5115, -1.0
      %v5117 = vmul.f32 %v4461, %v4461
      %v5118 = vmin.f32 16.0, %v5117
      %v5119 = vmul.f32 %v5118, 2.1237322e-06
      %v5120 = vadd.f32 %v5119, 0.00028619796
      %v5121 = vmul.f32 %v5118, %v5120
      %v5122 = vadd.f32 %v5121, 0.0036580483
      %v5123 = vmul.f32 %v5118, %v5122
      %v5124 = vadd.f32 %v5123, 0.05243302
      %v5125 = vmul.f32 %v5118, %v5124
      %v5126 = vadd.f32 %v5125, 0.18741608
      %v5127 = vmul.f32 %v5118, %v5126
      %v5128 = vadd.f32 %v5127, 1.1283791
      %v5129 = vmul.f32 %v4461, %v5128
      %v5130 = vmul.f32 %v5118, 3.8918573e-05
      %v5131 = vadd.f32 %v5130, 0.001143296
      %v5132 = vmul.f32 %v5118, %v5131
      %v5133 = vadd.f32 %v5132, 0.014752088
      %v5134 = vmul.f32 %v5118, %v5133
      %v5135 = vadd.f32 %v5134, 0.112945676
      %v5136 = vmul.f32 %v5118, %v5135
      %v5137 = vadd.f32 %v5136, 0.4994258
      %v5138 = vmul.f32 %v5118, %v5137
      %v5139 = vadd.f32 %v5138, 1.0
      %v5140 = vrcp.pop %v5139
      %v5141 = vmul.f32 %v5139, %v5140
      %v5142 = vsub.f32 1.0, %v5141
      %v5143 = vmul.f32 %v5140, %v5142
      %v5144 = vadd.f32 %v5140, %v5143
      %vm5145 = vweird.f32 %v5139
      %vm5146 = vweird.f32 %v5140
      %vm5147 = vmor %vm5145, %vm5146
      %v5148 = vsel %vm5147, %v5140, %v5144
      %v5149 = vand.u32 2147483647, %v5139
      %vm5150 = vcmp.eq.f32.partialorder %v5149, 8.507059e+37
      %v5151 = vand.u32 %v5139, 2147483648
      %v5152 = vor.u32 1.1754944e-38, %v5151
      %v5153 = vsel %vm5150, %v5152, %v5148
      %v5154 = vmul.f32 %v5129, %v5153
      %v5155 = vmin.f32 %v5154, 1.0
      %v5156 = vmax.f32 %v5155, -1.0
      %v5157 = vmul.f32 %v4462, %v4462
      %v5158 = vmin.f32 16.0, %v5157
      %v5159 = vmul.f32 %v5158, 2.1237322e-06
      %v5160 = vadd.f32 %v5159, 0.00028619796
      %v5161 = vmul.f32 %v5158, %v5160
      %v5162 = vadd.f32 %v5161, 0.0036580483
      %v5163 = vmul.f32 %v5158, %v5162
      %v5164 = vadd.f32 %v5163, 0.05243302
      %v5165 = vmul.f32 %v5158, %v5164
      %v5166 = vadd.f32 %v5165, 0.18741608
      %v5167 = vmul.f32 %v5158, %v5166
      %v5168 = vadd.f32 %v5167, 1.1283791
      %v5169 = vmul.f32 %v4462, %v5168
      %v5170 = vmul.f32 %v5158, 3.8918573e-05
      %v5171 = vadd.f32 %v5170, 0.001143296
      %v5172 = vmul.f32 %v5158, %v5171
      %v5173 = vadd.f32 %v5172, 0.014752088
      %v5174 = vmul.f32 %v5158, %v5173
      %v5175 = vadd.f32 %v5174, 0.112945676
      %v5176 = vmul.f32 %v5158, %v5175
      %v5177 = vadd.f32 %v5176, 0.4994258
      %v5178 = vmul.f32 %v5158, %v5177
      %v5179 = vadd.f32 %v5178, 1.0
      %v5180 = vrcp.pop %v5179
      %v5181 = vmul.f32 %v5179, %v5180
      %v5182 = vsub.f32 1.0, %v5181
      %v5183 = vmul.f32 %v5180, %v5182
      %v5184 = vadd.f32 %v5180, %v5183
      %vm5185 = vweird.f32 %v5179
      %vm5186 = vweird.f32 %v5180
      %vm5187 = vmor %vm5185, %vm5186
      %v5188 = vsel %vm5187, %v5180, %v5184
      %v5189 = vand.u32 2147483647, %v5179
      %vm5190 = vcmp.eq.f32.partialorder %v5189, 8.507059e+37
      %v5191 = vand.u32 %v5179, 2147483648
      %v5192 = vor.u32 1.1754944e-38, %v5191
      %v5193 = vsel %vm5190, %v5192, %v5188
      %v5194 = vmul.f32 %v5169, %v5193
      %v5195 = vmin.f32 %v5194, 1.0
      %v5196 = vmax.f32 %v5195, -1.0
      %v5197 = vmul.f32 %v4463, %v4463
      %v5198 = vmin.f32 16.0, %v5197
      %v5199 = vmul.f32 %v5198, 2.1237322e-06
      %v5200 = vadd.f32 %v5199, 0.00028619796
      %v5201 = vmul.f32 %v5198, %v5200
      %v5202 = vadd.f32 %v5201, 0.0036580483
      %v5203 = vmul.f32 %v5198, %v5202
      %v5204 = vadd.f32 %v5203, 0.05243302
      %v5205 = vmul.f32 %v5198, %v5204
      %v5206 = vadd.f32 %v5205, 0.18741608
      %v5207 = vmul.f32 %v5198, %v5206
      %v5208 = vadd.f32 %v5207, 1.1283791
      %v5209 = vmul.f32 %v4463, %v5208
      %v5210 = vmul.f32 %v5198, 3.8918573e-05
      %v5211 = vadd.f32 %v5210, 0.001143296
      %v5212 = vmul.f32 %v5198, %v5211
      %v5213 = vadd.f32 %v5212, 0.014752088
      %v5214 = vmul.f32 %v5198, %v5213
      %v5215 = vadd.f32 %v5214, 0.112945676
      %v5216 = vmul.f32 %v5198, %v5215
      %v5217 = vadd.f32 %v5216, 0.4994258
      %v5218 = vmul.f32 %v5198, %v5217
      %v5219 = vadd.f32 %v5218, 1.0
      %v5220 = vrcp.pop %v5219
      %v5221 = vmul.f32 %v5219, %v5220
      %v5222 = vsub.f32 1.0, %v5221
      %v5223 = vmul.f32 %v5220, %v5222
      %v5224 = vadd.f32 %v5220, %v5223
      %vm5225 = vweird.f32 %v5219
      %vm5226 = vweird.f32 %v5220
      %vm5227 = vmor %vm5225, %vm5226
      %v5228 = vsel %vm5227, %v5220, %v5224
      %v5229 = vand.u32 2147483647, %v5219
      %vm5230 = vcmp.eq.f32.partialorder %v5229, 8.507059e+37
      %v5231 = vand.u32 %v5219, 2147483648
      %v5232 = vor.u32 1.1754944e-38, %v5231
      %v5233 = vsel %vm5230, %v5232, %v5228
      %v5234 = vmul.f32 %v5209, %v5233
      %v5235 = vmin.f32 %v5234, 1.0
      %v5236 = vmax.f32 %v5235, -1.0
      %v5237 = vmul.f32 %v4464, %v4464
      %v5238 = vmin.f32 16.0, %v5237
      %v5239 = vmul.f32 %v5238, 2.1237322e-06
      %v5240 = vadd.f32 %v5239, 0.00028619796
      %v5241 = vmul.f32 %v5238, %v5240
      %v5242 = vadd.f32 %v5241, 0.0036580483
      %v5243 = vmul.f32 %v5238, %v5242
      %v5244 = vadd.f32 %v5243, 0.05243302
      %v5245 = vmul.f32 %v5238, %v5244
      %v5246 = vadd.f32 %v5245, 0.18741608
      %v5247 = vmul.f32 %v5238, %v5246
      %v5248 = vadd.f32 %v5247, 1.1283791
      %v5249 = vmul.f32 %v4464, %v5248
      %v5250 = vmul.f32 %v5238, 3.8918573e-05
      %v5251 = vadd.f32 %v5250, 0.001143296
      %v5252 = vmul.f32 %v5238, %v5251
      %v5253 = vadd.f32 %v5252, 0.014752088
      %v5254 = vmul.f32 %v5238, %v5253
      %v5255 = vadd.f32 %v5254, 0.112945676
      %v5256 = vmul.f32 %v5238, %v5255
      %v5257 = vadd.f32 %v5256, 0.4994258
      %v5258 = vmul.f32 %v5238, %v5257
      %v5259 = vadd.f32 %v5258, 1.0
      %v5260 = vrcp.pop %v5259
      %v5261 = vmul.f32 %v5259, %v5260
      %v5262 = vsub.f32 1.0, %v5261
      %v5263 = vmul.f32 %v5260, %v5262
      %v5264 = vadd.f32 %v5260, %v5263
      %vm5265 = vweird.f32 %v5259
      %vm5266 = vweird.f32 %v5260
      %vm5267 = vmor %vm5265, %vm5266
      %v5268 = vsel %vm5267, %v5260, %v5264
      %v5269 = vand.u32 2147483647, %v5259
      %vm5270 = vcmp.eq.f32.partialorder %v5269, 8.507059e+37
      %v5271 = vand.u32 %v5259, 2147483648
      %v5272 = vor.u32 1.1754944e-38, %v5271
      %v5273 = vsel %vm5270, %v5272, %v5268
      %v5274 = vmul.f32 %v5249, %v5273
      %v5275 = vmin.f32 %v5274, 1.0
      %v5276 = vmax.f32 %v5275, -1.0
      %v5277 = vmul.f32 %v4465, %v4465
      %v5278 = vmin.f32 16.0, %v5277
      %v5279 = vmul.f32 %v5278, 2.1237322e-06
      %v5280 = vadd.f32 %v5279, 0.00028619796
      %v5281 = vmul.f32 %v5278, %v5280
      %v5282 = vadd.f32 %v5281, 0.0036580483
      %v5283 = vmul.f32 %v5278, %v5282
      %v5284 = vadd.f32 %v5283, 0.05243302
      %v5285 = vmul.f32 %v5278, %v5284
      %v5286 = vadd.f32 %v5285, 0.18741608
      %v5287 = vmul.f32 %v5278, %v5286
      %v5288 = vadd.f32 %v5287, 1.1283791
      %v5289 = vmul.f32 %v4465, %v5288
      %v5290 = vmul.f32 %v5278, 3.8918573e-05
      %v5291 = vadd.f32 %v5290, 0.001143296
      %v5292 = vmul.f32 %v5278, %v5291
      %v5293 = vadd.f32 %v5292, 0.014752088
      %v5294 = vmul.f32 %v5278, %v5293
      %v5295 = vadd.f32 %v5294, 0.112945676
      %v5296 = vmul.f32 %v5278, %v5295
      %v5297 = vadd.f32 %v5296, 0.4994258
      %v5298 = vmul.f32 %v5278, %v5297
      %v5299 = vadd.f32 %v5298, 1.0
      %v5300 = vrcp.pop %v5299
      %v5301 = vmul.f32 %v5299, %v5300
      %v5302 = vsub.f32 1.0, %v5301
      %v5303 = vmul.f32 %v5300, %v5302
      %v5304 = vadd.f32 %v5300, %v5303
      %vm5305 = vweird.f32 %v5299
      %vm5306 = vweird.f32 %v5300
      %vm5307 = vmor %vm5305, %vm5306
      %v5308 = vsel %vm5307, %v5300, %v5304
      %v5309 = vand.u32 2147483647, %v5299
      %vm5310 = vcmp.eq.f32.partialorder %v5309, 8.507059e+37
      %v5311 = vand.u32 %v5299, 2147483648
      %v5312 = vor.u32 1.1754944e-38, %v5311
      %v5313 = vsel %vm5310, %v5312, %v5308
      %v5314 = vmul.f32 %v5289, %v5313
      %v5315 = vmin.f32 %v5314, 1.0
      %v5316 = vmax.f32 %v5315, -1.0
      %v5317 = vmul.f32 %v4466, %v4466
      %v5318 = vmin.f32 16.0, %v5317
      %v5319 = vmul.f32 %v5318, 2.1237322e-06
      %v5320 = vadd.f32 %v5319, 0.00028619796
      %v5321 = vmul.f32 %v5318, %v5320
      %v5322 = vadd.f32 %v5321, 0.0036580483
      %v5323 = vmul.f32 %v5318, %v5322
      %v5324 = vadd.f32 %v5323, 0.05243302
      %v5325 = vmul.f32 %v5318, %v5324
      %v5326 = vadd.f32 %v5325, 0.18741608
      %v5327 = vmul.f32 %v5318, %v5326
      %v5328 = vadd.f32 %v5327, 1.1283791
      %v5329 = vmul.f32 %v4466, %v5328
      %v5330 = vmul.f32 %v5318, 3.8918573e-05
      %v5331 = vadd.f32 %v5330, 0.001143296
      %v5332 = vmul.f32 %v5318, %v5331
      %v5333 = vadd.f32 %v5332, 0.014752088
      %v5334 = vmul.f32 %v5318, %v5333
      %v5335 = vadd.f32 %v5334, 0.112945676
      %v5336 = vmul.f32 %v5318, %v5335
      %v5337 = vadd.f32 %v5336, 0.4994258
      %v5338 = vmul.f32 %v5318, %v5337
      %v5339 = vadd.f32 %v5338, 1.0
      %v5340 = vrcp.pop %v5339
      %v5341 = vmul.f32 %v5339, %v5340
      %v5342 = vsub.f32 1.0, %v5341
      %v5343 = vmul.f32 %v5340, %v5342
      %v5344 = vadd.f32 %v5340, %v5343
      %vm5345 = vweird.f32 %v5339
      %vm5346 = vweird.f32 %v5340
      %vm5347 = vmor %vm5345, %vm5346
      %v5348 = vsel %vm5347, %v5340, %v5344
      %v5349 = vand.u32 2147483647, %v5339
      %vm5350 = vcmp.eq.f32.partialorder %v5349, 8.507059e+37
      %v5351 = vand.u32 %v5339, 2147483648
      %v5352 = vor.u32 1.1754944e-38, %v5351
      %v5353 = vsel %vm5350, %v5352, %v5348
      %v5354 = vmul.f32 %v5329, %v5353
      %v5355 = vmin.f32 %v5354, 1.0
      %v5356 = vmax.f32 %v5355, -1.0
      %v5357 = vmul.f32 %v4467, %v4467
      %v5358 = vmin.f32 16.0, %v5357
      %v5359 = vmul.f32 %v5358, 2.1237322e-06
      %v5360 = vadd.f32 %v5359, 0.00028619796
      %v5361 = vmul.f32 %v5358, %v5360
      %v5362 = vadd.f32 %v5361, 0.0036580483
      %v5363 = vmul.f32 %v5358, %v5362
      %v5364 = vadd.f32 %v5363, 0.05243302
      %v5365 = vmul.f32 %v5358, %v5364
      %v5366 = vadd.f32 %v5365, 0.18741608
      %v5367 = vmul.f32 %v5358, %v5366
      %v5368 = vadd.f32 %v5367, 1.1283791
      %v5369 = vmul.f32 %v4467, %v5368
      %v5370 = vmul.f32 %v5358, 3.8918573e-05
      %v5371 = vadd.f32 %v5370, 0.001143296
      %v5372 = vmul.f32 %v5358, %v5371
      %v5373 = vadd.f32 %v5372, 0.014752088
      %v5374 = vmul.f32 %v5358, %v5373
      %v5375 = vadd.f32 %v5374, 0.112945676
      %v5376 = vmul.f32 %v5358, %v5375
      %v5377 = vadd.f32 %v5376, 0.4994258
      %v5378 = vmul.f32 %v5358, %v5377
      %v5379 = vadd.f32 %v5378, 1.0
      %v5380 = vrcp.pop %v5379
      %v5381 = vmul.f32 %v5379, %v5380
      %v5382 = vsub.f32 1.0, %v5381
      %v5383 = vmul.f32 %v5380, %v5382
      %v5384 = vadd.f32 %v5380, %v5383
      %vm5385 = vweird.f32 %v5379
      %vm5386 = vweird.f32 %v5380
      %vm5387 = vmor %vm5385, %vm5386
      %v5388 = vsel %vm5387, %v5380, %v5384
      %v5389 = vand.u32 2147483647, %v5379
      %vm5390 = vcmp.eq.f32.partialorder %v5389, 8.507059e+37
      %v5391 = vand.u32 %v5379, 2147483648
      %v5392 = vor.u32 1.1754944e-38, %v5391
      %v5393 = vsel %vm5390, %v5392, %v5388
      %v5394 = vmul.f32 %v5369, %v5393
      %v5395 = vmin.f32 %v5394, 1.0
      %v5396 = vmax.f32 %v5395, -1.0
      %v5397 = vmul.f32 %v4468, %v4468
      %v5398 = vmin.f32 16.0, %v5397
      %v5399 = vmul.f32 %v5398, 2.1237322e-06
      %v5400 = vadd.f32 %v5399, 0.00028619796
      %v5401 = vmul.f32 %v5398, %v5400
      %v5402 = vadd.f32 %v5401, 0.0036580483
      %v5403 = vmul.f32 %v5398, %v5402
      %v5404 = vadd.f32 %v5403, 0.05243302
      %v5405 = vmul.f32 %v5398, %v5404
      %v5406 = vadd.f32 %v5405, 0.18741608
      %v5407 = vmul.f32 %v5398, %v5406
      %v5408 = vadd.f32 %v5407, 1.1283791
      %v5409 = vmul.f32 %v4468, %v5408
      %v5410 = vmul.f32 %v5398, 3.8918573e-05
      %v5411 = vadd.f32 %v5410, 0.001143296
      %v5412 = vmul.f32 %v5398, %v5411
      %v5413 = vadd.f32 %v5412, 0.014752088
      %v5414 = vmul.f32 %v5398, %v5413
      %v5415 = vadd.f32 %v5414, 0.112945676
      %v5416 = vmul.f32 %v5398, %v5415
      %v5417 = vadd.f32 %v5416, 0.4994258
      %v5418 = vmul.f32 %v5398, %v5417
      %v5419 = vadd.f32 %v5418, 1.0
      %v5420 = vrcp.pop %v5419
      %v5421 = vmul.f32 %v5419, %v5420
      %v5422 = vsub.f32 1.0, %v5421
      %v5423 = vmul.f32 %v5420, %v5422
      %v5424 = vadd.f32 %v5420, %v5423
      %vm5425 = vweird.f32 %v5419
      %vm5426 = vweird.f32 %v5420
      %vm5427 = vmor %vm5425, %vm5426
      %v5428 = vsel %vm5427, %v5420, %v5424
      %v5429 = vand.u32 2147483647, %v5419
      %vm5430 = vcmp.eq.f32.partialorder %v5429, 8.507059e+37
      %v5431 = vand.u32 %v5419, 2147483648
      %v5432 = vor.u32 1.1754944e-38, %v5431
      %v5433 = vsel %vm5430, %v5432, %v5428
      %v5434 = vmul.f32 %v5409, %v5433
      %v5435 = vmin.f32 %v5434, 1.0
      %v5436 = vmax.f32 %v5435, -1.0
      %v5437 = vmul.f32 %v4469, %v4469
      %v5438 = vmin.f32 16.0, %v5437
      %v5439 = vmul.f32 %v5438, 2.1237322e-06
      %v5440 = vadd.f32 %v5439, 0.00028619796
      %v5441 = vmul.f32 %v5438, %v5440
      %v5442 = vadd.f32 %v5441, 0.0036580483
      %v5443 = vmul.f32 %v5438, %v5442
      %v5444 = vadd.f32 %v5443, 0.05243302
      %v5445 = vmul.f32 %v5438, %v5444
      %v5446 = vadd.f32 %v5445, 0.18741608
      %v5447 = vmul.f32 %v5438, %v5446
      %v5448 = vadd.f32 %v5447, 1.1283791
      %v5449 = vmul.f32 %v4469, %v5448
      %v5450 = vmul.f32 %v5438, 3.8918573e-05
      %v5451 = vadd.f32 %v5450, 0.001143296
      %v5452 = vmul.f32 %v5438, %v5451
      %v5453 = vadd.f32 %v5452, 0.014752088
      %v5454 = vmul.f32 %v5438, %v5453
      %v5455 = vadd.f32 %v5454, 0.112945676
      %v5456 = vmul.f32 %v5438, %v5455
      %v5457 = vadd.f32 %v5456, 0.4994258
      %v5458 = vmul.f32 %v5438, %v5457
      %v5459 = vadd.f32 %v5458, 1.0
      %v5460 = vrcp.pop %v5459
      %v5461 = vmul.f32 %v5459, %v5460
      %v5462 = vsub.f32 1.0, %v5461
      %v5463 = vmul.f32 %v5460, %v5462
      %v5464 = vadd.f32 %v5460, %v5463
      %vm5465 = vweird.f32 %v5459
      %vm5466 = vweird.f32 %v5460
      %vm5467 = vmor %vm5465, %vm5466
      %v5468 = vsel %vm5467, %v5460, %v5464
      %v5469 = vand.u32 2147483647, %v5459
      %vm5470 = vcmp.eq.f32.partialorder %v5469, 8.507059e+37
      %v5471 = vand.u32 %v5459, 2147483648
      %v5472 = vor.u32 1.1754944e-38, %v5471
      %v5473 = vsel %vm5470, %v5472, %v5468
      %v5474 = vmul.f32 %v5449, %v5473
      %v5475 = vmin.f32 %v5474, 1.0
      %v5476 = vmax.f32 %v5475, -1.0
      %v5477 = vmul.f32 %v4470, %v4470
      %v5478 = vmin.f32 16.0, %v5477
      %v5479 = vmul.f32 %v5478, 2.1237322e-06
      %v5480 = vadd.f32 %v5479, 0.00028619796
      %v5481 = vmul.f32 %v5478, %v5480
      %v5482 = vadd.f32 %v5481, 0.0036580483
      %v5483 = vmul.f32 %v5478, %v5482
      %v5484 = vadd.f32 %v5483, 0.05243302
      %v5485 = vmul.f32 %v5478, %v5484
      %v5486 = vadd.f32 %v5485, 0.18741608
      %v5487 = vmul.f32 %v5478, %v5486
      %v5488 = vadd.f32 %v5487, 1.1283791
      %v5489 = vmul.f32 %v4470, %v5488
      %v5490 = vmul.f32 %v5478, 3.8918573e-05
      %v5491 = vadd.f32 %v5490, 0.001143296
      %v5492 = vmul.f32 %v5478, %v5491
      %v5493 = vadd.f32 %v5492, 0.014752088
      %v5494 = vmul.f32 %v5478, %v5493
      %v5495 = vadd.f32 %v5494, 0.112945676
      %v5496 = vmul.f32 %v5478, %v5495
      %v5497 = vadd.f32 %v5496, 0.4994258
      %v5498 = vmul.f32 %v5478, %v5497
      %v5499 = vadd.f32 %v5498, 1.0
      %v5500 = vrcp.pop %v5499
      %v5501 = vmul.f32 %v5499, %v5500
      %v5502 = vsub.f32 1.0, %v5501
      %v5503 = vmul.f32 %v5500, %v5502
      %v5504 = vadd.f32 %v5500, %v5503
      %vm5505 = vweird.f32 %v5499
      %vm5506 = vweird.f32 %v5500
      %vm5507 = vmor %vm5505, %vm5506
      %v5508 = vsel %vm5507, %v5500, %v5504
      %v5509 = vand.u32 2147483647, %v5499
      %vm5510 = vcmp.eq.f32.partialorder %v5509, 8.507059e+37
      %v5511 = vand.u32 %v5499, 2147483648
      %v5512 = vor.u32 1.1754944e-38, %v5511
      %v5513 = vsel %vm5510, %v5512, %v5508
      %v5514 = vmul.f32 %v5489, %v5513
      %v5515 = vmin.f32 %v5514, 1.0
      %v5516 = vmax.f32 %v5515, -1.0
      %v5517 = vmul.f32 %v4471, %v4471
      %v5518 = vmin.f32 16.0, %v5517
      %v5519 = vmul.f32 %v5518, 2.1237322e-06
      %v5520 = vadd.f32 %v5519, 0.00028619796
      %v5521 = vmul.f32 %v5518, %v5520
      %v5522 = vadd.f32 %v5521, 0.0036580483
      %v5523 = vmul.f32 %v5518, %v5522
      %v5524 = vadd.f32 %v5523, 0.05243302
      %v5525 = vmul.f32 %v5518, %v5524
      %v5526 = vadd.f32 %v5525, 0.18741608
      %v5527 = vmul.f32 %v5518, %v5526
      %v5528 = vadd.f32 %v5527, 1.1283791
      %v5529 = vmul.f32 %v4471, %v5528
      %v5530 = vmul.f32 %v5518, 3.8918573e-05
      %v5531 = vadd.f32 %v5530, 0.001143296
      %v5532 = vmul.f32 %v5518, %v5531
      %v5533 = vadd.f32 %v5532, 0.014752088
      %v5534 = vmul.f32 %v5518, %v5533
      %v5535 = vadd.f32 %v5534, 0.112945676
      %v5536 = vmul.f32 %v5518, %v5535
      %v5537 = vadd.f32 %v5536, 0.4994258
      %v5538 = vmul.f32 %v5518, %v5537
      %v5539 = vadd.f32 %v5538, 1.0
      %v5540 = vrcp.pop %v5539
      %v5541 = vmul.f32 %v5539, %v5540
      %v5542 = vsub.f32 1.0, %v5541
      %v5543 = vmul.f32 %v5540, %v5542
      %v5544 = vadd.f32 %v5540, %v5543
      %vm5545 = vweird.f32 %v5539
      %vm5546 = vweird.f32 %v5540
      %vm5547 = vmor %vm5545, %vm5546
      %v5548 = vsel %vm5547, %v5540, %v5544
      %v5549 = vand.u32 2147483647, %v5539
      %vm5550 = vcmp.eq.f32.partialorder %v5549, 8.507059e+37
      %v5551 = vand.u32 %v5539, 2147483648
      %v5552 = vor.u32 1.1754944e-38, %v5551
      %v5553 = vsel %vm5550, %v5552, %v5548
      %v5554 = vmul.f32 %v5529, %v5553
      %v5555 = vmin.f32 %v5554, 1.0
      %v5556 = vmax.f32 %v5555, -1.0
      %v5557 = vmul.f32 %v4472, %v4472
      %v5558 = vmin.f32 16.0, %v5557
      %v5559 = vmul.f32 %v5558, 2.1237322e-06
      %v5560 = vadd.f32 %v5559, 0.00028619796
      %v5561 = vmul.f32 %v5558, %v5560
      %v5562 = vadd.f32 %v5561, 0.0036580483
      %v5563 = vmul.f32 %v5558, %v5562
      %v5564 = vadd.f32 %v5563, 0.05243302
      %v5565 = vmul.f32 %v5558, %v5564
      %v5566 = vadd.f32 %v5565, 0.18741608
      %v5567 = vmul.f32 %v5558, %v5566
      %v5568 = vadd.f32 %v5567, 1.1283791
      %v5569 = vmul.f32 %v4472, %v5568
      %v5570 = vmul.f32 %v5558, 3.8918573e-05
      %v5571 = vadd.f32 %v5570, 0.001143296
      %v5572 = vmul.f32 %v5558, %v5571
      %v5573 = vadd.f32 %v5572, 0.014752088
      %v5574 = vmul.f32 %v5558, %v5573
      %v5575 = vadd.f32 %v5574, 0.112945676
      %v5576 = vmul.f32 %v5558, %v5575
      %v5577 = vadd.f32 %v5576, 0.4994258
      %v5578 = vmul.f32 %v5558, %v5577
      %v5579 = vadd.f32 %v5578, 1.0
      %v5580 = vrcp.pop %v5579
      %v5581 = vmul.f32 %v5579, %v5580
      %v5582 = vsub.f32 1.0, %v5581
      %v5583 = vmul.f32 %v5580, %v5582
      %v5584 = vadd.f32 %v5580, %v5583
      %vm5585 = vweird.f32 %v5579
      %vm5586 = vweird.f32 %v5580
      %vm5587 = vmor %vm5585, %vm5586
      %v5588 = vsel %vm5587, %v5580, %v5584
      %v5589 = vand.u32 2147483647, %v5579
      %vm5590 = vcmp.eq.f32.partialorder %v5589, 8.507059e+37
      %v5591 = vand.u32 %v5579, 2147483648
      %v5592 = vor.u32 1.1754944e-38, %v5591
      %v5593 = vsel %vm5590, %v5592, %v5588
      %v5594 = vmul.f32 %v5569, %v5593
      %v5595 = vmin.f32 %v5594, 1.0
      %v5596 = vmax.f32 %v5595, -1.0
      %v5597 = vmul.f32 %v4473, %v4473
      %v5598 = vmin.f32 16.0, %v5597
      %v5599 = vmul.f32 %v5598, 2.1237322e-06
      %v5600 = vadd.f32 %v5599, 0.00028619796
      %v5601 = vmul.f32 %v5598, %v5600
      %v5602 = vadd.f32 %v5601, 0.0036580483
      %v5603 = vmul.f32 %v5598, %v5602
      %v5604 = vadd.f32 %v5603, 0.05243302
      %v5605 = vmul.f32 %v5598, %v5604
      %v5606 = vadd.f32 %v5605, 0.18741608
      %v5607 = vmul.f32 %v5598, %v5606
      %v5608 = vadd.f32 %v5607, 1.1283791
      %v5609 = vmul.f32 %v4473, %v5608
      %v5610 = vmul.f32 %v5598, 3.8918573e-05
      %v5611 = vadd.f32 %v5610, 0.001143296
      %v5612 = vmul.f32 %v5598, %v5611
      %v5613 = vadd.f32 %v5612, 0.014752088
      %v5614 = vmul.f32 %v5598, %v5613
      %v5615 = vadd.f32 %v5614, 0.112945676
      %v5616 = vmul.f32 %v5598, %v5615
      %v5617 = vadd.f32 %v5616, 0.4994258
      %v5618 = vmul.f32 %v5598, %v5617
      %v5619 = vadd.f32 %v5618, 1.0
      %v5620 = vrcp.pop %v5619
      %v5621 = vmul.f32 %v5619, %v5620
      %v5622 = vsub.f32 1.0, %v5621
      %v5623 = vmul.f32 %v5620, %v5622
      %v5624 = vadd.f32 %v5620, %v5623
      %vm5625 = vweird.f32 %v5619
      %vm5626 = vweird.f32 %v5620
      %vm5627 = vmor %vm5625, %vm5626
      %v5628 = vsel %vm5627, %v5620, %v5624
      %v5629 = vand.u32 2147483647, %v5619
      %vm5630 = vcmp.eq.f32.partialorder %v5629, 8.507059e+37
      %v5631 = vand.u32 %v5619, 2147483648
      %v5632 = vor.u32 1.1754944e-38, %v5631
      %v5633 = vsel %vm5630, %v5632, %v5628
      %v5634 = vmul.f32 %v5609, %v5633
      %v5635 = vmin.f32 %v5634, 1.0
      %v5636 = vmax.f32 %v5635, -1.0
      %v5637 = vmul.f32 %v4474, %v4474
      %v5638 = vmin.f32 16.0, %v5637
      %v5639 = vmul.f32 %v5638, 2.1237322e-06
      %v5640 = vadd.f32 %v5639, 0.00028619796
      %v5641 = vmul.f32 %v5638, %v5640
      %v5642 = vadd.f32 %v5641, 0.0036580483
      %v5643 = vmul.f32 %v5638, %v5642
      %v5644 = vadd.f32 %v5643, 0.05243302
      %v5645 = vmul.f32 %v5638, %v5644
      %v5646 = vadd.f32 %v5645, 0.18741608
      %v5647 = vmul.f32 %v5638, %v5646
      %v5648 = vadd.f32 %v5647, 1.1283791
      %v5649 = vmul.f32 %v4474, %v5648
      %v5650 = vmul.f32 %v5638, 3.8918573e-05
      %v5651 = vadd.f32 %v5650, 0.001143296
      %v5652 = vmul.f32 %v5638, %v5651
      %v5653 = vadd.f32 %v5652, 0.014752088
      %v5654 = vmul.f32 %v5638, %v5653
      %v5655 = vadd.f32 %v5654, 0.112945676
      %v5656 = vmul.f32 %v5638, %v5655
      %v5657 = vadd.f32 %v5656, 0.4994258
      %v5658 = vmul.f32 %v5638, %v5657
      %v5659 = vadd.f32 %v5658, 1.0
      %v5660 = vrcp.pop %v5659
      %v5661 = vmul.f32 %v5659, %v5660
      %v5662 = vsub.f32 1.0, %v5661
      %v5663 = vmul.f32 %v5660, %v5662
      %v5664 = vadd.f32 %v5660, %v5663
      %vm5665 = vweird.f32 %v5659
      %vm5666 = vweird.f32 %v5660
      %vm5667 = vmor %vm5665, %vm5666
      %v5668 = vsel %vm5667, %v5660, %v5664
      %v5669 = vand.u32 2147483647, %v5659
      %vm5670 = vcmp.eq.f32.partialorder %v5669, 8.507059e+37
      %v5671 = vand.u32 %v5659, 2147483648
      %v5672 = vor.u32 1.1754944e-38, %v5671
      %v5673 = vsel %vm5670, %v5672, %v5668
      %v5674 = vmul.f32 %v5649, %v5673
      %v5675 = vmin.f32 %v5674, 1.0
      %v5676 = vmax.f32 %v5675, -1.0
      %v5677 = vmul.f32 %v4475, %v4475
      %v5678 = vmin.f32 16.0, %v5677
      %v5679 = vmul.f32 %v5678, 2.1237322e-06
      %v5680 = vadd.f32 %v5679, 0.00028619796
      %v5681 = vmul.f32 %v5678, %v5680
      %v5682 = vadd.f32 %v5681, 0.0036580483
      %v5683 = vmul.f32 %v5678, %v5682
      %v5684 = vadd.f32 %v5683, 0.05243302
      %v5685 = vmul.f32 %v5678, %v5684
      %v5686 = vadd.f32 %v5685, 0.18741608
      %v5687 = vmul.f32 %v5678, %v5686
      %v5688 = vadd.f32 %v5687, 1.1283791
      %v5689 = vmul.f32 %v4475, %v5688
      %v5690 = vmul.f32 %v5678, 3.8918573e-05
      %v5691 = vadd.f32 %v5690, 0.001143296
      %v5692 = vmul.f32 %v5678, %v5691
      %v5693 = vadd.f32 %v5692, 0.014752088
      %v5694 = vmul.f32 %v5678, %v5693
      %v5695 = vadd.f32 %v5694, 0.112945676
      %v5696 = vmul.f32 %v5678, %v5695
      %v5697 = vadd.f32 %v5696, 0.4994258
      %v5698 = vmul.f32 %v5678, %v5697
      %v5699 = vadd.f32 %v5698, 1.0
      %v5700 = vrcp.pop %v5699
      %v5701 = vmul.f32 %v5699, %v5700
      %v5702 = vsub.f32 1.0, %v5701
      %v5703 = vmul.f32 %v5700, %v5702
      %v5704 = vadd.f32 %v5700, %v5703
      %vm5705 = vweird.f32 %v5699
      %vm5706 = vweird.f32 %v5700
      %vm5707 = vmor %vm5705, %vm5706
      %v5708 = vsel %vm5707, %v5700, %v5704
      %v5709 = vand.u32 2147483647, %v5699
      %vm5710 = vcmp.eq.f32.partialorder %v5709, 8.507059e+37
      %v5711 = vand.u32 %v5699, 2147483648
      %v5712 = vor.u32 1.1754944e-38, %v5711
      %v5713 = vsel %vm5710, %v5712, %v5708
      %v5714 = vmul.f32 %v5689, %v5713
      %v5715 = vmin.f32 %v5714, 1.0
      %v5716 = vmax.f32 %v5715, -1.0
      %v5717 = vmul.f32 %v4476, %v4476
      %v5718 = vmin.f32 16.0, %v5717
      %v5719 = vmul.f32 %v5718, 2.1237322e-06
      %v5720 = vadd.f32 %v5719, 0.00028619796
      %v5721 = vmul.f32 %v5718, %v5720
      %v5722 = vadd.f32 %v5721, 0.0036580483
      %v5723 = vmul.f32 %v5718, %v5722
      %v5724 = vadd.f32 %v5723, 0.05243302
      %v5725 = vmul.f32 %v5718, %v5724
      %v5726 = vadd.f32 %v5725, 0.18741608
      %v5727 = vmul.f32 %v5718, %v5726
      %v5728 = vadd.f32 %v5727, 1.1283791
      %v5729 = vmul.f32 %v4476, %v5728
      %v5730 = vmul.f32 %v5718, 3.8918573e-05
      %v5731 = vadd.f32 %v5730, 0.001143296
      %v5732 = vmul.f32 %v5718, %v5731
      %v5733 = vadd.f32 %v5732, 0.014752088
      %v5734 = vmul.f32 %v5718, %v5733
      %v5735 = vadd.f32 %v5734, 0.112945676
      %v5736 = vmul.f32 %v5718, %v5735
      %v5737 = vadd.f32 %v5736, 0.4994258
      %v5738 = vmul.f32 %v5718, %v5737
      %v5739 = vadd.f32 %v5738, 1.0
      %v5740 = vrcp.pop %v5739
      %v5741 = vmul.f32 %v5739, %v5740
      %v5742 = vsub.f32 1.0, %v5741
      %v5743 = vmul.f32 %v5740, %v5742
      %v5744 = vadd.f32 %v5740, %v5743
      %vm5745 = vweird.f32 %v5739
      %vm5746 = vweird.f32 %v5740
      %vm5747 = vmor %vm5745, %vm5746
      %v5748 = vsel %vm5747, %v5740, %v5744
      %v5749 = vand.u32 2147483647, %v5739
      %vm5750 = vcmp.eq.f32.partialorder %v5749, 8.507059e+37
      %v5751 = vand.u32 %v5739, 2147483648
      %v5752 = vor.u32 1.1754944e-38, %v5751
      %v5753 = vsel %vm5750, %v5752, %v5748
      %v5754 = vmul.f32 %v5729, %v5753
      %v5755 = vmin.f32 %v5754, 1.0
      %v5756 = vmax.f32 %v5755, -1.0
      %v5757 = vadd.f32 %v4516, 1.0
      %v5758 = vadd.f32 %v4556, 1.0
      %v5759 = vadd.f32 %v4596, 1.0
      %v5760 = vadd.f32 %v4636, 1.0
      %v5761 = vadd.f32 %v4676, 1.0
      %v5762 = vadd.f32 %v4716, 1.0
      %v5763 = vadd.f32 %v4756, 1.0
      %v5764 = vadd.f32 %v4796, 1.0
      %v5765 = vadd.f32 %v4836, 1.0
      %v5766 = vadd.f32 %v4876, 1.0
      %v5767 = vadd.f32 %v4916, 1.0
      %v5768 = vadd.f32 %v4956, 1.0
      %v5769 = vadd.f32 %v4996, 1.0
      %v5770 = vadd.f32 %v5036, 1.0
      %v5771 = vadd.f32 %v5076, 1.0
      %v5772 = vadd.f32 %v5116, 1.0
      %v5773 = vadd.f32 %v5156, 1.0
      %v5774 = vadd.f32 %v5196, 1.0
      %v5775 = vadd.f32 %v5236, 1.0
      %v5776 = vadd.f32 %v5276, 1.0
      %v5777 = vadd.f32 %v5316, 1.0
      %v5778 = vadd.f32 %v5356, 1.0
      %v5779 = vadd.f32 %v5396, 1.0
      %v5780 = vadd.f32 %v5436, 1.0
      %v5781 = vadd.f32 %v5476, 1.0
      %v5782 = vadd.f32 %v5516, 1.0
      %v5783 = vadd.f32 %v5556, 1.0
      %v5784 = vadd.f32 %v5596, 1.0
      %v5785 = vadd.f32 %v5636, 1.0
      %v5786 = vadd.f32 %v5676, 1.0
      %v5787 = vadd.f32 %v5716, 1.0
      %v5788 = vadd.f32 %v5756, 1.0
      %v5789 = vmul.f32 %v4413, %v5757
      %v5790 = vmul.f32 %v4414, %v5758
      %v5791 = vmul.f32 %v4415, %v5759
      %v5792 = vmul.f32 %v4416, %v5760
      %v5793 = vmul.f32 %v4417, %v5761
      %v5794 = vmul.f32 %v4418, %v5762
      %v5795 = vmul.f32 %v4419, %v5763
      %v5796 = vmul.f32 %v4420, %v5764
      %v5797 = vmul.f32 %v4421, %v5765
      %v5798 = vmul.f32 %v4422, %v5766
      %v5799 = vmul.f32 %v4423, %v5767
      %v5800 = vmul.f32 %v4424, %v5768
      %v5801 = vmul.f32 %v4425, %v5769
      %v5802 = vmul.f32 %v4426, %v5770
      %v5803 = vmul.f32 %v4427, %v5771
      %v5804 = vmul.f32 %v4428, %v5772
      %v5805 = vmul.f32 %v4429, %v5773
      %v5806 = vmul.f32 %v4430, %v5774
      %v5807 = vmul.f32 %v4431, %v5775
      %v5808 = vmul.f32 %v4432, %v5776
      %v5809 = vmul.f32 %v4433, %v5777
      %v5810 = vmul.f32 %v4434, %v5778
      %v5811 = vmul.f32 %v4435, %v5779
      %v5812 = vmul.f32 %v4436, %v5780
      %v5813 = vmul.f32 %v4437, %v5781
      %v5814 = vmul.f32 %v4438, %v5782
      %v5815 = vmul.f32 %v4439, %v5783
      %v5816 = vmul.f32 %v4440, %v5784
      %v5817 = vmul.f32 %v4441, %v5785
      %v5818 = vmul.f32 %v4442, %v5786
      %v5819 = vmul.f32 %v4443, %v5787
      %v5820 = vmul.f32 %v4444, %v5788
      %v5821 = vld [vmem:[%s23] sm:$0xf]
      %v5822 = vld [vmem:[%s23 + $0x4] sm:$0xf]
      %v5823 = vld [vmem:[%s23 + $0x8] sm:$0xf]
      %v5824 = vld [vmem:[%s23 + $0xc] sm:$0xf]
      %v5825 = vmul.f32 %v4245, %v5789
      %v5826 = vmul.f32 %v4334, %v5790
      %v5827 = vmul.f32 %v4247, %v5791
      %v5828 = vmul.f32 %v4336, %v5792
      %v5829 = vmul.f32 %v4250, %v5793
      %v5830 = vmul.f32 %v4339, %v5794
      %v5831 = vmul.f32 %v4252, %v5795
      %v5832 = vmul.f32 %v4341, %v5796
      %v5833 = vmul.f32 %v4255, %v5797
      %v5834 = vmul.f32 %v4344, %v5798
      %v5835 = vmul.f32 %v4257, %v5799
      %v5836 = vmul.f32 %v4346, %v5800
      %v5837 = vmul.f32 %v4260, %v5801
      %v5838 = vmul.f32 %v4349, %v5802
      %v5839 = vmul.f32 %v4262, %v5803
      %v5840 = vmul.f32 %v4351, %v5804
      %v5841 = vmul.f32 %v4265, %v5805
      %v5842 = vmul.f32 %v4354, %v5806
      %v5843 = vmul.f32 %v4267, %v5807
      %v5844 = vmul.f32 %v4356, %v5808
      %v5845 = vmul.f32 %v4270, %v5809
      %v5846 = vmul.f32 %v4359, %v5810
      %v5847 = vmul.f32 %v4272, %v5811
      %v5848 = vmul.f32 %v4361, %v5812
      %v5849 = vmul.f32 %v4275, %v5813
      %v5850 = vmul.f32 %v4364, %v5814
      %v5851 = vmul.f32 %v4277, %v5815
      %v5852 = vmul.f32 %v4366, %v5816
      %v5853 = vmul.f32 %v4280, %v5817
      %v5854 = vmul.f32 %v4369, %v5818
      %v5855 = vmul.f32 %v4282, %v5819
      %v5856 = vmul.f32 %v4371, %v5820
      %v5857 = vpack.c.bf16 %v5827, %v5825
      %v5858 = vpack.c.bf16 %v5828, %v5826
      %v5859 = vpack.c.bf16 %v5831, %v5829
      %v5860 = vpack.c.bf16 %v5832, %v5830
      %v5861 = vpack.c.bf16 %v5835, %v5833
      %v5862 = vpack.c.bf16 %v5836, %v5834
      %v5863 = vpack.c.bf16 %v5839, %v5837
      %v5864 = vpack.c.bf16 %v5840, %v5838
      %v5865 = vpack.c.bf16 %v5843, %v5841
      %v5866 = vpack.c.bf16 %v5844, %v5842
      %v5867 = vpack.c.bf16 %v5847, %v5845
      %v5868 = vpack.c.bf16 %v5848, %v5846
      %v5869 = vpack.c.bf16 %v5851, %v5849
      %v5870 = vpack.c.bf16 %v5852, %v5850
      %v5871 = vpack.c.bf16 %v5855, %v5853
      %v5872 = vpack.c.bf16 %v5856, %v5854
      %v5873 = vld [vmem:[%s24] sm:$0xff]
      %v5874 = vld [vmem:[%s24 + $0x8] sm:$0xff]
      %v5875 = vld [vmem:[%s24 + $0x10] sm:$0xff]
      %v5876 = vld [vmem:[%s24 + $0x18] sm:$0xff]
      %5878 = vset.pattern.permute.xlu0 0
      %5879 = vperm.xlu0 %5878, %v5873
      %v5880 = vpop.permute.xlu0 %5879
      %5883 = vset.pattern.permute.xlu0 0
      %5884 = vperm.xlu0 %5883, %v5874
      %v5885 = vpop.permute.xlu0 %5884
      %5888 = vset.pattern.permute.xlu0 0
      %5889 = vperm.xlu0 %5888, %v5875
      %v5890 = vpop.permute.xlu0 %5889
      %5893 = vset.pattern.permute.xlu0 0
      %5894 = vperm.xlu0 %5893, %v5876
      %v5895 = vpop.permute.xlu0 %5894
      %v5901 = vunpack.c.l.b16 %v5821
      %v5902 = vunpack.c.l.b16 %v5822
      %v5903 = vunpack.c.l.b16 %v5823
      %v5904 = vunpack.c.l.b16 %v5824
      %v5905 = vpack.c.b16 %v5902, %v5901
      %v5906 = vpack.c.b16 %v5904, %v5903
      %5909 = vmatpush.bf16.msra.mxu0 %v5871
      %5910 = vmatpush.bf16.msra.mxu0 %v5869
      %5911 = vmatpush.bf16.msra.mxu0 %v5867
      %5912 = vmatpush.bf16.msra.mxu0 %v5865
      %5913 = vmatpush.bf16.msra.mxu0 %v5863
      %5914 = vmatpush.bf16.msra.mxu0 %v5861
      %5915 = vmatpush.bf16.msra.mxu0 %v5859
      %5916 = vmatpush.bf16.msra.mxu0 %v5857
      %5917 = vmatmul.bf16.gmra.mxu0 %v5905
      %v5918 = vpop.f32.mrf.mxu0
      %v5919 = vadd.f32 %v5880, %v5918
      %v5920 = vpop.f32.mrf.mxu0
      %v5921 = vadd.f32 %v5885, %v5920
      %5922 = vmatmul.bf16.gmra.mxu0 %v5906
      %v5923 = vpop.f32.mrf.mxu0
      %v5924 = vadd.f32 %v5890, %v5923
      %v5925 = vpop.f32.mrf.mxu0
      %v5926 = vadd.f32 %v5895, %v5925
      %5927 = vdwg.mxu0
      %5928 = vmatpush.bf16.msra.mxu0 %v5872
      %5929 = vmatpush.bf16.msra.mxu0 %v5870
      %5930 = vmatpush.bf16.msra.mxu0 %v5868
      %5931 = vmatpush.bf16.msra.mxu0 %v5866
      %5932 = vmatpush.bf16.msra.mxu0 %v5864
      %5933 = vmatpush.bf16.msra.mxu0 %v5862
      %5934 = vmatpush.bf16.msra.mxu0 %v5860
      %5935 = vmatpush.bf16.msra.mxu0 %v5858
      %5936 = vmatmul.bf16.gmra.mxu0 %v5905
      %v5937 = vpop.f32.mrf.mxu0
      %v5938 = vadd.f32 %v5880, %v5937
      %v5939 = vpop.f32.mrf.mxu0
      %v5940 = vadd.f32 %v5885, %v5939
      %5941 = vmatmul.bf16.gmra.mxu0 %v5906
      %v5942 = vpop.f32.mrf.mxu0
      %v5943 = vadd.f32 %v5890, %v5942
      %v5944 = vpop.f32.mrf.mxu0
      %v5945 = vadd.f32 %v5895, %v5944
      %5946 = vdwg.mxu0
      %v5947 = vadd.f32 %v5919, %v3721
      %v5948 = vadd.f32 %v5938, %v3722
      %v5949 = vadd.f32 %v5921, %v3723
      %v5950 = vadd.f32 %v5940, %v3724
      %v5951 = vadd.f32 %v5924, %v3725
      %v5952 = vadd.f32 %v5943, %v3726
      %v5953 = vadd.f32 %v5926, %v3727
      %v5954 = vadd.f32 %v5945, %v3728
      %v5955 = vld [vmem:[%s25] sm:$0xf]
      %v5956 = vld [vmem:[%s25 + $0x4] sm:$0xf]
      %v5957 = vld [vmem:[%s25 + $0x8] sm:$0xf]
      %v5958 = vld [vmem:[%s25 + $0xc] sm:$0xf]
      %v5959 = vpack.c.bf16 %v5949, %v5947
      %v5960 = vpack.c.bf16 %v5950, %v5948
      %v5961 = vpack.c.bf16 %v5953, %v5951
      %v5962 = vpack.c.bf16 %v5954, %v5952
      %v5963 = vld [vmem:[%s26] sm:$0xff]
      %v5964 = vld [vmem:[%s26 + $0x8] sm:$0xff]
      %v5965 = vld [vmem:[%s26 + $0x10] sm:$0xff]
      %v5966 = vld [vmem:[%s26 + $0x18] sm:$0xff]
      %5968 = vset.pattern.permute.xlu0 0
      %5969 = vperm.xlu0 %5968, %v5963
      %v5970 = vpop.permute.xlu0 %5969
      %5973 = vset.pattern.permute.xlu0 0
      %5974 = vperm.xlu0 %5973, %v5964
      %v5975 = vpop.permute.xlu0 %5974
      %5978 = vset.pattern.permute.xlu0 0
      %5979 = vperm.xlu0 %5978, %v5965
      %v5980 = vpop.permute.xlu0 %5979
      %5983 = vset.pattern.permute.xlu0 0
      %5984 = vperm.xlu0 %5983, %v5966
      %v5985 = vpop.permute.xlu0 %5984
      %v5991 = vunpack.c.l.b16 %v5955
      %v5992 = vunpack.c.l.b16 %v5956
      %v5993 = vunpack.c.l.b16 %v5957
      %v5994 = vunpack.c.l.b16 %v5958
      %v5995 = vpack.c.b16 %v5992, %v5991
      %v5996 = vpack.c.b16 %v5994, %v5993
      %v5998 = vsel %vm1279, %v5995, 0
      %v6001 = vsel %vm1279, %v5996, 0
      %6003 = vmatpush.bf16.msra.mxu0 0
      %6004 = vmatpush.bf16.msra.mxu0 0
      %6005 = vmatpush.bf16.msra.mxu0 0
      %6006 = vmatpush.bf16.msra.mxu0 0
      %6007 = vmatpush.bf16.msra.mxu0 0
      %6008 = vmatpush.bf16.msra.mxu0 0
      %6009 = vmatpush.bf16.msra.mxu0 %v5961
      %6010 = vmatpush.bf16.msra.mxu0 %v5959
      %6011 = vmatmul.bf16.gmra.mxu0 %v5998
      %v6012 = vpop.f32.mrf.mxu0
      %v6013 = vadd.f32 %v5970, %v6012
      %v6014 = vpop.f32.mrf.mxu0
      %v6015 = vadd.f32 %v5975, %v6014
      %6016 = vmatmul.bf16.gmra.mxu0 %v6001
      %v6017 = vpop.f32.mrf.mxu0
      %v6018 = vadd.f32 %v5980, %v6017
      %v6019 = vpop.f32.mrf.mxu0
      %v6020 = vadd.f32 %v5985, %v6019
      %6021 = vdwg.mxu0
      %6022 = vmatpush.bf16.msra.mxu0 0
      %6023 = vmatpush.bf16.msra.mxu0 0
      %6024 = vmatpush.bf16.msra.mxu0 0
      %6025 = vmatpush.bf16.msra.mxu0 0
      %6026 = vmatpush.bf16.msra.mxu0 0
      %6027 = vmatpush.bf16.msra.mxu0 0
      %6028 = vmatpush.bf16.msra.mxu0 %v5962
      %6029 = vmatpush.bf16.msra.mxu0 %v5960
      %6030 = vmatmul.bf16.gmra.mxu0 %v5998
      %v6031 = vpop.f32.mrf.mxu0
      %v6032 = vadd.f32 %v5970, %v6031
      %v6033 = vpop.f32.mrf.mxu0
      %v6034 = vadd.f32 %v5975, %v6033
      %6035 = vmatmul.bf16.gmra.mxu0 %v6001
      %v6036 = vpop.f32.mrf.mxu0
      %v6037 = vadd.f32 %v5980, %v6036
      %v6038 = vpop.f32.mrf.mxu0
      %v6039 = vadd.f32 %v5985, %v6038
      %6040 = vdwg.mxu0
      %v6041 = vadd.f32 %v6013, %v840
      %v6042 = vadd.f32 %v6032, %v841
      %v6043 = vadd.f32 %v6015, %v842
      %v6044 = vadd.f32 %v6034, %v843
      %v6045 = vadd.f32 %v6018, %v844
      %v6046 = vadd.f32 %v6037, %v845
      %v6047 = vadd.f32 %v6020, %v846
      %v6048 = vadd.f32 %v6039, %v847
      %6049 = vst [vmem:[%s838] sm:$0xff] %v6041
      %6050 = vst [vmem:[%s838 + $0x8] sm:$0xff] %v6042
      %6051 = vst [vmem:[%s838 + $0x10] sm:$0xff] %v6043
      %6052 = vst [vmem:[%s838 + $0x18] sm:$0xff] %v6044
      %6053 = vst [vmem:[%s838 + $0x20] sm:$0xff] %v6045
      %6054 = vst [vmem:[%s838 + $0x28] sm:$0xff] %v6046
      %6055 = vst [vmem:[%s838 + $0x30] sm:$0xff] %v6047
      %6056 = vst [vmem:[%s838 + $0x38] sm:$0xff] %v6048
      %p6057 = scmp.lt.s32.totalorder %s38, 1
      %s6058 = scalar_select %p6057, %s38, 1
      %s6059 = smul.addr %s6058, 8
      %s6060 = smul.addr %s6059, 8
      %s6061 = scalar_lea.vmem %s27, %s6060
      // Predicated region
      $region129: #{spatial_transformer.1} parent=127 // pred_check
        %p6062 = pneg %p633
      $region130: #{spatial_transformer.1} parent=127 // pred_check_branch
        %6064 = sbr.rel (%p6062) target = $region132
      $region131: #{spatial_transformer.1} parent=127 // pred_region
        _
      $region132: #{spatial_transformer.1} parent=127 // pred_fallthru
        _
    $region128: #{spatial_transformer.1} parent=5 // pred_fallthru
      _
    %p6065 = scmp.le.s32.totalorder 2, %s33
    // Predicated region
    $region133: #{spatial_transformer.1} parent=5 // pred_check
      %p6066 = pneg %p6065
    $region134: #{spatial_transformer.1} parent=5 // pred_check_branch
      %6068 = sbr.rel (%p6066) target = $region136
    $region135: #{spatial_transformer.1} parent=5 // pred_region
      %s6069 = ssub.s32 %s33, 2
      // Predicated region
      $region137: #{spatial_transformer.1} parent=135 // pred_check
        %p6070 = pneg %p639
      $region138: #{spatial_transformer.1} parent=135 // pred_check_branch
        %6072 = sbr.rel (%p6070) target = $region140
      $region139: #{spatial_transformer.1} parent=135 // pred_region
        %p6073 = scmp.lt.s32.totalorder %s39, 1
        %s6074 = scalar_select %p6073, %s39, 1
        %s6075 = smul.addr %s6074, 8
        %s6076 = smul.addr %s6075, 8
        %s6077 = scalar_lea.vmem %s27, %s6076
      $region140: #{spatial_transformer.1} parent=135 // pred_fallthru
        _
    $region136: #{spatial_transformer.1} parent=5 // pred_fallthru
      _
  $region6: #{spatial_transformer.1} parent=0 // loop_footer
    %s37 = sadd.s32 1, %s33
  $region7: #{spatial_transformer.1} parent=0 // loop_footer_branch
    %32 = sbr.rel target = $region3
  $region8: #{spatial_transformer.1} parent=0 // loop_exit
    _

</llo_original>
